<compile_context>
chip_gen: v7x
topology: tpu7x:2x2x1
jax: 0.10.0
libtpu: 0.0.40
codegen_flags: <defaults>
</compile_context>

<pallas_src>
import functools
import math

import jax
import jax.numpy as jnp
from jax.experimental import pallas as pl
from jax.experimental.pallas import tpu as pltpu


DTYPE = jnp.bfloat16     # storage / MXU input dtype; all accumulation is f32
LN_EPS = 1e-5


def _pick_tile(dim, max_tile, unit):
    """Largest tile <= max_tile that divides dim; prefers the full dim, then
    multiples of 256, then multiples of `unit` (falls back to full dim)."""
    if dim <= max_tile:
        return dim
    for u in sorted({256, unit}, reverse=True):
        if u > max_tile:
            continue
        t = (max_tile // u) * u
        while t >= u:
            if dim % t == 0:
                return t
            t -= u
    return dim


def _ln(y, gamma_f32, beta_f32):
    """LayerNorm over the last dim, all in f32."""
    mean = jnp.mean(y, axis=-1, keepdims=True)
    var = jnp.mean(jnp.square(y - mean), axis=-1, keepdims=True)
    return (y - mean) * jax.lax.rsqrt(var + LN_EPS) * gamma_f32 + beta_f32


# ----------------------------------------------------------------------------
# Plain GEMM kernel (tiled grid, f32 VMEM accumulator, K-reduction last axis)
# ----------------------------------------------------------------------------
def _linear_kernel(x_ref, w_ref, b_ref, o_ref, acc_ref):
    k = pl.program_id(2)

    @pl.when(k == 0)
    def _():
        acc_ref[...] = jnp.zeros_like(acc_ref)

    acc_ref[...] += jnp.dot(x_ref[...], w_ref[...],
                            preferred_element_type=jnp.float32)

    @pl.when(k == pl.num_programs(2) - 1)
    def _():
        o_ref[...] = (acc_ref[...]
                      + b_ref[...].astype(jnp.float32)).astype(o_ref.dtype)


def linear(x, w, b, *, out_dtype=None, tm=256, tn=512, tk=512):
    """x: (M, K), w: (K, N) (input-major, i.e. torch W.T), b: (N,) -> (M, N)."""
    M, K = x.shape
    N = w.shape[1]
    out_dtype = x.dtype if out_dtype is None else out_dtype
    tm = _pick_tile(M, tm, 8)
    tn = _pick_tile(N, tn, 128)
    tk = _pick_tile(K, tk, 128)
    return pl.pallas_call(
        _linear_kernel,
        out_shape=jax.ShapeDtypeStruct((M, N), out_dtype),
        grid=(M // tm, N // tn, K // tk),
        in_specs=[
            pl.BlockSpec((tm, tk), lambda i, j, k: (i, k)),
            pl.BlockSpec((tk, tn), lambda i, j, k: (k, j)),
            pl.BlockSpec((1, tn), lambda i, j, k: (0, j)),
        ],
        out_specs=pl.BlockSpec((tm, tn), lambda i, j, k: (i, j)),
        scratch_shapes=[pltpu.VMEM((tm, tn), jnp.float32)],
        compiler_params=pltpu.CompilerParams(
            dimension_semantics=("parallel", "parallel", "arbitrary")),
    )(x, w, b.reshape(1, N))


# ----------------------------------------------------------------------------
# Fused FFN + residual + LayerNorm (hidden dim F tiled as the reduction axis)
# ----------------------------------------------------------------------------
def _ffn_ln_kernel(x_ref, w1_ref, b1_ref, w2_ref, b2_ref, g_ref, beta_ref,
                   o_ref, acc_ref):
    f = pl.program_id(1)

    @pl.when(f == 0)
    def _():
        acc_ref[...] = jnp.zeros_like(acc_ref)

    h = (jnp.dot(x_ref[...], w1_ref[...], preferred_element_type=jnp.float32)
         + b1_ref[...].astype(jnp.float32))
    h = jnp.maximum(h, 0.0).astype(x_ref.dtype)       # relu, back to MXU dtype
    acc_ref[...] += jnp.dot(h, w2_ref[...], preferred_element_type=jnp.float32)

    @pl.when(f == pl.num_programs(1) - 1)
    def _():
        y = (acc_ref[...] + b2_ref[...].astype(jnp.float32)
             + x_ref[...].astype(jnp.float32))          # residual = FFN input
        o_ref[...] = _ln(y, g_ref[...].astype(jnp.float32),
                         beta_ref[...].astype(jnp.float32)).astype(o_ref.dtype)


def ffn_ln(x, w1, b1, w2, b2, gamma, beta, *, tm=256, tf=512):
    """LayerNorm(relu(x @ w1 + b1) @ w2 + b2 + x)."""
    M, D = x.shape
    F = w1.shape[1]
    tm = _pick_tile(M, tm, 8)
    tf = _pick_tile(F, tf, 128)
    return pl.pallas_call(
        _ffn_ln_kernel,
        out_shape=jax.ShapeDtypeStruct((M, D), x.dtype),
        grid=(M // tm, F // tf),
        in_specs=[
            pl.BlockSpec((tm, D), lambda i, f: (i, 0)),
            pl.BlockSpec((D, tf), lambda i, f: (0, f)),
            pl.BlockSpec((1, tf), lambda i, f: (0, f)),
            pl.BlockSpec((tf, D), lambda i, f: (f, 0)),
            pl.BlockSpec((1, D), lambda i, f: (0, 0)),
            pl.BlockSpec((1, D), lambda i, f: (0, 0)),
            pl.BlockSpec((1, D), lambda i, f: (0, 0)),
        ],
        out_specs=pl.BlockSpec((tm, D), lambda i, f: (i, 0)),
        scratch_shapes=[pltpu.VMEM((tm, D), jnp.float32)],
        compiler_params=pltpu.CompilerParams(
            dimension_semantics=("parallel", "arbitrary")),
    )(x, w1, b1.reshape(1, F), w2, b2.reshape(1, D),
      gamma.reshape(1, D), beta.reshape(1, D))


# ----------------------------------------------------------------------------
# Fused attention sublayers: one batch element per grid step; QKV / Q / KV
# projections, per-head attention (bf16 MXU operands, f32 softmax), output
# projection (accumulated per head), residual add and LayerNorm all in VMEM.
# Weight blocks have constant block indices, so Pallas fetches them once.
# ----------------------------------------------------------------------------
def _attend_and_project(q, k, v, wo_ref, acc, nhead):
    """q/k/v: (Sq|Sk, D) bf16 (scale already folded into q). Accumulates the
    per-head attention outputs through the out-projection into f32 `acc`."""
    D = q.shape[-1]
    Dh = D // nhead
    for h in range(nhead):                        # static unrolled head loop
        lo, hi = h * Dh, (h + 1) * Dh
        s = jax.lax.dot_general(q[:, lo:hi], k[:, lo:hi],
                                (((1,), (1,)), ((), ())),
                                preferred_element_type=jnp.float32)
        s = s - jnp.max(s, axis=-1, keepdims=True)
        p = jnp.exp(s)                            # (Sq, Sk) f32
        l = jnp.sum(p, axis=-1, keepdims=True)
        oh = jnp.dot(p.astype(q.dtype), v[:, lo:hi],
                     preferred_element_type=jnp.float32) / l   # (Sq, Dh) f32
        acc = acc + jnp.dot(oh.astype(q.dtype), wo_ref[lo:hi, :],
                            preferred_element_type=jnp.float32)
    return acc


def _self_attn_sublayer_kernel(x_ref, wqkv_ref, bqkv_ref, wo_ref, bo_ref,
                               g_ref, beta_ref, o_ref, *, nhead):
    D = x_ref.shape[2]
    Dh = D // nhead
    scale = 1.0 / math.sqrt(Dh)
    x = x_ref[0]                                              # (S, D) bf16
    # fused QKV projection (bf16 operands, f32 accumulation)
    qkv = (jnp.dot(x, wqkv_ref[...], preferred_element_type=jnp.float32)
           + bqkv_ref[...].astype(jnp.float32))               # (S, 3D) f32
    q = (qkv[:, :D] * scale).astype(x.dtype)                  # scale folded in
    k = qkv[:, D:2 * D].astype(x.dtype)
    v = qkv[:, 2 * D:].astype(x.dtype)
    acc = x.astype(jnp.float32) + bo_ref[...].astype(jnp.float32)
    acc = _attend_and_project(q, k, v, wo_ref, acc, nhead)
    # post-norm: LayerNorm(x + SelfAttn(x))
    o_ref[0] = _ln(acc, g_ref[...].astype(jnp.float32),
                   beta_ref[...].astype(jnp.float32)).astype(o_ref.dtype)


def _cross_attn_sublayer_kernel(x_ref, mem_ref, wq_ref, bq_ref, wkv_ref,
                                bkv_ref, wo_ref, bo_ref, g_ref, beta_ref,
                                o_ref, *, nhead):
    D = x_ref.shape[2]
    Dh = D // nhead
    scale = 1.0 / math.sqrt(Dh)
    x = x_ref[0]                                              # (St, D) bf16
    m = mem_ref[0]                                            # (Ss, D) bf16
    q = ((jnp.dot(x, wq_ref[...], preferred_element_type=jnp.float32)
          + bq_ref[...].astype(jnp.float32)) * scale).astype(x.dtype)
    kv = (jnp.dot(m, wkv_ref[...], preferred_element_type=jnp.float32)
          + bkv_ref[...].astype(jnp.float32))                 # (Ss, 2D) f32
    k = kv[:, :D].astype(x.dtype)
    v = kv[:, D:].astype(x.dtype)
    acc = x.astype(jnp.float32) + bo_ref[...].astype(jnp.float32)
    acc = _attend_and_project(q, k, v, wo_ref, acc, nhead)
    o_ref[0] = _ln(acc, g_ref[...].astype(jnp.float32),
                   beta_ref[...].astype(jnp.float32)).astype(o_ref.dtype)


def self_attn_sublayer(x, wqkv, bqkv, wo, bo, gamma, beta, nhead):
    """LayerNorm(x + SelfAttention(x)) with packed Q|K|V projection, fused."""
    B, S, D = x.shape
    return pl.pallas_call(
        functools.partial(_self_attn_sublayer_kernel, nhead=nhead),
        out_shape=jax.ShapeDtypeStruct((B, S, D), x.dtype),
        grid=(B,),
        in_specs=[
            pl.BlockSpec((1, S, D), lambda b: (b, 0, 0)),
            pl.BlockSpec((D, 3 * D), lambda b: (0, 0)),
            pl.BlockSpec((1, 3 * D), lambda b: (0, 0)),
            pl.BlockSpec((D, D), lambda b: (0, 0)),
            pl.BlockSpec((1, D), lambda b: (0, 0)),
            pl.BlockSpec((1, D), lambda b: (0, 0)),
            pl.BlockSpec((1, D), lambda b: (0, 0)),
        ],
        out_specs=pl.BlockSpec((1, S, D), lambda b: (b, 0, 0)),
        compiler_params=pltpu.CompilerParams(dimension_semantics=("parallel",)),
    )(x, wqkv, bqkv.reshape(1, 3 * D), wo, bo.reshape(1, D),
      gamma.reshape(1, D), beta.reshape(1, D))


def cross_attn_sublayer(x, memory, wq, bq, wkv, bkv, wo, bo, gamma, beta,
                        nhead):
    """LayerNorm(x + CrossAttention(x, memory)) with packed K|V projection."""
    B, St, D = x.shape
    Ss = memory.shape[1]
    return pl.pallas_call(
        functools.partial(_cross_attn_sublayer_kernel, nhead=nhead),
        out_shape=jax.ShapeDtypeStruct((B, St, D), x.dtype),
        grid=(B,),
        in_specs=[
            pl.BlockSpec((1, St, D), lambda b: (b, 0, 0)),
            pl.BlockSpec((1, Ss, D), lambda b: (b, 0, 0)),
            pl.BlockSpec((D, D), lambda b: (0, 0)),
            pl.BlockSpec((1, D), lambda b: (0, 0)),
            pl.BlockSpec((D, 2 * D), lambda b: (0, 0)),
            pl.BlockSpec((1, 2 * D), lambda b: (0, 0)),
            pl.BlockSpec((D, D), lambda b: (0, 0)),
            pl.BlockSpec((1, D), lambda b: (0, 0)),
            pl.BlockSpec((1, D), lambda b: (0, 0)),
            pl.BlockSpec((1, D), lambda b: (0, 0)),
        ],
        out_specs=pl.BlockSpec((1, St, D), lambda b: (b, 0, 0)),
        compiler_params=pltpu.CompilerParams(dimension_semantics=("parallel",)),
    )(x, memory, wq, bq.reshape(1, D), wkv, bkv.reshape(1, 2 * D),
      wo, bo.reshape(1, D), gamma.reshape(1, D), beta.reshape(1, D))


# ----------------------------------------------------------------------------
# Model glue (plain JAX only for embedding gather and shape metadata)
# ----------------------------------------------------------------------------
def encoder_layer(x, p, nhead):
    B, S, D = x.shape
    sa = p["self_attn"]
    x1 = self_attn_sublayer(x, sa["wqkv"], sa["bqkv"], sa["wo"], sa["bo"],
                            p["ln1_g"], p["ln1_b"], nhead)
    x2 = ffn_ln(x1.reshape(B * S, D), p["w1"], p["b1"], p["w2"], p["b2"],
                p["ln2_g"], p["ln2_b"])
    return x2.reshape(B, S, D)


def decoder_layer(x, memory, p, nhead):
    # Note: no causal mask — matches the reference, which calls the decoder
    # without a tgt_mask.
    B, St, D = x.shape
    sa, ca = p["self_attn"], p["cross_attn"]
    x1 = self_attn_sublayer(x, sa["wqkv"], sa["bqkv"], sa["wo"], sa["bo"],
                            p["ln1_g"], p["ln1_b"], nhead)
    x2 = cross_attn_sublayer(x1, memory, ca["wq"], ca["bq"], ca["wkv"],
                             ca["bkv"], ca["wo"], ca["bo"],
                             p["ln2_g"], p["ln2_b"], nhead)
    x3 = ffn_ln(x2.reshape(B * St, D), p["w1"], p["b1"], p["w2"], p["b2"],
                p["ln3_g"], p["ln3_b"])
    return x3.reshape(B, St, D)


def transformer_forward(params, src, tgt, *, nhead, vocab_size):
    emb = params["embedding"]                       # (vocab, D)
    pos = params["pos"]                             # (1, 100, D)
    B, Ss = src.shape
    _, St = tgt.shape
    src_x = jnp.take(emb, src, axis=0) + pos[:, :Ss, :]
    tgt_x = jnp.take(emb, tgt, axis=0) + pos[:, :St, :]
    memory = src_x
    for lp in params["encoder"]:
        memory = encoder_layer(memory, lp, nhead)
    out = tgt_x
    for lp in params["decoder"]:
        out = decoder_layer(out, memory, lp, nhead)
    D = out.shape[-1]
    logits = linear(out.reshape(B * St, D), params["fc_w"], params["fc_b"],
                    out_dtype=jnp.float32)          # f32 logits
    logits = logits[:, :vocab_size]                 # strip 128-lane padding
    return logits.reshape(B, St, vocab_size)


# ----------------------------------------------------------------------------
# Deterministic parameter init. Weights stored input-major (in_dim, out_dim)
# so kernels compute x @ W + b; QKV / KV projections packed column-wise.
# ----------------------------------------------------------------------------
def _init_self_mha(key, d_model, dtype):
    k1, k2 = jax.random.split(key)
    s = 1.0 / math.sqrt(d_model)
    return dict(
        wqkv=(jax.random.normal(k1, (d_model, 3 * d_model), jnp.float32) * s
              ).astype(dtype),
        bqkv=jnp.zeros((3 * d_model,), dtype),
        wo=(jax.random.normal(k2, (d_model, d_model), jnp.float32) * s
            ).astype(dtype),
        bo=jnp.zeros((d_model,), dtype),
    )


def _init_cross_mha(key, d_model, dtype):
    k1, k2, k3 = jax.random.split(key, 3)
    s = 1.0 / math.sqrt(d_model)
    return dict(
        wq=(jax.random.normal(k1, (d_model, d_model), jnp.float32) * s
            ).astype(dtype),
        bq=jnp.zeros((d_model,), dtype),
        wkv=(jax.random.normal(k2, (d_model, 2 * d_model), jnp.float32) * s
             ).astype(dtype),
        bkv=jnp.zeros((2 * d_model,), dtype),
        wo=(jax.random.normal(k3, (d_model, d_model), jnp.float32) * s
            ).astype(dtype),
        bo=jnp.zeros((d_model,), dtype),
    )


def _init_ffn_norms(key, d_model, dim_ff, n_norms, dtype):
    k1, k2 = jax.random.split(key)
    p = dict(
        w1=(jax.random.normal(k1, (d_model, dim_ff), jnp.float32)
            / math.sqrt(d_model)).astype(dtype),
        b1=jnp.zeros((dim_ff,), dtype),
        w2=(jax.random.normal(k2, (dim_ff, d_model), jnp.float32)
            / math.sqrt(dim_ff)).astype(dtype),
        b2=jnp.zeros((d_model,), dtype),
    )
    for i in range(1, n_norms + 1):
        p[f"ln{i}_g"] = jnp.ones((d_model,), dtype)
        p[f"ln{i}_b"] = jnp.zeros((d_model,), dtype)
    return p


def init_params(key, vocab_size, d_model, num_enc, num_dec, dim_ff,
                dtype=DTYPE):
    vocab_pad = ((vocab_size + 127) // 128) * 128   # lane-dense fc_out
    keys = jax.random.split(key, 2 + 2 * num_enc + 3 * num_dec)
    ki = iter(keys)
    params = dict(
        embedding=jax.random.normal(next(ki), (vocab_size, d_model),
                                    jnp.float32).astype(dtype),
        # pos_encoder is nn.Parameter(torch.zeros(1, 100, d_model)) at init.
        pos=jnp.zeros((1, 100, d_model), dtype),
        fc_w=(jax.random.normal(next(ki), (d_model, vocab_pad), jnp.float32)
              / math.sqrt(d_model)).astype(dtype),
        fc_b=jnp.zeros((vocab_pad,), dtype),
        encoder=[],
        decoder=[],
    )
    for _ in range(num_enc):
        lp = dict(self_attn=_init_self_mha(next(ki), d_model, dtype))
        lp.update(_init_ffn_norms(next(ki), d_model, dim_ff, 2, dtype))
        params["encoder"].append(lp)
    for _ in range(num_dec):
        lp = dict(
            self_attn=_init_self_mha(next(ki), d_model, dtype),
            cross_attn=_init_cross_mha(next(ki), d_model, dtype),
        )
        lp.update(_init_ffn_norms(next(ki), d_model, dim_ff, 3, dtype))
        params["decoder"].append(lp)
    return params


# ----------------------------------------------------------------------------
if __name__ == "__main__":
    # Small, TPU-tile-friendly hyperparameters (same module structure; head dim
    # = 128 so head slices / QK^T contractions are lane-aligned).
    vocab_size = 100
    d_model = 256
    nhead = 2
    num_encoder_layers = 2
    num_decoder_layers = 2
    dim_feedforward = 512
    B, S = 2, 8

    key = jax.random.PRNGKey(0)
    kp, ks, kt = jax.random.split(key, 3)
    params = init_params(
        kp, vocab_size, d_model, num_encoder_layers, num_decoder_layers,
        dim_feedforward,
    )
    src = jax.random.randint(ks, (B, S), 0, vocab_size, dtype=jnp.int32)
    tgt = jax.random.randint(kt, (B, S), 0, vocab_size, dtype=jnp.int32)

    fwd = jax.jit(functools.partial(transformer_forward, nhead=nhead,
                                    vocab_size=vocab_size))
    out = fwd(params, src, tgt)
    out = jax.block_until_ready(out)
    assert out.shape == (B, S, vocab_size), out.shape
    assert out.dtype == jnp.float32, out.dtype
    assert bool(jnp.all(jnp.isfinite(out)))
    print("KERNEL_OK")
</pallas_src>

<mosaic_0001>
module attributes {stable_mosaic.version = 11 : i64} {
  func.func @_self_attn_sublayer_kernel(%arg0: i32, %arg1: memref<1x8x256xbf16, #tpu.memory_space<vmem>>, %arg2: memref<256x768xbf16, #tpu.memory_space<vmem>>, %arg3: memref<1x768xbf16, #tpu.memory_space<vmem>>, %arg4: memref<256x256xbf16, #tpu.memory_space<vmem>>, %arg5: memref<1x256xbf16, #tpu.memory_space<vmem>>, %arg6: memref<1x256xbf16, #tpu.memory_space<vmem>>, %arg7: memref<1x256xbf16, #tpu.memory_space<vmem>>, %arg8: memref<1x8x256xbf16, #tpu.memory_space<vmem>>) attributes {dimension_semantics = [#tpu.dimension_semantics<parallel>], iteration_bounds = array<i64: 2>, scalar_prefetch = 0 : i64, scratch_operands = 0 : i64, tpu.core_type = #tpu.core_type<tc>, window_params = [{transform_indices = @transform_0, window_bounds = array<i64: 1, 8, 256>}, {pipeline_mode = #tpu.pipeline_mode<synchronous>, transform_indices = @transform_1, window_bounds = array<i64: 256, 768>}, {pipeline_mode = #tpu.pipeline_mode<synchronous>, transform_indices = @transform_2, window_bounds = array<i64: 1, 768>}, {pipeline_mode = #tpu.pipeline_mode<synchronous>, transform_indices = @transform_3, window_bounds = array<i64: 256, 256>}, {pipeline_mode = #tpu.pipeline_mode<synchronous>, transform_indices = @transform_4, window_bounds = array<i64: 1, 256>}, {pipeline_mode = #tpu.pipeline_mode<synchronous>, transform_indices = @transform_5, window_bounds = array<i64: 1, 256>}, {pipeline_mode = #tpu.pipeline_mode<synchronous>, transform_indices = @transform_6, window_bounds = array<i64: 1, 256>}, {transform_indices = @transform_7, window_bounds = array<i64: 1, 8, 256>}]} {
    %c0 = arith.constant 0 : index
    %c0_0 = arith.constant 0 : index
    %c0_1 = arith.constant 0 : index
    %0 = vector.load %arg1[%c0, %c0_0, %c0_1] : memref<1x8x256xbf16, #tpu.memory_space<vmem>>, vector<1x8x256xbf16>
    %1 = vector.shape_cast %0 : vector<1x8x256xbf16> to vector<8x256xbf16>
    %c0_2 = arith.constant 0 : index
    %c0_3 = arith.constant 0 : index
    %2 = vector.load %arg2[%c0_2, %c0_3] : memref<256x768xbf16, #tpu.memory_space<vmem>>, vector<256x768xbf16>
    %cst = arith.constant dense<0.000000e+00> : vector<8x768xf32>
    %3 = tpu.matmul %1, %2, %cst {dimension_numbers = #tpu.dot_dimension_numbers<[1], [0], [0], [1], [0, 0, 1, 1], [], []>} : vector<8x256xbf16>, vector<256x768xbf16>, vector<8x768xf32> -> vector<8x768xf32>
    %c0_4 = arith.constant 0 : index
    %c0_5 = arith.constant 0 : index
    %4 = vector.load %arg3[%c0_4, %c0_5] : memref<1x768xbf16, #tpu.memory_space<vmem>>, vector<1x768xbf16>
    %5 = arith.extf %4 : vector<1x768xbf16> to vector<1x768xf32>
    %6 = vector.broadcast %5 : vector<1x768xf32> to vector<8x768xf32>
    %7 = arith.addf %3, %6 : vector<8x768xf32>
    %8 = vector.extract_strided_slice %7 {offsets = [0, 0], sizes = [8, 256], strides = [1, 1]} : vector<8x768xf32> to vector<8x256xf32>
    %cst_6 = arith.constant 0.0883883461 : f32
    %9 = vector.broadcast %cst_6 : f32 to vector<8x256xf32>
    %10 = arith.mulf %8, %9 : vector<8x256xf32>
    %11 = arith.truncf %10 : vector<8x256xf32> to vector<8x256xbf16>
    %12 = vector.extract_strided_slice %7 {offsets = [0, 256], sizes = [8, 256], strides = [1, 1]} : vector<8x768xf32> to vector<8x256xf32>
    %13 = arith.truncf %12 : vector<8x256xf32> to vector<8x256xbf16>
    %14 = vector.extract_strided_slice %7 {offsets = [0, 512], sizes = [8, 256], strides = [1, 1]} : vector<8x768xf32> to vector<8x256xf32>
    %15 = arith.truncf %14 : vector<8x256xf32> to vector<8x256xbf16>
    %16 = arith.extf %1 : vector<8x256xbf16> to vector<8x256xf32>
    %c0_7 = arith.constant 0 : index
    %c0_8 = arith.constant 0 : index
    %17 = vector.load %arg5[%c0_7, %c0_8] : memref<1x256xbf16, #tpu.memory_space<vmem>>, vector<1x256xbf16>
    %18 = arith.extf %17 : vector<1x256xbf16> to vector<1x256xf32>
    %19 = vector.broadcast %18 : vector<1x256xf32> to vector<8x256xf32>
    %20 = arith.addf %16, %19 : vector<8x256xf32>
    %21 = vector.extract_strided_slice %11 {offsets = [0, 0], sizes = [8, 128], strides = [1, 1]} : vector<8x256xbf16> to vector<8x128xbf16>
    %22 = vector.extract_strided_slice %13 {offsets = [0, 0], sizes = [8, 128], strides = [1, 1]} : vector<8x256xbf16> to vector<8x128xbf16>
    %cst_9 = arith.constant dense<0.000000e+00> : vector<8x8xf32>
    %23 = tpu.matmul %21, %22, %cst_9 {dimension_numbers = #tpu.dot_dimension_numbers<[1], [1], [0], [0], [0, 0, 1, 0], [], []>} : vector<8x128xbf16>, vector<8x128xbf16>, vector<8x8xf32> -> vector<8x8xf32>
    %cst_10 = arith.constant dense<0xFF800000> : vector<8xf32>
    %24 = vector.multi_reduction <maximumf>, %23, %cst_10 [1] : vector<8x8xf32> to vector<8xf32>
    %25 = vector.shape_cast %24 : vector<8xf32> to vector<8x1xf32>
    %26 = vector.broadcast %25 : vector<8x1xf32> to vector<8x8xf32>
    %27 = arith.subf %23, %26 : vector<8x8xf32>
    %28 = math.exp %27 : vector<8x8xf32>
    %cst_11 = arith.constant dense<0.000000e+00> : vector<8xf32>
    %29 = vector.multi_reduction <add>, %28, %cst_11 [1] : vector<8x8xf32> to vector<8xf32>
    %30 = vector.shape_cast %29 : vector<8xf32> to vector<8x1xf32>
    %31 = arith.truncf %28 : vector<8x8xf32> to vector<8x8xbf16>
    %32 = vector.extract_strided_slice %15 {offsets = [0, 0], sizes = [8, 128], strides = [1, 1]} : vector<8x256xbf16> to vector<8x128xbf16>
    %cst_12 = arith.constant dense<0.000000e+00> : vector<8x128xf32>
    %33 = tpu.matmul %31, %32, %cst_12 {dimension_numbers = #tpu.dot_dimension_numbers<[1], [0], [0], [1], [0, 0, 1, 1], [], []>} : vector<8x8xbf16>, vector<8x128xbf16>, vector<8x128xf32> -> vector<8x128xf32>
    %34 = vector.broadcast %30 : vector<8x1xf32> to vector<8x128xf32>
    %35 = arith.divf %33, %34 : vector<8x128xf32>
    %36 = arith.truncf %35 : vector<8x128xf32> to vector<8x128xbf16>
    %c0_13 = arith.constant 0 : index
    %c0_14 = arith.constant 0 : index
    %37 = vector.load %arg4[%c0_13, %c0_14] : memref<256x256xbf16, #tpu.memory_space<vmem>>, vector<128x256xbf16>
    %cst_15 = arith.constant dense<0.000000e+00> : vector<8x256xf32>
    %38 = tpu.matmul %36, %37, %cst_15 {dimension_numbers = #tpu.dot_dimension_numbers<[1], [0], [0], [1], [0, 0, 1, 1], [], []>} : vector<8x128xbf16>, vector<128x256xbf16>, vector<8x256xf32> -> vector<8x256xf32>
    %39 = arith.addf %20, %38 : vector<8x256xf32>
    %40 = vector.extract_strided_slice %11 {offsets = [0, 128], sizes = [8, 128], strides = [1, 1]} : vector<8x256xbf16> to vector<8x128xbf16>
    %41 = vector.extract_strided_slice %13 {offsets = [0, 128], sizes = [8, 128], strides = [1, 1]} : vector<8x256xbf16> to vector<8x128xbf16>
    %cst_16 = arith.constant dense<0.000000e+00> : vector<8x8xf32>
    %42 = tpu.matmul %40, %41, %cst_16 {dimension_numbers = #tpu.dot_dimension_numbers<[1], [1], [0], [0], [0, 0, 1, 0], [], []>} : vector<8x128xbf16>, vector<8x128xbf16>, vector<8x8xf32> -> vector<8x8xf32>
    %cst_17 = arith.constant dense<0xFF800000> : vector<8xf32>
    %43 = vector.multi_reduction <maximumf>, %42, %cst_17 [1] : vector<8x8xf32> to vector<8xf32>
    %44 = vector.shape_cast %43 : vector<8xf32> to vector<8x1xf32>
    %45 = vector.broadcast %44 : vector<8x1xf32> to vector<8x8xf32>
    %46 = arith.subf %42, %45 : vector<8x8xf32>
    %47 = math.exp %46 : vector<8x8xf32>
    %cst_18 = arith.constant dense<0.000000e+00> : vector<8xf32>
    %48 = vector.multi_reduction <add>, %47, %cst_18 [1] : vector<8x8xf32> to vector<8xf32>
    %49 = vector.shape_cast %48 : vector<8xf32> to vector<8x1xf32>
    %50 = arith.truncf %47 : vector<8x8xf32> to vector<8x8xbf16>
    %51 = vector.extract_strided_slice %15 {offsets = [0, 128], sizes = [8, 128], strides = [1, 1]} : vector<8x256xbf16> to vector<8x128xbf16>
    %cst_19 = arith.constant dense<0.000000e+00> : vector<8x128xf32>
    %52 = tpu.matmul %50, %51, %cst_19 {dimension_numbers = #tpu.dot_dimension_numbers<[1], [0], [0], [1], [0, 0, 1, 1], [], []>} : vector<8x8xbf16>, vector<8x128xbf16>, vector<8x128xf32> -> vector<8x128xf32>
    %53 = vector.broadcast %49 : vector<8x1xf32> to vector<8x128xf32>
    %54 = arith.divf %52, %53 : vector<8x128xf32>
    %55 = arith.truncf %54 : vector<8x128xf32> to vector<8x128xbf16>
    %c128 = arith.constant 128 : index
    %c0_20 = arith.constant 0 : index
    %56 = vector.load %arg4[%c128, %c0_20] : memref<256x256xbf16, #tpu.memory_space<vmem>>, vector<128x256xbf16>
    %cst_21 = arith.constant dense<0.000000e+00> : vector<8x256xf32>
    %57 = tpu.matmul %55, %56, %cst_21 {dimension_numbers = #tpu.dot_dimension_numbers<[1], [0], [0], [1], [0, 0, 1, 1], [], []>} : vector<8x128xbf16>, vector<128x256xbf16>, vector<8x256xf32> -> vector<8x256xf32>
    %58 = arith.addf %39, %57 : vector<8x256xf32>
    %c0_22 = arith.constant 0 : index
    %c0_23 = arith.constant 0 : index
    %59 = vector.load %arg6[%c0_22, %c0_23] : memref<1x256xbf16, #tpu.memory_space<vmem>>, vector<1x256xbf16>
    %60 = arith.extf %59 : vector<1x256xbf16> to vector<1x256xf32>
    %c0_24 = arith.constant 0 : index
    %c0_25 = arith.constant 0 : index
    %61 = vector.load %arg7[%c0_24, %c0_25] : memref<1x256xbf16, #tpu.memory_space<vmem>>, vector<1x256xbf16>
    %62 = arith.extf %61 : vector<1x256xbf16> to vector<1x256xf32>
    %cst_26 = arith.constant dense<0.000000e+00> : vector<8xf32>
    %63 = vector.multi_reduction <add>, %58, %cst_26 [1] : vector<8x256xf32> to vector<8xf32>
    %64 = vector.shape_cast %63 : vector<8xf32> to vector<8x1xf32>
    %cst_27 = arith.constant 2.560000e+02 : f32
    %65 = vector.broadcast %cst_27 : f32 to vector<8x1xf32>
    %66 = arith.divf %64, %65 : vector<8x1xf32>
    %67 = vector.broadcast %66 : vector<8x1xf32> to vector<8x256xf32>
    %68 = arith.subf %58, %67 : vector<8x256xf32>
    %69 = arith.mulf %68, %68 : vector<8x256xf32>
    %cst_28 = arith.constant dense<0.000000e+00> : vector<8xf32>
    %70 = vector.multi_reduction <add>, %69, %cst_28 [1] : vector<8x256xf32> to vector<8xf32>
    %71 = vector.shape_cast %70 : vector<8xf32> to vector<8x1xf32>
    %cst_29 = arith.constant 2.560000e+02 : f32
    %72 = vector.broadcast %cst_29 : f32 to vector<8x1xf32>
    %73 = arith.divf %71, %72 : vector<8x1xf32>
    %74 = vector.broadcast %66 : vector<8x1xf32> to vector<8x256xf32>
    %75 = arith.subf %58, %74 : vector<8x256xf32>
    %cst_30 = arith.constant 9.99999974E-6 : f32
    %76 = vector.broadcast %cst_30 : f32 to vector<8x1xf32>
    %77 = arith.addf %73, %76 : vector<8x1xf32>
    %78 = math.rsqrt %77 : vector<8x1xf32>
    %79 = vector.broadcast %78 : vector<8x1xf32> to vector<8x256xf32>
    %80 = arith.mulf %75, %79 : vector<8x256xf32>
    %81 = vector.broadcast %60 : vector<1x256xf32> to vector<8x256xf32>
    %82 = arith.mulf %80, %81 : vector<8x256xf32>
    %83 = vector.broadcast %62 : vector<1x256xf32> to vector<8x256xf32>
    %84 = arith.addf %82, %83 : vector<8x256xf32>
    %85 = arith.truncf %84 : vector<8x256xf32> to vector<8x256xbf16>
    %c0_31 = arith.constant 0 : index
    %c0_32 = arith.constant 0 : index
    %c0_33 = arith.constant 0 : index
    %86 = vector.load %arg8[%c0_31, %c0_32, %c0_33] : memref<1x8x256xbf16, #tpu.memory_space<vmem>>, vector<1x8x256xbf16>
    %87 = vector.shape_cast %86 : vector<1x8x256xbf16> to vector<8x256xbf16>
    %88 = vector.shape_cast %85 : vector<8x256xbf16> to vector<1x8x256xbf16>
    tpu.vector_store %arg8[%c0_31, %c0_32, %c0_33], %88 {strides = array<i32>} : memref<1x8x256xbf16, #tpu.memory_space<vmem>>, vector<1x8x256xbf16>,
    return
  }
  func.func @transform_0(%arg0: i32) -> (i32, i32, i32) {
    %c0_i32 = arith.constant 0 : i32
    %c0_i32_0 = arith.constant 0 : i32
    %c0_i32_1 = arith.constant 0 : i32
    return %arg0, %c0_i32, %c0_i32_0 : i32, i32, i32
  }
  func.func @transform_1(%arg0: i32) -> (i32, i32) {
    %c0_i32 = arith.constant 0 : i32
    %c0_i32_0 = arith.constant 0 : i32
    %c0_i32_1 = arith.constant 0 : i32
    return %c0_i32, %c0_i32_0 : i32, i32
  }
  func.func @transform_2(%arg0: i32) -> (i32, i32) {
    %c0_i32 = arith.constant 0 : i32
    %c0_i32_0 = arith.constant 0 : i32
    %c0_i32_1 = arith.constant 0 : i32
    return %c0_i32, %c0_i32_0 : i32, i32
  }
  func.func @transform_3(%arg0: i32) -> (i32, i32) {
    %c0_i32 = arith.constant 0 : i32
    %c0_i32_0 = arith.constant 0 : i32
    %c0_i32_1 = arith.constant 0 : i32
    return %c0_i32, %c0_i32_0 : i32, i32
  }
  func.func @transform_4(%arg0: i32) -> (i32, i32) {
    %c0_i32 = arith.constant 0 : i32
    %c0_i32_0 = arith.constant 0 : i32
    %c0_i32_1 = arith.constant 0 : i32
    return %c0_i32, %c0_i32_0 : i32, i32
  }
  func.func @transform_5(%arg0: i32) -> (i32, i32) {
    %c0_i32 = arith.constant 0 : i32
    %c0_i32_0 = arith.constant 0 : i32
    %c0_i32_1 = arith.constant 0 : i32
    return %c0_i32, %c0_i32_0 : i32, i32
  }
  func.func @transform_6(%arg0: i32) -> (i32, i32) {
    %c0_i32 = arith.constant 0 : i32
    %c0_i32_0 = arith.constant 0 : i32
    %c0_i32_1 = arith.constant 0 : i32
    return %c0_i32, %c0_i32_0 : i32, i32
  }
  func.func @transform_7(%arg0: i32) -> (i32, i32, i32) {
    %c0_i32 = arith.constant 0 : i32
    %c0_i32_0 = arith.constant 0 : i32
    %c0_i32_1 = arith.constant 0 : i32
    return %arg0, %c0_i32, %c0_i32_0 : i32, i32, i32
  }
}

module attributes {stable_mosaic.version = 11 : i64} {
  func.func @_ffn_ln_kernel(%arg0: i32, %arg1: i32, %arg2: memref<16x256xbf16, #tpu.memory_space<vmem>>, %arg3: memref<256x512xbf16, #tpu.memory_space<vmem>>, %arg4: memref<1x512xbf16, #tpu.memory_space<vmem>>, %arg5: memref<512x256xbf16, #tpu.memory_space<vmem>>, %arg6: memref<1x256xbf16, #tpu.memory_space<vmem>>, %arg7: memref<1x256xbf16, #tpu.memory_space<vmem>>, %arg8: memref<1x256xbf16, #tpu.memory_space<vmem>>, %arg9: memref<16x256xbf16, #tpu.memory_space<vmem>>, %arg10: memref<16x256xf32, #tpu.memory_space<vmem>>) attributes {dimension_semantics = [#tpu.dimension_semantics<parallel>, #tpu.dimension_semantics<arbitrary>], iteration_bounds = array<i64: 1, 1>, scalar_prefetch = 0 : i64, scratch_operands = 1 : i64, tpu.core_type = #tpu.core_type<tc>, window_params = [{transform_indices = @transform_0, window_bounds = array<i64: 16, 256>}, {transform_indices = @transform_1, window_bounds = array<i64: 256, 512>}, {transform_indices = @transform_2, window_bounds = array<i64: 1, 512>}, {transform_indices = @transform_3, window_bounds = array<i64: 512, 256>}, {pipeline_mode = #tpu.pipeline_mode<synchronous>, transform_indices = @transform_4, window_bounds = array<i64: 1, 256>}, {pipeline_mode = #tpu.pipeline_mode<synchronous>, transform_indices = @transform_5, window_bounds = array<i64: 1, 256>}, {pipeline_mode = #tpu.pipeline_mode<synchronous>, transform_indices = @transform_6, window_bounds = array<i64: 1, 256>}, {transform_indices = @transform_7, window_bounds = array<i64: 16, 256>}]} {
    %c0_i32 = arith.constant 0 : i32
    %0 = arith.cmpi eq, %arg1, %c0_i32 : i32
    %1 = arith.extui %0 : i1 to i32
    %c0_i32_0 = arith.constant 0 : i32
    %2 = arith.cmpi ne, %1, %c0_i32_0 : i32
    scf.if %2 {
      %cst_16 = arith.constant 0.000000e+00 : f32
      %21 = vector.broadcast %cst_16 : f32 to vector<16x256xf32>
      %c0_17 = arith.constant 0 : index
      %c0_18 = arith.constant 0 : index
      %22 = vector.load %arg10[%c0_17, %c0_18] : memref<16x256xf32, #tpu.memory_space<vmem>>, vector<16x256xf32>
      tpu.vector_store %arg10[%c0_17, %c0_18], %21 {strides = array<i32>} : memref<16x256xf32, #tpu.memory_space<vmem>>, vector<16x256xf32>,
    } else {
    }
    %c0 = arith.constant 0 : index
    %c0_1 = arith.constant 0 : index
    %3 = vector.load %arg2[%c0, %c0_1] : memref<16x256xbf16, #tpu.memory_space<vmem>>, vector<16x256xbf16>
    %c0_2 = arith.constant 0 : index
    %c0_3 = arith.constant 0 : index
    %4 = vector.load %arg3[%c0_2, %c0_3] : memref<256x512xbf16, #tpu.memory_space<vmem>>, vector<256x512xbf16>
    %cst = arith.constant dense<0.000000e+00> : vector<16x512xf32>
    %5 = tpu.matmul %3, %4, %cst {dimension_numbers = #tpu.dot_dimension_numbers<[1], [0], [0], [1], [0, 0, 1, 1], [], []>} : vector<16x256xbf16>, vector<256x512xbf16>, vector<16x512xf32> -> vector<16x512xf32>
    %c0_4 = arith.constant 0 : index
    %c0_5 = arith.constant 0 : index
    %6 = vector.load %arg4[%c0_4, %c0_5] : memref<1x512xbf16, #tpu.memory_space<vmem>>, vector<1x512xbf16>
    %7 = arith.extf %6 : vector<1x512xbf16> to vector<1x512xf32>
    %8 = vector.broadcast %7 : vector<1x512xf32> to vector<16x512xf32>
    %9 = arith.addf %5, %8 : vector<16x512xf32>
    %cst_6 = arith.constant 0.000000e+00 : f32
    %10 = vector.broadcast %cst_6 : f32 to vector<16x512xf32>
    %11 = arith.maximumf %9, %10 : vector<16x512xf32>
    %12 = arith.truncf %11 : vector<16x512xf32> to vector<16x512xbf16>
    %c0_7 = arith.constant 0 : index
    %c0_8 = arith.constant 0 : index
    %13 = vector.load %arg10[%c0_7, %c0_8] : memref<16x256xf32, #tpu.memory_space<vmem>>, vector<16x256xf32>
    %c0_9 = arith.constant 0 : index
    %c0_10 = arith.constant 0 : index
    %14 = vector.load %arg5[%c0_9, %c0_10] : memref<512x256xbf16, #tpu.memory_space<vmem>>, vector<512x256xbf16>
    %cst_11 = arith.constant dense<0.000000e+00> : vector<16x256xf32>
    %15 = tpu.matmul %12, %14, %cst_11 {dimension_numbers = #tpu.dot_dimension_numbers<[1], [0], [0], [1], [0, 0, 1, 1], [], []>} : vector<16x512xbf16>, vector<512x256xbf16>, vector<16x256xf32> -> vector<16x256xf32>
    %16 = arith.addf %13, %15 : vector<16x256xf32>
    %c0_12 = arith.constant 0 : index
    %c0_13 = arith.constant 0 : index
    %17 = vector.load %arg10[%c0_12, %c0_13] : memref<16x256xf32, #tpu.memory_space<vmem>>, vector<16x256xf32>
    tpu.vector_store %arg10[%c0_12, %c0_13], %16 {strides = array<i32>} : memref<16x256xf32, #tpu.memory_space<vmem>>, vector<16x256xf32>,
    %c0_i32_14 = arith.constant 0 : i32
    %18 = arith.cmpi eq, %arg1, %c0_i32_14 : i32
    %19 = arith.extui %18 : i1 to i32
    %c0_i32_15 = arith.constant 0 : i32
    %20 = arith.cmpi ne, %19, %c0_i32_15 : i32
    scf.if %20 {
      %c0_16 = arith.constant 0 : index
      %c0_17 = arith.constant 0 : index
      %21 = vector.load %arg10[%c0_16, %c0_17] : memref<16x256xf32, #tpu.memory_space<vmem>>, vector<16x256xf32>
      %c0_18 = arith.constant 0 : index
      %c0_19 = arith.constant 0 : index
      %22 = vector.load %arg6[%c0_18, %c0_19] : memref<1x256xbf16, #tpu.memory_space<vmem>>, vector<1x256xbf16>
      %23 = arith.extf %22 : vector<1x256xbf16> to vector<1x256xf32>
      %24 = vector.broadcast %23 : vector<1x256xf32> to vector<16x256xf32>
      %25 = arith.addf %21, %24 : vector<16x256xf32>
      %c0_20 = arith.constant 0 : index
      %c0_21 = arith.constant 0 : index
      %26 = vector.load %arg2[%c0_20, %c0_21] : memref<16x256xbf16, #tpu.memory_space<vmem>>, vector<16x256xbf16>
      %27 = arith.extf %26 : vector<16x256xbf16> to vector<16x256xf32>
      %28 = arith.addf %25, %27 : vector<16x256xf32>
      %c0_22 = arith.constant 0 : index
      %c0_23 = arith.constant 0 : index
      %29 = vector.load %arg7[%c0_22, %c0_23] : memref<1x256xbf16, #tpu.memory_space<vmem>>, vector<1x256xbf16>
      %30 = arith.extf %29 : vector<1x256xbf16> to vector<1x256xf32>
      %c0_24 = arith.constant 0 : index
      %c0_25 = arith.constant 0 : index
      %31 = vector.load %arg8[%c0_24, %c0_25] : memref<1x256xbf16, #tpu.memory_space<vmem>>, vector<1x256xbf16>
      %32 = arith.extf %31 : vector<1x256xbf16> to vector<1x256xf32>
      %cst_26 = arith.constant dense<0.000000e+00> : vector<16xf32>
      %33 = vector.multi_reduction <add>, %28, %cst_26 [1] : vector<16x256xf32> to vector<16xf32>
      %34 = vector.shape_cast %33 : vector<16xf32> to vector<16x1xf32>
      %cst_27 = arith.constant 2.560000e+02 : f32
      %35 = vector.broadcast %cst_27 : f32 to vector<16x1xf32>
      %36 = arith.divf %34, %35 : vector<16x1xf32>
      %37 = vector.broadcast %36 : vector<16x1xf32> to vector<16x256xf32>
      %38 = arith.subf %28, %37 : vector<16x256xf32>
      %39 = arith.mulf %38, %38 : vector<16x256xf32>
      %cst_28 = arith.constant dense<0.000000e+00> : vector<16xf32>
      %40 = vector.multi_reduction <add>, %39, %cst_28 [1] : vector<16x256xf32> to vector<16xf32>
      %41 = vector.shape_cast %40 : vector<16xf32> to vector<16x1xf32>
      %cst_29 = arith.constant 2.560000e+02 : f32
      %42 = vector.broadcast %cst_29 : f32 to vector<16x1xf32>
      %43 = arith.divf %41, %42 : vector<16x1xf32>
      %44 = vector.broadcast %36 : vector<16x1xf32> to vector<16x256xf32>
      %45 = arith.subf %28, %44 : vector<16x256xf32>
      %cst_30 = arith.constant 9.99999974E-6 : f32
      %46 = vector.broadcast %cst_30 : f32 to vector<16x1xf32>
      %47 = arith.addf %43, %46 : vector<16x1xf32>
      %48 = math.rsqrt %47 : vector<16x1xf32>
      %49 = vector.broadcast %48 : vector<16x1xf32> to vector<16x256xf32>
      %50 = arith.mulf %45, %49 : vector<16x256xf32>
      %51 = vector.broadcast %30 : vector<1x256xf32> to vector<16x256xf32>
      %52 = arith.mulf %50, %51 : vector<16x256xf32>
      %53 = vector.broadcast %32 : vector<1x256xf32> to vector<16x256xf32>
      %54 = arith.addf %52, %53 : vector<16x256xf32>
      %55 = arith.truncf %54 : vector<16x256xf32> to vector<16x256xbf16>
      %c0_31 = arith.constant 0 : index
      %c0_32 = arith.constant 0 : index
      %56 = vector.load %arg9[%c0_31, %c0_32] : memref<16x256xbf16, #tpu.memory_space<vmem>>, vector<16x256xbf16>
      tpu.vector_store %arg9[%c0_31, %c0_32], %55 {strides = array<i32>} : memref<16x256xbf16, #tpu.memory_space<vmem>>, vector<16x256xbf16>,
    } else {
    }
    return
  }
  func.func @transform_0(%arg0: i32, %arg1: i32) -> (i32, i32) {
    %c0_i32 = arith.constant 0 : i32
    %c0_i32_0 = arith.constant 0 : i32
    return %arg0, %c0_i32 : i32, i32
  }
  func.func @transform_1(%arg0: i32, %arg1: i32) -> (i32, i32) {
    %c0_i32 = arith.constant 0 : i32
    %c0_i32_0 = arith.constant 0 : i32
    return %c0_i32, %arg1 : i32, i32
  }
  func.func @transform_2(%arg0: i32, %arg1: i32) -> (i32, i32) {
    %c0_i32 = arith.constant 0 : i32
    %c0_i32_0 = arith.constant 0 : i32
    return %c0_i32, %arg1 : i32, i32
  }
  func.func @transform_3(%arg0: i32, %arg1: i32) -> (i32, i32) {
    %c0_i32 = arith.constant 0 : i32
    %c0_i32_0 = arith.constant 0 : i32
    return %arg1, %c0_i32 : i32, i32
  }
  func.func @transform_4(%arg0: i32, %arg1: i32) -> (i32, i32) {
    %c0_i32 = arith.constant 0 : i32
    %c0_i32_0 = arith.constant 0 : i32
    %c0_i32_1 = arith.constant 0 : i32
    return %c0_i32, %c0_i32_0 : i32, i32
  }
  func.func @transform_5(%arg0: i32, %arg1: i32) -> (i32, i32) {
    %c0_i32 = arith.constant 0 : i32
    %c0_i32_0 = arith.constant 0 : i32
    %c0_i32_1 = arith.constant 0 : i32
    return %c0_i32, %c0_i32_0 : i32, i32
  }
  func.func @transform_6(%arg0: i32, %arg1: i32) -> (i32, i32) {
    %c0_i32 = arith.constant 0 : i32
    %c0_i32_0 = arith.constant 0 : i32
    %c0_i32_1 = arith.constant 0 : i32
    return %c0_i32, %c0_i32_0 : i32, i32
  }
  func.func @transform_7(%arg0: i32, %arg1: i32) -> (i32, i32) {
    %c0_i32 = arith.constant 0 : i32
    %c0_i32_0 = arith.constant 0 : i32
    return %arg0, %c0_i32 : i32, i32
  }
}

module attributes {stable_mosaic.version = 11 : i64} {
  func.func @_self_attn_sublayer_kernel(%arg0: i32, %arg1: memref<1x8x256xbf16, #tpu.memory_space<vmem>>, %arg2: memref<256x768xbf16, #tpu.memory_space<vmem>>, %arg3: memref<1x768xbf16, #tpu.memory_space<vmem>>, %arg4: memref<256x256xbf16, #tpu.memory_space<vmem>>, %arg5: memref<1x256xbf16, #tpu.memory_space<vmem>>, %arg6: memref<1x256xbf16, #tpu.memory_space<vmem>>, %arg7: memref<1x256xbf16, #tpu.memory_space<vmem>>, %arg8: memref<1x8x256xbf16, #tpu.memory_space<vmem>>) attributes {dimension_semantics = [#tpu.dimension_semantics<parallel>], iteration_bounds = array<i64: 2>, scalar_prefetch = 0 : i64, scratch_operands = 0 : i64, tpu.core_type = #tpu.core_type<tc>, window_params = [{transform_indices = @transform_0, window_bounds = array<i64: 1, 8, 256>}, {pipeline_mode = #tpu.pipeline_mode<synchronous>, transform_indices = @transform_1, window_bounds = array<i64: 256, 768>}, {pipeline_mode = #tpu.pipeline_mode<synchronous>, transform_indices = @transform_2, window_bounds = array<i64: 1, 768>}, {pipeline_mode = #tpu.pipeline_mode<synchronous>, transform_indices = @transform_3, window_bounds = array<i64: 256, 256>}, {pipeline_mode = #tpu.pipeline_mode<synchronous>, transform_indices = @transform_4, window_bounds = array<i64: 1, 256>}, {pipeline_mode = #tpu.pipeline_mode<synchronous>, transform_indices = @transform_5, window_bounds = array<i64: 1, 256>}, {pipeline_mode = #tpu.pipeline_mode<synchronous>, transform_indices = @transform_6, window_bounds = array<i64: 1, 256>}, {transform_indices = @transform_7, window_bounds = array<i64: 1, 8, 256>}]} {
    %c0 = arith.constant 0 : index
    %c0_0 = arith.constant 0 : index
    %c0_1 = arith.constant 0 : index
    %0 = vector.load %arg1[%c0, %c0_0, %c0_1] : memref<1x8x256xbf16, #tpu.memory_space<vmem>>, vector<1x8x256xbf16>
    %1 = vector.shape_cast %0 : vector<1x8x256xbf16> to vector<8x256xbf16>
    %c0_2 = arith.constant 0 : index
    %c0_3 = arith.constant 0 : index
    %2 = vector.load %arg2[%c0_2, %c0_3] : memref<256x768xbf16, #tpu.memory_space<vmem>>, vector<256x768xbf16>
    %cst = arith.constant dense<0.000000e+00> : vector<8x768xf32>
    %3 = tpu.matmul %1, %2, %cst {dimension_numbers = #tpu.dot_dimension_numbers<[1], [0], [0], [1], [0, 0, 1, 1], [], []>} : vector<8x256xbf16>, vector<256x768xbf16>, vector<8x768xf32> -> vector<8x768xf32>
    %c0_4 = arith.constant 0 : index
    %c0_5 = arith.constant 0 : index
    %4 = vector.load %arg3[%c0_4, %c0_5] : memref<1x768xbf16, #tpu.memory_space<vmem>>, vector<1x768xbf16>
    %5 = arith.extf %4 : vector<1x768xbf16> to vector<1x768xf32>
    %6 = vector.broadcast %5 : vector<1x768xf32> to vector<8x768xf32>
    %7 = arith.addf %3, %6 : vector<8x768xf32>
    %8 = vector.extract_strided_slice %7 {offsets = [0, 0], sizes = [8, 256], strides = [1, 1]} : vector<8x768xf32> to vector<8x256xf32>
    %cst_6 = arith.constant 0.0883883461 : f32
    %9 = vector.broadcast %cst_6 : f32 to vector<8x256xf32>
    %10 = arith.mulf %8, %9 : vector<8x256xf32>
    %11 = arith.truncf %10 : vector<8x256xf32> to vector<8x256xbf16>
    %12 = vector.extract_strided_slice %7 {offsets = [0, 256], sizes = [8, 256], strides = [1, 1]} : vector<8x768xf32> to vector<8x256xf32>
    %13 = arith.truncf %12 : vector<8x256xf32> to vector<8x256xbf16>
    %14 = vector.extract_strided_slice %7 {offsets = [0, 512], sizes = [8, 256], strides = [1, 1]} : vector<8x768xf32> to vector<8x256xf32>
    %15 = arith.truncf %14 : vector<8x256xf32> to vector<8x256xbf16>
    %16 = arith.extf %1 : vector<8x256xbf16> to vector<8x256xf32>
    %c0_7 = arith.constant 0 : index
    %c0_8 = arith.constant 0 : index
    %17 = vector.load %arg5[%c0_7, %c0_8] : memref<1x256xbf16, #tpu.memory_space<vmem>>, vector<1x256xbf16>
    %18 = arith.extf %17 : vector<1x256xbf16> to vector<1x256xf32>
    %19 = vector.broadcast %18 : vector<1x256xf32> to vector<8x256xf32>
    %20 = arith.addf %16, %19 : vector<8x256xf32>
    %21 = vector.extract_strided_slice %11 {offsets = [0, 0], sizes = [8, 128], strides = [1, 1]} : vector<8x256xbf16> to vector<8x128xbf16>
    %22 = vector.extract_strided_slice %13 {offsets = [0, 0], sizes = [8, 128], strides = [1, 1]} : vector<8x256xbf16> to vector<8x128xbf16>
    %cst_9 = arith.constant dense<0.000000e+00> : vector<8x8xf32>
    %23 = tpu.matmul %21, %22, %cst_9 {dimension_numbers = #tpu.dot_dimension_numbers<[1], [1], [0], [0], [0, 0, 1, 0], [], []>} : vector<8x128xbf16>, vector<8x128xbf16>, vector<8x8xf32> -> vector<8x8xf32>
    %cst_10 = arith.constant dense<0xFF800000> : vector<8xf32>
    %24 = vector.multi_reduction <maximumf>, %23, %cst_10 [1] : vector<8x8xf32> to vector<8xf32>
    %25 = vector.shape_cast %24 : vector<8xf32> to vector<8x1xf32>
    %26 = vector.broadcast %25 : vector<8x1xf32> to vector<8x8xf32>
    %27 = arith.subf %23, %26 : vector<8x8xf32>
    %28 = math.exp %27 : vector<8x8xf32>
    %cst_11 = arith.constant dense<0.000000e+00> : vector<8xf32>
    %29 = vector.multi_reduction <add>, %28, %cst_11 [1] : vector<8x8xf32> to vector<8xf32>
    %30 = vector.shape_cast %29 : vector<8xf32> to vector<8x1xf32>
    %31 = arith.truncf %28 : vector<8x8xf32> to vector<8x8xbf16>
    %32 = vector.extract_strided_slice %15 {offsets = [0, 0], sizes = [8, 128], strides = [1, 1]} : vector<8x256xbf16> to vector<8x128xbf16>
    %cst_12 = arith.constant dense<0.000000e+00> : vector<8x128xf32>
    %33 = tpu.matmul %31, %32, %cst_12 {dimension_numbers = #tpu.dot_dimension_numbers<[1], [0], [0], [1], [0, 0, 1, 1], [], []>} : vector<8x8xbf16>, vector<8x128xbf16>, vector<8x128xf32> -> vector<8x128xf32>
    %34 = vector.broadcast %30 : vector<8x1xf32> to vector<8x128xf32>
    %35 = arith.divf %33, %34 : vector<8x128xf32>
    %36 = arith.truncf %35 : vector<8x128xf32> to vector<8x128xbf16>
    %c0_13 = arith.constant 0 : index
    %c0_14 = arith.constant 0 : index
    %37 = vector.load %arg4[%c0_13, %c0_14] : memref<256x256xbf16, #tpu.memory_space<vmem>>, vector<128x256xbf16>
    %cst_15 = arith.constant dense<0.000000e+00> : vector<8x256xf32>
    %38 = tpu.matmul %36, %37, %cst_15 {dimension_numbers = #tpu.dot_dimension_numbers<[1], [0], [0], [1], [0, 0, 1, 1], [], []>} : vector<8x128xbf16>, vector<128x256xbf16>, vector<8x256xf32> -> vector<8x256xf32>
    %39 = arith.addf %20, %38 : vector<8x256xf32>
    %40 = vector.extract_strided_slice %11 {offsets = [0, 128], sizes = [8, 128], strides = [1, 1]} : vector<8x256xbf16> to vector<8x128xbf16>
    %41 = vector.extract_strided_slice %13 {offsets = [0, 128], sizes = [8, 128], strides = [1, 1]} : vector<8x256xbf16> to vector<8x128xbf16>
    %cst_16 = arith.constant dense<0.000000e+00> : vector<8x8xf32>
    %42 = tpu.matmul %40, %41, %cst_16 {dimension_numbers = #tpu.dot_dimension_numbers<[1], [1], [0], [0], [0, 0, 1, 0], [], []>} : vector<8x128xbf16>, vector<8x128xbf16>, vector<8x8xf32> -> vector<8x8xf32>
    %cst_17 = arith.constant dense<0xFF800000> : vector<8xf32>
    %43 = vector.multi_reduction <maximumf>, %42, %cst_17 [1] : vector<8x8xf32> to vector<8xf32>
    %44 = vector.shape_cast %43 : vector<8xf32> to vector<8x1xf32>
    %45 = vector.broadcast %44 : vector<8x1xf32> to vector<8x8xf32>
    %46 = arith.subf %42, %45 : vector<8x8xf32>
    %47 = math.exp %46 : vector<8x8xf32>
    %cst_18 = arith.constant dense<0.000000e+00> : vector<8xf32>
    %48 = vector.multi_reduction <add>, %47, %cst_18 [1] : vector<8x8xf32> to vector<8xf32>
    %49 = vector.shape_cast %48 : vector<8xf32> to vector<8x1xf32>
    %50 = arith.truncf %47 : vector<8x8xf32> to vector<8x8xbf16>
    %51 = vector.extract_strided_slice %15 {offsets = [0, 128], sizes = [8, 128], strides = [1, 1]} : vector<8x256xbf16> to vector<8x128xbf16>
    %cst_19 = arith.constant dense<0.000000e+00> : vector<8x128xf32>
    %52 = tpu.matmul %50, %51, %cst_19 {dimension_numbers = #tpu.dot_dimension_numbers<[1], [0], [0], [1], [0, 0, 1, 1], [], []>} : vector<8x8xbf16>, vector<8x128xbf16>, vector<8x128xf32> -> vector<8x128xf32>
    %53 = vector.broadcast %49 : vector<8x1xf32> to vector<8x128xf32>
    %54 = arith.divf %52, %53 : vector<8x128xf32>
    %55 = arith.truncf %54 : vector<8x128xf32> to vector<8x128xbf16>
    %c128 = arith.constant 128 : index
    %c0_20 = arith.constant 0 : index
    %56 = vector.load %arg4[%c128, %c0_20] : memref<256x256xbf16, #tpu.memory_space<vmem>>, vector<128x256xbf16>
    %cst_21 = arith.constant dense<0.000000e+00> : vector<8x256xf32>
    %57 = tpu.matmul %55, %56, %cst_21 {dimension_numbers = #tpu.dot_dimension_numbers<[1], [0], [0], [1], [0, 0, 1, 1], [], []>} : vector<8x128xbf16>, vector<128x256xbf16>, vector<8x256xf32> -> vector<8x256xf32>
    %58 = arith.addf %39, %57 : vector<8x256xf32>
    %c0_22 = arith.constant 0 : index
    %c0_23 = arith.constant 0 : index
    %59 = vector.load %arg6[%c0_22, %c0_23] : memref<1x256xbf16, #tpu.memory_space<vmem>>, vector<1x256xbf16>
    %60 = arith.extf %59 : vector<1x256xbf16> to vector<1x256xf32>
    %c0_24 = arith.constant 0 : index
    %c0_25 = arith.constant 0 : index
    %61 = vector.load %arg7[%c0_24, %c0_25] : memref<1x256xbf16, #tpu.memory_space<vmem>>, vector<1x256xbf16>
    %62 = arith.extf %61 : vector<1x256xbf16> to vector<1x256xf32>
    %cst_26 = arith.constant dense<0.000000e+00> : vector<8xf32>
    %63 = vector.multi_reduction <add>, %58, %cst_26 [1] : vector<8x256xf32> to vector<8xf32>
    %64 = vector.shape_cast %63 : vector<8xf32> to vector<8x1xf32>
    %cst_27 = arith.constant 2.560000e+02 : f32
    %65 = vector.broadcast %cst_27 : f32 to vector<8x1xf32>
    %66 = arith.divf %64, %65 : vector<8x1xf32>
    %67 = vector.broadcast %66 : vector<8x1xf32> to vector<8x256xf32>
    %68 = arith.subf %58, %67 : vector<8x256xf32>
    %69 = arith.mulf %68, %68 : vector<8x256xf32>
    %cst_28 = arith.constant dense<0.000000e+00> : vector<8xf32>
    %70 = vector.multi_reduction <add>, %69, %cst_28 [1] : vector<8x256xf32> to vector<8xf32>
    %71 = vector.shape_cast %70 : vector<8xf32> to vector<8x1xf32>
    %cst_29 = arith.constant 2.560000e+02 : f32
    %72 = vector.broadcast %cst_29 : f32 to vector<8x1xf32>
    %73 = arith.divf %71, %72 : vector<8x1xf32>
    %74 = vector.broadcast %66 : vector<8x1xf32> to vector<8x256xf32>
    %75 = arith.subf %58, %74 : vector<8x256xf32>
    %cst_30 = arith.constant 9.99999974E-6 : f32
    %76 = vector.broadcast %cst_30 : f32 to vector<8x1xf32>
    %77 = arith.addf %73, %76 : vector<8x1xf32>
    %78 = math.rsqrt %77 : vector<8x1xf32>
    %79 = vector.broadcast %78 : vector<8x1xf32> to vector<8x256xf32>
    %80 = arith.mulf %75, %79 : vector<8x256xf32>
    %81 = vector.broadcast %60 : vector<1x256xf32> to vector<8x256xf32>
    %82 = arith.mulf %80, %81 : vector<8x256xf32>
    %83 = vector.broadcast %62 : vector<1x256xf32> to vector<8x256xf32>
    %84 = arith.addf %82, %83 : vector<8x256xf32>
    %85 = arith.truncf %84 : vector<8x256xf32> to vector<8x256xbf16>
    %c0_31 = arith.constant 0 : index
    %c0_32 = arith.constant 0 : index
    %c0_33 = arith.constant 0 : index
    %86 = vector.load %arg8[%c0_31, %c0_32, %c0_33] : memref<1x8x256xbf16, #tpu.memory_space<vmem>>, vector<1x8x256xbf16>
    %87 = vector.shape_cast %86 : vector<1x8x256xbf16> to vector<8x256xbf16>
    %88 = vector.shape_cast %85 : vector<8x256xbf16> to vector<1x8x256xbf16>
    tpu.vector_store %arg8[%c0_31, %c0_32, %c0_33], %88 {strides = array<i32>} : memref<1x8x256xbf16, #tpu.memory_space<vmem>>, vector<1x8x256xbf16>,
    return
  }
  func.func @transform_0(%arg0: i32) -> (i32, i32, i32) {
    %c0_i32 = arith.constant 0 : i32
    %c0_i32_0 = arith.constant 0 : i32
    %c0_i32_1 = arith.constant 0 : i32
    return %arg0, %c0_i32, %c0_i32_0 : i32, i32, i32
  }
  func.func @transform_1(%arg0: i32) -> (i32, i32) {
    %c0_i32 = arith.constant 0 : i32
    %c0_i32_0 = arith.constant 0 : i32
    %c0_i32_1 = arith.constant 0 : i32
    return %c0_i32, %c0_i32_0 : i32, i32
  }
  func.func @transform_2(%arg0: i32) -> (i32, i32) {
    %c0_i32 = arith.constant 0 : i32
    %c0_i32_0 = arith.constant 0 : i32
    %c0_i32_1 = arith.constant 0 : i32
    return %c0_i32, %c0_i32_0 : i32, i32
  }
  func.func @transform_3(%arg0: i32) -> (i32, i32) {
    %c0_i32 = arith.constant 0 : i32
    %c0_i32_0 = arith.constant 0 : i32
    %c0_i32_1 = arith.constant 0 : i32
    return %c0_i32, %c0_i32_0 : i32, i32
  }
  func.func @transform_4(%arg0: i32) -> (i32, i32) {
    %c0_i32 = arith.constant 0 : i32
    %c0_i32_0 = arith.constant 0 : i32
    %c0_i32_1 = arith.constant 0 : i32
    return %c0_i32, %c0_i32_0 : i32, i32
  }
  func.func @transform_5(%arg0: i32) -> (i32, i32) {
    %c0_i32 = arith.constant 0 : i32
    %c0_i32_0 = arith.constant 0 : i32
    %c0_i32_1 = arith.constant 0 : i32
    return %c0_i32, %c0_i32_0 : i32, i32
  }
  func.func @transform_6(%arg0: i32) -> (i32, i32) {
    %c0_i32 = arith.constant 0 : i32
    %c0_i32_0 = arith.constant 0 : i32
    %c0_i32_1 = arith.constant 0 : i32
    return %c0_i32, %c0_i32_0 : i32, i32
  }
  func.func @transform_7(%arg0: i32) -> (i32, i32, i32) {
    %c0_i32 = arith.constant 0 : i32
    %c0_i32_0 = arith.constant 0 : i32
    %c0_i32_1 = arith.constant 0 : i32
    return %arg0, %c0_i32, %c0_i32_0 : i32, i32, i32
  }
}

module attributes {stable_mosaic.version = 11 : i64} {
  func.func @_cross_attn_sublayer_kernel(%arg0: i32, %arg1: memref<1x8x256xbf16, #tpu.memory_space<vmem>>, %arg2: memref<1x8x256xbf16, #tpu.memory_space<vmem>>, %arg3: memref<256x256xbf16, #tpu.memory_space<vmem>>, %arg4: memref<1x256xbf16, #tpu.memory_space<vmem>>, %arg5: memref<256x512xbf16, #tpu.memory_space<vmem>>, %arg6: memref<1x512xbf16, #tpu.memory_space<vmem>>, %arg7: memref<256x256xbf16, #tpu.memory_space<vmem>>, %arg8: memref<1x256xbf16, #tpu.memory_space<vmem>>, %arg9: memref<1x256xbf16, #tpu.memory_space<vmem>>, %arg10: memref<1x256xbf16, #tpu.memory_space<vmem>>, %arg11: memref<1x8x256xbf16, #tpu.memory_space<vmem>>) attributes {dimension_semantics = [#tpu.dimension_semantics<parallel>], iteration_bounds = array<i64: 2>, scalar_prefetch = 0 : i64, scratch_operands = 0 : i64, tpu.core_type = #tpu.core_type<tc>, window_params = [{transform_indices = @transform_0, window_bounds = array<i64: 1, 8, 256>}, {transform_indices = @transform_1, window_bounds = array<i64: 1, 8, 256>}, {pipeline_mode = #tpu.pipeline_mode<synchronous>, transform_indices = @transform_2, window_bounds = array<i64: 256, 256>}, {pipeline_mode = #tpu.pipeline_mode<synchronous>, transform_indices = @transform_3, window_bounds = array<i64: 1, 256>}, {pipeline_mode = #tpu.pipeline_mode<synchronous>, transform_indices = @transform_4, window_bounds = array<i64: 256, 512>}, {pipeline_mode = #tpu.pipeline_mode<synchronous>, transform_indices = @transform_5, window_bounds = array<i64: 1, 512>}, {pipeline_mode = #tpu.pipeline_mode<synchronous>, transform_indices = @transform_6, window_bounds = array<i64: 256, 256>}, {pipeline_mode = #tpu.pipeline_mode<synchronous>, transform_indices = @transform_7, window_bounds = array<i64: 1, 256>}, {pipeline_mode = #tpu.pipeline_mode<synchronous>, transform_indices = @transform_8, window_bounds = array<i64: 1, 256>}, {pipeline_mode = #tpu.pipeline_mode<synchronous>, transform_indices = @transform_9, window_bounds = array<i64: 1, 256>}, {transform_indices = @transform_10, window_bounds = array<i64: 1, 8, 256>}]} {
    %c0 = arith.constant 0 : index
    %c0_0 = arith.constant 0 : index
    %c0_1 = arith.constant 0 : index
    %0 = vector.load %arg1[%c0, %c0_0, %c0_1] : memref<1x8x256xbf16, #tpu.memory_space<vmem>>, vector<1x8x256xbf16>
    %1 = vector.shape_cast %0 : vector<1x8x256xbf16> to vector<8x256xbf16>
    %c0_2 = arith.constant 0 : index
    %c0_3 = arith.constant 0 : index
    %c0_4 = arith.constant 0 : index
    %2 = vector.load %arg2[%c0_2, %c0_3, %c0_4] : memref<1x8x256xbf16, #tpu.memory_space<vmem>>, vector<1x8x256xbf16>
    %3 = vector.shape_cast %2 : vector<1x8x256xbf16> to vector<8x256xbf16>
    %c0_5 = arith.constant 0 : index
    %c0_6 = arith.constant 0 : index
    %4 = vector.load %arg3[%c0_5, %c0_6] : memref<256x256xbf16, #tpu.memory_space<vmem>>, vector<256x256xbf16>
    %cst = arith.constant dense<0.000000e+00> : vector<8x256xf32>
    %5 = tpu.matmul %1, %4, %cst {dimension_numbers = #tpu.dot_dimension_numbers<[1], [0], [0], [1], [0, 0, 1, 1], [], []>} : vector<8x256xbf16>, vector<256x256xbf16>, vector<8x256xf32> -> vector<8x256xf32>
    %c0_7 = arith.constant 0 : index
    %c0_8 = arith.constant 0 : index
    %6 = vector.load %arg4[%c0_7, %c0_8] : memref<1x256xbf16, #tpu.memory_space<vmem>>, vector<1x256xbf16>
    %7 = arith.extf %6 : vector<1x256xbf16> to vector<1x256xf32>
    %8 = vector.broadcast %7 : vector<1x256xf32> to vector<8x256xf32>
    %9 = arith.addf %5, %8 : vector<8x256xf32>
    %cst_9 = arith.constant 0.0883883461 : f32
    %10 = vector.broadcast %cst_9 : f32 to vector<8x256xf32>
    %11 = arith.mulf %9, %10 : vector<8x256xf32>
    %12 = arith.truncf %11 : vector<8x256xf32> to vector<8x256xbf16>
    %c0_10 = arith.constant 0 : index
    %c0_11 = arith.constant 0 : index
    %13 = vector.load %arg5[%c0_10, %c0_11] : memref<256x512xbf16, #tpu.memory_space<vmem>>, vector<256x512xbf16>
    %cst_12 = arith.constant dense<0.000000e+00> : vector<8x512xf32>
    %14 = tpu.matmul %3, %13, %cst_12 {dimension_numbers = #tpu.dot_dimension_numbers<[1], [0], [0], [1], [0, 0, 1, 1], [], []>} : vector<8x256xbf16>, vector<256x512xbf16>, vector<8x512xf32> -> vector<8x512xf32>
    %c0_13 = arith.constant 0 : index
    %c0_14 = arith.constant 0 : index
    %15 = vector.load %arg6[%c0_13, %c0_14] : memref<1x512xbf16, #tpu.memory_space<vmem>>, vector<1x512xbf16>
    %16 = arith.extf %15 : vector<1x512xbf16> to vector<1x512xf32>
    %17 = vector.broadcast %16 : vector<1x512xf32> to vector<8x512xf32>
    %18 = arith.addf %14, %17 : vector<8x512xf32>
    %19 = vector.extract_strided_slice %18 {offsets = [0, 0], sizes = [8, 256], strides = [1, 1]} : vector<8x512xf32> to vector<8x256xf32>
    %20 = arith.truncf %19 : vector<8x256xf32> to vector<8x256xbf16>
    %21 = vector.extract_strided_slice %18 {offsets = [0, 256], sizes = [8, 256], strides = [1, 1]} : vector<8x512xf32> to vector<8x256xf32>
    %22 = arith.truncf %21 : vector<8x256xf32> to vector<8x256xbf16>
    %23 = arith.extf %1 : vector<8x256xbf16> to vector<8x256xf32>
    %c0_15 = arith.constant 0 : index
    %c0_16 = arith.constant 0 : index
    %24 = vector.load %arg8[%c0_15, %c0_16] : memref<1x256xbf16, #tpu.memory_space<vmem>>, vector<1x256xbf16>
    %25 = arith.extf %24 : vector<1x256xbf16> to vector<1x256xf32>
    %26 = vector.broadcast %25 : vector<1x256xf32> to vector<8x256xf32>
    %27 = arith.addf %23, %26 : vector<8x256xf32>
    %28 = vector.extract_strided_slice %12 {offsets = [0, 0], sizes = [8, 128], strides = [1, 1]} : vector<8x256xbf16> to vector<8x128xbf16>
    %29 = vector.extract_strided_slice %20 {offsets = [0, 0], sizes = [8, 128], strides = [1, 1]} : vector<8x256xbf16> to vector<8x128xbf16>
    %cst_17 = arith.constant dense<0.000000e+00> : vector<8x8xf32>
    %30 = tpu.matmul %28, %29, %cst_17 {dimension_numbers = #tpu.dot_dimension_numbers<[1], [1], [0], [0], [0, 0, 1, 0], [], []>} : vector<8x128xbf16>, vector<8x128xbf16>, vector<8x8xf32> -> vector<8x8xf32>
    %cst_18 = arith.constant dense<0xFF800000> : vector<8xf32>
    %31 = vector.multi_reduction <maximumf>, %30, %cst_18 [1] : vector<8x8xf32> to vector<8xf32>
    %32 = vector.shape_cast %31 : vector<8xf32> to vector<8x1xf32>
    %33 = vector.broadcast %32 : vector<8x1xf32> to vector<8x8xf32>
    %34 = arith.subf %30, %33 : vector<8x8xf32>
    %35 = math.exp %34 : vector<8x8xf32>
    %cst_19 = arith.constant dense<0.000000e+00> : vector<8xf32>
    %36 = vector.multi_reduction <add>, %35, %cst_19 [1] : vector<8x8xf32> to vector<8xf32>
    %37 = vector.shape_cast %36 : vector<8xf32> to vector<8x1xf32>
    %38 = arith.truncf %35 : vector<8x8xf32> to vector<8x8xbf16>
    %39 = vector.extract_strided_slice %22 {offsets = [0, 0], sizes = [8, 128], strides = [1, 1]} : vector<8x256xbf16> to vector<8x128xbf16>
    %cst_20 = arith.constant dense<0.000000e+00> : vector<8x128xf32>
    %40 = tpu.matmul %38, %39, %cst_20 {dimension_numbers = #tpu.dot_dimension_numbers<[1], [0], [0], [1], [0, 0, 1, 1], [], []>} : vector<8x8xbf16>, vector<8x128xbf16>, vector<8x128xf32> -> vector<8x128xf32>
    %41 = vector.broadcast %37 : vector<8x1xf32> to vector<8x128xf32>
    %42 = arith.divf %40, %41 : vector<8x128xf32>
    %43 = arith.truncf %42 : vector<8x128xf32> to vector<8x128xbf16>
    %c0_21 = arith.constant 0 : index
    %c0_22 = arith.constant 0 : index
    %44 = vector.load %arg7[%c0_21, %c0_22] : memref<256x256xbf16, #tpu.memory_space<vmem>>, vector<128x256xbf16>
    %cst_23 = arith.constant dense<0.000000e+00> : vector<8x256xf32>
    %45 = tpu.matmul %43, %44, %cst_23 {dimension_numbers = #tpu.dot_dimension_numbers<[1], [0], [0], [1], [0, 0, 1, 1], [], []>} : vector<8x128xbf16>, vector<128x256xbf16>, vector<8x256xf32> -> vector<8x256xf32>
    %46 = arith.addf %27, %45 : vector<8x256xf32>
    %47 = vector.extract_strided_slice %12 {offsets = [0, 128], sizes = [8, 128], strides = [1, 1]} : vector<8x256xbf16> to vector<8x128xbf16>
    %48 = vector.extract_strided_slice %20 {offsets = [0, 128], sizes = [8, 128], strides = [1, 1]} : vector<8x256xbf16> to vector<8x128xbf16>
    %cst_24 = arith.constant dense<0.000000e+00> : vector<8x8xf32>
    %49 = tpu.matmul %47, %48, %cst_24 {dimension_numbers = #tpu.dot_dimension_numbers<[1], [1], [0], [0], [0, 0, 1, 0], [], []>} : vector<8x128xbf16>, vector<8x128xbf16>, vector<8x8xf32> -> vector<8x8xf32>
    %cst_25 = arith.constant dense<0xFF800000> : vector<8xf32>
    %50 = vector.multi_reduction <maximumf>, %49, %cst_25 [1] : vector<8x8xf32> to vector<8xf32>
    %51 = vector.shape_cast %50 : vector<8xf32> to vector<8x1xf32>
    %52 = vector.broadcast %51 : vector<8x1xf32> to vector<8x8xf32>
    %53 = arith.subf %49, %52 : vector<8x8xf32>
    %54 = math.exp %53 : vector<8x8xf32>
    %cst_26 = arith.constant dense<0.000000e+00> : vector<8xf32>
    %55 = vector.multi_reduction <add>, %54, %cst_26 [1] : vector<8x8xf32> to vector<8xf32>
    %56 = vector.shape_cast %55 : vector<8xf32> to vector<8x1xf32>
    %57 = arith.truncf %54 : vector<8x8xf32> to vector<8x8xbf16>
    %58 = vector.extract_strided_slice %22 {offsets = [0, 128], sizes = [8, 128], strides = [1, 1]} : vector<8x256xbf16> to vector<8x128xbf16>
    %cst_27 = arith.constant dense<0.000000e+00> : vector<8x128xf32>
    %59 = tpu.matmul %57, %58, %cst_27 {dimension_numbers = #tpu.dot_dimension_numbers<[1], [0], [0], [1], [0, 0, 1, 1], [], []>} : vector<8x8xbf16>, vector<8x128xbf16>, vector<8x128xf32> -> vector<8x128xf32>
    %60 = vector.broadcast %56 : vector<8x1xf32> to vector<8x128xf32>
    %61 = arith.divf %59, %60 : vector<8x128xf32>
    %62 = arith.truncf %61 : vector<8x128xf32> to vector<8x128xbf16>
    %c128 = arith.constant 128 : index
    %c0_28 = arith.constant 0 : index
    %63 = vector.load %arg7[%c128, %c0_28] : memref<256x256xbf16, #tpu.memory_space<vmem>>, vector<128x256xbf16>
    %cst_29 = arith.constant dense<0.000000e+00> : vector<8x256xf32>
    %64 = tpu.matmul %62, %63, %cst_29 {dimension_numbers = #tpu.dot_dimension_numbers<[1], [0], [0], [1], [0, 0, 1, 1], [], []>} : vector<8x128xbf16>, vector<128x256xbf16>, vector<8x256xf32> -> vector<8x256xf32>
    %65 = arith.addf %46, %64 : vector<8x256xf32>
    %c0_30 = arith.constant 0 : index
    %c0_31 = arith.constant 0 : index
    %66 = vector.load %arg9[%c0_30, %c0_31] : memref<1x256xbf16, #tpu.memory_space<vmem>>, vector<1x256xbf16>
    %67 = arith.extf %66 : vector<1x256xbf16> to vector<1x256xf32>
    %c0_32 = arith.constant 0 : index
    %c0_33 = arith.constant 0 : index
    %68 = vector.load %arg10[%c0_32, %c0_33] : memref<1x256xbf16, #tpu.memory_space<vmem>>, vector<1x256xbf16>
    %69 = arith.extf %68 : vector<1x256xbf16> to vector<1x256xf32>
    %cst_34 = arith.constant dense<0.000000e+00> : vector<8xf32>
    %70 = vector.multi_reduction <add>, %65, %cst_34 [1] : vector<8x256xf32> to vector<8xf32>
    %71 = vector.shape_cast %70 : vector<8xf32> to vector<8x1xf32>
    %cst_35 = arith.constant 2.560000e+02 : f32
    %72 = vector.broadcast %cst_35 : f32 to vector<8x1xf32>
    %73 = arith.divf %71, %72 : vector<8x1xf32>
    %74 = vector.broadcast %73 : vector<8x1xf32> to vector<8x256xf32>
    %75 = arith.subf %65, %74 : vector<8x256xf32>
    %76 = arith.mulf %75, %75 : vector<8x256xf32>
    %cst_36 = arith.constant dense<0.000000e+00> : vector<8xf32>
    %77 = vector.multi_reduction <add>, %76, %cst_36 [1] : vector<8x256xf32> to vector<8xf32>
    %78 = vector.shape_cast %77 : vector<8xf32> to vector<8x1xf32>
    %cst_37 = arith.constant 2.560000e+02 : f32
    %79 = vector.broadcast %cst_37 : f32 to vector<8x1xf32>
    %80 = arith.divf %78, %79 : vector<8x1xf32>
    %81 = vector.broadcast %73 : vector<8x1xf32> to vector<8x256xf32>
    %82 = arith.subf %65, %81 : vector<8x256xf32>
    %cst_38 = arith.constant 9.99999974E-6 : f32
    %83 = vector.broadcast %cst_38 : f32 to vector<8x1xf32>
    %84 = arith.addf %80, %83 : vector<8x1xf32>
    %85 = math.rsqrt %84 : vector<8x1xf32>
    %86 = vector.broadcast %85 : vector<8x1xf32> to vector<8x256xf32>
    %87 = arith.mulf %82, %86 : vector<8x256xf32>
    %88 = vector.broadcast %67 : vector<1x256xf32> to vector<8x256xf32>
    %89 = arith.mulf %87, %88 : vector<8x256xf32>
    %90 = vector.broadcast %69 : vector<1x256xf32> to vector<8x256xf32>
    %91 = arith.addf %89, %90 : vector<8x256xf32>
    %92 = arith.truncf %91 : vector<8x256xf32> to vector<8x256xbf16>
    %c0_39 = arith.constant 0 : index
    %c0_40 = arith.constant 0 : index
    %c0_41 = arith.constant 0 : index
    %93 = vector.load %arg11[%c0_39, %c0_40, %c0_41] : memref<1x8x256xbf16, #tpu.memory_space<vmem>>, vector<1x8x256xbf16>
    %94 = vector.shape_cast %93 : vector<1x8x256xbf16> to vector<8x256xbf16>
    %95 = vector.shape_cast %92 : vector<8x256xbf16> to vector<1x8x256xbf16>
    tpu.vector_store %arg11[%c0_39, %c0_40, %c0_41], %95 {strides = array<i32>} : memref<1x8x256xbf16, #tpu.memory_space<vmem>>, vector<1x8x256xbf16>,
    return
  }
  func.func @transform_0(%arg0: i32) -> (i32, i32, i32) {
    %c0_i32 = arith.constant 0 : i32
    %c0_i32_0 = arith.constant 0 : i32
    %c0_i32_1 = arith.constant 0 : i32
    return %arg0, %c0_i32, %c0_i32_0 : i32, i32, i32
  }
  func.func @transform_1(%arg0: i32) -> (i32, i32, i32) {
    %c0_i32 = arith.constant 0 : i32
    %c0_i32_0 = arith.constant 0 : i32
    %c0_i32_1 = arith.constant 0 : i32
    return %arg0, %c0_i32, %c0_i32_0 : i32, i32, i32
  }
  func.func @transform_2(%arg0: i32) -> (i32, i32) {
    %c0_i32 = arith.constant 0 : i32
    %c0_i32_0 = arith.constant 0 : i32
    %c0_i32_1 = arith.constant 0 : i32
    return %c0_i32, %c0_i32_0 : i32, i32
  }
  func.func @transform_3(%arg0: i32) -> (i32, i32) {
    %c0_i32 = arith.constant 0 : i32
    %c0_i32_0 = arith.constant 0 : i32
    %c0_i32_1 = arith.constant 0 : i32
    return %c0_i32, %c0_i32_0 : i32, i32
  }
  func.func @transform_4(%arg0: i32) -> (i32, i32) {
    %c0_i32 = arith.constant 0 : i32
    %c0_i32_0 = arith.constant 0 : i32
    %c0_i32_1 = arith.constant 0 : i32
    return %c0_i32, %c0_i32_0 : i32, i32
  }
  func.func @transform_5(%arg0: i32) -> (i32, i32) {
    %c0_i32 = arith.constant 0 : i32
    %c0_i32_0 = arith.constant 0 : i32
    %c0_i32_1 = arith.constant 0 : i32
    return %c0_i32, %c0_i32_0 : i32, i32
  }
  func.func @transform_6(%arg0: i32) -> (i32, i32) {
    %c0_i32 = arith.constant 0 : i32
    %c0_i32_0 = arith.constant 0 : i32
    %c0_i32_1 = arith.constant 0 : i32
    return %c0_i32, %c0_i32_0 : i32, i32
  }
  func.func @transform_7(%arg0: i32) -> (i32, i32) {
    %c0_i32 = arith.constant 0 : i32
    %c0_i32_0 = arith.constant 0 : i32
    %c0_i32_1 = arith.constant 0 : i32
    return %c0_i32, %c0_i32_0 : i32, i32
  }
  func.func @transform_8(%arg0: i32) -> (i32, i32) {
    %c0_i32 = arith.constant 0 : i32
    %c0_i32_0 = arith.constant 0 : i32
    %c0_i32_1 = arith.constant 0 : i32
    return %c0_i32, %c0_i32_0 : i32, i32
  }
  func.func @transform_9(%arg0: i32) -> (i32, i32) {
    %c0_i32 = arith.constant 0 : i32
    %c0_i32_0 = arith.constant 0 : i32
    %c0_i32_1 = arith.constant 0 : i32
    return %c0_i32, %c0_i32_0 : i32, i32
  }
  func.func @transform_10(%arg0: i32) -> (i32, i32, i32) {
    %c0_i32 = arith.constant 0 : i32
    %c0_i32_0 = arith.constant 0 : i32
    %c0_i32_1 = arith.constant 0 : i32
    return %arg0, %c0_i32, %c0_i32_0 : i32, i32, i32
  }
}

module attributes {stable_mosaic.version = 11 : i64} {
  func.func @_linear_kernel(%arg0: i32, %arg1: i32, %arg2: i32, %arg3: memref<16x256xbf16, #tpu.memory_space<vmem>>, %arg4: memref<256x128xbf16, #tpu.memory_space<vmem>>, %arg5: memref<1x128xbf16, #tpu.memory_space<vmem>>, %arg6: memref<16x128xf32, #tpu.memory_space<vmem>>, %arg7: memref<16x128xf32, #tpu.memory_space<vmem>>) attributes {dimension_semantics = [#tpu.dimension_semantics<parallel>, #tpu.dimension_semantics<parallel>, #tpu.dimension_semantics<arbitrary>], iteration_bounds = array<i64: 1, 1, 1>, scalar_prefetch = 0 : i64, scratch_operands = 1 : i64, tpu.core_type = #tpu.core_type<tc>, window_params = [{transform_indices = @transform_0, window_bounds = array<i64: 16, 256>}, {transform_indices = @transform_1, window_bounds = array<i64: 256, 128>}, {transform_indices = @transform_2, window_bounds = array<i64: 1, 128>}, {transform_indices = @transform_3, window_bounds = array<i64: 16, 128>}]} {
    %c0_i32 = arith.constant 0 : i32
    %0 = arith.cmpi eq, %arg2, %c0_i32 : i32
    %1 = arith.extui %0 : i1 to i32
    %c0_i32_0 = arith.constant 0 : i32
    %2 = arith.cmpi ne, %1, %c0_i32_0 : i32
    scf.if %2 {
      %cst_10 = arith.constant 0.000000e+00 : f32
      %12 = vector.broadcast %cst_10 : f32 to vector<16x128xf32>
      %c0_11 = arith.constant 0 : index
      %c0_12 = arith.constant 0 : index
      %13 = vector.load %arg7[%c0_11, %c0_12] : memref<16x128xf32, #tpu.memory_space<vmem>>, vector<16x128xf32>
      tpu.vector_store %arg7[%c0_11, %c0_12], %12 {strides = array<i32>} : memref<16x128xf32, #tpu.memory_space<vmem>>, vector<16x128xf32>,
    } else {
    }
    %c0 = arith.constant 0 : index
    %c0_1 = arith.constant 0 : index
    %3 = vector.load %arg7[%c0, %c0_1] : memref<16x128xf32, #tpu.memory_space<vmem>>, vector<16x128xf32>
    %c0_2 = arith.constant 0 : index
    %c0_3 = arith.constant 0 : index
    %4 = vector.load %arg3[%c0_2, %c0_3] : memref<16x256xbf16, #tpu.memory_space<vmem>>, vector<16x256xbf16>
    %c0_4 = arith.constant 0 : index
    %c0_5 = arith.constant 0 : index
    %5 = vector.load %arg4[%c0_4, %c0_5] : memref<256x128xbf16, #tpu.memory_space<vmem>>, vector<256x128xbf16>
    %cst = arith.constant dense<0.000000e+00> : vector<16x128xf32>
    %6 = tpu.matmul %4, %5, %cst {dimension_numbers = #tpu.dot_dimension_numbers<[1], [0], [0], [1], [0, 0, 1, 1], [], []>} : vector<16x256xbf16>, vector<256x128xbf16>, vector<16x128xf32> -> vector<16x128xf32>
    %7 = arith.addf %3, %6 : vector<16x128xf32>
    %c0_6 = arith.constant 0 : index
    %c0_7 = arith.constant 0 : index
    %8 = vector.load %arg7[%c0_6, %c0_7] : memref<16x128xf32, #tpu.memory_space<vmem>>, vector<16x128xf32>
    tpu.vector_store %arg7[%c0_6, %c0_7], %7 {strides = array<i32>} : memref<16x128xf32, #tpu.memory_space<vmem>>, vector<16x128xf32>,
    %c0_i32_8 = arith.constant 0 : i32
    %9 = arith.cmpi eq, %arg2, %c0_i32_8 : i32
    %10 = arith.extui %9 : i1 to i32
    %c0_i32_9 = arith.constant 0 : i32
    %11 = arith.cmpi ne, %10, %c0_i32_9 : i32
    scf.if %11 {
      %c0_10 = arith.constant 0 : index
      %c0_11 = arith.constant 0 : index
      %12 = vector.load %arg7[%c0_10, %c0_11] : memref<16x128xf32, #tpu.memory_space<vmem>>, vector<16x128xf32>
      %c0_12 = arith.constant 0 : index
      %c0_13 = arith.constant 0 : index
      %13 = vector.load %arg5[%c0_12, %c0_13] : memref<1x128xbf16, #tpu.memory_space<vmem>>, vector<1x128xbf16>
      %14 = arith.extf %13 : vector<1x128xbf16> to vector<1x128xf32>
      %15 = vector.broadcast %14 : vector<1x128xf32> to vector<16x128xf32>
      %16 = arith.addf %12, %15 : vector<16x128xf32>
      %c0_14 = arith.constant 0 : index
      %c0_15 = arith.constant 0 : index
      %17 = vector.load %arg6[%c0_14, %c0_15] : memref<16x128xf32, #tpu.memory_space<vmem>>, vector<16x128xf32>
      tpu.vector_store %arg6[%c0_14, %c0_15], %16 {strides = array<i32>} : memref<16x128xf32, #tpu.memory_space<vmem>>, vector<16x128xf32>,
    } else {
    }
    return
  }
  func.func @transform_0(%arg0: i32, %arg1: i32, %arg2: i32) -> (i32, i32) {
    %c0_i32 = arith.constant 0 : i32
    return %arg0, %arg2 : i32, i32
  }
  func.func @transform_1(%arg0: i32, %arg1: i32, %arg2: i32) -> (i32, i32) {
    %c0_i32 = arith.constant 0 : i32
    return %arg2, %arg1 : i32, i32
  }
  func.func @transform_2(%arg0: i32, %arg1: i32, %arg2: i32) -> (i32, i32) {
    %c0_i32 = arith.constant 0 : i32
    %c0_i32_0 = arith.constant 0 : i32
    return %c0_i32, %arg1 : i32, i32
  }
  func.func @transform_3(%arg0: i32, %arg1: i32, %arg2: i32) -> (i32, i32) {
    %c0_i32 = arith.constant 0 : i32
    return %arg0, %arg1 : i32, i32
  }
}

</mosaic_0001>

<llo_original>
// kernel: transformer_forward.12
$region0: #{transformer_forward.12}
  #allocation0 [shape = 'u32[]', space=smem, size = 0x4, offset = 0x4, fixed_abs, tag = 'smem constant byte address 0x4 - core index']
  #allocation1 [shape = 'u32[144,128]{1,0:T(1,128)}', space=vmem, size = 0x12000, scoped, tag = 'internal scratch']
  #allocation2 [shape = 'f32[16,256]{1,0:T(8,128)}', space=vmem, size = 0x4000, scoped, tag = 'scratch operand']
  %s0 = inlined_call_operand.vmem [shape: bf16[16,256], index: 0, kind: input, shape index: {}]
  %s1 = inlined_call_operand.vmem [shape: bf16[256,512], index: 1, kind: input, shape index: {}]
  %s2 = inlined_call_operand.vmem [shape: bf16[1,512], index: 2, kind: input, shape index: {}]
  %s3 = inlined_call_operand.vmem [shape: bf16[512,256], index: 3, kind: input, shape index: {}]
  %s4 = inlined_call_operand.vmem [shape: bf16[1,256], index: 4, kind: input, shape index: {}]
  %s5 = inlined_call_operand.vmem [shape: bf16[1,256], index: 5, kind: input, shape index: {}]
  %s6 = inlined_call_operand.vmem [shape: bf16[1,256], index: 6, kind: input, shape index: {}]
  %s7 = inlined_call_operand.vmem [shape: bf16[16,256], index: 7, kind: output, shape index: {}]
  %s8 = sld [smem:[#allocation0]]
  $region46: #{transformer_forward.12} parent=0
    _
  %s10 = ssub.s32 1, %s8
  %s11 = scalar_select 0, %s10, %s8
  // Predicated region
  $region2: #{transformer_forward.12} parent=0 // pred_check
    _
  $region3: #{transformer_forward.12} parent=0 // pred_check_branch
    %13 = sbr.rel (0) target = $region5
  $region4: #{transformer_forward.12} parent=0 // pred_region
    _
  $region5: #{transformer_forward.12} parent=0 // pred_fallthru
    _
  // Predicated region
  $region6: #{transformer_forward.12} parent=0 // pred_check
    _
  $region7: #{transformer_forward.12} parent=0 // pred_check_branch
    %15 = sbr.rel (0) target = $region9
  $region8: #{transformer_forward.12} parent=0 // pred_region
    _
  $region9: #{transformer_forward.12} parent=0 // pred_fallthru
    _
  // Predicated region
  $region10: #{transformer_forward.12} parent=0 // pred_check
    _
  $region11: #{transformer_forward.12} parent=0 // pred_check_branch
    %17 = sbr.rel (0) target = $region13
  $region12: #{transformer_forward.12} parent=0 // pred_region
    _
  $region13: #{transformer_forward.12} parent=0 // pred_fallthru
    _
  // Predicated region
  $region14: #{transformer_forward.12} parent=0 // pred_check
    _
  $region15: #{transformer_forward.12} parent=0 // pred_check_branch
    %19 = sbr.rel (0) target = $region17
  $region16: #{transformer_forward.12} parent=0 // pred_region
    _
  $region17: #{transformer_forward.12} parent=0 // pred_fallthru
    _
  // Predicated region
  $region18: #{transformer_forward.12} parent=0 // pred_check
    _
  $region19: #{transformer_forward.12} parent=0 // pred_check_branch
    %21 = sbr.rel (0) target = $region21
  $region20: #{transformer_forward.12} parent=0 // pred_region
    _
  $region21: #{transformer_forward.12} parent=0 // pred_fallthru
    _
  // Predicated region
  $region22: #{transformer_forward.12} parent=0 // pred_check
    _
  $region23: #{transformer_forward.12} parent=0 // pred_check_branch
    %23 = sbr.rel (0) target = $region25
  $region24: #{transformer_forward.12} parent=0 // pred_region
    _
  $region25: #{transformer_forward.12} parent=0 // pred_fallthru
    _
  // Predicated region
  $region26: #{transformer_forward.12} parent=0 // pred_check
    _
  $region27: #{transformer_forward.12} parent=0 // pred_check_branch
    %25 = sbr.rel (0) target = $region29
  $region28: #{transformer_forward.12} parent=0 // pred_region
    _
  $region29: #{transformer_forward.12} parent=0 // pred_fallthru
    _
  %p26 = scmp.eq.s32.totalorder 0, 0
  // Predicated region
  $region30: #{transformer_forward.12} parent=0 // pred_check
    %p27 = pneg %p26
  $region31: #{transformer_forward.12} parent=0 // pred_check_branch
    %29 = sbr.rel (%p27) target = $region33
  $region32: #{transformer_forward.12} parent=0 // pred_region
    %30 = vst [vmem:[#allocation2] sm:$0xff] 0.0
    %31 = vst [vmem:[#allocation2 + $0x8] sm:$0xff] 0.0
    %32 = vst [vmem:[#allocation2 + $0x10] sm:$0xff] 0.0
    %33 = vst [vmem:[#allocation2 + $0x18] sm:$0xff] 0.0
  $region33: #{transformer_forward.12} parent=0 // pred_fallthru
    _
  %v34 = vld [vmem:[%s0] sm:$0xff]
  %v35 = vld [vmem:[%s0 + $0x8] sm:$0xff]
  %v36 = vld [vmem:[%s1] sm:$0xff]
  %v37 = vld [vmem:[%s1 + $0x8] sm:$0xff]
  %v38 = vld [vmem:[%s1 + $0x10] sm:$0xff]
  %v39 = vld [vmem:[%s1 + $0x18] sm:$0xff]
  %v40 = vld [vmem:[%s1 + $0x20] sm:$0xff]
  %v41 = vld [vmem:[%s1 + $0x28] sm:$0xff]
  %v42 = vld [vmem:[%s1 + $0x30] sm:$0xff]
  %v43 = vld [vmem:[%s1 + $0x38] sm:$0xff]
  %v44 = vld [vmem:[%s1 + $0x40] sm:$0xff]
  %v45 = vld [vmem:[%s1 + $0x48] sm:$0xff]
  %v46 = vld [vmem:[%s1 + $0x50] sm:$0xff]
  %v47 = vld [vmem:[%s1 + $0x58] sm:$0xff]
  %v48 = vld [vmem:[%s1 + $0x60] sm:$0xff]
  %v49 = vld [vmem:[%s1 + $0x68] sm:$0xff]
  %v50 = vld [vmem:[%s1 + $0x70] sm:$0xff]
  %v51 = vld [vmem:[%s1 + $0x78] sm:$0xff]
  %v52 = vld [vmem:[%s1 + $0x80] sm:$0xff]
  %v53 = vld [vmem:[%s1 + $0x88] sm:$0xff]
  %v54 = vld [vmem:[%s1 + $0x90] sm:$0xff]
  %v55 = vld [vmem:[%s1 + $0x98] sm:$0xff]
  %v56 = vld [vmem:[%s1 + $0xa0] sm:$0xff]
  %v57 = vld [vmem:[%s1 + $0xa8] sm:$0xff]
  %v58 = vld [vmem:[%s1 + $0xb0] sm:$0xff]
  %v59 = vld [vmem:[%s1 + $0xb8] sm:$0xff]
  %v60 = vld [vmem:[%s1 + $0xc0] sm:$0xff]
  %v61 = vld [vmem:[%s1 + $0xc8] sm:$0xff]
  %v62 = vld [vmem:[%s1 + $0xd0] sm:$0xff]
  %v63 = vld [vmem:[%s1 + $0xd8] sm:$0xff]
  %v64 = vld [vmem:[%s1 + $0xe0] sm:$0xff]
  %v65 = vld [vmem:[%s1 + $0xe8] sm:$0xff]
  %v66 = vld [vmem:[%s1 + $0xf0] sm:$0xff]
  %v67 = vld [vmem:[%s1 + $0xf8] sm:$0xff]
  %v68 = vld [vmem:[%s1 + $0x100] sm:$0xff]
  %v69 = vld [vmem:[%s1 + $0x108] sm:$0xff]
  %v70 = vld [vmem:[%s1 + $0x110] sm:$0xff]
  %v71 = vld [vmem:[%s1 + $0x118] sm:$0xff]
  %v72 = vld [vmem:[%s1 + $0x120] sm:$0xff]
  %v73 = vld [vmem:[%s1 + $0x128] sm:$0xff]
  %v74 = vld [vmem:[%s1 + $0x130] sm:$0xff]
  %v75 = vld [vmem:[%s1 + $0x138] sm:$0xff]
  %v76 = vld [vmem:[%s1 + $0x140] sm:$0xff]
  %v77 = vld [vmem:[%s1 + $0x148] sm:$0xff]
  %v78 = vld [vmem:[%s1 + $0x150] sm:$0xff]
  %v79 = vld [vmem:[%s1 + $0x158] sm:$0xff]
  %v80 = vld [vmem:[%s1 + $0x160] sm:$0xff]
  %v81 = vld [vmem:[%s1 + $0x168] sm:$0xff]
  %v82 = vld [vmem:[%s1 + $0x170] sm:$0xff]
  %v83 = vld [vmem:[%s1 + $0x178] sm:$0xff]
  %v84 = vld [vmem:[%s1 + $0x180] sm:$0xff]
  %v85 = vld [vmem:[%s1 + $0x188] sm:$0xff]
  %v86 = vld [vmem:[%s1 + $0x190] sm:$0xff]
  %v87 = vld [vmem:[%s1 + $0x198] sm:$0xff]
  %v88 = vld [vmem:[%s1 + $0x1a0] sm:$0xff]
  %v89 = vld [vmem:[%s1 + $0x1a8] sm:$0xff]
  %v90 = vld [vmem:[%s1 + $0x1b0] sm:$0xff]
  %v91 = vld [vmem:[%s1 + $0x1b8] sm:$0xff]
  %v92 = vld [vmem:[%s1 + $0x1c0] sm:$0xff]
  %v93 = vld [vmem:[%s1 + $0x1c8] sm:$0xff]
  %v94 = vld [vmem:[%s1 + $0x1d0] sm:$0xff]
  %v95 = vld [vmem:[%s1 + $0x1d8] sm:$0xff]
  %v96 = vld [vmem:[%s1 + $0x1e0] sm:$0xff]
  %v97 = vld [vmem:[%s1 + $0x1e8] sm:$0xff]
  %v98 = vld [vmem:[%s1 + $0x1f0] sm:$0xff]
  %v99 = vld [vmem:[%s1 + $0x1f8] sm:$0xff]
  %v100 = vld [vmem:[%s2] sm:$0xf]
  %v101 = vunpack.c.l.bf16 %v100
  %v103 = vlaneseq
  %v104 = vshrl.u32 %v103, 7
  %v105 = vsub.s32 0, %v104
  %v106 = vrot.slane %v101, %v105
  %v107 = vlaneseq
  %v108 = vshrl.u32 %v107, 7
  %v109 = vsub.s32 2, %v108
  %v110 = vrot.slane %v101, %v109
  %v111 = vlaneseq
  %v112 = vshrl.u32 %v111, 7
  %v113 = vsub.s32 4, %v112
  %v114 = vrot.slane %v101, %v113
  %v115 = vlaneseq
  %v116 = vshrl.u32 %v115, 7
  %v117 = vsub.s32 6, %v116
  %v118 = vrot.slane %v101, %v117
  %v123 = vlaneseq
  %v124 = vshrl.u32 %v123, 7
  %v125 = vsub.s32 0, %v124
  %v126 = vrot.slane %v106, %v125
  %v127 = vlaneseq
  %v128 = vshrl.u32 %v127, 7
  %v129 = vsub.s32 0, %v128
  %v130 = vrot.slane %v110, %v129
  %v131 = vlaneseq
  %v132 = vshrl.u32 %v131, 7
  %v133 = vsub.s32 0, %v132
  %v134 = vrot.slane %v114, %v133
  %v135 = vlaneseq
  %v136 = vshrl.u32 %v135, 7
  %v137 = vsub.s32 0, %v136
  %v138 = vrot.slane %v118, %v137
  %v141 = vunpack.c.l.b16 %v34
  %v142 = vunpack.c.h.b16 %v34
  %v143 = vunpack.c.l.b16 %v35
  %v144 = vunpack.c.h.b16 %v35
  %v145 = vpack.c.b16 %v143, %v141
  %v146 = vpack.c.b16 %v144, %v142
  %v213 = vunpack.c.l.b16 %v36
  %v214 = vunpack.c.h.b16 %v36
  %v215 = vunpack.c.l.b16 %v37
  %v216 = vunpack.c.h.b16 %v37
  %v217 = vunpack.c.l.b16 %v38
  %v218 = vunpack.c.h.b16 %v38
  %v219 = vunpack.c.l.b16 %v39
  %v220 = vunpack.c.h.b16 %v39
  %v221 = vunpack.c.l.b16 %v40
  %v222 = vunpack.c.h.b16 %v40
  %v223 = vunpack.c.l.b16 %v41
  %v224 = vunpack.c.h.b16 %v41
  %v225 = vunpack.c.l.b16 %v42
  %v226 = vunpack.c.h.b16 %v42
  %v227 = vunpack.c.l.b16 %v43
  %v228 = vunpack.c.h.b16 %v43
  %v229 = vunpack.c.l.b16 %v44
  %v230 = vunpack.c.h.b16 %v44
  %v231 = vunpack.c.l.b16 %v45
  %v232 = vunpack.c.h.b16 %v45
  %v233 = vunpack.c.l.b16 %v46
  %v234 = vunpack.c.h.b16 %v46
  %v235 = vunpack.c.l.b16 %v47
  %v236 = vunpack.c.h.b16 %v47
  %v237 = vunpack.c.l.b16 %v48
  %v238 = vunpack.c.h.b16 %v48
  %v239 = vunpack.c.l.b16 %v49
  %v240 = vunpack.c.h.b16 %v49
  %v241 = vunpack.c.l.b16 %v50
  %v242 = vunpack.c.h.b16 %v50
  %v243 = vunpack.c.l.b16 %v51
  %v244 = vunpack.c.h.b16 %v51
  %v245 = vunpack.c.l.b16 %v52
  %v246 = vunpack.c.h.b16 %v52
  %v247 = vunpack.c.l.b16 %v53
  %v248 = vunpack.c.h.b16 %v53
  %v249 = vunpack.c.l.b16 %v54
  %v250 = vunpack.c.h.b16 %v54
  %v251 = vunpack.c.l.b16 %v55
  %v252 = vunpack.c.h.b16 %v55
  %v253 = vunpack.c.l.b16 %v56
  %v254 = vunpack.c.h.b16 %v56
  %v255 = vunpack.c.l.b16 %v57
  %v256 = vunpack.c.h.b16 %v57
  %v257 = vunpack.c.l.b16 %v58
  %v258 = vunpack.c.h.b16 %v58
  %v259 = vunpack.c.l.b16 %v59
  %v260 = vunpack.c.h.b16 %v59
  %v261 = vunpack.c.l.b16 %v60
  %v262 = vunpack.c.h.b16 %v60
  %v263 = vunpack.c.l.b16 %v61
  %v264 = vunpack.c.h.b16 %v61
  %v265 = vunpack.c.l.b16 %v62
  %v266 = vunpack.c.h.b16 %v62
  %v267 = vunpack.c.l.b16 %v63
  %v268 = vunpack.c.h.b16 %v63
  %v269 = vunpack.c.l.b16 %v64
  %v270 = vunpack.c.h.b16 %v64
  %v271 = vunpack.c.l.b16 %v65
  %v272 = vunpack.c.h.b16 %v65
  %v273 = vunpack.c.l.b16 %v66
  %v274 = vunpack.c.h.b16 %v66
  %v275 = vunpack.c.l.b16 %v67
  %v276 = vunpack.c.h.b16 %v67
  %v277 = vunpack.c.l.b16 %v68
  %v278 = vunpack.c.h.b16 %v68
  %v279 = vunpack.c.l.b16 %v69
  %v280 = vunpack.c.h.b16 %v69
  %v281 = vunpack.c.l.b16 %v70
  %v282 = vunpack.c.h.b16 %v70
  %v283 = vunpack.c.l.b16 %v71
  %v284 = vunpack.c.h.b16 %v71
  %v285 = vunpack.c.l.b16 %v72
  %v286 = vunpack.c.h.b16 %v72
  %v287 = vunpack.c.l.b16 %v73
  %v288 = vunpack.c.h.b16 %v73
  %v289 = vunpack.c.l.b16 %v74
  %v290 = vunpack.c.h.b16 %v74
  %v291 = vunpack.c.l.b16 %v75
  %v292 = vunpack.c.h.b16 %v75
  %v293 = vunpack.c.l.b16 %v76
  %v294 = vunpack.c.h.b16 %v76
  %v295 = vunpack.c.l.b16 %v77
  %v296 = vunpack.c.h.b16 %v77
  %v297 = vunpack.c.l.b16 %v78
  %v298 = vunpack.c.h.b16 %v78
  %v299 = vunpack.c.l.b16 %v79
  %v300 = vunpack.c.h.b16 %v79
  %v301 = vunpack.c.l.b16 %v80
  %v302 = vunpack.c.h.b16 %v80
  %v303 = vunpack.c.l.b16 %v81
  %v304 = vunpack.c.h.b16 %v81
  %v305 = vunpack.c.l.b16 %v82
  %v306 = vunpack.c.h.b16 %v82
  %v307 = vunpack.c.l.b16 %v83
  %v308 = vunpack.c.h.b16 %v83
  %v309 = vunpack.c.l.b16 %v84
  %v310 = vunpack.c.h.b16 %v84
  %v311 = vunpack.c.l.b16 %v85
  %v312 = vunpack.c.h.b16 %v85
  %v313 = vunpack.c.l.b16 %v86
  %v314 = vunpack.c.h.b16 %v86
  %v315 = vunpack.c.l.b16 %v87
  %v316 = vunpack.c.h.b16 %v87
  %v317 = vunpack.c.l.b16 %v88
  %v318 = vunpack.c.h.b16 %v88
  %v319 = vunpack.c.l.b16 %v89
  %v320 = vunpack.c.h.b16 %v89
  %v321 = vunpack.c.l.b16 %v90
  %v322 = vunpack.c.h.b16 %v90
  %v323 = vunpack.c.l.b16 %v91
  %v324 = vunpack.c.h.b16 %v91
  %v325 = vunpack.c.l.b16 %v92
  %v326 = vunpack.c.h.b16 %v92
  %v327 = vunpack.c.l.b16 %v93
  %v328 = vunpack.c.h.b16 %v93
  %v329 = vunpack.c.l.b16 %v94
  %v330 = vunpack.c.h.b16 %v94
  %v331 = vunpack.c.l.b16 %v95
  %v332 = vunpack.c.h.b16 %v95
  %v333 = vunpack.c.l.b16 %v96
  %v334 = vunpack.c.h.b16 %v96
  %v335 = vunpack.c.l.b16 %v97
  %v336 = vunpack.c.h.b16 %v97
  %v337 = vunpack.c.l.b16 %v98
  %v338 = vunpack.c.h.b16 %v98
  %v339 = vunpack.c.l.b16 %v99
  %v340 = vunpack.c.h.b16 %v99
  %v341 = vpack.c.b16 %v217, %v213
  %v342 = vpack.c.b16 %v218, %v214
  %v343 = vpack.c.b16 %v219, %v215
  %v344 = vpack.c.b16 %v220, %v216
  %v345 = vpack.c.b16 %v225, %v221
  %v346 = vpack.c.b16 %v226, %v222
  %v347 = vpack.c.b16 %v227, %v223
  %v348 = vpack.c.b16 %v228, %v224
  %v349 = vpack.c.b16 %v233, %v229
  %v350 = vpack.c.b16 %v234, %v230
  %v351 = vpack.c.b16 %v235, %v231
  %v352 = vpack.c.b16 %v236, %v232
  %v353 = vpack.c.b16 %v241, %v237
  %v354 = vpack.c.b16 %v242, %v238
  %v355 = vpack.c.b16 %v243, %v239
  %v356 = vpack.c.b16 %v244, %v240
  %v357 = vpack.c.b16 %v249, %v245
  %v358 = vpack.c.b16 %v250, %v246
  %v359 = vpack.c.b16 %v251, %v247
  %v360 = vpack.c.b16 %v252, %v248
  %v361 = vpack.c.b16 %v257, %v253
  %v362 = vpack.c.b16 %v258, %v254
  %v363 = vpack.c.b16 %v259, %v255
  %v364 = vpack.c.b16 %v260, %v256
  %v365 = vpack.c.b16 %v265, %v261
  %v366 = vpack.c.b16 %v266, %v262
  %v367 = vpack.c.b16 %v267, %v263
  %v368 = vpack.c.b16 %v268, %v264
  %v369 = vpack.c.b16 %v273, %v269
  %v370 = vpack.c.b16 %v274, %v270
  %v371 = vpack.c.b16 %v275, %v271
  %v372 = vpack.c.b16 %v276, %v272
  %v373 = vpack.c.b16 %v281, %v277
  %v374 = vpack.c.b16 %v282, %v278
  %v375 = vpack.c.b16 %v283, %v279
  %v376 = vpack.c.b16 %v284, %v280
  %v377 = vpack.c.b16 %v289, %v285
  %v378 = vpack.c.b16 %v290, %v286
  %v379 = vpack.c.b16 %v291, %v287
  %v380 = vpack.c.b16 %v292, %v288
  %v381 = vpack.c.b16 %v297, %v293
  %v382 = vpack.c.b16 %v298, %v294
  %v383 = vpack.c.b16 %v299, %v295
  %v384 = vpack.c.b16 %v300, %v296
  %v385 = vpack.c.b16 %v305, %v301
  %v386 = vpack.c.b16 %v306, %v302
  %v387 = vpack.c.b16 %v307, %v303
  %v388 = vpack.c.b16 %v308, %v304
  %v389 = vpack.c.b16 %v313, %v309
  %v390 = vpack.c.b16 %v314, %v310
  %v391 = vpack.c.b16 %v315, %v311
  %v392 = vpack.c.b16 %v316, %v312
  %v393 = vpack.c.b16 %v321, %v317
  %v394 = vpack.c.b16 %v322, %v318
  %v395 = vpack.c.b16 %v323, %v319
  %v396 = vpack.c.b16 %v324, %v320
  %v397 = vpack.c.b16 %v329, %v325
  %v398 = vpack.c.b16 %v330, %v326
  %v399 = vpack.c.b16 %v331, %v327
  %v400 = vpack.c.b16 %v332, %v328
  %v401 = vpack.c.b16 %v337, %v333
  %v402 = vpack.c.b16 %v338, %v334
  %v403 = vpack.c.b16 %v339, %v335
  %v404 = vpack.c.b16 %v340, %v336
  %469 = vmatprep.subr.bf16.mxu0 %v342
  %470 = vmatpush1.bf16.msra.mxu0 %v341
  %471 = vmatprep.subr.bf16.mxu0 %v346
  %472 = vmatpush1.bf16.msra.mxu0 %v345
  %473 = vmatprep.subr.bf16.mxu0 %v350
  %474 = vmatpush1.bf16.msra.mxu0 %v349
  %475 = vmatprep.subr.bf16.mxu0 %v354
  %476 = vmatpush1.bf16.msra.mxu0 %v353
  %477 = vmatprep.subr.bf16.mxu0 %v358
  %478 = vmatpush1.bf16.msra.mxu0 %v357
  %479 = vmatprep.subr.bf16.mxu0 %v362
  %480 = vmatpush1.bf16.msra.mxu0 %v361
  %481 = vmatprep.subr.bf16.mxu0 %v366
  %482 = vmatpush1.bf16.msra.mxu0 %v365
  %483 = vmatprep.subr.bf16.mxu0 %v370
  %484 = vmatpush1.bf16.msra.mxu0 %v369
  %485 = vmatprep.subr.bf16.mxu0 %v374
  %486 = vmatpush1.bf16.msra.mxu0 %v373
  %487 = vmatprep.subr.bf16.mxu0 %v378
  %488 = vmatpush1.bf16.msra.mxu0 %v377
  %489 = vmatprep.subr.bf16.mxu0 %v382
  %490 = vmatpush1.bf16.msra.mxu0 %v381
  %491 = vmatprep.subr.bf16.mxu0 %v386
  %492 = vmatpush1.bf16.msra.mxu0 %v385
  %493 = vmatprep.subr.bf16.mxu0 %v390
  %494 = vmatpush1.bf16.msra.mxu0 %v389
  %495 = vmatprep.subr.bf16.mxu0 %v394
  %496 = vmatpush1.bf16.msra.mxu0 %v393
  %497 = vmatprep.subr.bf16.mxu0 %v398
  %498 = vmatpush1.bf16.msra.mxu0 %v397
  %499 = vmatprep.subr.bf16.mxu0 %v402
  %500 = vmatpush1.bf16.msra.mxu0 %v401
  %501 = vmatprep.mubr.bf16.mxu0 %v146
  %502 = vmatmul.mubr.bf16.gmra.mrb[0].mxu0 %v145
  %v503 = vpop.f32.mrb[0].mxu0
  %v504 = vadd.f32 %v126, %v503
  %v505 = vpop.f32.mrb[0].mxu0
  %v506 = vadd.f32 %v130, %v505
  %v507 = vpop.f32.mrb[0].mxu0
  %v508 = vadd.f32 %v126, %v507
  %v509 = vpop.f32.mrb[0].mxu0
  %v510 = vadd.f32 %v130, %v509
  %511 = vdwg.mxu0
  %512 = vmatprep.subr.bf16.mxu0 %v344
  %513 = vmatpush1.bf16.msra.mxu0 %v343
  %514 = vmatprep.subr.bf16.mxu0 %v348
  %515 = vmatpush1.bf16.msra.mxu0 %v347
  %516 = vmatprep.subr.bf16.mxu0 %v352
  %517 = vmatpush1.bf16.msra.mxu0 %v351
  %518 = vmatprep.subr.bf16.mxu0 %v356
  %519 = vmatpush1.bf16.msra.mxu0 %v355
  %520 = vmatprep.subr.bf16.mxu0 %v360
  %521 = vmatpush1.bf16.msra.mxu0 %v359
  %522 = vmatprep.subr.bf16.mxu0 %v364
  %523 = vmatpush1.bf16.msra.mxu0 %v363
  %524 = vmatprep.subr.bf16.mxu0 %v368
  %525 = vmatpush1.bf16.msra.mxu0 %v367
  %526 = vmatprep.subr.bf16.mxu0 %v372
  %527 = vmatpush1.bf16.msra.mxu0 %v371
  %528 = vmatprep.subr.bf16.mxu0 %v376
  %529 = vmatpush1.bf16.msra.mxu0 %v375
  %530 = vmatprep.subr.bf16.mxu0 %v380
  %531 = vmatpush1.bf16.msra.mxu0 %v379
  %532 = vmatprep.subr.bf16.mxu0 %v384
  %533 = vmatpush1.bf16.msra.mxu0 %v383
  %534 = vmatprep.subr.bf16.mxu0 %v388
  %535 = vmatpush1.bf16.msra.mxu0 %v387
  %536 = vmatprep.subr.bf16.mxu0 %v392
  %537 = vmatpush1.bf16.msra.mxu0 %v391
  %538 = vmatprep.subr.bf16.mxu0 %v396
  %539 = vmatpush1.bf16.msra.mxu0 %v395
  %540 = vmatprep.subr.bf16.mxu0 %v400
  %541 = vmatpush1.bf16.msra.mxu0 %v399
  %542 = vmatprep.subr.bf16.mxu0 %v404
  %543 = vmatpush1.bf16.msra.mxu0 %v403
  %544 = vmatprep.mubr.bf16.mxu0 %v146
  %545 = vmatmul.mubr.bf16.gmra.mrb[0].mxu0 %v145
  %v546 = vpop.f32.mrb[0].mxu0
  %v547 = vadd.f32 %v134, %v546
  %v548 = vpop.f32.mrb[0].mxu0
  %v549 = vadd.f32 %v138, %v548
  %v550 = vpop.f32.mrb[0].mxu0
  %v551 = vadd.f32 %v134, %v550
  %v552 = vpop.f32.mrb[0].mxu0
  %v553 = vadd.f32 %v138, %v552
  %554 = vdwg.mxu0
  %v555 = vmax.f32 %v504, 0.0
  %v556 = vmax.f32 %v506, 0.0
  %v557 = vmax.f32 %v547, 0.0
  %v558 = vmax.f32 %v549, 0.0
  %v559 = vmax.f32 %v508, 0.0
  %v560 = vmax.f32 %v510, 0.0
  %v561 = vmax.f32 %v551, 0.0
  %v562 = vmax.f32 %v553, 0.0
  %v563 = vpack.c.bf16 %v559, %v555
  %v564 = vpack.c.bf16 %v560, %v556
  %v565 = vpack.c.bf16 %v561, %v557
  %v566 = vpack.c.bf16 %v562, %v558
  %v567 = vld [vmem:[#allocation2] sm:$0xff]
  %v568 = vld [vmem:[#allocation2 + $0x8] sm:$0xff]
  %v569 = vld [vmem:[#allocation2 + $0x10] sm:$0xff]
  %v570 = vld [vmem:[#allocation2 + $0x18] sm:$0xff]
  %v571 = vld [vmem:[%s3] sm:$0xff]
  %v572 = vld [vmem:[%s3 + $0x8] sm:$0xff]
  %v573 = vld [vmem:[%s3 + $0x10] sm:$0xff]
  %v574 = vld [vmem:[%s3 + $0x18] sm:$0xff]
  %v575 = vld [vmem:[%s3 + $0x20] sm:$0xff]
  %v576 = vld [vmem:[%s3 + $0x28] sm:$0xff]
  %v577 = vld [vmem:[%s3 + $0x30] sm:$0xff]
  %v578 = vld [vmem:[%s3 + $0x38] sm:$0xff]
  %v579 = vld [vmem:[%s3 + $0x40] sm:$0xff]
  %v580 = vld [vmem:[%s3 + $0x48] sm:$0xff]
  %v581 = vld [vmem:[%s3 + $0x50] sm:$0xff]
  %v582 = vld [vmem:[%s3 + $0x58] sm:$0xff]
  %v583 = vld [vmem:[%s3 + $0x60] sm:$0xff]
  %v584 = vld [vmem:[%s3 + $0x68] sm:$0xff]
  %v585 = vld [vmem:[%s3 + $0x70] sm:$0xff]
  %v586 = vld [vmem:[%s3 + $0x78] sm:$0xff]
  %v587 = vld [vmem:[%s3 + $0x80] sm:$0xff]
  %v588 = vld [vmem:[%s3 + $0x88] sm:$0xff]
  %v589 = vld [vmem:[%s3 + $0x90] sm:$0xff]
  %v590 = vld [vmem:[%s3 + $0x98] sm:$0xff]
  %v591 = vld [vmem:[%s3 + $0xa0] sm:$0xff]
  %v592 = vld [vmem:[%s3 + $0xa8] sm:$0xff]
  %v593 = vld [vmem:[%s3 + $0xb0] sm:$0xff]
  %v594 = vld [vmem:[%s3 + $0xb8] sm:$0xff]
  %v595 = vld [vmem:[%s3 + $0xc0] sm:$0xff]
  %v596 = vld [vmem:[%s3 + $0xc8] sm:$0xff]
  %v597 = vld [vmem:[%s3 + $0xd0] sm:$0xff]
  %v598 = vld [vmem:[%s3 + $0xd8] sm:$0xff]
  %v599 = vld [vmem:[%s3 + $0xe0] sm:$0xff]
  %v600 = vld [vmem:[%s3 + $0xe8] sm:$0xff]
  %v601 = vld [vmem:[%s3 + $0xf0] sm:$0xff]
  %v602 = vld [vmem:[%s3 + $0xf8] sm:$0xff]
  %v603 = vld [vmem:[%s3 + $0x100] sm:$0xff]
  %v604 = vld [vmem:[%s3 + $0x108] sm:$0xff]
  %v605 = vld [vmem:[%s3 + $0x110] sm:$0xff]
  %v606 = vld [vmem:[%s3 + $0x118] sm:$0xff]
  %v607 = vld [vmem:[%s3 + $0x120] sm:$0xff]
  %v608 = vld [vmem:[%s3 + $0x128] sm:$0xff]
  %v609 = vld [vmem:[%s3 + $0x130] sm:$0xff]
  %v610 = vld [vmem:[%s3 + $0x138] sm:$0xff]
  %v611 = vld [vmem:[%s3 + $0x140] sm:$0xff]
  %v612 = vld [vmem:[%s3 + $0x148] sm:$0xff]
  %v613 = vld [vmem:[%s3 + $0x150] sm:$0xff]
  %v614 = vld [vmem:[%s3 + $0x158] sm:$0xff]
  %v615 = vld [vmem:[%s3 + $0x160] sm:$0xff]
  %v616 = vld [vmem:[%s3 + $0x168] sm:$0xff]
  %v617 = vld [vmem:[%s3 + $0x170] sm:$0xff]
  %v618 = vld [vmem:[%s3 + $0x178] sm:$0xff]
  %v619 = vld [vmem:[%s3 + $0x180] sm:$0xff]
  %v620 = vld [vmem:[%s3 + $0x188] sm:$0xff]
  %v621 = vld [vmem:[%s3 + $0x190] sm:$0xff]
  %v622 = vld [vmem:[%s3 + $0x198] sm:$0xff]
  %v623 = vld [vmem:[%s3 + $0x1a0] sm:$0xff]
  %v624 = vld [vmem:[%s3 + $0x1a8] sm:$0xff]
  %v625 = vld [vmem:[%s3 + $0x1b0] sm:$0xff]
  %v626 = vld [vmem:[%s3 + $0x1b8] sm:$0xff]
  %v627 = vld [vmem:[%s3 + $0x1c0] sm:$0xff]
  %v628 = vld [vmem:[%s3 + $0x1c8] sm:$0xff]
  %v629 = vld [vmem:[%s3 + $0x1d0] sm:$0xff]
  %v630 = vld [vmem:[%s3 + $0x1d8] sm:$0xff]
  %v631 = vld [vmem:[%s3 + $0x1e0] sm:$0xff]
  %v632 = vld [vmem:[%s3 + $0x1e8] sm:$0xff]
  %v633 = vld [vmem:[%s3 + $0x1f0] sm:$0xff]
  %v634 = vld [vmem:[%s3 + $0x1f8] sm:$0xff]
  %v699 = vunpack.c.l.b16 %v571
  %v700 = vunpack.c.h.b16 %v571
  %v701 = vunpack.c.l.b16 %v572
  %v702 = vunpack.c.h.b16 %v572
  %v703 = vunpack.c.l.b16 %v573
  %v704 = vunpack.c.h.b16 %v573
  %v705 = vunpack.c.l.b16 %v574
  %v706 = vunpack.c.h.b16 %v574
  %v707 = vunpack.c.l.b16 %v575
  %v708 = vunpack.c.h.b16 %v575
  %v709 = vunpack.c.l.b16 %v576
  %v710 = vunpack.c.h.b16 %v576
  %v711 = vunpack.c.l.b16 %v577
  %v712 = vunpack.c.h.b16 %v577
  %v713 = vunpack.c.l.b16 %v578
  %v714 = vunpack.c.h.b16 %v578
  %v715 = vunpack.c.l.b16 %v579
  %v716 = vunpack.c.h.b16 %v579
  %v717 = vunpack.c.l.b16 %v580
  %v718 = vunpack.c.h.b16 %v580
  %v719 = vunpack.c.l.b16 %v581
  %v720 = vunpack.c.h.b16 %v581
  %v721 = vunpack.c.l.b16 %v582
  %v722 = vunpack.c.h.b16 %v582
  %v723 = vunpack.c.l.b16 %v583
  %v724 = vunpack.c.h.b16 %v583
  %v725 = vunpack.c.l.b16 %v584
  %v726 = vunpack.c.h.b16 %v584
  %v727 = vunpack.c.l.b16 %v585
  %v728 = vunpack.c.h.b16 %v585
  %v729 = vunpack.c.l.b16 %v586
  %v730 = vunpack.c.h.b16 %v586
  %v731 = vunpack.c.l.b16 %v587
  %v732 = vunpack.c.h.b16 %v587
  %v733 = vunpack.c.l.b16 %v588
  %v734 = vunpack.c.h.b16 %v588
  %v735 = vunpack.c.l.b16 %v589
  %v736 = vunpack.c.h.b16 %v589
  %v737 = vunpack.c.l.b16 %v590
  %v738 = vunpack.c.h.b16 %v590
  %v739 = vunpack.c.l.b16 %v591
  %v740 = vunpack.c.h.b16 %v591
  %v741 = vunpack.c.l.b16 %v592
  %v742 = vunpack.c.h.b16 %v592
  %v743 = vunpack.c.l.b16 %v593
  %v744 = vunpack.c.h.b16 %v593
  %v745 = vunpack.c.l.b16 %v594
  %v746 = vunpack.c.h.b16 %v594
  %v747 = vunpack.c.l.b16 %v595
  %v748 = vunpack.c.h.b16 %v595
  %v749 = vunpack.c.l.b16 %v596
  %v750 = vunpack.c.h.b16 %v596
  %v751 = vunpack.c.l.b16 %v597
  %v752 = vunpack.c.h.b16 %v597
  %v753 = vunpack.c.l.b16 %v598
  %v754 = vunpack.c.h.b16 %v598
  %v755 = vunpack.c.l.b16 %v599
  %v756 = vunpack.c.h.b16 %v599
  %v757 = vunpack.c.l.b16 %v600
  %v758 = vunpack.c.h.b16 %v600
  %v759 = vunpack.c.l.b16 %v601
  %v760 = vunpack.c.h.b16 %v601
  %v761 = vunpack.c.l.b16 %v602
  %v762 = vunpack.c.h.b16 %v602
  %v763 = vunpack.c.l.b16 %v603
  %v764 = vunpack.c.h.b16 %v603
  %v765 = vunpack.c.l.b16 %v604
  %v766 = vunpack.c.h.b16 %v604
  %v767 = vunpack.c.l.b16 %v605
  %v768 = vunpack.c.h.b16 %v605
  %v769 = vunpack.c.l.b16 %v606
  %v770 = vunpack.c.h.b16 %v606
  %v771 = vunpack.c.l.b16 %v607
  %v772 = vunpack.c.h.b16 %v607
  %v773 = vunpack.c.l.b16 %v608
  %v774 = vunpack.c.h.b16 %v608
  %v775 = vunpack.c.l.b16 %v609
  %v776 = vunpack.c.h.b16 %v609
  %v777 = vunpack.c.l.b16 %v610
  %v778 = vunpack.c.h.b16 %v610
  %v779 = vunpack.c.l.b16 %v611
  %v780 = vunpack.c.h.b16 %v611
  %v781 = vunpack.c.l.b16 %v612
  %v782 = vunpack.c.h.b16 %v612
  %v783 = vunpack.c.l.b16 %v613
  %v784 = vunpack.c.h.b16 %v613
  %v785 = vunpack.c.l.b16 %v614
  %v786 = vunpack.c.h.b16 %v614
  %v787 = vunpack.c.l.b16 %v615
  %v788 = vunpack.c.h.b16 %v615
  %v789 = vunpack.c.l.b16 %v616
  %v790 = vunpack.c.h.b16 %v616
  %v791 = vunpack.c.l.b16 %v617
  %v792 = vunpack.c.h.b16 %v617
  %v793 = vunpack.c.l.b16 %v618
  %v794 = vunpack.c.h.b16 %v618
  %v795 = vunpack.c.l.b16 %v619
  %v796 = vunpack.c.h.b16 %v619
  %v797 = vunpack.c.l.b16 %v620
  %v798 = vunpack.c.h.b16 %v620
  %v799 = vunpack.c.l.b16 %v621
  %v800 = vunpack.c.h.b16 %v621
  %v801 = vunpack.c.l.b16 %v622
  %v802 = vunpack.c.h.b16 %v622
  %v803 = vunpack.c.l.b16 %v623
  %v804 = vunpack.c.h.b16 %v623
  %v805 = vunpack.c.l.b16 %v624
  %v806 = vunpack.c.h.b16 %v624
  %v807 = vunpack.c.l.b16 %v625
  %v808 = vunpack.c.h.b16 %v625
  %v809 = vunpack.c.l.b16 %v626
  %v810 = vunpack.c.h.b16 %v626
  %v811 = vunpack.c.l.b16 %v627
  %v812 = vunpack.c.h.b16 %v627
  %v813 = vunpack.c.l.b16 %v628
  %v814 = vunpack.c.h.b16 %v628
  %v815 = vunpack.c.l.b16 %v629
  %v816 = vunpack.c.h.b16 %v629
  %v817 = vunpack.c.l.b16 %v630
  %v818 = vunpack.c.h.b16 %v630
  %v819 = vunpack.c.l.b16 %v631
  %v820 = vunpack.c.h.b16 %v631
  %v821 = vunpack.c.l.b16 %v632
  %v822 = vunpack.c.h.b16 %v632
  %v823 = vunpack.c.l.b16 %v633
  %v824 = vunpack.c.h.b16 %v633
  %v825 = vunpack.c.l.b16 %v634
  %v826 = vunpack.c.h.b16 %v634
  %v827 = vpack.c.b16 %v701, %v699
  %v828 = vpack.c.b16 %v702, %v700
  %v829 = vpack.c.b16 %v705, %v703
  %v830 = vpack.c.b16 %v706, %v704
  %v831 = vpack.c.b16 %v709, %v707
  %v832 = vpack.c.b16 %v710, %v708
  %v833 = vpack.c.b16 %v713, %v711
  %v834 = vpack.c.b16 %v714, %v712
  %v835 = vpack.c.b16 %v717, %v715
  %v836 = vpack.c.b16 %v718, %v716
  %v837 = vpack.c.b16 %v721, %v719
  %v838 = vpack.c.b16 %v722, %v720
  %v839 = vpack.c.b16 %v725, %v723
  %v840 = vpack.c.b16 %v726, %v724
  %v841 = vpack.c.b16 %v729, %v727
  %v842 = vpack.c.b16 %v730, %v728
  %v843 = vpack.c.b16 %v733, %v731
  %v844 = vpack.c.b16 %v734, %v732
  %v845 = vpack.c.b16 %v737, %v735
  %v846 = vpack.c.b16 %v738, %v736
  %v847 = vpack.c.b16 %v741, %v739
  %v848 = vpack.c.b16 %v742, %v740
  %v849 = vpack.c.b16 %v745, %v743
  %v850 = vpack.c.b16 %v746, %v744
  %v851 = vpack.c.b16 %v749, %v747
  %v852 = vpack.c.b16 %v750, %v748
  %v853 = vpack.c.b16 %v753, %v751
  %v854 = vpack.c.b16 %v754, %v752
  %v855 = vpack.c.b16 %v757, %v755
  %v856 = vpack.c.b16 %v758, %v756
  %v857 = vpack.c.b16 %v761, %v759
  %v858 = vpack.c.b16 %v762, %v760
  %v859 = vpack.c.b16 %v765, %v763
  %v860 = vpack.c.b16 %v766, %v764
  %v861 = vpack.c.b16 %v769, %v767
  %v862 = vpack.c.b16 %v770, %v768
  %v863 = vpack.c.b16 %v773, %v771
  %v864 = vpack.c.b16 %v774, %v772
  %v865 = vpack.c.b16 %v777, %v775
  %v866 = vpack.c.b16 %v778, %v776
  %v867 = vpack.c.b16 %v781, %v779
  %v868 = vpack.c.b16 %v782, %v780
  %v869 = vpack.c.b16 %v785, %v783
  %v870 = vpack.c.b16 %v786, %v784
  %v871 = vpack.c.b16 %v789, %v787
  %v872 = vpack.c.b16 %v790, %v788
  %v873 = vpack.c.b16 %v793, %v791
  %v874 = vpack.c.b16 %v794, %v792
  %v875 = vpack.c.b16 %v797, %v795
  %v876 = vpack.c.b16 %v798, %v796
  %v877 = vpack.c.b16 %v801, %v799
  %v878 = vpack.c.b16 %v802, %v800
  %v879 = vpack.c.b16 %v805, %v803
  %v880 = vpack.c.b16 %v806, %v804
  %v881 = vpack.c.b16 %v809, %v807
  %v882 = vpack.c.b16 %v810, %v808
  %v883 = vpack.c.b16 %v813, %v811
  %v884 = vpack.c.b16 %v814, %v812
  %v885 = vpack.c.b16 %v817, %v815
  %v886 = vpack.c.b16 %v818, %v816
  %v887 = vpack.c.b16 %v821, %v819
  %v888 = vpack.c.b16 %v822, %v820
  %v889 = vpack.c.b16 %v825, %v823
  %v890 = vpack.c.b16 %v826, %v824
  %955 = vmatprep.subr.bf16.mxu0 %v828
  %956 = vmatpush1.bf16.msra.mxu0 %v827
  %957 = vmatprep.subr.bf16.mxu0 %v830
  %958 = vmatpush1.bf16.msra.mxu0 %v829
  %959 = vmatprep.subr.bf16.mxu0 %v832
  %960 = vmatpush1.bf16.msra.mxu0 %v831
  %961 = vmatprep.subr.bf16.mxu0 %v834
  %962 = vmatpush1.bf16.msra.mxu0 %v833
  %963 = vmatprep.subr.bf16.mxu0 %v836
  %964 = vmatpush1.bf16.msra.mxu0 %v835
  %965 = vmatprep.subr.bf16.mxu0 %v838
  %966 = vmatpush1.bf16.msra.mxu0 %v837
  %967 = vmatprep.subr.bf16.mxu0 %v840
  %968 = vmatpush1.bf16.msra.mxu0 %v839
  %969 = vmatprep.subr.bf16.mxu0 %v842
  %970 = vmatpush1.bf16.msra.mxu0 %v841
  %971 = vmatprep.subr.bf16.mxu0 %v844
  %972 = vmatpush1.bf16.msra.mxu0 %v843
  %973 = vmatprep.subr.bf16.mxu0 %v846
  %974 = vmatpush1.bf16.msra.mxu0 %v845
  %975 = vmatprep.subr.bf16.mxu0 %v848
  %976 = vmatpush1.bf16.msra.mxu0 %v847
  %977 = vmatprep.subr.bf16.mxu0 %v850
  %978 = vmatpush1.bf16.msra.mxu0 %v849
  %979 = vmatprep.subr.bf16.mxu0 %v852
  %980 = vmatpush1.bf16.msra.mxu0 %v851
  %981 = vmatprep.subr.bf16.mxu0 %v854
  %982 = vmatpush1.bf16.msra.mxu0 %v853
  %983 = vmatprep.subr.bf16.mxu0 %v856
  %984 = vmatpush1.bf16.msra.mxu0 %v855
  %985 = vmatprep.subr.bf16.mxu0 %v858
  %986 = vmatpush1.bf16.msra.mxu0 %v857
  %987 = vmatprep.mubr.bf16.mxu0 %v564
  %988 = vmatmul.mubr.bf16.gmra.mrb[0].mxu0 %v563
  %v989 = vpop.f32.mrb[0].mxu0
  %v990 = vadd.f32 0.0, %v989
  %v991 = vpop.f32.mrb[0].mxu0
  %v992 = vadd.f32 0.0, %v991
  %v993 = vpop.f32.mrb[0].mxu0
  %v994 = vadd.f32 0.0, %v993
  %v995 = vpop.f32.mrb[0].mxu0
  %v996 = vadd.f32 0.0, %v995
  %997 = vdwg.mxu0
  %998 = vmatprep.subr.bf16.mxu0 %v860
  %999 = vmatpush1.bf16.msra.mxu0 %v859
  %1000 = vmatprep.subr.bf16.mxu0 %v862
  %1001 = vmatpush1.bf16.msra.mxu0 %v861
  %1002 = vmatprep.subr.bf16.mxu0 %v864
  %1003 = vmatpush1.bf16.msra.mxu0 %v863
  %1004 = vmatprep.subr.bf16.mxu0 %v866
  %1005 = vmatpush1.bf16.msra.mxu0 %v865
  %1006 = vmatprep.subr.bf16.mxu0 %v868
  %1007 = vmatpush1.bf16.msra.mxu0 %v867
  %1008 = vmatprep.subr.bf16.mxu0 %v870
  %1009 = vmatpush1.bf16.msra.mxu0 %v869
  %1010 = vmatprep.subr.bf16.mxu0 %v872
  %1011 = vmatpush1.bf16.msra.mxu0 %v871
  %1012 = vmatprep.subr.bf16.mxu0 %v874
  %1013 = vmatpush1.bf16.msra.mxu0 %v873
  %1014 = vmatprep.subr.bf16.mxu0 %v876
  %1015 = vmatpush1.bf16.msra.mxu0 %v875
  %1016 = vmatprep.subr.bf16.mxu0 %v878
  %1017 = vmatpush1.bf16.msra.mxu0 %v877
  %1018 = vmatprep.subr.bf16.mxu0 %v880
  %1019 = vmatpush1.bf16.msra.mxu0 %v879
  %1020 = vmatprep.subr.bf16.mxu0 %v882
  %1021 = vmatpush1.bf16.msra.mxu0 %v881
  %1022 = vmatprep.subr.bf16.mxu0 %v884
  %1023 = vmatpush1.bf16.msra.mxu0 %v883
  %1024 = vmatprep.subr.bf16.mxu0 %v886
  %1025 = vmatpush1.bf16.msra.mxu0 %v885
  %1026 = vmatprep.subr.bf16.mxu0 %v888
  %1027 = vmatpush1.bf16.msra.mxu0 %v887
  %1028 = vmatprep.subr.bf16.mxu0 %v890
  %1029 = vmatpush1.bf16.msra.mxu0 %v889
  %1030 = vmatprep.mubr.bf16.mxu0 %v566
  %1031 = vmatmul.mubr.bf16.gmra.mrb[0].mxu0 %v565
  %v1032 = vpop.f32.mrb[0].mxu0
  %v1033 = vadd.f32 %v990, %v1032
  %v1034 = vpop.f32.mrb[0].mxu0
  %v1035 = vadd.f32 %v992, %v1034
  %v1036 = vpop.f32.mrb[0].mxu0
  %v1037 = vadd.f32 %v994, %v1036
  %v1038 = vpop.f32.mrb[0].mxu0
  %v1039 = vadd.f32 %v996, %v1038
  %1040 = vdwg.mxu0
  %v1041 = vadd.f32 %v567, %v1033
  %v1042 = vadd.f32 %v568, %v1035
  %v1043 = vadd.f32 %v569, %v1037
  %v1044 = vadd.f32 %v570, %v1039
  %1045 = vst [vmem:[#allocation2] sm:$0xff] %v1041
  %1046 = vst [vmem:[#allocation2 + $0x8] sm:$0xff] %v1042
  %1047 = vst [vmem:[#allocation2 + $0x10] sm:$0xff] %v1043
  %1048 = vst [vmem:[#allocation2 + $0x18] sm:$0xff] %v1044
  // Predicated region
  $region34: #{transformer_forward.12} parent=0 // pred_check
    %p1049 = pneg %p26
  $region35: #{transformer_forward.12} parent=0 // pred_check_branch
    %1051 = sbr.rel (%p1049) target = $region37
  $region36: #{transformer_forward.12} parent=0 // pred_region
    %v1052 = vld [vmem:[#allocation2] sm:$0xff]
    %v1053 = vld [vmem:[#allocation2 + $0x8] sm:$0xff]
    %v1054 = vld [vmem:[#allocation2 + $0x10] sm:$0xff]
    %v1055 = vld [vmem:[#allocation2 + $0x18] sm:$0xff]
    %v1056 = vld [vmem:[%s4] sm:$0x3]
    %v1057 = vunpack.c.l.bf16 %v1056
    %v1059 = vlaneseq
    %v1060 = vshrl.u32 %v1059, 7
    %v1061 = vsub.s32 0, %v1060
    %v1062 = vrot.slane %v1057, %v1061
    %v1063 = vlaneseq
    %v1064 = vshrl.u32 %v1063, 7
    %v1065 = vsub.s32 2, %v1064
    %v1066 = vrot.slane %v1057, %v1065
    %v1069 = vlaneseq
    %v1070 = vshrl.u32 %v1069, 7
    %v1071 = vsub.s32 0, %v1070
    %v1072 = vrot.slane %v1062, %v1071
    %v1073 = vlaneseq
    %v1074 = vshrl.u32 %v1073, 7
    %v1075 = vsub.s32 0, %v1074
    %v1076 = vrot.slane %v1066, %v1075
    %v1077 = vadd.f32 %v1052, %v1072
    %v1078 = vadd.f32 %v1053, %v1076
    %v1079 = vadd.f32 %v1054, %v1072
    %v1080 = vadd.f32 %v1055, %v1076
    %v1081 = vld [vmem:[%s0] sm:$0xff]
    %v1082 = vld [vmem:[%s0 + $0x8] sm:$0xff]
    %v1083 = vunpack.c.l.bf16 %v1081
    %v1084 = vunpack.c.h.bf16 %v1081
    %v1085 = vunpack.c.l.bf16 %v1082
    %v1086 = vunpack.c.h.bf16 %v1082
    %v1087 = vadd.f32 %v1077, %v1083
    %v1088 = vadd.f32 %v1078, %v1084
    %v1089 = vadd.f32 %v1079, %v1085
    %v1090 = vadd.f32 %v1080, %v1086
    %v1091 = vld [vmem:[%s5] sm:$0x3]
    %v1092 = vunpack.c.l.bf16 %v1091
    %v1093 = vld [vmem:[%s6] sm:$0x3]
    %v1094 = vunpack.c.l.bf16 %v1093
    %v1095 = vadd.f32 %v1087, %v1088
    %1096 = vadd.xlane.f32.xlu0 %v1095
    %v1097 = vpop.xlane.xlu0 %1096
    %v1098 = vadd.f32 %v1089, %v1090
    %1099 = vadd.xlane.f32.xlu0 %v1098
    %v1100 = vpop.xlane.xlu0 %1099
    %v1101 = vrcp.pop 256.0
    %v1102 = vmul.f32 %v1097, %v1101
    %v1103 = vmul.f32 %v1100, %v1101
    %v1104 = vsub.f32 %v1087, %v1102
    %v1105 = vsub.f32 %v1088, %v1102
    %v1106 = vsub.f32 %v1089, %v1103
    %v1107 = vsub.f32 %v1090, %v1103
    %v1108 = vmul.f32 %v1104, %v1104
    %v1109 = vmul.f32 %v1105, %v1105
    %v1110 = vmul.f32 %v1106, %v1106
    %v1111 = vmul.f32 %v1107, %v1107
    %v1112 = vadd.f32 %v1108, %v1109
    %1113 = vadd.xlane.f32.xlu0 %v1112
    %v1114 = vpop.xlane.xlu0 %1113
    %v1115 = vadd.f32 %v1110, %v1111
    %1116 = vadd.xlane.f32.xlu0 %v1115
    %v1117 = vpop.xlane.xlu0 %1116
    %v1118 = vmul.f32 %v1114, %v1101
    %v1119 = vmul.f32 %v1117, %v1101
    %v1120 = vadd.f32 %v1118, 1e-05
    %v1121 = vadd.f32 %v1119, 1e-05
    %v1122 = vrsqrt.pop %v1120
    %v1123 = vrsqrt.pop %v1121
    %v1124 = vmul.f32 %v1104, %v1122
    %v1125 = vmul.f32 %v1105, %v1122
    %v1126 = vmul.f32 %v1106, %v1123
    %v1127 = vmul.f32 %v1107, %v1123
    %v1129 = vlaneseq
    %v1130 = vshrl.u32 %v1129, 7
    %v1131 = vsub.s32 0, %v1130
    %v1132 = vrot.slane %v1092, %v1131
    %v1133 = vlaneseq
    %v1134 = vshrl.u32 %v1133, 7
    %v1135 = vsub.s32 2, %v1134
    %v1136 = vrot.slane %v1092, %v1135
    %v1139 = vlaneseq
    %v1140 = vshrl.u32 %v1139, 7
    %v1141 = vsub.s32 0, %v1140
    %v1142 = vrot.slane %v1132, %v1141
    %v1143 = vlaneseq
    %v1144 = vshrl.u32 %v1143, 7
    %v1145 = vsub.s32 0, %v1144
    %v1146 = vrot.slane %v1136, %v1145
    %v1147 = vmul.f32 %v1124, %v1142
    %v1148 = vmul.f32 %v1125, %v1146
    %v1149 = vmul.f32 %v1126, %v1142
    %v1150 = vmul.f32 %v1127, %v1146
    %v1152 = vlaneseq
    %v1153 = vshrl.u32 %v1152, 7
    %v1154 = vsub.s32 0, %v1153
    %v1155 = vrot.slane %v1094, %v1154
    %v1156 = vlaneseq
    %v1157 = vshrl.u32 %v1156, 7
    %v1158 = vsub.s32 2, %v1157
    %v1159 = vrot.slane %v1094, %v1158
    %v1162 = vlaneseq
    %v1163 = vshrl.u32 %v1162, 7
    %v1164 = vsub.s32 0, %v1163
    %v1165 = vrot.slane %v1155, %v1164
    %v1166 = vlaneseq
    %v1167 = vshrl.u32 %v1166, 7
    %v1168 = vsub.s32 0, %v1167
    %v1169 = vrot.slane %v1159, %v1168
    %v1170 = vadd.f32 %v1147, %v1165
    %v1171 = vadd.f32 %v1148, %v1169
    %v1172 = vadd.f32 %v1149, %v1165
    %v1173 = vadd.f32 %v1150, %v1169
    %v1174 = vpack.c.bf16 %v1172, %v1170
    %v1175 = vpack.c.bf16 %v1173, %v1171
    %v1178 = vunpack.c.l.b16 %v1174
    %v1179 = vunpack.c.l.b16 %v1175
    %v1180 = vunpack.c.h.b16 %v1174
    %v1181 = vunpack.c.h.b16 %v1175
    %v1182 = vpack.c.b16 %v1179, %v1178
    %v1183 = vpack.c.b16 %v1181, %v1180
    %1186 = vst [vmem:[%s7] sm:$0xff] %v1182
    %1187 = vst [vmem:[%s7 + $0x8] sm:$0xff] %v1183
  $region37: #{transformer_forward.12} parent=0 // pred_fallthru
    _
  // Predicated region
  $region38: #{transformer_forward.12} parent=0 // pred_check
    _
  $region39: #{transformer_forward.12} parent=0 // pred_check_branch
    %1189 = sbr.rel (0) target = $region41
  $region40: #{transformer_forward.12} parent=0 // pred_region
    _
  $region41: #{transformer_forward.12} parent=0 // pred_fallthru
    _
  // Predicated region
  $region42: #{transformer_forward.12} parent=0 // pred_check
    _
  $region43: #{transformer_forward.12} parent=0 // pred_check_branch
    %1191 = sbr.rel (0) target = $region45
  $region44: #{transformer_forward.12} parent=0 // pred_region
    _
  $region45: #{transformer_forward.12} parent=0 // pred_fallthru
    _

// kernel: transformer_forward.16
$region0: #{transformer_forward.16}
  #allocation0 [shape = 'u32[]', space=smem, size = 0x4, offset = 0x4, fixed_abs, tag = 'smem constant byte address 0x4 - core index']
  #allocation1 [shape = 'u32[144,128]{1,0:T(1,128)}', space=vmem, size = 0x12000, scoped, tag = 'internal scratch']
  %s0 = inlined_call_operand.vmem [shape: bf16[2,8,256], index: 0, kind: input, shape index: {}]
  %s1 = inlined_call_operand.vmem [shape: bf16[2,8,256], index: 1, kind: input, shape index: {}]
  %s2 = inlined_call_operand.vmem [shape: bf16[256,256], index: 2, kind: input, shape index: {}]
  %s3 = inlined_call_operand.vmem [shape: bf16[1,256], index: 3, kind: input, shape index: {}]
  %s4 = inlined_call_operand.vmem [shape: bf16[256,512], index: 4, kind: input, shape index: {}]
  %s5 = inlined_call_operand.vmem [shape: bf16[1,512], index: 5, kind: input, shape index: {}]
  %s6 = inlined_call_operand.vmem [shape: bf16[256,256], index: 6, kind: input, shape index: {}]
  %s7 = inlined_call_operand.vmem [shape: bf16[1,256], index: 7, kind: input, shape index: {}]
  %s8 = inlined_call_operand.vmem [shape: bf16[1,256], index: 8, kind: input, shape index: {}]
  %s9 = inlined_call_operand.vmem [shape: bf16[1,256], index: 9, kind: input, shape index: {}]
  %s10 = inlined_call_operand.vmem [shape: bf16[2,8,256], index: 10, kind: output, shape index: {}]
  %s11 = sld [smem:[#allocation0]]
  $region73: #{transformer_forward.16} parent=0
    _
  %s13 = ssub.s32 1, %s11
  %s14 = scalar_select 0, %s13, %s11
  loop: start=0, step=1, limit=4
  $region2: #{transformer_forward.16} parent=0 // loop_pre_header
    _
  $region3: #{transformer_forward.16} parent=0 // loop_header
    %s16 = sphi 0, %s20
    %p17 = scmp.ge.s32.totalorder %s16, 4
    %s26 = sphi 0, %s28
    %s29 = sphi 0, %s26
    %s30 = sphi 0, %s29
    %s46 = sphi 0, %s30
    %s52 = sphi 0, %s54
    %s55 = sphi 0, %s52
    %s56 = sphi 0, %s55
    %s72 = sphi 0, %s56
    %s76 = sphi 0, %s76
    %s78 = sphi 0, %s76
    %s79 = sphi 0, %s78
    %s93 = sphi 0, %s79
    %s97 = sphi 0, %s97
    %s99 = sphi 0, %s97
    %s100 = sphi 0, %s99
    %s114 = sphi 0, %s100
    %s118 = sphi 0, %s118
    %s120 = sphi 0, %s118
    %s121 = sphi 0, %s120
    %s135 = sphi 0, %s121
    %s139 = sphi 0, %s139
    %s141 = sphi 0, %s139
    %s142 = sphi 0, %s141
    %s156 = sphi 0, %s142
    %s160 = sphi 0, %s160
    %s162 = sphi 0, %s160
    %s163 = sphi 0, %s162
    %s177 = sphi 0, %s163
    %s181 = sphi 0, %s181
    %s183 = sphi 0, %s181
    %s184 = sphi 0, %s183
    %s198 = sphi 0, %s184
    %s202 = sphi 0, %s202
    %s204 = sphi 0, %s202
    %s205 = sphi 0, %s204
    %s219 = sphi 0, %s205
    %s223 = sphi 0, %s223
    %s225 = sphi 0, %s223
    %s226 = sphi 0, %s225
    %s240 = sphi 0, %s226
    %s246 = sphi 0, %s248
    %s249 = sphi 0, %s246
    %s250 = sphi 0, %s249
    %s266 = sphi 0, %s250
  $region4: #{transformer_forward.16} parent=0 // loop_header_branch
    %19 = sbr.rel (%p17) target = $region8
  $region5: #{transformer_forward.16} parent=0 // loop_body
    %s21 = ssub.s32 %s16, 1
    %s22 = ssub.s32 %s16, 2
    %s23 = sadd.s32 %s16, 1
    %s24 = ssub.s32 %s16, %s23
    %p25 = scmp.eq.s32.totalorder %s24, 0
    %s27 = sadd.s32 %s26, 1
    %s28 = scalar_select %p25, %s26, %s27
    %p31 = pneg %p25
    %p32 = scmp.eq.s32.totalorder %s16, 1
    %p33 = por %p31, %p32
    %p34 = scmp.ne.s32.totalorder %s26, %s29
    %p35 = scmp.eq.s32.totalorder %s16, 0
    %p36 = por %p34, %p35
    %p37 = scmp.ne.s32.totalorder %s26, %s29
    %p38 = scmp.eq.s32.totalorder %s21, 1
    %p39 = por %p37, %p38
    %p40 = scmp.ne.s32.totalorder %s29, %s30
    %p41 = scmp.eq.s32.totalorder %s21, 0
    %p42 = por %p40, %p41
    %p43 = scmp.ne.s32.totalorder %s29, %s30
    %p44 = scmp.eq.s32.totalorder %s22, 1
    %p45 = por %p43, %p44
    %p47 = scmp.ne.s32.totalorder %s30, %s46
    %p48 = scmp.eq.s32.totalorder %s22, 0
    %p49 = por %p47, %p48
    %s50 = ssub.s32 %s16, %s23
    %p51 = scmp.eq.s32.totalorder %s50, 0
    %s53 = sadd.s32 %s52, 1
    %s54 = scalar_select %p51, %s52, %s53
    %p57 = pneg %p51
    %p58 = scmp.eq.s32.totalorder %s16, 1
    %p59 = por %p57, %p58
    %p60 = scmp.ne.s32.totalorder %s52, %s55
    %p61 = scmp.eq.s32.totalorder %s16, 0
    %p62 = por %p60, %p61
    %p63 = scmp.ne.s32.totalorder %s52, %s55
    %p64 = scmp.eq.s32.totalorder %s21, 1
    %p65 = por %p63, %p64
    %p66 = scmp.ne.s32.totalorder %s55, %s56
    %p67 = scmp.eq.s32.totalorder %s21, 0
    %p68 = por %p66, %p67
    %p69 = scmp.ne.s32.totalorder %s55, %s56
    %p70 = scmp.eq.s32.totalorder %s22, 1
    %p71 = por %p69, %p70
    %p73 = scmp.ne.s32.totalorder %s56, %s72
    %p74 = scmp.eq.s32.totalorder %s22, 0
    %p75 = por %p73, %p74
    %s77 = sadd.s32 %s76, 1
    %p80 = scmp.eq.s32.totalorder %s16, 1
    %p81 = scmp.ne.s32.totalorder %s76, %s78
    %p82 = scmp.eq.s32.totalorder %s16, 0
    %p83 = por %p81, %p82
    %p84 = scmp.ne.s32.totalorder %s76, %s78
    %p85 = scmp.eq.s32.totalorder %s21, 1
    %p86 = por %p84, %p85
    %p87 = scmp.ne.s32.totalorder %s78, %s79
    %p88 = scmp.eq.s32.totalorder %s21, 0
    %p89 = por %p87, %p88
    %p90 = scmp.ne.s32.totalorder %s78, %s79
    %p91 = scmp.eq.s32.totalorder %s22, 1
    %p92 = por %p90, %p91
    %p94 = scmp.ne.s32.totalorder %s79, %s93
    %p95 = scmp.eq.s32.totalorder %s22, 0
    %p96 = por %p94, %p95
    %s98 = sadd.s32 %s97, 1
    %p101 = scmp.eq.s32.totalorder %s16, 1
    %p102 = scmp.ne.s32.totalorder %s97, %s99
    %p103 = scmp.eq.s32.totalorder %s16, 0
    %p104 = por %p102, %p103
    %p105 = scmp.ne.s32.totalorder %s97, %s99
    %p106 = scmp.eq.s32.totalorder %s21, 1
    %p107 = por %p105, %p106
    %p108 = scmp.ne.s32.totalorder %s99, %s100
    %p109 = scmp.eq.s32.totalorder %s21, 0
    %p110 = por %p108, %p109
    %p111 = scmp.ne.s32.totalorder %s99, %s100
    %p112 = scmp.eq.s32.totalorder %s22, 1
    %p113 = por %p111, %p112
    %p115 = scmp.ne.s32.totalorder %s100, %s114
    %p116 = scmp.eq.s32.totalorder %s22, 0
    %p117 = por %p115, %p116
    %s119 = sadd.s32 %s118, 1
    %p122 = scmp.eq.s32.totalorder %s16, 1
    %p123 = scmp.ne.s32.totalorder %s118, %s120
    %p124 = scmp.eq.s32.totalorder %s16, 0
    %p125 = por %p123, %p124
    %p126 = scmp.ne.s32.totalorder %s118, %s120
    %p127 = scmp.eq.s32.totalorder %s21, 1
    %p128 = por %p126, %p127
    %p129 = scmp.ne.s32.totalorder %s120, %s121
    %p130 = scmp.eq.s32.totalorder %s21, 0
    %p131 = por %p129, %p130
    %p132 = scmp.ne.s32.totalorder %s120, %s121
    %p133 = scmp.eq.s32.totalorder %s22, 1
    %p134 = por %p132, %p133
    %p136 = scmp.ne.s32.totalorder %s121, %s135
    %p137 = scmp.eq.s32.totalorder %s22, 0
    %p138 = por %p136, %p137
    %s140 = sadd.s32 %s139, 1
    %p143 = scmp.eq.s32.totalorder %s16, 1
    %p144 = scmp.ne.s32.totalorder %s139, %s141
    %p145 = scmp.eq.s32.totalorder %s16, 0
    %p146 = por %p144, %p145
    %p147 = scmp.ne.s32.totalorder %s139, %s141
    %p148 = scmp.eq.s32.totalorder %s21, 1
    %p149 = por %p147, %p148
    %p150 = scmp.ne.s32.totalorder %s141, %s142
    %p151 = scmp.eq.s32.totalorder %s21, 0
    %p152 = por %p150, %p151
    %p153 = scmp.ne.s32.totalorder %s141, %s142
    %p154 = scmp.eq.s32.totalorder %s22, 1
    %p155 = por %p153, %p154
    %p157 = scmp.ne.s32.totalorder %s142, %s156
    %p158 = scmp.eq.s32.totalorder %s22, 0
    %p159 = por %p157, %p158
    %s161 = sadd.s32 %s160, 1
    %p164 = scmp.eq.s32.totalorder %s16, 1
    %p165 = scmp.ne.s32.totalorder %s160, %s162
    %p166 = scmp.eq.s32.totalorder %s16, 0
    %p167 = por %p165, %p166
    %p168 = scmp.ne.s32.totalorder %s160, %s162
    %p169 = scmp.eq.s32.totalorder %s21, 1
    %p170 = por %p168, %p169
    %p171 = scmp.ne.s32.totalorder %s162, %s163
    %p172 = scmp.eq.s32.totalorder %s21, 0
    %p173 = por %p171, %p172
    %p174 = scmp.ne.s32.totalorder %s162, %s163
    %p175 = scmp.eq.s32.totalorder %s22, 1
    %p176 = por %p174, %p175
    %p178 = scmp.ne.s32.totalorder %s163, %s177
    %p179 = scmp.eq.s32.totalorder %s22, 0
    %p180 = por %p178, %p179
    %s182 = sadd.s32 %s181, 1
    %p185 = scmp.eq.s32.totalorder %s16, 1
    %p186 = scmp.ne.s32.totalorder %s181, %s183
    %p187 = scmp.eq.s32.totalorder %s16, 0
    %p188 = por %p186, %p187
    %p189 = scmp.ne.s32.totalorder %s181, %s183
    %p190 = scmp.eq.s32.totalorder %s21, 1
    %p191 = por %p189, %p190
    %p192 = scmp.ne.s32.totalorder %s183, %s184
    %p193 = scmp.eq.s32.totalorder %s21, 0
    %p194 = por %p192, %p193
    %p195 = scmp.ne.s32.totalorder %s183, %s184
    %p196 = scmp.eq.s32.totalorder %s22, 1
    %p197 = por %p195, %p196
    %p199 = scmp.ne.s32.totalorder %s184, %s198
    %p200 = scmp.eq.s32.totalorder %s22, 0
    %p201 = por %p199, %p200
    %s203 = sadd.s32 %s202, 1
    %p206 = scmp.eq.s32.totalorder %s16, 1
    %p207 = scmp.ne.s32.totalorder %s202, %s204
    %p208 = scmp.eq.s32.totalorder %s16, 0
    %p209 = por %p207, %p208
    %p210 = scmp.ne.s32.totalorder %s202, %s204
    %p211 = scmp.eq.s32.totalorder %s21, 1
    %p212 = por %p210, %p211
    %p213 = scmp.ne.s32.totalorder %s204, %s205
    %p214 = scmp.eq.s32.totalorder %s21, 0
    %p215 = por %p213, %p214
    %p216 = scmp.ne.s32.totalorder %s204, %s205
    %p217 = scmp.eq.s32.totalorder %s22, 1
    %p218 = por %p216, %p217
    %p220 = scmp.ne.s32.totalorder %s205, %s219
    %p221 = scmp.eq.s32.totalorder %s22, 0
    %p222 = por %p220, %p221
    %s224 = sadd.s32 %s223, 1
    %p227 = scmp.eq.s32.totalorder %s16, 1
    %p228 = scmp.ne.s32.totalorder %s223, %s225
    %p229 = scmp.eq.s32.totalorder %s16, 0
    %p230 = por %p228, %p229
    %p231 = scmp.ne.s32.totalorder %s223, %s225
    %p232 = scmp.eq.s32.totalorder %s21, 1
    %p233 = por %p231, %p232
    %p234 = scmp.ne.s32.totalorder %s225, %s226
    %p235 = scmp.eq.s32.totalorder %s21, 0
    %p236 = por %p234, %p235
    %p237 = scmp.ne.s32.totalorder %s225, %s226
    %p238 = scmp.eq.s32.totalorder %s22, 1
    %p239 = por %p237, %p238
    %p241 = scmp.ne.s32.totalorder %s226, %s240
    %p242 = scmp.eq.s32.totalorder %s22, 0
    %p243 = por %p241, %p242
    %s244 = ssub.s32 %s16, %s23
    %p245 = scmp.eq.s32.totalorder %s244, 0
    %s247 = sadd.s32 %s246, 1
    %s248 = scalar_select %p245, %s246, %s247
    %p251 = pneg %p245
    %p252 = scmp.eq.s32.totalorder %s16, 1
    %p253 = por %p251, %p252
    %p254 = scmp.ne.s32.totalorder %s246, %s249
    %p255 = scmp.eq.s32.totalorder %s16, 0
    %p256 = por %p254, %p255
    %p257 = scmp.ne.s32.totalorder %s246, %s249
    %p258 = scmp.eq.s32.totalorder %s21, 1
    %p259 = por %p257, %p258
    %p260 = scmp.ne.s32.totalorder %s249, %s250
    %p261 = scmp.eq.s32.totalorder %s21, 0
    %p262 = por %p260, %p261
    %p263 = scmp.ne.s32.totalorder %s249, %s250
    %p264 = scmp.eq.s32.totalorder %s22, 1
    %p265 = por %p263, %p264
    %p267 = scmp.ne.s32.totalorder %s250, %s266
    %p268 = scmp.eq.s32.totalorder %s22, 0
    %p269 = por %p267, %p268
    %p270 = scmp.le.s32.totalorder 1, %s16
    %p271 = scmp.lt.s32.totalorder %s16, 3
    %p272 = pnand %p270, %p271
    %p273 = pneg %p272
    // Predicated region
    $region9: #{transformer_forward.16} parent=5 // pred_check
      _
    $region10: #{transformer_forward.16} parent=5 // pred_check_branch
      %275 = sbr.rel (%p272) target = $region12
    $region11: #{transformer_forward.16} parent=5 // pred_region
      %s276 = ssub.s32 %s16, 1
      // Predicated region
      $region13: #{transformer_forward.16} parent=11 // pred_check
        %p277 = pneg %p89
      $region14: #{transformer_forward.16} parent=11 // pred_check_branch
        %279 = sbr.rel (%p277) target = $region16
      $region15: #{transformer_forward.16} parent=11 // pred_region
        _
      $region16: #{transformer_forward.16} parent=11 // pred_fallthru
        _
      // Predicated region
      $region17: #{transformer_forward.16} parent=11 // pred_check
        %p280 = pneg %p110
      $region18: #{transformer_forward.16} parent=11 // pred_check_branch
        %282 = sbr.rel (%p280) target = $region20
      $region19: #{transformer_forward.16} parent=11 // pred_region
        _
      $region20: #{transformer_forward.16} parent=11 // pred_fallthru
        _
      // Predicated region
      $region21: #{transformer_forward.16} parent=11 // pred_check
        %p283 = pneg %p131
      $region22: #{transformer_forward.16} parent=11 // pred_check_branch
        %285 = sbr.rel (%p283) target = $region24
      $region23: #{transformer_forward.16} parent=11 // pred_region
        _
      $region24: #{transformer_forward.16} parent=11 // pred_fallthru
        _
      // Predicated region
      $region25: #{transformer_forward.16} parent=11 // pred_check
        %p286 = pneg %p152
      $region26: #{transformer_forward.16} parent=11 // pred_check_branch
        %288 = sbr.rel (%p286) target = $region28
      $region27: #{transformer_forward.16} parent=11 // pred_region
        _
      $region28: #{transformer_forward.16} parent=11 // pred_fallthru
        _
      // Predicated region
      $region29: #{transformer_forward.16} parent=11 // pred_check
        %p289 = pneg %p173
      $region30: #{transformer_forward.16} parent=11 // pred_check_branch
        %291 = sbr.rel (%p289) target = $region32
      $region31: #{transformer_forward.16} parent=11 // pred_region
        _
      $region32: #{transformer_forward.16} parent=11 // pred_fallthru
        _
      // Predicated region
      $region33: #{transformer_forward.16} parent=11 // pred_check
        %p292 = pneg %p194
      $region34: #{transformer_forward.16} parent=11 // pred_check_branch
        %294 = sbr.rel (%p292) target = $region36
      $region35: #{transformer_forward.16} parent=11 // pred_region
        _
      $region36: #{transformer_forward.16} parent=11 // pred_fallthru
        _
      // Predicated region
      $region37: #{transformer_forward.16} parent=11 // pred_check
        %p295 = pneg %p215
      $region38: #{transformer_forward.16} parent=11 // pred_check_branch
        %297 = sbr.rel (%p295) target = $region40
      $region39: #{transformer_forward.16} parent=11 // pred_region
        _
      $region40: #{transformer_forward.16} parent=11 // pred_fallthru
        _
      // Predicated region
      $region41: #{transformer_forward.16} parent=11 // pred_check
        %p298 = pneg %p236
      $region42: #{transformer_forward.16} parent=11 // pred_check_branch
        %300 = sbr.rel (%p298) target = $region44
      $region43: #{transformer_forward.16} parent=11 // pred_region
        _
      $region44: #{transformer_forward.16} parent=11 // pred_fallthru
        _
    $region12: #{transformer_forward.16} parent=5 // pred_fallthru
      _
    %p301 = scmp.lt.s32.totalorder %s16, 2
    // Predicated region
    $region45: #{transformer_forward.16} parent=5 // pred_check
      %p302 = pneg %p301
    $region46: #{transformer_forward.16} parent=5 // pred_check_branch
      %304 = sbr.rel (%p302) target = $region48
    $region47: #{transformer_forward.16} parent=5 // pred_region
      // Predicated region
      $region49: #{transformer_forward.16} parent=47 // pred_check
        %p305 = pneg %p36
      $region50: #{transformer_forward.16} parent=47 // pred_check_branch
        %307 = sbr.rel (%p305) target = $region52
      $region51: #{transformer_forward.16} parent=47 // pred_region
        %p308 = scmp.lt.s32.totalorder %s16, 1
        %s309 = scalar_select %p308, %s16, 1
        %s310 = smul.addr %s309, 2
        %s311 = smul.addr %s310, 4
        %s312 = scalar_lea.vmem %s0, %s311
      $region52: #{transformer_forward.16} parent=47 // pred_fallthru
        _
      // Predicated region
      $region53: #{transformer_forward.16} parent=47 // pred_check
        %p313 = pneg %p62
      $region54: #{transformer_forward.16} parent=47 // pred_check_branch
        %315 = sbr.rel (%p313) target = $region56
      $region55: #{transformer_forward.16} parent=47 // pred_region
        %p316 = scmp.lt.s32.totalorder %s16, 1
        %s317 = scalar_select %p316, %s16, 1
        %s318 = smul.addr %s317, 2
        %s319 = smul.addr %s318, 4
        %s320 = scalar_lea.vmem %s1, %s319
      $region56: #{transformer_forward.16} parent=47 // pred_fallthru
        _
    $region48: #{transformer_forward.16} parent=5 // pred_fallthru
      _
    %p321 = scmp.le.s32.totalorder 1, %s16
    %p322 = scmp.lt.s32.totalorder %s16, 3
    %p323 = pnand %p321, %p322
    %p324 = pneg %p323
    // Predicated region
    $region57: #{transformer_forward.16} parent=5 // pred_check
      _
    $region58: #{transformer_forward.16} parent=5 // pred_check_branch
      %326 = sbr.rel (%p323) target = $region60
    $region59: #{transformer_forward.16} parent=5 // pred_region
      %s327 = ssub.s32 %s16, 1
      %p328 = scmp.lt.s32.totalorder %s21, 1
      %s329 = scalar_select %p328, %s21, 1
      %s330 = smul.addr %s329, 2
      %s331 = smul.addr %s330, 4
      %s332 = scalar_lea.vmem %s0, %s331
      %p333 = pneg %p42
      %p334 = pneg %p39
      %p335 = scmp.lt.s32.totalorder %s21, 1
      %s336 = scalar_select %p335, %s21, 1
      %s337 = smul.addr %s336, 2
      %s338 = smul.addr %s337, 4
      %s339 = scalar_lea.vmem %s1, %s338
      %p340 = pneg %p68
      %p341 = pneg %p65
      %p342 = pneg %p89
      %p343 = pneg %p86
      %p344 = pneg %p110
      %p345 = pneg %p107
      %p346 = pneg %p131
      %p347 = pneg %p128
      %p348 = pneg %p152
      %p349 = pneg %p149
      %p350 = pneg %p173
      %p351 = pneg %p170
      %p352 = pneg %p194
      %p353 = pneg %p191
      %p354 = pneg %p215
      %p355 = pneg %p212
      %p356 = pneg %p236
      %p357 = pneg %p233
      %p358 = pneg %p262
      %p359 = pneg %p259
      %p360 = scmp.lt.s32.totalorder %s21, 1
      %s361 = scalar_select %p360, %s21, 1
      %s362 = smul.addr %s361, 2
      %s363 = smul.addr %s362, 4
      %s364 = scalar_lea.vmem %s10, %s363
      %p365 = scmp.lt.s32.totalorder %s21, 1
      %s366 = scalar_select %p365, %s21, 1
      %s367 = smul.addr %s366, 2
      %s368 = smul.addr %s367, 4
      %s369 = scalar_lea.vmem %s0, %s368
      %p370 = scmp.lt.s32.totalorder %s21, 1
      %s371 = scalar_select %p370, %s21, 1
      %s372 = smul.addr %s371, 2
      %s373 = smul.addr %s372, 4
      %s374 = scalar_lea.vmem %s1, %s373
      %p375 = scmp.lt.s32.totalorder %s21, 1
      %s376 = scalar_select %p375, %s21, 1
      %s377 = smul.addr %s376, 2
      %s378 = smul.addr %s377, 4
      %s379 = scalar_lea.vmem %s10, %s378
      %v381 = vld [vmem:[%s369] sm:$0xff]
      %v382 = vld [vmem:[%s374] sm:$0xff]
      %v383 = vld [vmem:[%s2] sm:$0xff]
      %v384 = vld [vmem:[%s2 + $0x8] sm:$0xff]
      %v385 = vld [vmem:[%s2 + $0x10] sm:$0xff]
      %v386 = vld [vmem:[%s2 + $0x18] sm:$0xff]
      %v387 = vld [vmem:[%s2 + $0x20] sm:$0xff]
      %v388 = vld [vmem:[%s2 + $0x28] sm:$0xff]
      %v389 = vld [vmem:[%s2 + $0x30] sm:$0xff]
      %v390 = vld [vmem:[%s2 + $0x38] sm:$0xff]
      %v391 = vld [vmem:[%s2 + $0x40] sm:$0xff]
      %v392 = vld [vmem:[%s2 + $0x48] sm:$0xff]
      %v393 = vld [vmem:[%s2 + $0x50] sm:$0xff]
      %v394 = vld [vmem:[%s2 + $0x58] sm:$0xff]
      %v395 = vld [vmem:[%s2 + $0x60] sm:$0xff]
      %v396 = vld [vmem:[%s2 + $0x68] sm:$0xff]
      %v397 = vld [vmem:[%s2 + $0x70] sm:$0xff]
      %v398 = vld [vmem:[%s2 + $0x78] sm:$0xff]
      %v399 = vld [vmem:[%s2 + $0x80] sm:$0xff]
      %v400 = vld [vmem:[%s2 + $0x88] sm:$0xff]
      %v401 = vld [vmem:[%s2 + $0x90] sm:$0xff]
      %v402 = vld [vmem:[%s2 + $0x98] sm:$0xff]
      %v403 = vld [vmem:[%s2 + $0xa0] sm:$0xff]
      %v404 = vld [vmem:[%s2 + $0xa8] sm:$0xff]
      %v405 = vld [vmem:[%s2 + $0xb0] sm:$0xff]
      %v406 = vld [vmem:[%s2 + $0xb8] sm:$0xff]
      %v407 = vld [vmem:[%s2 + $0xc0] sm:$0xff]
      %v408 = vld [vmem:[%s2 + $0xc8] sm:$0xff]
      %v409 = vld [vmem:[%s2 + $0xd0] sm:$0xff]
      %v410 = vld [vmem:[%s2 + $0xd8] sm:$0xff]
      %v411 = vld [vmem:[%s2 + $0xe0] sm:$0xff]
      %v412 = vld [vmem:[%s2 + $0xe8] sm:$0xff]
      %v413 = vld [vmem:[%s2 + $0xf0] sm:$0xff]
      %v414 = vld [vmem:[%s2 + $0xf8] sm:$0xff]
      %v415 = vld [vmem:[%s3] sm:$0x3]
      %v416 = vunpack.c.l.bf16 %v415
      %v418 = vlaneseq
      %v419 = vshrl.u32 %v418, 7
      %v420 = vsub.s32 0, %v419
      %v421 = vrot.slane %v416, %v420
      %v422 = vlaneseq
      %v423 = vshrl.u32 %v422, 7
      %v424 = vsub.s32 2, %v423
      %v425 = vrot.slane %v416, %v424
      %v428 = vlaneseq
      %v429 = vshrl.u32 %v428, 7
      %v430 = vsub.s32 0, %v429
      %v431 = vrot.slane %v421, %v430
      %v432 = vlaneseq
      %v433 = vshrl.u32 %v432, 7
      %v434 = vsub.s32 0, %v433
      %v435 = vrot.slane %v425, %v434
      %v437 = vunpack.c.l.b16 %v381
      %v438 = vunpack.c.h.b16 %v381
      %v439 = vpack.c.b16 %v437, %v437
      %v440 = vpack.c.b16 %v438, %v438
      %v475 = vunpack.c.l.b16 %v383
      %v476 = vunpack.c.h.b16 %v383
      %v477 = vunpack.c.l.b16 %v384
      %v478 = vunpack.c.h.b16 %v384
      %v479 = vunpack.c.l.b16 %v385
      %v480 = vunpack.c.h.b16 %v385
      %v481 = vunpack.c.l.b16 %v386
      %v482 = vunpack.c.h.b16 %v386
      %v483 = vunpack.c.l.b16 %v387
      %v484 = vunpack.c.h.b16 %v387
      %v485 = vunpack.c.l.b16 %v388
      %v486 = vunpack.c.h.b16 %v388
      %v487 = vunpack.c.l.b16 %v389
      %v488 = vunpack.c.h.b16 %v389
      %v489 = vunpack.c.l.b16 %v390
      %v490 = vunpack.c.h.b16 %v390
      %v491 = vunpack.c.l.b16 %v391
      %v492 = vunpack.c.h.b16 %v391
      %v493 = vunpack.c.l.b16 %v392
      %v494 = vunpack.c.h.b16 %v392
      %v495 = vunpack.c.l.b16 %v393
      %v496 = vunpack.c.h.b16 %v393
      %v497 = vunpack.c.l.b16 %v394
      %v498 = vunpack.c.h.b16 %v394
      %v499 = vunpack.c.l.b16 %v395
      %v500 = vunpack.c.h.b16 %v395
      %v501 = vunpack.c.l.b16 %v396
      %v502 = vunpack.c.h.b16 %v396
      %v503 = vunpack.c.l.b16 %v397
      %v504 = vunpack.c.h.b16 %v397
      %v505 = vunpack.c.l.b16 %v398
      %v506 = vunpack.c.h.b16 %v398
      %v507 = vunpack.c.l.b16 %v399
      %v508 = vunpack.c.h.b16 %v399
      %v509 = vunpack.c.l.b16 %v400
      %v510 = vunpack.c.h.b16 %v400
      %v511 = vunpack.c.l.b16 %v401
      %v512 = vunpack.c.h.b16 %v401
      %v513 = vunpack.c.l.b16 %v402
      %v514 = vunpack.c.h.b16 %v402
      %v515 = vunpack.c.l.b16 %v403
      %v516 = vunpack.c.h.b16 %v403
      %v517 = vunpack.c.l.b16 %v404
      %v518 = vunpack.c.h.b16 %v404
      %v519 = vunpack.c.l.b16 %v405
      %v520 = vunpack.c.h.b16 %v405
      %v521 = vunpack.c.l.b16 %v406
      %v522 = vunpack.c.h.b16 %v406
      %v523 = vunpack.c.l.b16 %v407
      %v524 = vunpack.c.h.b16 %v407
      %v525 = vunpack.c.l.b16 %v408
      %v526 = vunpack.c.h.b16 %v408
      %v527 = vunpack.c.l.b16 %v409
      %v528 = vunpack.c.h.b16 %v409
      %v529 = vunpack.c.l.b16 %v410
      %v530 = vunpack.c.h.b16 %v410
      %v531 = vunpack.c.l.b16 %v411
      %v532 = vunpack.c.h.b16 %v411
      %v533 = vunpack.c.l.b16 %v412
      %v534 = vunpack.c.h.b16 %v412
      %v535 = vunpack.c.l.b16 %v413
      %v536 = vunpack.c.h.b16 %v413
      %v537 = vunpack.c.l.b16 %v414
      %v538 = vunpack.c.h.b16 %v414
      %v539 = vpack.c.b16 %v477, %v475
      %v540 = vpack.c.b16 %v478, %v476
      %v541 = vpack.c.b16 %v481, %v479
      %v542 = vpack.c.b16 %v482, %v480
      %v543 = vpack.c.b16 %v485, %v483
      %v544 = vpack.c.b16 %v486, %v484
      %v545 = vpack.c.b16 %v489, %v487
      %v546 = vpack.c.b16 %v490, %v488
      %v547 = vpack.c.b16 %v493, %v491
      %v548 = vpack.c.b16 %v494, %v492
      %v549 = vpack.c.b16 %v497, %v495
      %v550 = vpack.c.b16 %v498, %v496
      %v551 = vpack.c.b16 %v501, %v499
      %v552 = vpack.c.b16 %v502, %v500
      %v553 = vpack.c.b16 %v505, %v503
      %v554 = vpack.c.b16 %v506, %v504
      %v555 = vpack.c.b16 %v509, %v507
      %v556 = vpack.c.b16 %v510, %v508
      %v557 = vpack.c.b16 %v513, %v511
      %v558 = vpack.c.b16 %v514, %v512
      %v559 = vpack.c.b16 %v517, %v515
      %v560 = vpack.c.b16 %v518, %v516
      %v561 = vpack.c.b16 %v521, %v519
      %v562 = vpack.c.b16 %v522, %v520
      %v563 = vpack.c.b16 %v525, %v523
      %v564 = vpack.c.b16 %v526, %v524
      %v565 = vpack.c.b16 %v529, %v527
      %v566 = vpack.c.b16 %v530, %v528
      %v567 = vpack.c.b16 %v533, %v531
      %v568 = vpack.c.b16 %v534, %v532
      %v569 = vpack.c.b16 %v537, %v535
      %v570 = vpack.c.b16 %v538, %v536
      %603 = vmatprep.subr.bf16.mxu0 %v540
      %604 = vmatpush1.bf16.msra.mxu0 %v539
      %605 = vmatprep.subr.bf16.mxu0 %v542
      %606 = vmatpush1.bf16.msra.mxu0 %v541
      %607 = vmatprep.subr.bf16.mxu0 %v544
      %608 = vmatpush1.bf16.msra.mxu0 %v543
      %609 = vmatprep.subr.bf16.mxu0 %v546
      %610 = vmatpush1.bf16.msra.mxu0 %v545
      %611 = vmatprep.subr.bf16.mxu0 %v548
      %612 = vmatpush1.bf16.msra.mxu0 %v547
      %613 = vmatprep.subr.bf16.mxu0 %v550
      %614 = vmatpush1.bf16.msra.mxu0 %v549
      %615 = vmatprep.subr.bf16.mxu0 %v552
      %616 = vmatpush1.bf16.msra.mxu0 %v551
      %617 = vmatprep.subr.bf16.mxu0 %v554
      %618 = vmatpush1.bf16.msra.mxu0 %v553
      %619 = vmatprep.subr.bf16.mxu0 %v556
      %620 = vmatpush1.bf16.msra.mxu0 %v555
      %621 = vmatprep.subr.bf16.mxu0 %v558
      %622 = vmatpush1.bf16.msra.mxu0 %v557
      %623 = vmatprep.subr.bf16.mxu0 %v560
      %624 = vmatpush1.bf16.msra.mxu0 %v559
      %625 = vmatprep.subr.bf16.mxu0 %v562
      %626 = vmatpush1.bf16.msra.mxu0 %v561
      %627 = vmatprep.subr.bf16.mxu0 %v564
      %628 = vmatpush1.bf16.msra.mxu0 %v563
      %629 = vmatprep.subr.bf16.mxu0 %v566
      %630 = vmatpush1.bf16.msra.mxu0 %v565
      %631 = vmatprep.subr.bf16.mxu0 %v568
      %632 = vmatpush1.bf16.msra.mxu0 %v567
      %633 = vmatprep.subr.bf16.mxu0 %v570
      %634 = vmatpush1.bf16.msra.mxu0 %v569
      %635 = vmatprep.mubr.bf16.mxu0 %v440
      %636 = vmatmul.mubr.bf16.gmra.mrb[0].mxu0 %v439
      %v637 = vpop.f32.mrb[0].mxu0
      %v638 = vadd.f32 %v431, %v637
      %v639 = vpop.f32.mrb[0].mxu0
      %v640 = vadd.f32 %v435, %v639
      %v641 = vpop.f32.mrb[0].mxu0
      %v642 = vpop.f32.mrb[0].mxu0
      %643 = vdwg.mxu0
      %v644 = vmul.f32 %v638, 0.088388346
      %v645 = vmul.f32 %v640, 0.088388346
      %v646 = vpack.c.bf16 %v644, %v644
      %v647 = vpack.c.bf16 %v645, %v645
      %v648 = vld [vmem:[%s4] sm:$0xff]
      %v649 = vld [vmem:[%s4 + $0x8] sm:$0xff]
      %v650 = vld [vmem:[%s4 + $0x10] sm:$0xff]
      %v651 = vld [vmem:[%s4 + $0x18] sm:$0xff]
      %v652 = vld [vmem:[%s4 + $0x20] sm:$0xff]
      %v653 = vld [vmem:[%s4 + $0x28] sm:$0xff]
      %v654 = vld [vmem:[%s4 + $0x30] sm:$0xff]
      %v655 = vld [vmem:[%s4 + $0x38] sm:$0xff]
      %v656 = vld [vmem:[%s4 + $0x40] sm:$0xff]
      %v657 = vld [vmem:[%s4 + $0x48] sm:$0xff]
      %v658 = vld [vmem:[%s4 + $0x50] sm:$0xff]
      %v659 = vld [vmem:[%s4 + $0x58] sm:$0xff]
      %v660 = vld [vmem:[%s4 + $0x60] sm:$0xff]
      %v661 = vld [vmem:[%s4 + $0x68] sm:$0xff]
      %v662 = vld [vmem:[%s4 + $0x70] sm:$0xff]
      %v663 = vld [vmem:[%s4 + $0x78] sm:$0xff]
      %v664 = vld [vmem:[%s4 + $0x80] sm:$0xff]
      %v665 = vld [vmem:[%s4 + $0x88] sm:$0xff]
      %v666 = vld [vmem:[%s4 + $0x90] sm:$0xff]
      %v667 = vld [vmem:[%s4 + $0x98] sm:$0xff]
      %v668 = vld [vmem:[%s4 + $0xa0] sm:$0xff]
      %v669 = vld [vmem:[%s4 + $0xa8] sm:$0xff]
      %v670 = vld [vmem:[%s4 + $0xb0] sm:$0xff]
      %v671 = vld [vmem:[%s4 + $0xb8] sm:$0xff]
      %v672 = vld [vmem:[%s4 + $0xc0] sm:$0xff]
      %v673 = vld [vmem:[%s4 + $0xc8] sm:$0xff]
      %v674 = vld [vmem:[%s4 + $0xd0] sm:$0xff]
      %v675 = vld [vmem:[%s4 + $0xd8] sm:$0xff]
      %v676 = vld [vmem:[%s4 + $0xe0] sm:$0xff]
      %v677 = vld [vmem:[%s4 + $0xe8] sm:$0xff]
      %v678 = vld [vmem:[%s4 + $0xf0] sm:$0xff]
      %v679 = vld [vmem:[%s4 + $0xf8] sm:$0xff]
      %v680 = vld [vmem:[%s4 + $0x100] sm:$0xff]
      %v681 = vld [vmem:[%s4 + $0x108] sm:$0xff]
      %v682 = vld [vmem:[%s4 + $0x110] sm:$0xff]
      %v683 = vld [vmem:[%s4 + $0x118] sm:$0xff]
      %v684 = vld [vmem:[%s4 + $0x120] sm:$0xff]
      %v685 = vld [vmem:[%s4 + $0x128] sm:$0xff]
      %v686 = vld [vmem:[%s4 + $0x130] sm:$0xff]
      %v687 = vld [vmem:[%s4 + $0x138] sm:$0xff]
      %v688 = vld [vmem:[%s4 + $0x140] sm:$0xff]
      %v689 = vld [vmem:[%s4 + $0x148] sm:$0xff]
      %v690 = vld [vmem:[%s4 + $0x150] sm:$0xff]
      %v691 = vld [vmem:[%s4 + $0x158] sm:$0xff]
      %v692 = vld [vmem:[%s4 + $0x160] sm:$0xff]
      %v693 = vld [vmem:[%s4 + $0x168] sm:$0xff]
      %v694 = vld [vmem:[%s4 + $0x170] sm:$0xff]
      %v695 = vld [vmem:[%s4 + $0x178] sm:$0xff]
      %v696 = vld [vmem:[%s4 + $0x180] sm:$0xff]
      %v697 = vld [vmem:[%s4 + $0x188] sm:$0xff]
      %v698 = vld [vmem:[%s4 + $0x190] sm:$0xff]
      %v699 = vld [vmem:[%s4 + $0x198] sm:$0xff]
      %v700 = vld [vmem:[%s4 + $0x1a0] sm:$0xff]
      %v701 = vld [vmem:[%s4 + $0x1a8] sm:$0xff]
      %v702 = vld [vmem:[%s4 + $0x1b0] sm:$0xff]
      %v703 = vld [vmem:[%s4 + $0x1b8] sm:$0xff]
      %v704 = vld [vmem:[%s4 + $0x1c0] sm:$0xff]
      %v705 = vld [vmem:[%s4 + $0x1c8] sm:$0xff]
      %v706 = vld [vmem:[%s4 + $0x1d0] sm:$0xff]
      %v707 = vld [vmem:[%s4 + $0x1d8] sm:$0xff]
      %v708 = vld [vmem:[%s4 + $0x1e0] sm:$0xff]
      %v709 = vld [vmem:[%s4 + $0x1e8] sm:$0xff]
      %v710 = vld [vmem:[%s4 + $0x1f0] sm:$0xff]
      %v711 = vld [vmem:[%s4 + $0x1f8] sm:$0xff]
      %v712 = vld [vmem:[%s5] sm:$0xf]
      %v713 = vunpack.c.l.bf16 %v712
      %v715 = vlaneseq
      %v716 = vshrl.u32 %v715, 7
      %v717 = vsub.s32 0, %v716
      %v718 = vrot.slane %v713, %v717
      %v719 = vlaneseq
      %v720 = vshrl.u32 %v719, 7
      %v721 = vsub.s32 2, %v720
      %v722 = vrot.slane %v713, %v721
      %v723 = vlaneseq
      %v724 = vshrl.u32 %v723, 7
      %v725 = vsub.s32 4, %v724
      %v726 = vrot.slane %v713, %v725
      %v727 = vlaneseq
      %v728 = vshrl.u32 %v727, 7
      %v729 = vsub.s32 6, %v728
      %v730 = vrot.slane %v713, %v729
      %v735 = vlaneseq
      %v736 = vshrl.u32 %v735, 7
      %v737 = vsub.s32 0, %v736
      %v738 = vrot.slane %v718, %v737
      %v739 = vlaneseq
      %v740 = vshrl.u32 %v739, 7
      %v741 = vsub.s32 0, %v740
      %v742 = vrot.slane %v722, %v741
      %v743 = vlaneseq
      %v744 = vshrl.u32 %v743, 7
      %v745 = vsub.s32 0, %v744
      %v746 = vrot.slane %v726, %v745
      %v747 = vlaneseq
      %v748 = vshrl.u32 %v747, 7
      %v749 = vsub.s32 0, %v748
      %v750 = vrot.slane %v730, %v749
      %v752 = vunpack.c.l.b16 %v382
      %v753 = vunpack.c.h.b16 %v382
      %v754 = vpack.c.b16 %v752, %v752
      %v755 = vpack.c.b16 %v753, %v753
      %v822 = vunpack.c.l.b16 %v648
      %v823 = vunpack.c.h.b16 %v648
      %v824 = vunpack.c.l.b16 %v649
      %v825 = vunpack.c.h.b16 %v649
      %v826 = vunpack.c.l.b16 %v650
      %v827 = vunpack.c.h.b16 %v650
      %v828 = vunpack.c.l.b16 %v651
      %v829 = vunpack.c.h.b16 %v651
      %v830 = vunpack.c.l.b16 %v652
      %v831 = vunpack.c.h.b16 %v652
      %v832 = vunpack.c.l.b16 %v653
      %v833 = vunpack.c.h.b16 %v653
      %v834 = vunpack.c.l.b16 %v654
      %v835 = vunpack.c.h.b16 %v654
      %v836 = vunpack.c.l.b16 %v655
      %v837 = vunpack.c.h.b16 %v655
      %v838 = vunpack.c.l.b16 %v656
      %v839 = vunpack.c.h.b16 %v656
      %v840 = vunpack.c.l.b16 %v657
      %v841 = vunpack.c.h.b16 %v657
      %v842 = vunpack.c.l.b16 %v658
      %v843 = vunpack.c.h.b16 %v658
      %v844 = vunpack.c.l.b16 %v659
      %v845 = vunpack.c.h.b16 %v659
      %v846 = vunpack.c.l.b16 %v660
      %v847 = vunpack.c.h.b16 %v660
      %v848 = vunpack.c.l.b16 %v661
      %v849 = vunpack.c.h.b16 %v661
      %v850 = vunpack.c.l.b16 %v662
      %v851 = vunpack.c.h.b16 %v662
      %v852 = vunpack.c.l.b16 %v663
      %v853 = vunpack.c.h.b16 %v663
      %v854 = vunpack.c.l.b16 %v664
      %v855 = vunpack.c.h.b16 %v664
      %v856 = vunpack.c.l.b16 %v665
      %v857 = vunpack.c.h.b16 %v665
      %v858 = vunpack.c.l.b16 %v666
      %v859 = vunpack.c.h.b16 %v666
      %v860 = vunpack.c.l.b16 %v667
      %v861 = vunpack.c.h.b16 %v667
      %v862 = vunpack.c.l.b16 %v668
      %v863 = vunpack.c.h.b16 %v668
      %v864 = vunpack.c.l.b16 %v669
      %v865 = vunpack.c.h.b16 %v669
      %v866 = vunpack.c.l.b16 %v670
      %v867 = vunpack.c.h.b16 %v670
      %v868 = vunpack.c.l.b16 %v671
      %v869 = vunpack.c.h.b16 %v671
      %v870 = vunpack.c.l.b16 %v672
      %v871 = vunpack.c.h.b16 %v672
      %v872 = vunpack.c.l.b16 %v673
      %v873 = vunpack.c.h.b16 %v673
      %v874 = vunpack.c.l.b16 %v674
      %v875 = vunpack.c.h.b16 %v674
      %v876 = vunpack.c.l.b16 %v675
      %v877 = vunpack.c.h.b16 %v675
      %v878 = vunpack.c.l.b16 %v676
      %v879 = vunpack.c.h.b16 %v676
      %v880 = vunpack.c.l.b16 %v677
      %v881 = vunpack.c.h.b16 %v677
      %v882 = vunpack.c.l.b16 %v678
      %v883 = vunpack.c.h.b16 %v678
      %v884 = vunpack.c.l.b16 %v679
      %v885 = vunpack.c.h.b16 %v679
      %v886 = vunpack.c.l.b16 %v680
      %v887 = vunpack.c.h.b16 %v680
      %v888 = vunpack.c.l.b16 %v681
      %v889 = vunpack.c.h.b16 %v681
      %v890 = vunpack.c.l.b16 %v682
      %v891 = vunpack.c.h.b16 %v682
      %v892 = vunpack.c.l.b16 %v683
      %v893 = vunpack.c.h.b16 %v683
      %v894 = vunpack.c.l.b16 %v684
      %v895 = vunpack.c.h.b16 %v684
      %v896 = vunpack.c.l.b16 %v685
      %v897 = vunpack.c.h.b16 %v685
      %v898 = vunpack.c.l.b16 %v686
      %v899 = vunpack.c.h.b16 %v686
      %v900 = vunpack.c.l.b16 %v687
      %v901 = vunpack.c.h.b16 %v687
      %v902 = vunpack.c.l.b16 %v688
      %v903 = vunpack.c.h.b16 %v688
      %v904 = vunpack.c.l.b16 %v689
      %v905 = vunpack.c.h.b16 %v689
      %v906 = vunpack.c.l.b16 %v690
      %v907 = vunpack.c.h.b16 %v690
      %v908 = vunpack.c.l.b16 %v691
      %v909 = vunpack.c.h.b16 %v691
      %v910 = vunpack.c.l.b16 %v692
      %v911 = vunpack.c.h.b16 %v692
      %v912 = vunpack.c.l.b16 %v693
      %v913 = vunpack.c.h.b16 %v693
      %v914 = vunpack.c.l.b16 %v694
      %v915 = vunpack.c.h.b16 %v694
      %v916 = vunpack.c.l.b16 %v695
      %v917 = vunpack.c.h.b16 %v695
      %v918 = vunpack.c.l.b16 %v696
      %v919 = vunpack.c.h.b16 %v696
      %v920 = vunpack.c.l.b16 %v697
      %v921 = vunpack.c.h.b16 %v697
      %v922 = vunpack.c.l.b16 %v698
      %v923 = vunpack.c.h.b16 %v698
      %v924 = vunpack.c.l.b16 %v699
      %v925 = vunpack.c.h.b16 %v699
      %v926 = vunpack.c.l.b16 %v700
      %v927 = vunpack.c.h.b16 %v700
      %v928 = vunpack.c.l.b16 %v701
      %v929 = vunpack.c.h.b16 %v701
      %v930 = vunpack.c.l.b16 %v702
      %v931 = vunpack.c.h.b16 %v702
      %v932 = vunpack.c.l.b16 %v703
      %v933 = vunpack.c.h.b16 %v703
      %v934 = vunpack.c.l.b16 %v704
      %v935 = vunpack.c.h.b16 %v704
      %v936 = vunpack.c.l.b16 %v705
      %v937 = vunpack.c.h.b16 %v705
      %v938 = vunpack.c.l.b16 %v706
      %v939 = vunpack.c.h.b16 %v706
      %v940 = vunpack.c.l.b16 %v707
      %v941 = vunpack.c.h.b16 %v707
      %v942 = vunpack.c.l.b16 %v708
      %v943 = vunpack.c.h.b16 %v708
      %v944 = vunpack.c.l.b16 %v709
      %v945 = vunpack.c.h.b16 %v709
      %v946 = vunpack.c.l.b16 %v710
      %v947 = vunpack.c.h.b16 %v710
      %v948 = vunpack.c.l.b16 %v711
      %v949 = vunpack.c.h.b16 %v711
      %v950 = vpack.c.b16 %v826, %v822
      %v951 = vpack.c.b16 %v827, %v823
      %v952 = vpack.c.b16 %v828, %v824
      %v953 = vpack.c.b16 %v829, %v825
      %v954 = vpack.c.b16 %v834, %v830
      %v955 = vpack.c.b16 %v835, %v831
      %v956 = vpack.c.b16 %v836, %v832
      %v957 = vpack.c.b16 %v837, %v833
      %v958 = vpack.c.b16 %v842, %v838
      %v959 = vpack.c.b16 %v843, %v839
      %v960 = vpack.c.b16 %v844, %v840
      %v961 = vpack.c.b16 %v845, %v841
      %v962 = vpack.c.b16 %v850, %v846
      %v963 = vpack.c.b16 %v851, %v847
      %v964 = vpack.c.b16 %v852, %v848
      %v965 = vpack.c.b16 %v853, %v849
      %v966 = vpack.c.b16 %v858, %v854
      %v967 = vpack.c.b16 %v859, %v855
      %v968 = vpack.c.b16 %v860, %v856
      %v969 = vpack.c.b16 %v861, %v857
      %v970 = vpack.c.b16 %v866, %v862
      %v971 = vpack.c.b16 %v867, %v863
      %v972 = vpack.c.b16 %v868, %v864
      %v973 = vpack.c.b16 %v869, %v865
      %v974 = vpack.c.b16 %v874, %v870
      %v975 = vpack.c.b16 %v875, %v871
      %v976 = vpack.c.b16 %v876, %v872
      %v977 = vpack.c.b16 %v877, %v873
      %v978 = vpack.c.b16 %v882, %v878
      %v979 = vpack.c.b16 %v883, %v879
      %v980 = vpack.c.b16 %v884, %v880
      %v981 = vpack.c.b16 %v885, %v881
      %v982 = vpack.c.b16 %v890, %v886
      %v983 = vpack.c.b16 %v891, %v887
      %v984 = vpack.c.b16 %v892, %v888
      %v985 = vpack.c.b16 %v893, %v889
      %v986 = vpack.c.b16 %v898, %v894
      %v987 = vpack.c.b16 %v899, %v895
      %v988 = vpack.c.b16 %v900, %v896
      %v989 = vpack.c.b16 %v901, %v897
      %v990 = vpack.c.b16 %v906, %v902
      %v991 = vpack.c.b16 %v907, %v903
      %v992 = vpack.c.b16 %v908, %v904
      %v993 = vpack.c.b16 %v909, %v905
      %v994 = vpack.c.b16 %v914, %v910
      %v995 = vpack.c.b16 %v915, %v911
      %v996 = vpack.c.b16 %v916, %v912
      %v997 = vpack.c.b16 %v917, %v913
      %v998 = vpack.c.b16 %v922, %v918
      %v999 = vpack.c.b16 %v923, %v919
      %v1000 = vpack.c.b16 %v924, %v920
      %v1001 = vpack.c.b16 %v925, %v921
      %v1002 = vpack.c.b16 %v930, %v926
      %v1003 = vpack.c.b16 %v931, %v927
      %v1004 = vpack.c.b16 %v932, %v928
      %v1005 = vpack.c.b16 %v933, %v929
      %v1006 = vpack.c.b16 %v938, %v934
      %v1007 = vpack.c.b16 %v939, %v935
      %v1008 = vpack.c.b16 %v940, %v936
      %v1009 = vpack.c.b16 %v941, %v937
      %v1010 = vpack.c.b16 %v946, %v942
      %v1011 = vpack.c.b16 %v947, %v943
      %v1012 = vpack.c.b16 %v948, %v944
      %v1013 = vpack.c.b16 %v949, %v945
      %1078 = vmatprep.subr.bf16.mxu0 %v951
      %1079 = vmatpush1.bf16.msra.mxu0 %v950
      %1080 = vmatprep.subr.bf16.mxu0 %v955
      %1081 = vmatpush1.bf16.msra.mxu0 %v954
      %1082 = vmatprep.subr.bf16.mxu0 %v959
      %1083 = vmatpush1.bf16.msra.mxu0 %v958
      %1084 = vmatprep.subr.bf16.mxu0 %v963
      %1085 = vmatpush1.bf16.msra.mxu0 %v962
      %1086 = vmatprep.subr.bf16.mxu0 %v967
      %1087 = vmatpush1.bf16.msra.mxu0 %v966
      %1088 = vmatprep.subr.bf16.mxu0 %v971
      %1089 = vmatpush1.bf16.msra.mxu0 %v970
      %1090 = vmatprep.subr.bf16.mxu0 %v975
      %1091 = vmatpush1.bf16.msra.mxu0 %v974
      %1092 = vmatprep.subr.bf16.mxu0 %v979
      %1093 = vmatpush1.bf16.msra.mxu0 %v978
      %1094 = vmatprep.subr.bf16.mxu0 %v983
      %1095 = vmatpush1.bf16.msra.mxu0 %v982
      %1096 = vmatprep.subr.bf16.mxu0 %v987
      %1097 = vmatpush1.bf16.msra.mxu0 %v986
      %1098 = vmatprep.subr.bf16.mxu0 %v991
      %1099 = vmatpush1.bf16.msra.mxu0 %v990
      %1100 = vmatprep.subr.bf16.mxu0 %v995
      %1101 = vmatpush1.bf16.msra.mxu0 %v994
      %1102 = vmatprep.subr.bf16.mxu0 %v999
      %1103 = vmatpush1.bf16.msra.mxu0 %v998
      %1104 = vmatprep.subr.bf16.mxu0 %v1003
      %1105 = vmatpush1.bf16.msra.mxu0 %v1002
      %1106 = vmatprep.subr.bf16.mxu0 %v1007
      %1107 = vmatpush1.bf16.msra.mxu0 %v1006
      %1108 = vmatprep.subr.bf16.mxu0 %v1011
      %1109 = vmatpush1.bf16.msra.mxu0 %v1010
      %1110 = vmatprep.mubr.bf16.mxu0 %v755
      %1111 = vmatmul.mubr.bf16.gmra.mrb[0].mxu0 %v754
      %v1112 = vpop.f32.mrb[0].mxu0
      %v1113 = vadd.f32 %v738, %v1112
      %v1114 = vpop.f32.mrb[0].mxu0
      %v1115 = vadd.f32 %v742, %v1114
      %v1116 = vpop.f32.mrb[0].mxu0
      %v1117 = vpop.f32.mrb[0].mxu0
      %1118 = vdwg.mxu0
      %1119 = vmatprep.subr.bf16.mxu0 %v953
      %1120 = vmatpush1.bf16.msra.mxu0 %v952
      %1121 = vmatprep.subr.bf16.mxu0 %v957
      %1122 = vmatpush1.bf16.msra.mxu0 %v956
      %1123 = vmatprep.subr.bf16.mxu0 %v961
      %1124 = vmatpush1.bf16.msra.mxu0 %v960
      %1125 = vmatprep.subr.bf16.mxu0 %v965
      %1126 = vmatpush1.bf16.msra.mxu0 %v964
      %1127 = vmatprep.subr.bf16.mxu0 %v969
      %1128 = vmatpush1.bf16.msra.mxu0 %v968
      %1129 = vmatprep.subr.bf16.mxu0 %v973
      %1130 = vmatpush1.bf16.msra.mxu0 %v972
      %1131 = vmatprep.subr.bf16.mxu0 %v977
      %1132 = vmatpush1.bf16.msra.mxu0 %v976
      %1133 = vmatprep.subr.bf16.mxu0 %v981
      %1134 = vmatpush1.bf16.msra.mxu0 %v980
      %1135 = vmatprep.subr.bf16.mxu0 %v985
      %1136 = vmatpush1.bf16.msra.mxu0 %v984
      %1137 = vmatprep.subr.bf16.mxu0 %v989
      %1138 = vmatpush1.bf16.msra.mxu0 %v988
      %1139 = vmatprep.subr.bf16.mxu0 %v993
      %1140 = vmatpush1.bf16.msra.mxu0 %v992
      %1141 = vmatprep.subr.bf16.mxu0 %v997
      %1142 = vmatpush1.bf16.msra.mxu0 %v996
      %1143 = vmatprep.subr.bf16.mxu0 %v1001
      %1144 = vmatpush1.bf16.msra.mxu0 %v1000
      %1145 = vmatprep.subr.bf16.mxu0 %v1005
      %1146 = vmatpush1.bf16.msra.mxu0 %v1004
      %1147 = vmatprep.subr.bf16.mxu0 %v1009
      %1148 = vmatpush1.bf16.msra.mxu0 %v1008
      %1149 = vmatprep.subr.bf16.mxu0 %v1013
      %1150 = vmatpush1.bf16.msra.mxu0 %v1012
      %1151 = vmatprep.mubr.bf16.mxu0 %v755
      %1152 = vmatmul.mubr.bf16.gmra.mrb[0].mxu0 %v754
      %v1153 = vpop.f32.mrb[0].mxu0
      %v1154 = vadd.f32 %v746, %v1153
      %v1155 = vpop.f32.mrb[0].mxu0
      %v1156 = vadd.f32 %v750, %v1155
      %v1157 = vpop.f32.mrb[0].mxu0
      %v1158 = vpop.f32.mrb[0].mxu0
      %1159 = vdwg.mxu0
      %v1160 = vpack.c.bf16 %v1113, %v1113
      %v1161 = vpack.c.bf16 %v1115, %v1115
      %v1162 = vpack.c.bf16 %v1154, %v1154
      %v1163 = vpack.c.bf16 %v1156, %v1156
      %v1164 = vunpack.c.l.bf16 %v381
      %v1165 = vunpack.c.h.bf16 %v381
      %v1166 = vld [vmem:[%s7] sm:$0x3]
      %v1167 = vunpack.c.l.bf16 %v1166
      %v1169 = vlaneseq
      %v1170 = vshrl.u32 %v1169, 7
      %v1171 = vsub.s32 0, %v1170
      %v1172 = vrot.slane %v1167, %v1171
      %v1173 = vlaneseq
      %v1174 = vshrl.u32 %v1173, 7
      %v1175 = vsub.s32 2, %v1174
      %v1176 = vrot.slane %v1167, %v1175
      %v1179 = vlaneseq
      %v1180 = vshrl.u32 %v1179, 7
      %v1181 = vsub.s32 0, %v1180
      %v1182 = vrot.slane %v1172, %v1181
      %v1183 = vlaneseq
      %v1184 = vshrl.u32 %v1183, 7
      %v1185 = vsub.s32 0, %v1184
      %v1186 = vrot.slane %v1176, %v1185
      %v1187 = vadd.f32 %v1164, %v1182
      %v1188 = vadd.f32 %v1165, %v1186
      %1189 = vmatprep.subr.bf16.mxu0 0
      %1190 = vmatpush1.bf16.xpose.msra.mxu0 %v1160
      %1191 = vmatprep.subr.bf16.mxu0 0
      %1192 = vmatpush1.bf16.xpose.msra.mxu0 0
      %1193 = vmatprep.subr.bf16.mxu0 0
      %1194 = vmatpush1.bf16.xpose.msra.mxu0 0
      %1195 = vmatprep.subr.bf16.mxu0 0
      %1196 = vmatpush1.bf16.xpose.msra.mxu0 0
      %1197 = vmatprep.subr.bf16.mxu0 0
      %1198 = vmatpush1.bf16.xpose.msra.mxu0 0
      %1199 = vmatprep.subr.bf16.mxu0 0
      %1200 = vmatpush1.bf16.xpose.msra.mxu0 0
      %1201 = vmatprep.subr.bf16.mxu0 0
      %1202 = vmatpush1.bf16.xpose.msra.mxu0 0
      %1203 = vmatprep.subr.bf16.mxu0 0
      %1204 = vmatpush1.bf16.xpose.msra.mxu0 0
      %1205 = vmatprep.subr.bf16.mxu0 0
      %1206 = vmatpush1.bf16.xpose.msra.mxu0 0
      %1207 = vmatprep.subr.bf16.mxu0 0
      %1208 = vmatpush1.bf16.xpose.msra.mxu0 0
      %1209 = vmatprep.subr.bf16.mxu0 0
      %1210 = vmatpush1.bf16.xpose.msra.mxu0 0
      %1211 = vmatprep.subr.bf16.mxu0 0
      %1212 = vmatpush1.bf16.xpose.msra.mxu0 0
      %1213 = vmatprep.subr.bf16.mxu0 0
      %1214 = vmatpush1.bf16.xpose.msra.mxu0 0
      %1215 = vmatprep.subr.bf16.mxu0 0
      %1216 = vmatpush1.bf16.xpose.msra.mxu0 0
      %1217 = vmatprep.subr.bf16.mxu0 0
      %1218 = vmatpush1.bf16.xpose.msra.mxu0 0
      %1219 = vmatprep.subr.bf16.mxu0 0
      %1220 = vmatpush1.bf16.xpose.msra.mxu0 0
      %1221 = vmatprep.mubr.bf16.mxu0 0
      %1222 = vmatmul.mubr.bf16.gmra.mrb[0].mxu0 %v646
      %v1223 = vpop.f32.mrb[0].mxu0
      %v1224 = vadd.f32 0.0, %v1223
      %v1225 = vpop.f32.mrb[0].mxu0
      %v1226 = vpop.f32.mrb[0].mxu0
      %v1227 = vpop.f32.mrb[0].mxu0
      %1228 = vdwg.mxu0
      %vm1229 = vcmask 64512
      %v1230 = vsel %vm1229, %v1224, -inf
      %1231 = vmax.xlane.f32.xlu0 %v1230
      %v1232 = vpop.xlane.xlu0 %1231
      %v1233 = vsub.f32 %v1224, %v1232
      %v1234 = vmul.f32 %v1233, 1.442695
      %v1235 = vpow.pop %v1234
      %v1236 = vsel %vm1229, %v1235, 0.0
      %1237 = vadd.xlane.f32.xlu0 %v1236
      %v1238 = vpop.xlane.xlu0 %1237
      %v1239 = vpack.c.bf16 %v1235, %v1235
      %v1241 = vsel %vm1229, %v1239, 0
      %vm1243 = vcmask 1043456
      %v1245 = vsel %vm1243, %v1162, 0
      %1247 = vmatprep.subr.bf16.mxu0 0
      %1248 = vmatpush1.bf16.msra.mxu0 %v1245
      %1249 = vmatprep.subr.bf16.mxu0 0
      %1250 = vmatpush1.bf16.msra.mxu0 0
      %1251 = vmatprep.subr.bf16.mxu0 0
      %1252 = vmatpush1.bf16.msra.mxu0 0
      %1253 = vmatprep.subr.bf16.mxu0 0
      %1254 = vmatpush1.bf16.msra.mxu0 0
      %1255 = vmatprep.subr.bf16.mxu0 0
      %1256 = vmatpush1.bf16.msra.mxu0 0
      %1257 = vmatprep.subr.bf16.mxu0 0
      %1258 = vmatpush1.bf16.msra.mxu0 0
      %1259 = vmatprep.subr.bf16.mxu0 0
      %1260 = vmatpush1.bf16.msra.mxu0 0
      %1261 = vmatprep.subr.bf16.mxu0 0
      %1262 = vmatpush1.bf16.msra.mxu0 0
      %1263 = vmatprep.subr.bf16.mxu0 0
      %1264 = vmatpush1.bf16.msra.mxu0 0
      %1265 = vmatprep.subr.bf16.mxu0 0
      %1266 = vmatpush1.bf16.msra.mxu0 0
      %1267 = vmatprep.subr.bf16.mxu0 0
      %1268 = vmatpush1.bf16.msra.mxu0 0
      %1269 = vmatprep.subr.bf16.mxu0 0
      %1270 = vmatpush1.bf16.msra.mxu0 0
      %1271 = vmatprep.subr.bf16.mxu0 0
      %1272 = vmatpush1.bf16.msra.mxu0 0
      %1273 = vmatprep.subr.bf16.mxu0 0
      %1274 = vmatpush1.bf16.msra.mxu0 0
      %1275 = vmatprep.subr.bf16.mxu0 0
      %1276 = vmatpush1.bf16.msra.mxu0 0
      %1277 = vmatprep.subr.bf16.mxu0 0
      %1278 = vmatpush1.bf16.msra.mxu0 0
      %1279 = vmatprep.mubr.bf16.mxu0 0
      %1280 = vmatmul.mubr.bf16.gmra.mrb[0].mxu0 %v1241
      %v1281 = vpop.f32.mrb[0].mxu0
      %v1282 = vadd.f32 0.0, %v1281
      %v1283 = vpop.f32.mrb[0].mxu0
      %v1284 = vpop.f32.mrb[0].mxu0
      %v1285 = vpop.f32.mrb[0].mxu0
      %1286 = vdwg.mxu0
      %v1287 = vrcp.pop %v1238
      %v1288 = vmul.f32 %v1282, %v1287
      %v1289 = vpack.c.bf16 %v1288, %v1288
      %v1290 = vld [vmem:[%s6] sm:$0xff]
      %v1291 = vld [vmem:[%s6 + $0x8] sm:$0xff]
      %v1292 = vld [vmem:[%s6 + $0x10] sm:$0xff]
      %v1293 = vld [vmem:[%s6 + $0x18] sm:$0xff]
      %v1294 = vld [vmem:[%s6 + $0x20] sm:$0xff]
      %v1295 = vld [vmem:[%s6 + $0x28] sm:$0xff]
      %v1296 = vld [vmem:[%s6 + $0x30] sm:$0xff]
      %v1297 = vld [vmem:[%s6 + $0x38] sm:$0xff]
      %v1298 = vld [vmem:[%s6 + $0x40] sm:$0xff]
      %v1299 = vld [vmem:[%s6 + $0x48] sm:$0xff]
      %v1300 = vld [vmem:[%s6 + $0x50] sm:$0xff]
      %v1301 = vld [vmem:[%s6 + $0x58] sm:$0xff]
      %v1302 = vld [vmem:[%s6 + $0x60] sm:$0xff]
      %v1303 = vld [vmem:[%s6 + $0x68] sm:$0xff]
      %v1304 = vld [vmem:[%s6 + $0x70] sm:$0xff]
      %v1305 = vld [vmem:[%s6 + $0x78] sm:$0xff]
      %v1322 = vunpack.c.l.b16 %v1290
      %v1323 = vunpack.c.h.b16 %v1290
      %v1324 = vunpack.c.l.b16 %v1291
      %v1325 = vunpack.c.h.b16 %v1291
      %v1326 = vunpack.c.l.b16 %v1292
      %v1327 = vunpack.c.h.b16 %v1292
      %v1328 = vunpack.c.l.b16 %v1293
      %v1329 = vunpack.c.h.b16 %v1293
      %v1330 = vunpack.c.l.b16 %v1294
      %v1331 = vunpack.c.h.b16 %v1294
      %v1332 = vunpack.c.l.b16 %v1295
      %v1333 = vunpack.c.h.b16 %v1295
      %v1334 = vunpack.c.l.b16 %v1296
      %v1335 = vunpack.c.h.b16 %v1296
      %v1336 = vunpack.c.l.b16 %v1297
      %v1337 = vunpack.c.h.b16 %v1297
      %v1338 = vunpack.c.l.b16 %v1298
      %v1339 = vunpack.c.h.b16 %v1298
      %v1340 = vunpack.c.l.b16 %v1299
      %v1341 = vunpack.c.h.b16 %v1299
      %v1342 = vunpack.c.l.b16 %v1300
      %v1343 = vunpack.c.h.b16 %v1300
      %v1344 = vunpack.c.l.b16 %v1301
      %v1345 = vunpack.c.h.b16 %v1301
      %v1346 = vunpack.c.l.b16 %v1302
      %v1347 = vunpack.c.h.b16 %v1302
      %v1348 = vunpack.c.l.b16 %v1303
      %v1349 = vunpack.c.h.b16 %v1303
      %v1350 = vunpack.c.l.b16 %v1304
      %v1351 = vunpack.c.h.b16 %v1304
      %v1352 = vunpack.c.l.b16 %v1305
      %v1353 = vunpack.c.h.b16 %v1305
      %v1354 = vpack.c.b16 %v1324, %v1322
      %v1355 = vpack.c.b16 %v1325, %v1323
      %v1356 = vpack.c.b16 %v1328, %v1326
      %v1357 = vpack.c.b16 %v1329, %v1327
      %v1358 = vpack.c.b16 %v1332, %v1330
      %v1359 = vpack.c.b16 %v1333, %v1331
      %v1360 = vpack.c.b16 %v1336, %v1334
      %v1361 = vpack.c.b16 %v1337, %v1335
      %v1362 = vpack.c.b16 %v1340, %v1338
      %v1363 = vpack.c.b16 %v1341, %v1339
      %v1364 = vpack.c.b16 %v1344, %v1342
      %v1365 = vpack.c.b16 %v1345, %v1343
      %v1366 = vpack.c.b16 %v1348, %v1346
      %v1367 = vpack.c.b16 %v1349, %v1347
      %v1368 = vpack.c.b16 %v1352, %v1350
      %v1369 = vpack.c.b16 %v1353, %v1351
      %1386 = vmatprep.subr.bf16.mxu0 %v1355
      %1387 = vmatpush1.bf16.msra.mxu0 %v1354
      %1388 = vmatprep.subr.bf16.mxu0 %v1357
      %1389 = vmatpush1.bf16.msra.mxu0 %v1356
      %1390 = vmatprep.subr.bf16.mxu0 %v1359
      %1391 = vmatpush1.bf16.msra.mxu0 %v1358
      %1392 = vmatprep.subr.bf16.mxu0 %v1361
      %1393 = vmatpush1.bf16.msra.mxu0 %v1360
      %1394 = vmatprep.subr.bf16.mxu0 %v1363
      %1395 = vmatpush1.bf16.msra.mxu0 %v1362
      %1396 = vmatprep.subr.bf16.mxu0 %v1365
      %1397 = vmatpush1.bf16.msra.mxu0 %v1364
      %1398 = vmatprep.subr.bf16.mxu0 %v1367
      %1399 = vmatpush1.bf16.msra.mxu0 %v1366
      %1400 = vmatprep.subr.bf16.mxu0 %v1369
      %1401 = vmatpush1.bf16.msra.mxu0 %v1368
      %1402 = vmatprep.subr.bf16.mxu0 0
      %1403 = vmatpush1.bf16.msra.mxu0 0
      %1404 = vmatprep.subr.bf16.mxu0 0
      %1405 = vmatpush1.bf16.msra.mxu0 0
      %1406 = vmatprep.subr.bf16.mxu0 0
      %1407 = vmatpush1.bf16.msra.mxu0 0
      %1408 = vmatprep.subr.bf16.mxu0 0
      %1409 = vmatpush1.bf16.msra.mxu0 0
      %1410 = vmatprep.subr.bf16.mxu0 0
      %1411 = vmatpush1.bf16.msra.mxu0 0
      %1412 = vmatprep.subr.bf16.mxu0 0
      %1413 = vmatpush1.bf16.msra.mxu0 0
      %1414 = vmatprep.subr.bf16.mxu0 0
      %1415 = vmatpush1.bf16.msra.mxu0 0
      %1416 = vmatprep.subr.bf16.mxu0 0
      %1417 = vmatpush1.bf16.msra.mxu0 0
      %1418 = vmatprep.mubr.bf16.mxu0 0
      %1419 = vmatmul.mubr.bf16.gmra.mrb[0].mxu0 %v1289
      %v1420 = vpop.f32.mrb[0].mxu0
      %v1421 = vadd.f32 0.0, %v1420
      %v1422 = vpop.f32.mrb[0].mxu0
      %v1423 = vadd.f32 0.0, %v1422
      %v1424 = vpop.f32.mrb[0].mxu0
      %v1425 = vpop.f32.mrb[0].mxu0
      %1426 = vdwg.mxu0
      %v1427 = vadd.f32 %v1187, %v1421
      %v1428 = vadd.f32 %v1188, %v1423
      %1429 = vmatprep.subr.bf16.mxu0 0
      %1430 = vmatpush1.bf16.xpose.msra.mxu0 %v1161
      %1431 = vmatprep.subr.bf16.mxu0 0
      %1432 = vmatpush1.bf16.xpose.msra.mxu0 0
      %1433 = vmatprep.subr.bf16.mxu0 0
      %1434 = vmatpush1.bf16.xpose.msra.mxu0 0
      %1435 = vmatprep.subr.bf16.mxu0 0
      %1436 = vmatpush1.bf16.xpose.msra.mxu0 0
      %1437 = vmatprep.subr.bf16.mxu0 0
      %1438 = vmatpush1.bf16.xpose.msra.mxu0 0
      %1439 = vmatprep.subr.bf16.mxu0 0
      %1440 = vmatpush1.bf16.xpose.msra.mxu0 0
      %1441 = vmatprep.subr.bf16.mxu0 0
      %1442 = vmatpush1.bf16.xpose.msra.mxu0 0
      %1443 = vmatprep.subr.bf16.mxu0 0
      %1444 = vmatpush1.bf16.xpose.msra.mxu0 0
      %1445 = vmatprep.subr.bf16.mxu0 0
      %1446 = vmatpush1.bf16.xpose.msra.mxu0 0
      %1447 = vmatprep.subr.bf16.mxu0 0
      %1448 = vmatpush1.bf16.xpose.msra.mxu0 0
      %1449 = vmatprep.subr.bf16.mxu0 0
      %1450 = vmatpush1.bf16.xpose.msra.mxu0 0
      %1451 = vmatprep.subr.bf16.mxu0 0
      %1452 = vmatpush1.bf16.xpose.msra.mxu0 0
      %1453 = vmatprep.subr.bf16.mxu0 0
      %1454 = vmatpush1.bf16.xpose.msra.mxu0 0
      %1455 = vmatprep.subr.bf16.mxu0 0
      %1456 = vmatpush1.bf16.xpose.msra.mxu0 0
      %1457 = vmatprep.subr.bf16.mxu0 0
      %1458 = vmatpush1.bf16.xpose.msra.mxu0 0
      %1459 = vmatprep.subr.bf16.mxu0 0
      %1460 = vmatpush1.bf16.xpose.msra.mxu0 0
      %1461 = vmatprep.mubr.bf16.mxu0 0
      %1462 = vmatmul.mubr.bf16.gmra.mrb[0].mxu0 %v647
      %v1463 = vpop.f32.mrb[0].mxu0
      %v1464 = vadd.f32 0.0, %v1463
      %v1465 = vpop.f32.mrb[0].mxu0
      %v1466 = vpop.f32.mrb[0].mxu0
      %v1467 = vpop.f32.mrb[0].mxu0
      %1468 = vdwg.mxu0
      %v1469 = vsel %vm1229, %v1464, -inf
      %1470 = vmax.xlane.f32.xlu0 %v1469
      %v1471 = vpop.xlane.xlu0 %1470
      %v1472 = vsub.f32 %v1464, %v1471
      %v1473 = vmul.f32 %v1472, 1.442695
      %v1474 = vpow.pop %v1473
      %v1475 = vsel %vm1229, %v1474, 0.0
      %1476 = vadd.xlane.f32.xlu0 %v1475
      %v1477 = vpop.xlane.xlu0 %1476
      %v1478 = vpack.c.bf16 %v1474, %v1474
      %v1480 = vsel %vm1229, %v1478, 0
      %v1483 = vsel %vm1243, %v1163, 0
      %1485 = vmatprep.subr.bf16.mxu0 0
      %1486 = vmatpush1.bf16.msra.mxu0 %v1483
      %1487 = vmatprep.subr.bf16.mxu0 0
      %1488 = vmatpush1.bf16.msra.mxu0 0
      %1489 = vmatprep.subr.bf16.mxu0 0
      %1490 = vmatpush1.bf16.msra.mxu0 0
      %1491 = vmatprep.subr.bf16.mxu0 0
      %1492 = vmatpush1.bf16.msra.mxu0 0
      %1493 = vmatprep.subr.bf16.mxu0 0
      %1494 = vmatpush1.bf16.msra.mxu0 0
      %1495 = vmatprep.subr.bf16.mxu0 0
      %1496 = vmatpush1.bf16.msra.mxu0 0
      %1497 = vmatprep.subr.bf16.mxu0 0
      %1498 = vmatpush1.bf16.msra.mxu0 0
      %1499 = vmatprep.subr.bf16.mxu0 0
      %1500 = vmatpush1.bf16.msra.mxu0 0
      %1501 = vmatprep.subr.bf16.mxu0 0
      %1502 = vmatpush1.bf16.msra.mxu0 0
      %1503 = vmatprep.subr.bf16.mxu0 0
      %1504 = vmatpush1.bf16.msra.mxu0 0
      %1505 = vmatprep.subr.bf16.mxu0 0
      %1506 = vmatpush1.bf16.msra.mxu0 0
      %1507 = vmatprep.subr.bf16.mxu0 0
      %1508 = vmatpush1.bf16.msra.mxu0 0
      %1509 = vmatprep.subr.bf16.mxu0 0
      %1510 = vmatpush1.bf16.msra.mxu0 0
      %1511 = vmatprep.subr.bf16.mxu0 0
      %1512 = vmatpush1.bf16.msra.mxu0 0
      %1513 = vmatprep.subr.bf16.mxu0 0
      %1514 = vmatpush1.bf16.msra.mxu0 0
      %1515 = vmatprep.subr.bf16.mxu0 0
      %1516 = vmatpush1.bf16.msra.mxu0 0
      %1517 = vmatprep.mubr.bf16.mxu0 0
      %1518 = vmatmul.mubr.bf16.gmra.mrb[0].mxu0 %v1480
      %v1519 = vpop.f32.mrb[0].mxu0
      %v1520 = vadd.f32 0.0, %v1519
      %v1521 = vpop.f32.mrb[0].mxu0
      %v1522 = vpop.f32.mrb[0].mxu0
      %v1523 = vpop.f32.mrb[0].mxu0
      %1524 = vdwg.mxu0
      %v1525 = vrcp.pop %v1477
      %v1526 = vmul.f32 %v1520, %v1525
      %v1527 = vpack.c.bf16 %v1526, %v1526
      %v1528 = vld [vmem:[%s6 + $0x80] sm:$0xff]
      %v1529 = vld [vmem:[%s6 + $0x88] sm:$0xff]
      %v1530 = vld [vmem:[%s6 + $0x90] sm:$0xff]
      %v1531 = vld [vmem:[%s6 + $0x98] sm:$0xff]
      %v1532 = vld [vmem:[%s6 + $0xa0] sm:$0xff]
      %v1533 = vld [vmem:[%s6 + $0xa8] sm:$0xff]
      %v1534 = vld [vmem:[%s6 + $0xb0] sm:$0xff]
      %v1535 = vld [vmem:[%s6 + $0xb8] sm:$0xff]
      %v1536 = vld [vmem:[%s6 + $0xc0] sm:$0xff]
      %v1537 = vld [vmem:[%s6 + $0xc8] sm:$0xff]
      %v1538 = vld [vmem:[%s6 + $0xd0] sm:$0xff]
      %v1539 = vld [vmem:[%s6 + $0xd8] sm:$0xff]
      %v1540 = vld [vmem:[%s6 + $0xe0] sm:$0xff]
      %v1541 = vld [vmem:[%s6 + $0xe8] sm:$0xff]
      %v1542 = vld [vmem:[%s6 + $0xf0] sm:$0xff]
      %v1543 = vld [vmem:[%s6 + $0xf8] sm:$0xff]
      %v1560 = vunpack.c.l.b16 %v1528
      %v1561 = vunpack.c.h.b16 %v1528
      %v1562 = vunpack.c.l.b16 %v1529
      %v1563 = vunpack.c.h.b16 %v1529
      %v1564 = vunpack.c.l.b16 %v1530
      %v1565 = vunpack.c.h.b16 %v1530
      %v1566 = vunpack.c.l.b16 %v1531
      %v1567 = vunpack.c.h.b16 %v1531
      %v1568 = vunpack.c.l.b16 %v1532
      %v1569 = vunpack.c.h.b16 %v1532
      %v1570 = vunpack.c.l.b16 %v1533
      %v1571 = vunpack.c.h.b16 %v1533
      %v1572 = vunpack.c.l.b16 %v1534
      %v1573 = vunpack.c.h.b16 %v1534
      %v1574 = vunpack.c.l.b16 %v1535
      %v1575 = vunpack.c.h.b16 %v1535
      %v1576 = vunpack.c.l.b16 %v1536
      %v1577 = vunpack.c.h.b16 %v1536
      %v1578 = vunpack.c.l.b16 %v1537
      %v1579 = vunpack.c.h.b16 %v1537
      %v1580 = vunpack.c.l.b16 %v1538
      %v1581 = vunpack.c.h.b16 %v1538
      %v1582 = vunpack.c.l.b16 %v1539
      %v1583 = vunpack.c.h.b16 %v1539
      %v1584 = vunpack.c.l.b16 %v1540
      %v1585 = vunpack.c.h.b16 %v1540
      %v1586 = vunpack.c.l.b16 %v1541
      %v1587 = vunpack.c.h.b16 %v1541
      %v1588 = vunpack.c.l.b16 %v1542
      %v1589 = vunpack.c.h.b16 %v1542
      %v1590 = vunpack.c.l.b16 %v1543
      %v1591 = vunpack.c.h.b16 %v1543
      %v1592 = vpack.c.b16 %v1562, %v1560
      %v1593 = vpack.c.b16 %v1563, %v1561
      %v1594 = vpack.c.b16 %v1566, %v1564
      %v1595 = vpack.c.b16 %v1567, %v1565
      %v1596 = vpack.c.b16 %v1570, %v1568
      %v1597 = vpack.c.b16 %v1571, %v1569
      %v1598 = vpack.c.b16 %v1574, %v1572
      %v1599 = vpack.c.b16 %v1575, %v1573
      %v1600 = vpack.c.b16 %v1578, %v1576
      %v1601 = vpack.c.b16 %v1579, %v1577
      %v1602 = vpack.c.b16 %v1582, %v1580
      %v1603 = vpack.c.b16 %v1583, %v1581
      %v1604 = vpack.c.b16 %v1586, %v1584
      %v1605 = vpack.c.b16 %v1587, %v1585
      %v1606 = vpack.c.b16 %v1590, %v1588
      %v1607 = vpack.c.b16 %v1591, %v1589
      %1624 = vmatprep.subr.bf16.mxu0 %v1593
      %1625 = vmatpush1.bf16.msra.mxu0 %v1592
      %1626 = vmatprep.subr.bf16.mxu0 %v1595
      %1627 = vmatpush1.bf16.msra.mxu0 %v1594
      %1628 = vmatprep.subr.bf16.mxu0 %v1597
      %1629 = vmatpush1.bf16.msra.mxu0 %v1596
      %1630 = vmatprep.subr.bf16.mxu0 %v1599
      %1631 = vmatpush1.bf16.msra.mxu0 %v1598
      %1632 = vmatprep.subr.bf16.mxu0 %v1601
      %1633 = vmatpush1.bf16.msra.mxu0 %v1600
      %1634 = vmatprep.subr.bf16.mxu0 %v1603
      %1635 = vmatpush1.bf16.msra.mxu0 %v1602
      %1636 = vmatprep.subr.bf16.mxu0 %v1605
      %1637 = vmatpush1.bf16.msra.mxu0 %v1604
      %1638 = vmatprep.subr.bf16.mxu0 %v1607
      %1639 = vmatpush1.bf16.msra.mxu0 %v1606
      %1640 = vmatprep.subr.bf16.mxu0 0
      %1641 = vmatpush1.bf16.msra.mxu0 0
      %1642 = vmatprep.subr.bf16.mxu0 0
      %1643 = vmatpush1.bf16.msra.mxu0 0
      %1644 = vmatprep.subr.bf16.mxu0 0
      %1645 = vmatpush1.bf16.msra.mxu0 0
      %1646 = vmatprep.subr.bf16.mxu0 0
      %1647 = vmatpush1.bf16.msra.mxu0 0
      %1648 = vmatprep.subr.bf16.mxu0 0
      %1649 = vmatpush1.bf16.msra.mxu0 0
      %1650 = vmatprep.subr.bf16.mxu0 0
      %1651 = vmatpush1.bf16.msra.mxu0 0
      %1652 = vmatprep.subr.bf16.mxu0 0
      %1653 = vmatpush1.bf16.msra.mxu0 0
      %1654 = vmatprep.subr.bf16.mxu0 0
      %1655 = vmatpush1.bf16.msra.mxu0 0
      %1656 = vmatprep.mubr.bf16.mxu0 0
      %1657 = vmatmul.mubr.bf16.gmra.mrb[0].mxu0 %v1527
      %v1658 = vpop.f32.mrb[0].mxu0
      %v1659 = vadd.f32 0.0, %v1658
      %v1660 = vpop.f32.mrb[0].mxu0
      %v1661 = vadd.f32 0.0, %v1660
      %v1662 = vpop.f32.mrb[0].mxu0
      %v1663 = vpop.f32.mrb[0].mxu0
      %1664 = vdwg.mxu0
      %v1665 = vadd.f32 %v1427, %v1659
      %v1666 = vadd.f32 %v1428, %v1661
      %v1667 = vld [vmem:[%s8] sm:$0x3]
      %v1668 = vunpack.c.l.bf16 %v1667
      %v1669 = vld [vmem:[%s9] sm:$0x3]
      %v1670 = vunpack.c.l.bf16 %v1669
      %v1671 = vadd.f32 %v1665, %v1666
      %1672 = vadd.xlane.f32.xlu0 %v1671
      %v1673 = vpop.xlane.xlu0 %1672
      %v1674 = vrcp.pop 256.0
      %v1675 = vmul.f32 %v1673, %v1674
      %v1676 = vsub.f32 %v1665, %v1675
      %v1677 = vsub.f32 %v1666, %v1675
      %v1678 = vmul.f32 %v1676, %v1676
      %v1679 = vmul.f32 %v1677, %v1677
      %v1680 = vadd.f32 %v1678, %v1679
      %1681 = vadd.xlane.f32.xlu0 %v1680
      %v1682 = vpop.xlane.xlu0 %1681
      %v1683 = vmul.f32 %v1682, %v1674
      %v1684 = vadd.f32 %v1683, 1e-05
      %v1685 = vrsqrt.pop %v1684
      %v1686 = vmul.f32 %v1676, %v1685
      %v1687 = vmul.f32 %v1677, %v1685
      %v1689 = vlaneseq
      %v1690 = vshrl.u32 %v1689, 7
      %v1691 = vsub.s32 0, %v1690
      %v1692 = vrot.slane %v1668, %v1691
      %v1693 = vlaneseq
      %v1694 = vshrl.u32 %v1693, 7
      %v1695 = vsub.s32 2, %v1694
      %v1696 = vrot.slane %v1668, %v1695
      %v1699 = vlaneseq
      %v1700 = vshrl.u32 %v1699, 7
      %v1701 = vsub.s32 0, %v1700
      %v1702 = vrot.slane %v1692, %v1701
      %v1703 = vlaneseq
      %v1704 = vshrl.u32 %v1703, 7
      %v1705 = vsub.s32 0, %v1704
      %v1706 = vrot.slane %v1696, %v1705
      %v1707 = vmul.f32 %v1686, %v1702
      %v1708 = vmul.f32 %v1687, %v1706
      %v1710 = vlaneseq
      %v1711 = vshrl.u32 %v1710, 7
      %v1712 = vsub.s32 0, %v1711
      %v1713 = vrot.slane %v1670, %v1712
      %v1714 = vlaneseq
      %v1715 = vshrl.u32 %v1714, 7
      %v1716 = vsub.s32 2, %v1715
      %v1717 = vrot.slane %v1670, %v1716
      %v1720 = vlaneseq
      %v1721 = vshrl.u32 %v1720, 7
      %v1722 = vsub.s32 0, %v1721
      %v1723 = vrot.slane %v1713, %v1722
      %v1724 = vlaneseq
      %v1725 = vshrl.u32 %v1724, 7
      %v1726 = vsub.s32 0, %v1725
      %v1727 = vrot.slane %v1717, %v1726
      %v1728 = vadd.f32 %v1707, %v1723
      %v1729 = vadd.f32 %v1708, %v1727
      %v1730 = vpack.c.bf16 %v1728, %v1728
      %v1731 = vpack.c.bf16 %v1729, %v1729
      %v1734 = vunpack.c.l.b16 %v1730
      %v1735 = vunpack.c.l.b16 %v1731
      %v1736 = vpack.c.b16 %v1735, %v1734
      %1738 = vst [vmem:[%s379] sm:$0xff] %v1736
      %p1739 = scmp.lt.s32.totalorder %s21, 1
      %s1740 = scalar_select %p1739, %s21, 1
      %s1741 = smul.addr %s1740, 2
      %s1742 = smul.addr %s1741, 4
      %s1743 = scalar_lea.vmem %s10, %s1742
      // Predicated region
      $region61: #{transformer_forward.16} parent=59 // pred_check
        %p1744 = pneg %p259
      $region62: #{transformer_forward.16} parent=59 // pred_check_branch
        %1746 = sbr.rel (%p1744) target = $region64
      $region63: #{transformer_forward.16} parent=59 // pred_region
        _
      $region64: #{transformer_forward.16} parent=59 // pred_fallthru
        _
    $region60: #{transformer_forward.16} parent=5 // pred_fallthru
      _
    %p1747 = scmp.le.s32.totalorder 2, %s16
    // Predicated region
    $region65: #{transformer_forward.16} parent=5 // pred_check
      %p1748 = pneg %p1747
    $region66: #{transformer_forward.16} parent=5 // pred_check_branch
      %1750 = sbr.rel (%p1748) target = $region68
    $region67: #{transformer_forward.16} parent=5 // pred_region
      %s1751 = ssub.s32 %s16, 2
      // Predicated region
      $region69: #{transformer_forward.16} parent=67 // pred_check
        %p1752 = pneg %p265
      $region70: #{transformer_forward.16} parent=67 // pred_check_branch
        %1754 = sbr.rel (%p1752) target = $region72
      $region71: #{transformer_forward.16} parent=67 // pred_region
        %p1755 = scmp.lt.s32.totalorder %s22, 1
        %s1756 = scalar_select %p1755, %s22, 1
        %s1757 = smul.addr %s1756, 2
        %s1758 = smul.addr %s1757, 4
        %s1759 = scalar_lea.vmem %s10, %s1758
      $region72: #{transformer_forward.16} parent=67 // pred_fallthru
        _
    $region68: #{transformer_forward.16} parent=5 // pred_fallthru
      _
  $region6: #{transformer_forward.16} parent=0 // loop_footer
    %s20 = sadd.s32 1, %s16
  $region7: #{transformer_forward.16} parent=0 // loop_footer_branch
    %15 = sbr.rel target = $region3
  $region8: #{transformer_forward.16} parent=0 // loop_exit
    _

// kernel: transformer_forward.13
$region0: #{transformer_forward.13}
  #allocation0 [shape = 'u32[]', space=smem, size = 0x4, offset = 0x4, fixed_abs, tag = 'smem constant byte address 0x4 - core index']
  #allocation1 [shape = 'u32[144,128]{1,0:T(1,128)}', space=vmem, size = 0x12000, scoped, tag = 'internal scratch']
  %s0 = inlined_call_operand.vmem [shape: bf16[2,8,256], index: 0, kind: input, shape index: {}]
  %s1 = inlined_call_operand.vmem [shape: bf16[256,768], index: 1, kind: input, shape index: {}]
  %s2 = inlined_call_operand.vmem [shape: bf16[1,768], index: 2, kind: input, shape index: {}]
  %s3 = inlined_call_operand.vmem [shape: bf16[256,256], index: 3, kind: input, shape index: {}]
  %s4 = inlined_call_operand.vmem [shape: bf16[1,256], index: 4, kind: input, shape index: {}]
  %s5 = inlined_call_operand.vmem [shape: bf16[1,256], index: 5, kind: input, shape index: {}]
  %s6 = inlined_call_operand.vmem [shape: bf16[1,256], index: 6, kind: input, shape index: {}]
  %s7 = inlined_call_operand.vmem [shape: bf16[2,8,256], index: 7, kind: output, shape index: {}]
  %s8 = sld [smem:[#allocation0]]
  $region61: #{transformer_forward.13} parent=0
    _
  %s10 = ssub.s32 1, %s8
  %s11 = scalar_select 0, %s10, %s8
  loop: start=0, step=1, limit=4
  $region2: #{transformer_forward.13} parent=0 // loop_pre_header
    _
  $region3: #{transformer_forward.13} parent=0 // loop_header
    %s13 = sphi 0, %s17
    %p14 = scmp.ge.s32.totalorder %s13, 4
    %s23 = sphi 0, %s25
    %s26 = sphi 0, %s23
    %s27 = sphi 0, %s26
    %s43 = sphi 0, %s27
    %s47 = sphi 0, %s47
    %s49 = sphi 0, %s47
    %s50 = sphi 0, %s49
    %s64 = sphi 0, %s50
    %s68 = sphi 0, %s68
    %s70 = sphi 0, %s68
    %s71 = sphi 0, %s70
    %s85 = sphi 0, %s71
    %s89 = sphi 0, %s89
    %s91 = sphi 0, %s89
    %s92 = sphi 0, %s91
    %s106 = sphi 0, %s92
    %s110 = sphi 0, %s110
    %s112 = sphi 0, %s110
    %s113 = sphi 0, %s112
    %s127 = sphi 0, %s113
    %s131 = sphi 0, %s131
    %s133 = sphi 0, %s131
    %s134 = sphi 0, %s133
    %s148 = sphi 0, %s134
    %s152 = sphi 0, %s152
    %s154 = sphi 0, %s152
    %s155 = sphi 0, %s154
    %s169 = sphi 0, %s155
    %s175 = sphi 0, %s177
    %s178 = sphi 0, %s175
    %s179 = sphi 0, %s178
    %s195 = sphi 0, %s179
  $region4: #{transformer_forward.13} parent=0 // loop_header_branch
    %16 = sbr.rel (%p14) target = $region8
  $region5: #{transformer_forward.13} parent=0 // loop_body
    %s18 = ssub.s32 %s13, 1
    %s19 = ssub.s32 %s13, 2
    %s20 = sadd.s32 %s13, 1
    %s21 = ssub.s32 %s13, %s20
    %p22 = scmp.eq.s32.totalorder %s21, 0
    %s24 = sadd.s32 %s23, 1
    %s25 = scalar_select %p22, %s23, %s24
    %p28 = pneg %p22
    %p29 = scmp.eq.s32.totalorder %s13, 1
    %p30 = por %p28, %p29
    %p31 = scmp.ne.s32.totalorder %s23, %s26
    %p32 = scmp.eq.s32.totalorder %s13, 0
    %p33 = por %p31, %p32
    %p34 = scmp.ne.s32.totalorder %s23, %s26
    %p35 = scmp.eq.s32.totalorder %s18, 1
    %p36 = por %p34, %p35
    %p37 = scmp.ne.s32.totalorder %s26, %s27
    %p38 = scmp.eq.s32.totalorder %s18, 0
    %p39 = por %p37, %p38
    %p40 = scmp.ne.s32.totalorder %s26, %s27
    %p41 = scmp.eq.s32.totalorder %s19, 1
    %p42 = por %p40, %p41
    %p44 = scmp.ne.s32.totalorder %s27, %s43
    %p45 = scmp.eq.s32.totalorder %s19, 0
    %p46 = por %p44, %p45
    %s48 = sadd.s32 %s47, 1
    %p51 = scmp.eq.s32.totalorder %s13, 1
    %p52 = scmp.ne.s32.totalorder %s47, %s49
    %p53 = scmp.eq.s32.totalorder %s13, 0
    %p54 = por %p52, %p53
    %p55 = scmp.ne.s32.totalorder %s47, %s49
    %p56 = scmp.eq.s32.totalorder %s18, 1
    %p57 = por %p55, %p56
    %p58 = scmp.ne.s32.totalorder %s49, %s50
    %p59 = scmp.eq.s32.totalorder %s18, 0
    %p60 = por %p58, %p59
    %p61 = scmp.ne.s32.totalorder %s49, %s50
    %p62 = scmp.eq.s32.totalorder %s19, 1
    %p63 = por %p61, %p62
    %p65 = scmp.ne.s32.totalorder %s50, %s64
    %p66 = scmp.eq.s32.totalorder %s19, 0
    %p67 = por %p65, %p66
    %s69 = sadd.s32 %s68, 1
    %p72 = scmp.eq.s32.totalorder %s13, 1
    %p73 = scmp.ne.s32.totalorder %s68, %s70
    %p74 = scmp.eq.s32.totalorder %s13, 0
    %p75 = por %p73, %p74
    %p76 = scmp.ne.s32.totalorder %s68, %s70
    %p77 = scmp.eq.s32.totalorder %s18, 1
    %p78 = por %p76, %p77
    %p79 = scmp.ne.s32.totalorder %s70, %s71
    %p80 = scmp.eq.s32.totalorder %s18, 0
    %p81 = por %p79, %p80
    %p82 = scmp.ne.s32.totalorder %s70, %s71
    %p83 = scmp.eq.s32.totalorder %s19, 1
    %p84 = por %p82, %p83
    %p86 = scmp.ne.s32.totalorder %s71, %s85
    %p87 = scmp.eq.s32.totalorder %s19, 0
    %p88 = por %p86, %p87
    %s90 = sadd.s32 %s89, 1
    %p93 = scmp.eq.s32.totalorder %s13, 1
    %p94 = scmp.ne.s32.totalorder %s89, %s91
    %p95 = scmp.eq.s32.totalorder %s13, 0
    %p96 = por %p94, %p95
    %p97 = scmp.ne.s32.totalorder %s89, %s91
    %p98 = scmp.eq.s32.totalorder %s18, 1
    %p99 = por %p97, %p98
    %p100 = scmp.ne.s32.totalorder %s91, %s92
    %p101 = scmp.eq.s32.totalorder %s18, 0
    %p102 = por %p100, %p101
    %p103 = scmp.ne.s32.totalorder %s91, %s92
    %p104 = scmp.eq.s32.totalorder %s19, 1
    %p105 = por %p103, %p104
    %p107 = scmp.ne.s32.totalorder %s92, %s106
    %p108 = scmp.eq.s32.totalorder %s19, 0
    %p109 = por %p107, %p108
    %s111 = sadd.s32 %s110, 1
    %p114 = scmp.eq.s32.totalorder %s13, 1
    %p115 = scmp.ne.s32.totalorder %s110, %s112
    %p116 = scmp.eq.s32.totalorder %s13, 0
    %p117 = por %p115, %p116
    %p118 = scmp.ne.s32.totalorder %s110, %s112
    %p119 = scmp.eq.s32.totalorder %s18, 1
    %p120 = por %p118, %p119
    %p121 = scmp.ne.s32.totalorder %s112, %s113
    %p122 = scmp.eq.s32.totalorder %s18, 0
    %p123 = por %p121, %p122
    %p124 = scmp.ne.s32.totalorder %s112, %s113
    %p125 = scmp.eq.s32.totalorder %s19, 1
    %p126 = por %p124, %p125
    %p128 = scmp.ne.s32.totalorder %s113, %s127
    %p129 = scmp.eq.s32.totalorder %s19, 0
    %p130 = por %p128, %p129
    %s132 = sadd.s32 %s131, 1
    %p135 = scmp.eq.s32.totalorder %s13, 1
    %p136 = scmp.ne.s32.totalorder %s131, %s133
    %p137 = scmp.eq.s32.totalorder %s13, 0
    %p138 = por %p136, %p137
    %p139 = scmp.ne.s32.totalorder %s131, %s133
    %p140 = scmp.eq.s32.totalorder %s18, 1
    %p141 = por %p139, %p140
    %p142 = scmp.ne.s32.totalorder %s133, %s134
    %p143 = scmp.eq.s32.totalorder %s18, 0
    %p144 = por %p142, %p143
    %p145 = scmp.ne.s32.totalorder %s133, %s134
    %p146 = scmp.eq.s32.totalorder %s19, 1
    %p147 = por %p145, %p146
    %p149 = scmp.ne.s32.totalorder %s134, %s148
    %p150 = scmp.eq.s32.totalorder %s19, 0
    %p151 = por %p149, %p150
    %s153 = sadd.s32 %s152, 1
    %p156 = scmp.eq.s32.totalorder %s13, 1
    %p157 = scmp.ne.s32.totalorder %s152, %s154
    %p158 = scmp.eq.s32.totalorder %s13, 0
    %p159 = por %p157, %p158
    %p160 = scmp.ne.s32.totalorder %s152, %s154
    %p161 = scmp.eq.s32.totalorder %s18, 1
    %p162 = por %p160, %p161
    %p163 = scmp.ne.s32.totalorder %s154, %s155
    %p164 = scmp.eq.s32.totalorder %s18, 0
    %p165 = por %p163, %p164
    %p166 = scmp.ne.s32.totalorder %s154, %s155
    %p167 = scmp.eq.s32.totalorder %s19, 1
    %p168 = por %p166, %p167
    %p170 = scmp.ne.s32.totalorder %s155, %s169
    %p171 = scmp.eq.s32.totalorder %s19, 0
    %p172 = por %p170, %p171
    %s173 = ssub.s32 %s13, %s20
    %p174 = scmp.eq.s32.totalorder %s173, 0
    %s176 = sadd.s32 %s175, 1
    %s177 = scalar_select %p174, %s175, %s176
    %p180 = pneg %p174
    %p181 = scmp.eq.s32.totalorder %s13, 1
    %p182 = por %p180, %p181
    %p183 = scmp.ne.s32.totalorder %s175, %s178
    %p184 = scmp.eq.s32.totalorder %s13, 0
    %p185 = por %p183, %p184
    %p186 = scmp.ne.s32.totalorder %s175, %s178
    %p187 = scmp.eq.s32.totalorder %s18, 1
    %p188 = por %p186, %p187
    %p189 = scmp.ne.s32.totalorder %s178, %s179
    %p190 = scmp.eq.s32.totalorder %s18, 0
    %p191 = por %p189, %p190
    %p192 = scmp.ne.s32.totalorder %s178, %s179
    %p193 = scmp.eq.s32.totalorder %s19, 1
    %p194 = por %p192, %p193
    %p196 = scmp.ne.s32.totalorder %s179, %s195
    %p197 = scmp.eq.s32.totalorder %s19, 0
    %p198 = por %p196, %p197
    %p199 = scmp.le.s32.totalorder 1, %s13
    %p200 = scmp.lt.s32.totalorder %s13, 3
    %p201 = pnand %p199, %p200
    %p202 = pneg %p201
    // Predicated region
    $region9: #{transformer_forward.13} parent=5 // pred_check
      _
    $region10: #{transformer_forward.13} parent=5 // pred_check_branch
      %204 = sbr.rel (%p201) target = $region12
    $region11: #{transformer_forward.13} parent=5 // pred_region
      %s205 = ssub.s32 %s13, 1
      // Predicated region
      $region13: #{transformer_forward.13} parent=11 // pred_check
        %p206 = pneg %p60
      $region14: #{transformer_forward.13} parent=11 // pred_check_branch
        %208 = sbr.rel (%p206) target = $region16
      $region15: #{transformer_forward.13} parent=11 // pred_region
        _
      $region16: #{transformer_forward.13} parent=11 // pred_fallthru
        _
      // Predicated region
      $region17: #{transformer_forward.13} parent=11 // pred_check
        %p209 = pneg %p81
      $region18: #{transformer_forward.13} parent=11 // pred_check_branch
        %211 = sbr.rel (%p209) target = $region20
      $region19: #{transformer_forward.13} parent=11 // pred_region
        _
      $region20: #{transformer_forward.13} parent=11 // pred_fallthru
        _
      // Predicated region
      $region21: #{transformer_forward.13} parent=11 // pred_check
        %p212 = pneg %p102
      $region22: #{transformer_forward.13} parent=11 // pred_check_branch
        %214 = sbr.rel (%p212) target = $region24
      $region23: #{transformer_forward.13} parent=11 // pred_region
        _
      $region24: #{transformer_forward.13} parent=11 // pred_fallthru
        _
      // Predicated region
      $region25: #{transformer_forward.13} parent=11 // pred_check
        %p215 = pneg %p123
      $region26: #{transformer_forward.13} parent=11 // pred_check_branch
        %217 = sbr.rel (%p215) target = $region28
      $region27: #{transformer_forward.13} parent=11 // pred_region
        _
      $region28: #{transformer_forward.13} parent=11 // pred_fallthru
        _
      // Predicated region
      $region29: #{transformer_forward.13} parent=11 // pred_check
        %p218 = pneg %p144
      $region30: #{transformer_forward.13} parent=11 // pred_check_branch
        %220 = sbr.rel (%p218) target = $region32
      $region31: #{transformer_forward.13} parent=11 // pred_region
        _
      $region32: #{transformer_forward.13} parent=11 // pred_fallthru
        _
      // Predicated region
      $region33: #{transformer_forward.13} parent=11 // pred_check
        %p221 = pneg %p165
      $region34: #{transformer_forward.13} parent=11 // pred_check_branch
        %223 = sbr.rel (%p221) target = $region36
      $region35: #{transformer_forward.13} parent=11 // pred_region
        _
      $region36: #{transformer_forward.13} parent=11 // pred_fallthru
        _
    $region12: #{transformer_forward.13} parent=5 // pred_fallthru
      _
    %p224 = scmp.lt.s32.totalorder %s13, 2
    // Predicated region
    $region37: #{transformer_forward.13} parent=5 // pred_check
      %p225 = pneg %p224
    $region38: #{transformer_forward.13} parent=5 // pred_check_branch
      %227 = sbr.rel (%p225) target = $region40
    $region39: #{transformer_forward.13} parent=5 // pred_region
      // Predicated region
      $region41: #{transformer_forward.13} parent=39 // pred_check
        %p228 = pneg %p33
      $region42: #{transformer_forward.13} parent=39 // pred_check_branch
        %230 = sbr.rel (%p228) target = $region44
      $region43: #{transformer_forward.13} parent=39 // pred_region
        %p231 = scmp.lt.s32.totalorder %s13, 1
        %s232 = scalar_select %p231, %s13, 1
        %s233 = smul.addr %s232, 2
        %s234 = smul.addr %s233, 4
        %s235 = scalar_lea.vmem %s0, %s234
      $region44: #{transformer_forward.13} parent=39 // pred_fallthru
        _
    $region40: #{transformer_forward.13} parent=5 // pred_fallthru
      _
    %p236 = scmp.le.s32.totalorder 1, %s13
    %p237 = scmp.lt.s32.totalorder %s13, 3
    %p238 = pnand %p236, %p237
    %p239 = pneg %p238
    // Predicated region
    $region45: #{transformer_forward.13} parent=5 // pred_check
      _
    $region46: #{transformer_forward.13} parent=5 // pred_check_branch
      %241 = sbr.rel (%p238) target = $region48
    $region47: #{transformer_forward.13} parent=5 // pred_region
      %s242 = ssub.s32 %s13, 1
      %p243 = scmp.lt.s32.totalorder %s18, 1
      %s244 = scalar_select %p243, %s18, 1
      %s245 = smul.addr %s244, 2
      %s246 = smul.addr %s245, 4
      %s247 = scalar_lea.vmem %s0, %s246
      %p248 = pneg %p39
      %p249 = pneg %p36
      %p250 = pneg %p60
      %p251 = pneg %p57
      %p252 = pneg %p81
      %p253 = pneg %p78
      %p254 = pneg %p102
      %p255 = pneg %p99
      %p256 = pneg %p123
      %p257 = pneg %p120
      %p258 = pneg %p144
      %p259 = pneg %p141
      %p260 = pneg %p165
      %p261 = pneg %p162
      %p262 = pneg %p191
      %p263 = pneg %p188
      %p264 = scmp.lt.s32.totalorder %s18, 1
      %s265 = scalar_select %p264, %s18, 1
      %s266 = smul.addr %s265, 2
      %s267 = smul.addr %s266, 4
      %s268 = scalar_lea.vmem %s7, %s267
      %p269 = scmp.lt.s32.totalorder %s18, 1
      %s270 = scalar_select %p269, %s18, 1
      %s271 = smul.addr %s270, 2
      %s272 = smul.addr %s271, 4
      %s273 = scalar_lea.vmem %s0, %s272
      %p274 = scmp.lt.s32.totalorder %s18, 1
      %s275 = scalar_select %p274, %s18, 1
      %s276 = smul.addr %s275, 2
      %s277 = smul.addr %s276, 4
      %s278 = scalar_lea.vmem %s7, %s277
      %v280 = vld [vmem:[%s273] sm:$0xff]
      %v281 = vld [vmem:[%s1] sm:$0xff]
      %v282 = vld [vmem:[%s1 + $0x8] sm:$0xff]
      %v283 = vld [vmem:[%s1 + $0x10] sm:$0xff]
      %v284 = vld [vmem:[%s1 + $0x18] sm:$0xff]
      %v285 = vld [vmem:[%s1 + $0x20] sm:$0xff]
      %v286 = vld [vmem:[%s1 + $0x28] sm:$0xff]
      %v287 = vld [vmem:[%s1 + $0x30] sm:$0xff]
      %v288 = vld [vmem:[%s1 + $0x38] sm:$0xff]
      %v289 = vld [vmem:[%s1 + $0x40] sm:$0xff]
      %v290 = vld [vmem:[%s1 + $0x48] sm:$0xff]
      %v291 = vld [vmem:[%s1 + $0x50] sm:$0xff]
      %v292 = vld [vmem:[%s1 + $0x58] sm:$0xff]
      %v293 = vld [vmem:[%s1 + $0x60] sm:$0xff]
      %v294 = vld [vmem:[%s1 + $0x68] sm:$0xff]
      %v295 = vld [vmem:[%s1 + $0x70] sm:$0xff]
      %v296 = vld [vmem:[%s1 + $0x78] sm:$0xff]
      %v297 = vld [vmem:[%s1 + $0x80] sm:$0xff]
      %v298 = vld [vmem:[%s1 + $0x88] sm:$0xff]
      %v299 = vld [vmem:[%s1 + $0x90] sm:$0xff]
      %v300 = vld [vmem:[%s1 + $0x98] sm:$0xff]
      %v301 = vld [vmem:[%s1 + $0xa0] sm:$0xff]
      %v302 = vld [vmem:[%s1 + $0xa8] sm:$0xff]
      %v303 = vld [vmem:[%s1 + $0xb0] sm:$0xff]
      %v304 = vld [vmem:[%s1 + $0xb8] sm:$0xff]
      %v305 = vld [vmem:[%s1 + $0xc0] sm:$0xff]
      %v306 = vld [vmem:[%s1 + $0xc8] sm:$0xff]
      %v307 = vld [vmem:[%s1 + $0xd0] sm:$0xff]
      %v308 = vld [vmem:[%s1 + $0xd8] sm:$0xff]
      %v309 = vld [vmem:[%s1 + $0xe0] sm:$0xff]
      %v310 = vld [vmem:[%s1 + $0xe8] sm:$0xff]
      %v311 = vld [vmem:[%s1 + $0xf0] sm:$0xff]
      %v312 = vld [vmem:[%s1 + $0xf8] sm:$0xff]
      %v313 = vld [vmem:[%s1 + $0x100] sm:$0xff]
      %v314 = vld [vmem:[%s1 + $0x108] sm:$0xff]
      %v315 = vld [vmem:[%s1 + $0x110] sm:$0xff]
      %v316 = vld [vmem:[%s1 + $0x118] sm:$0xff]
      %v317 = vld [vmem:[%s1 + $0x120] sm:$0xff]
      %v318 = vld [vmem:[%s1 + $0x128] sm:$0xff]
      %v319 = vld [vmem:[%s1 + $0x130] sm:$0xff]
      %v320 = vld [vmem:[%s1 + $0x138] sm:$0xff]
      %v321 = vld [vmem:[%s1 + $0x140] sm:$0xff]
      %v322 = vld [vmem:[%s1 + $0x148] sm:$0xff]
      %v323 = vld [vmem:[%s1 + $0x150] sm:$0xff]
      %v324 = vld [vmem:[%s1 + $0x158] sm:$0xff]
      %v325 = vld [vmem:[%s1 + $0x160] sm:$0xff]
      %v326 = vld [vmem:[%s1 + $0x168] sm:$0xff]
      %v327 = vld [vmem:[%s1 + $0x170] sm:$0xff]
      %v328 = vld [vmem:[%s1 + $0x178] sm:$0xff]
      %v329 = vld [vmem:[%s1 + $0x180] sm:$0xff]
      %v330 = vld [vmem:[%s1 + $0x188] sm:$0xff]
      %v331 = vld [vmem:[%s1 + $0x190] sm:$0xff]
      %v332 = vld [vmem:[%s1 + $0x198] sm:$0xff]
      %v333 = vld [vmem:[%s1 + $0x1a0] sm:$0xff]
      %v334 = vld [vmem:[%s1 + $0x1a8] sm:$0xff]
      %v335 = vld [vmem:[%s1 + $0x1b0] sm:$0xff]
      %v336 = vld [vmem:[%s1 + $0x1b8] sm:$0xff]
      %v337 = vld [vmem:[%s1 + $0x1c0] sm:$0xff]
      %v338 = vld [vmem:[%s1 + $0x1c8] sm:$0xff]
      %v339 = vld [vmem:[%s1 + $0x1d0] sm:$0xff]
      %v340 = vld [vmem:[%s1 + $0x1d8] sm:$0xff]
      %v341 = vld [vmem:[%s1 + $0x1e0] sm:$0xff]
      %v342 = vld [vmem:[%s1 + $0x1e8] sm:$0xff]
      %v343 = vld [vmem:[%s1 + $0x1f0] sm:$0xff]
      %v344 = vld [vmem:[%s1 + $0x1f8] sm:$0xff]
      %v345 = vld [vmem:[%s1 + $0x200] sm:$0xff]
      %v346 = vld [vmem:[%s1 + $0x208] sm:$0xff]
      %v347 = vld [vmem:[%s1 + $0x210] sm:$0xff]
      %v348 = vld [vmem:[%s1 + $0x218] sm:$0xff]
      %v349 = vld [vmem:[%s1 + $0x220] sm:$0xff]
      %v350 = vld [vmem:[%s1 + $0x228] sm:$0xff]
      %v351 = vld [vmem:[%s1 + $0x230] sm:$0xff]
      %v352 = vld [vmem:[%s1 + $0x238] sm:$0xff]
      %v353 = vld [vmem:[%s1 + $0x240] sm:$0xff]
      %v354 = vld [vmem:[%s1 + $0x248] sm:$0xff]
      %v355 = vld [vmem:[%s1 + $0x250] sm:$0xff]
      %v356 = vld [vmem:[%s1 + $0x258] sm:$0xff]
      %v357 = vld [vmem:[%s1 + $0x260] sm:$0xff]
      %v358 = vld [vmem:[%s1 + $0x268] sm:$0xff]
      %v359 = vld [vmem:[%s1 + $0x270] sm:$0xff]
      %v360 = vld [vmem:[%s1 + $0x278] sm:$0xff]
      %v361 = vld [vmem:[%s1 + $0x280] sm:$0xff]
      %v362 = vld [vmem:[%s1 + $0x288] sm:$0xff]
      %v363 = vld [vmem:[%s1 + $0x290] sm:$0xff]
      %v364 = vld [vmem:[%s1 + $0x298] sm:$0xff]
      %v365 = vld [vmem:[%s1 + $0x2a0] sm:$0xff]
      %v366 = vld [vmem:[%s1 + $0x2a8] sm:$0xff]
      %v367 = vld [vmem:[%s1 + $0x2b0] sm:$0xff]
      %v368 = vld [vmem:[%s1 + $0x2b8] sm:$0xff]
      %v369 = vld [vmem:[%s1 + $0x2c0] sm:$0xff]
      %v370 = vld [vmem:[%s1 + $0x2c8] sm:$0xff]
      %v371 = vld [vmem:[%s1 + $0x2d0] sm:$0xff]
      %v372 = vld [vmem:[%s1 + $0x2d8] sm:$0xff]
      %v373 = vld [vmem:[%s1 + $0x2e0] sm:$0xff]
      %v374 = vld [vmem:[%s1 + $0x2e8] sm:$0xff]
      %v375 = vld [vmem:[%s1 + $0x2f0] sm:$0xff]
      %v376 = vld [vmem:[%s1 + $0x2f8] sm:$0xff]
      %v377 = vld [vmem:[%s2] sm:$0x3f]
      %v378 = vunpack.c.l.bf16 %v377
      %v379 = vunpack.c.h.bf16 %v377
      %v382 = vlaneseq
      %v383 = vshrl.u32 %v382, 7
      %v384 = vsub.s32 0, %v383
      %v385 = vrot.slane %v378, %v384
      %v386 = vlaneseq
      %v387 = vshrl.u32 %v386, 7
      %v388 = vsub.s32 2, %v387
      %v389 = vrot.slane %v378, %v388
      %v390 = vlaneseq
      %v391 = vshrl.u32 %v390, 7
      %v392 = vsub.s32 4, %v391
      %v393 = vrot.slane %v378, %v392
      %v394 = vlaneseq
      %v395 = vshrl.u32 %v394, 7
      %v396 = vsub.s32 6, %v395
      %v397 = vrot.slane %v378, %v396
      %v398 = vlaneseq
      %v399 = vshrl.u32 %v398, 7
      %v400 = vsub.s32 0, %v399
      %v401 = vrot.slane %v379, %v400
      %v402 = vlaneseq
      %v403 = vshrl.u32 %v402, 7
      %v404 = vsub.s32 2, %v403
      %v405 = vrot.slane %v379, %v404
      %v412 = vlaneseq
      %v413 = vshrl.u32 %v412, 7
      %v414 = vsub.s32 0, %v413
      %v415 = vrot.slane %v385, %v414
      %v416 = vlaneseq
      %v417 = vshrl.u32 %v416, 7
      %v418 = vsub.s32 0, %v417
      %v419 = vrot.slane %v389, %v418
      %v420 = vlaneseq
      %v421 = vshrl.u32 %v420, 7
      %v422 = vsub.s32 0, %v421
      %v423 = vrot.slane %v393, %v422
      %v424 = vlaneseq
      %v425 = vshrl.u32 %v424, 7
      %v426 = vsub.s32 0, %v425
      %v427 = vrot.slane %v397, %v426
      %v428 = vlaneseq
      %v429 = vshrl.u32 %v428, 7
      %v430 = vsub.s32 0, %v429
      %v431 = vrot.slane %v401, %v430
      %v432 = vlaneseq
      %v433 = vshrl.u32 %v432, 7
      %v434 = vsub.s32 0, %v433
      %v435 = vrot.slane %v405, %v434
      %v437 = vunpack.c.l.b16 %v280
      %v438 = vunpack.c.h.b16 %v280
      %v439 = vpack.c.b16 %v437, %v437
      %v440 = vpack.c.b16 %v438, %v438
      %v539 = vunpack.c.l.b16 %v281
      %v540 = vunpack.c.h.b16 %v281
      %v541 = vunpack.c.l.b16 %v282
      %v542 = vunpack.c.h.b16 %v282
      %v543 = vunpack.c.l.b16 %v283
      %v544 = vunpack.c.h.b16 %v283
      %v545 = vunpack.c.l.b16 %v284
      %v546 = vunpack.c.h.b16 %v284
      %v547 = vunpack.c.l.b16 %v285
      %v548 = vunpack.c.h.b16 %v285
      %v549 = vunpack.c.l.b16 %v286
      %v550 = vunpack.c.h.b16 %v286
      %v551 = vunpack.c.l.b16 %v287
      %v552 = vunpack.c.h.b16 %v287
      %v553 = vunpack.c.l.b16 %v288
      %v554 = vunpack.c.h.b16 %v288
      %v555 = vunpack.c.l.b16 %v289
      %v556 = vunpack.c.h.b16 %v289
      %v557 = vunpack.c.l.b16 %v290
      %v558 = vunpack.c.h.b16 %v290
      %v559 = vunpack.c.l.b16 %v291
      %v560 = vunpack.c.h.b16 %v291
      %v561 = vunpack.c.l.b16 %v292
      %v562 = vunpack.c.h.b16 %v292
      %v563 = vunpack.c.l.b16 %v293
      %v564 = vunpack.c.h.b16 %v293
      %v565 = vunpack.c.l.b16 %v294
      %v566 = vunpack.c.h.b16 %v294
      %v567 = vunpack.c.l.b16 %v295
      %v568 = vunpack.c.h.b16 %v295
      %v569 = vunpack.c.l.b16 %v296
      %v570 = vunpack.c.h.b16 %v296
      %v571 = vunpack.c.l.b16 %v297
      %v572 = vunpack.c.h.b16 %v297
      %v573 = vunpack.c.l.b16 %v298
      %v574 = vunpack.c.h.b16 %v298
      %v575 = vunpack.c.l.b16 %v299
      %v576 = vunpack.c.h.b16 %v299
      %v577 = vunpack.c.l.b16 %v300
      %v578 = vunpack.c.h.b16 %v300
      %v579 = vunpack.c.l.b16 %v301
      %v580 = vunpack.c.h.b16 %v301
      %v581 = vunpack.c.l.b16 %v302
      %v582 = vunpack.c.h.b16 %v302
      %v583 = vunpack.c.l.b16 %v303
      %v584 = vunpack.c.h.b16 %v303
      %v585 = vunpack.c.l.b16 %v304
      %v586 = vunpack.c.h.b16 %v304
      %v587 = vunpack.c.l.b16 %v305
      %v588 = vunpack.c.h.b16 %v305
      %v589 = vunpack.c.l.b16 %v306
      %v590 = vunpack.c.h.b16 %v306
      %v591 = vunpack.c.l.b16 %v307
      %v592 = vunpack.c.h.b16 %v307
      %v593 = vunpack.c.l.b16 %v308
      %v594 = vunpack.c.h.b16 %v308
      %v595 = vunpack.c.l.b16 %v309
      %v596 = vunpack.c.h.b16 %v309
      %v597 = vunpack.c.l.b16 %v310
      %v598 = vunpack.c.h.b16 %v310
      %v599 = vunpack.c.l.b16 %v311
      %v600 = vunpack.c.h.b16 %v311
      %v601 = vunpack.c.l.b16 %v312
      %v602 = vunpack.c.h.b16 %v312
      %v603 = vunpack.c.l.b16 %v313
      %v604 = vunpack.c.h.b16 %v313
      %v605 = vunpack.c.l.b16 %v314
      %v606 = vunpack.c.h.b16 %v314
      %v607 = vunpack.c.l.b16 %v315
      %v608 = vunpack.c.h.b16 %v315
      %v609 = vunpack.c.l.b16 %v316
      %v610 = vunpack.c.h.b16 %v316
      %v611 = vunpack.c.l.b16 %v317
      %v612 = vunpack.c.h.b16 %v317
      %v613 = vunpack.c.l.b16 %v318
      %v614 = vunpack.c.h.b16 %v318
      %v615 = vunpack.c.l.b16 %v319
      %v616 = vunpack.c.h.b16 %v319
      %v617 = vunpack.c.l.b16 %v320
      %v618 = vunpack.c.h.b16 %v320
      %v619 = vunpack.c.l.b16 %v321
      %v620 = vunpack.c.h.b16 %v321
      %v621 = vunpack.c.l.b16 %v322
      %v622 = vunpack.c.h.b16 %v322
      %v623 = vunpack.c.l.b16 %v323
      %v624 = vunpack.c.h.b16 %v323
      %v625 = vunpack.c.l.b16 %v324
      %v626 = vunpack.c.h.b16 %v324
      %v627 = vunpack.c.l.b16 %v325
      %v628 = vunpack.c.h.b16 %v325
      %v629 = vunpack.c.l.b16 %v326
      %v630 = vunpack.c.h.b16 %v326
      %v631 = vunpack.c.l.b16 %v327
      %v632 = vunpack.c.h.b16 %v327
      %v633 = vunpack.c.l.b16 %v328
      %v634 = vunpack.c.h.b16 %v328
      %v635 = vunpack.c.l.b16 %v329
      %v636 = vunpack.c.h.b16 %v329
      %v637 = vunpack.c.l.b16 %v330
      %v638 = vunpack.c.h.b16 %v330
      %v639 = vunpack.c.l.b16 %v331
      %v640 = vunpack.c.h.b16 %v331
      %v641 = vunpack.c.l.b16 %v332
      %v642 = vunpack.c.h.b16 %v332
      %v643 = vunpack.c.l.b16 %v333
      %v644 = vunpack.c.h.b16 %v333
      %v645 = vunpack.c.l.b16 %v334
      %v646 = vunpack.c.h.b16 %v334
      %v647 = vunpack.c.l.b16 %v335
      %v648 = vunpack.c.h.b16 %v335
      %v649 = vunpack.c.l.b16 %v336
      %v650 = vunpack.c.h.b16 %v336
      %v651 = vunpack.c.l.b16 %v337
      %v652 = vunpack.c.h.b16 %v337
      %v653 = vunpack.c.l.b16 %v338
      %v654 = vunpack.c.h.b16 %v338
      %v655 = vunpack.c.l.b16 %v339
      %v656 = vunpack.c.h.b16 %v339
      %v657 = vunpack.c.l.b16 %v340
      %v658 = vunpack.c.h.b16 %v340
      %v659 = vunpack.c.l.b16 %v341
      %v660 = vunpack.c.h.b16 %v341
      %v661 = vunpack.c.l.b16 %v342
      %v662 = vunpack.c.h.b16 %v342
      %v663 = vunpack.c.l.b16 %v343
      %v664 = vunpack.c.h.b16 %v343
      %v665 = vunpack.c.l.b16 %v344
      %v666 = vunpack.c.h.b16 %v344
      %v667 = vunpack.c.l.b16 %v345
      %v668 = vunpack.c.h.b16 %v345
      %v669 = vunpack.c.l.b16 %v346
      %v670 = vunpack.c.h.b16 %v346
      %v671 = vunpack.c.l.b16 %v347
      %v672 = vunpack.c.h.b16 %v347
      %v673 = vunpack.c.l.b16 %v348
      %v674 = vunpack.c.h.b16 %v348
      %v675 = vunpack.c.l.b16 %v349
      %v676 = vunpack.c.h.b16 %v349
      %v677 = vunpack.c.l.b16 %v350
      %v678 = vunpack.c.h.b16 %v350
      %v679 = vunpack.c.l.b16 %v351
      %v680 = vunpack.c.h.b16 %v351
      %v681 = vunpack.c.l.b16 %v352
      %v682 = vunpack.c.h.b16 %v352
      %v683 = vunpack.c.l.b16 %v353
      %v684 = vunpack.c.h.b16 %v353
      %v685 = vunpack.c.l.b16 %v354
      %v686 = vunpack.c.h.b16 %v354
      %v687 = vunpack.c.l.b16 %v355
      %v688 = vunpack.c.h.b16 %v355
      %v689 = vunpack.c.l.b16 %v356
      %v690 = vunpack.c.h.b16 %v356
      %v691 = vunpack.c.l.b16 %v357
      %v692 = vunpack.c.h.b16 %v357
      %v693 = vunpack.c.l.b16 %v358
      %v694 = vunpack.c.h.b16 %v358
      %v695 = vunpack.c.l.b16 %v359
      %v696 = vunpack.c.h.b16 %v359
      %v697 = vunpack.c.l.b16 %v360
      %v698 = vunpack.c.h.b16 %v360
      %v699 = vunpack.c.l.b16 %v361
      %v700 = vunpack.c.h.b16 %v361
      %v701 = vunpack.c.l.b16 %v362
      %v702 = vunpack.c.h.b16 %v362
      %v703 = vunpack.c.l.b16 %v363
      %v704 = vunpack.c.h.b16 %v363
      %v705 = vunpack.c.l.b16 %v364
      %v706 = vunpack.c.h.b16 %v364
      %v707 = vunpack.c.l.b16 %v365
      %v708 = vunpack.c.h.b16 %v365
      %v709 = vunpack.c.l.b16 %v366
      %v710 = vunpack.c.h.b16 %v366
      %v711 = vunpack.c.l.b16 %v367
      %v712 = vunpack.c.h.b16 %v367
      %v713 = vunpack.c.l.b16 %v368
      %v714 = vunpack.c.h.b16 %v368
      %v715 = vunpack.c.l.b16 %v369
      %v716 = vunpack.c.h.b16 %v369
      %v717 = vunpack.c.l.b16 %v370
      %v718 = vunpack.c.h.b16 %v370
      %v719 = vunpack.c.l.b16 %v371
      %v720 = vunpack.c.h.b16 %v371
      %v721 = vunpack.c.l.b16 %v372
      %v722 = vunpack.c.h.b16 %v372
      %v723 = vunpack.c.l.b16 %v373
      %v724 = vunpack.c.h.b16 %v373
      %v725 = vunpack.c.l.b16 %v374
      %v726 = vunpack.c.h.b16 %v374
      %v727 = vunpack.c.l.b16 %v375
      %v728 = vunpack.c.h.b16 %v375
      %v729 = vunpack.c.l.b16 %v376
      %v730 = vunpack.c.h.b16 %v376
      %v731 = vpack.c.b16 %v545, %v539
      %v732 = vpack.c.b16 %v546, %v540
      %v733 = vpack.c.b16 %v547, %v541
      %v734 = vpack.c.b16 %v548, %v542
      %v735 = vpack.c.b16 %v549, %v543
      %v736 = vpack.c.b16 %v550, %v544
      %v737 = vpack.c.b16 %v557, %v551
      %v738 = vpack.c.b16 %v558, %v552
      %v739 = vpack.c.b16 %v559, %v553
      %v740 = vpack.c.b16 %v560, %v554
      %v741 = vpack.c.b16 %v561, %v555
      %v742 = vpack.c.b16 %v562, %v556
      %v743 = vpack.c.b16 %v569, %v563
      %v744 = vpack.c.b16 %v570, %v564
      %v745 = vpack.c.b16 %v571, %v565
      %v746 = vpack.c.b16 %v572, %v566
      %v747 = vpack.c.b16 %v573, %v567
      %v748 = vpack.c.b16 %v574, %v568
      %v749 = vpack.c.b16 %v581, %v575
      %v750 = vpack.c.b16 %v582, %v576
      %v751 = vpack.c.b16 %v583, %v577
      %v752 = vpack.c.b16 %v584, %v578
      %v753 = vpack.c.b16 %v585, %v579
      %v754 = vpack.c.b16 %v586, %v580
      %v755 = vpack.c.b16 %v593, %v587
      %v756 = vpack.c.b16 %v594, %v588
      %v757 = vpack.c.b16 %v595, %v589
      %v758 = vpack.c.b16 %v596, %v590
      %v759 = vpack.c.b16 %v597, %v591
      %v760 = vpack.c.b16 %v598, %v592
      %v761 = vpack.c.b16 %v605, %v599
      %v762 = vpack.c.b16 %v606, %v600
      %v763 = vpack.c.b16 %v607, %v601
      %v764 = vpack.c.b16 %v608, %v602
      %v765 = vpack.c.b16 %v609, %v603
      %v766 = vpack.c.b16 %v610, %v604
      %v767 = vpack.c.b16 %v617, %v611
      %v768 = vpack.c.b16 %v618, %v612
      %v769 = vpack.c.b16 %v619, %v613
      %v770 = vpack.c.b16 %v620, %v614
      %v771 = vpack.c.b16 %v621, %v615
      %v772 = vpack.c.b16 %v622, %v616
      %v773 = vpack.c.b16 %v629, %v623
      %v774 = vpack.c.b16 %v630, %v624
      %v775 = vpack.c.b16 %v631, %v625
      %v776 = vpack.c.b16 %v632, %v626
      %v777 = vpack.c.b16 %v633, %v627
      %v778 = vpack.c.b16 %v634, %v628
      %v779 = vpack.c.b16 %v641, %v635
      %v780 = vpack.c.b16 %v642, %v636
      %v781 = vpack.c.b16 %v643, %v637
      %v782 = vpack.c.b16 %v644, %v638
      %v783 = vpack.c.b16 %v645, %v639
      %v784 = vpack.c.b16 %v646, %v640
      %v785 = vpack.c.b16 %v653, %v647
      %v786 = vpack.c.b16 %v654, %v648
      %v787 = vpack.c.b16 %v655, %v649
      %v788 = vpack.c.b16 %v656, %v650
      %v789 = vpack.c.b16 %v657, %v651
      %v790 = vpack.c.b16 %v658, %v652
      %v791 = vpack.c.b16 %v665, %v659
      %v792 = vpack.c.b16 %v666, %v660
      %v793 = vpack.c.b16 %v667, %v661
      %v794 = vpack.c.b16 %v668, %v662
      %v795 = vpack.c.b16 %v669, %v663
      %v796 = vpack.c.b16 %v670, %v664
      %v797 = vpack.c.b16 %v677, %v671
      %v798 = vpack.c.b16 %v678, %v672
      %v799 = vpack.c.b16 %v679, %v673
      %v800 = vpack.c.b16 %v680, %v674
      %v801 = vpack.c.b16 %v681, %v675
      %v802 = vpack.c.b16 %v682, %v676
      %v803 = vpack.c.b16 %v689, %v683
      %v804 = vpack.c.b16 %v690, %v684
      %v805 = vpack.c.b16 %v691, %v685
      %v806 = vpack.c.b16 %v692, %v686
      %v807 = vpack.c.b16 %v693, %v687
      %v808 = vpack.c.b16 %v694, %v688
      %v809 = vpack.c.b16 %v701, %v695
      %v810 = vpack.c.b16 %v702, %v696
      %v811 = vpack.c.b16 %v703, %v697
      %v812 = vpack.c.b16 %v704, %v698
      %v813 = vpack.c.b16 %v705, %v699
      %v814 = vpack.c.b16 %v706, %v700
      %v815 = vpack.c.b16 %v713, %v707
      %v816 = vpack.c.b16 %v714, %v708
      %v817 = vpack.c.b16 %v715, %v709
      %v818 = vpack.c.b16 %v716, %v710
      %v819 = vpack.c.b16 %v717, %v711
      %v820 = vpack.c.b16 %v718, %v712
      %v821 = vpack.c.b16 %v725, %v719
      %v822 = vpack.c.b16 %v726, %v720
      %v823 = vpack.c.b16 %v727, %v721
      %v824 = vpack.c.b16 %v728, %v722
      %v825 = vpack.c.b16 %v729, %v723
      %v826 = vpack.c.b16 %v730, %v724
      %923 = vmatprep.subr.bf16.mxu0 %v732
      %924 = vmatpush1.bf16.msra.mxu0 %v731
      %925 = vmatprep.subr.bf16.mxu0 %v738
      %926 = vmatpush1.bf16.msra.mxu0 %v737
      %927 = vmatprep.subr.bf16.mxu0 %v744
      %928 = vmatpush1.bf16.msra.mxu0 %v743
      %929 = vmatprep.subr.bf16.mxu0 %v750
      %930 = vmatpush1.bf16.msra.mxu0 %v749
      %931 = vmatprep.subr.bf16.mxu0 %v756
      %932 = vmatpush1.bf16.msra.mxu0 %v755
      %933 = vmatprep.subr.bf16.mxu0 %v762
      %934 = vmatpush1.bf16.msra.mxu0 %v761
      %935 = vmatprep.subr.bf16.mxu0 %v768
      %936 = vmatpush1.bf16.msra.mxu0 %v767
      %937 = vmatprep.subr.bf16.mxu0 %v774
      %938 = vmatpush1.bf16.msra.mxu0 %v773
      %939 = vmatprep.subr.bf16.mxu0 %v780
      %940 = vmatpush1.bf16.msra.mxu0 %v779
      %941 = vmatprep.subr.bf16.mxu0 %v786
      %942 = vmatpush1.bf16.msra.mxu0 %v785
      %943 = vmatprep.subr.bf16.mxu0 %v792
      %944 = vmatpush1.bf16.msra.mxu0 %v791
      %945 = vmatprep.subr.bf16.mxu0 %v798
      %946 = vmatpush1.bf16.msra.mxu0 %v797
      %947 = vmatprep.subr.bf16.mxu0 %v804
      %948 = vmatpush1.bf16.msra.mxu0 %v803
      %949 = vmatprep.subr.bf16.mxu0 %v810
      %950 = vmatpush1.bf16.msra.mxu0 %v809
      %951 = vmatprep.subr.bf16.mxu0 %v816
      %952 = vmatpush1.bf16.msra.mxu0 %v815
      %953 = vmatprep.subr.bf16.mxu0 %v822
      %954 = vmatpush1.bf16.msra.mxu0 %v821
      %955 = vmatprep.mubr.bf16.mxu0 %v440
      %956 = vmatmul.mubr.bf16.gmra.mrb[0].mxu0 %v439
      %v957 = vpop.f32.mrb[0].mxu0
      %v958 = vadd.f32 %v415, %v957
      %v959 = vpop.f32.mrb[0].mxu0
      %v960 = vadd.f32 %v419, %v959
      %v961 = vpop.f32.mrb[0].mxu0
      %v962 = vpop.f32.mrb[0].mxu0
      %963 = vdwg.mxu0
      %964 = vmatprep.subr.bf16.mxu0 %v734
      %965 = vmatpush1.bf16.msra.mxu0 %v733
      %966 = vmatprep.subr.bf16.mxu0 %v740
      %967 = vmatpush1.bf16.msra.mxu0 %v739
      %968 = vmatprep.subr.bf16.mxu0 %v746
      %969 = vmatpush1.bf16.msra.mxu0 %v745
      %970 = vmatprep.subr.bf16.mxu0 %v752
      %971 = vmatpush1.bf16.msra.mxu0 %v751
      %972 = vmatprep.subr.bf16.mxu0 %v758
      %973 = vmatpush1.bf16.msra.mxu0 %v757
      %974 = vmatprep.subr.bf16.mxu0 %v764
      %975 = vmatpush1.bf16.msra.mxu0 %v763
      %976 = vmatprep.subr.bf16.mxu0 %v770
      %977 = vmatpush1.bf16.msra.mxu0 %v769
      %978 = vmatprep.subr.bf16.mxu0 %v776
      %979 = vmatpush1.bf16.msra.mxu0 %v775
      %980 = vmatprep.subr.bf16.mxu0 %v782
      %981 = vmatpush1.bf16.msra.mxu0 %v781
      %982 = vmatprep.subr.bf16.mxu0 %v788
      %983 = vmatpush1.bf16.msra.mxu0 %v787
      %984 = vmatprep.subr.bf16.mxu0 %v794
      %985 = vmatpush1.bf16.msra.mxu0 %v793
      %986 = vmatprep.subr.bf16.mxu0 %v800
      %987 = vmatpush1.bf16.msra.mxu0 %v799
      %988 = vmatprep.subr.bf16.mxu0 %v806
      %989 = vmatpush1.bf16.msra.mxu0 %v805
      %990 = vmatprep.subr.bf16.mxu0 %v812
      %991 = vmatpush1.bf16.msra.mxu0 %v811
      %992 = vmatprep.subr.bf16.mxu0 %v818
      %993 = vmatpush1.bf16.msra.mxu0 %v817
      %994 = vmatprep.subr.bf16.mxu0 %v824
      %995 = vmatpush1.bf16.msra.mxu0 %v823
      %996 = vmatprep.mubr.bf16.mxu0 %v440
      %997 = vmatmul.mubr.bf16.gmra.mrb[0].mxu0 %v439
      %v998 = vpop.f32.mrb[0].mxu0
      %v999 = vadd.f32 %v423, %v998
      %v1000 = vpop.f32.mrb[0].mxu0
      %v1001 = vadd.f32 %v427, %v1000
      %v1002 = vpop.f32.mrb[0].mxu0
      %v1003 = vpop.f32.mrb[0].mxu0
      %1004 = vdwg.mxu0
      %1005 = vmatprep.subr.bf16.mxu0 %v736
      %1006 = vmatpush1.bf16.msra.mxu0 %v735
      %1007 = vmatprep.subr.bf16.mxu0 %v742
      %1008 = vmatpush1.bf16.msra.mxu0 %v741
      %1009 = vmatprep.subr.bf16.mxu0 %v748
      %1010 = vmatpush1.bf16.msra.mxu0 %v747
      %1011 = vmatprep.subr.bf16.mxu0 %v754
      %1012 = vmatpush1.bf16.msra.mxu0 %v753
      %1013 = vmatprep.subr.bf16.mxu0 %v760
      %1014 = vmatpush1.bf16.msra.mxu0 %v759
      %1015 = vmatprep.subr.bf16.mxu0 %v766
      %1016 = vmatpush1.bf16.msra.mxu0 %v765
      %1017 = vmatprep.subr.bf16.mxu0 %v772
      %1018 = vmatpush1.bf16.msra.mxu0 %v771
      %1019 = vmatprep.subr.bf16.mxu0 %v778
      %1020 = vmatpush1.bf16.msra.mxu0 %v777
      %1021 = vmatprep.subr.bf16.mxu0 %v784
      %1022 = vmatpush1.bf16.msra.mxu0 %v783
      %1023 = vmatprep.subr.bf16.mxu0 %v790
      %1024 = vmatpush1.bf16.msra.mxu0 %v789
      %1025 = vmatprep.subr.bf16.mxu0 %v796
      %1026 = vmatpush1.bf16.msra.mxu0 %v795
      %1027 = vmatprep.subr.bf16.mxu0 %v802
      %1028 = vmatpush1.bf16.msra.mxu0 %v801
      %1029 = vmatprep.subr.bf16.mxu0 %v808
      %1030 = vmatpush1.bf16.msra.mxu0 %v807
      %1031 = vmatprep.subr.bf16.mxu0 %v814
      %1032 = vmatpush1.bf16.msra.mxu0 %v813
      %1033 = vmatprep.subr.bf16.mxu0 %v820
      %1034 = vmatpush1.bf16.msra.mxu0 %v819
      %1035 = vmatprep.subr.bf16.mxu0 %v826
      %1036 = vmatpush1.bf16.msra.mxu0 %v825
      %1037 = vmatprep.mubr.bf16.mxu0 %v440
      %1038 = vmatmul.mubr.bf16.gmra.mrb[0].mxu0 %v439
      %v1039 = vpop.f32.mrb[0].mxu0
      %v1040 = vadd.f32 %v431, %v1039
      %v1041 = vpop.f32.mrb[0].mxu0
      %v1042 = vadd.f32 %v435, %v1041
      %v1043 = vpop.f32.mrb[0].mxu0
      %v1044 = vpop.f32.mrb[0].mxu0
      %1045 = vdwg.mxu0
      %v1046 = vmul.f32 %v958, 0.088388346
      %v1047 = vmul.f32 %v960, 0.088388346
      %v1048 = vpack.c.bf16 %v1046, %v1046
      %v1049 = vpack.c.bf16 %v1047, %v1047
      %v1050 = vpack.c.bf16 %v999, %v999
      %v1051 = vpack.c.bf16 %v1001, %v1001
      %v1052 = vpack.c.bf16 %v1040, %v1040
      %v1053 = vpack.c.bf16 %v1042, %v1042
      %v1054 = vunpack.c.l.bf16 %v280
      %v1055 = vunpack.c.h.bf16 %v280
      %v1056 = vld [vmem:[%s4] sm:$0x3]
      %v1057 = vunpack.c.l.bf16 %v1056
      %v1059 = vlaneseq
      %v1060 = vshrl.u32 %v1059, 7
      %v1061 = vsub.s32 0, %v1060
      %v1062 = vrot.slane %v1057, %v1061
      %v1063 = vlaneseq
      %v1064 = vshrl.u32 %v1063, 7
      %v1065 = vsub.s32 2, %v1064
      %v1066 = vrot.slane %v1057, %v1065
      %v1069 = vlaneseq
      %v1070 = vshrl.u32 %v1069, 7
      %v1071 = vsub.s32 0, %v1070
      %v1072 = vrot.slane %v1062, %v1071
      %v1073 = vlaneseq
      %v1074 = vshrl.u32 %v1073, 7
      %v1075 = vsub.s32 0, %v1074
      %v1076 = vrot.slane %v1066, %v1075
      %v1077 = vadd.f32 %v1054, %v1072
      %v1078 = vadd.f32 %v1055, %v1076
      %1079 = vmatprep.subr.bf16.mxu0 0
      %1080 = vmatpush1.bf16.xpose.msra.mxu0 %v1050
      %1081 = vmatprep.subr.bf16.mxu0 0
      %1082 = vmatpush1.bf16.xpose.msra.mxu0 0
      %1083 = vmatprep.subr.bf16.mxu0 0
      %1084 = vmatpush1.bf16.xpose.msra.mxu0 0
      %1085 = vmatprep.subr.bf16.mxu0 0
      %1086 = vmatpush1.bf16.xpose.msra.mxu0 0
      %1087 = vmatprep.subr.bf16.mxu0 0
      %1088 = vmatpush1.bf16.xpose.msra.mxu0 0
      %1089 = vmatprep.subr.bf16.mxu0 0
      %1090 = vmatpush1.bf16.xpose.msra.mxu0 0
      %1091 = vmatprep.subr.bf16.mxu0 0
      %1092 = vmatpush1.bf16.xpose.msra.mxu0 0
      %1093 = vmatprep.subr.bf16.mxu0 0
      %1094 = vmatpush1.bf16.xpose.msra.mxu0 0
      %1095 = vmatprep.subr.bf16.mxu0 0
      %1096 = vmatpush1.bf16.xpose.msra.mxu0 0
      %1097 = vmatprep.subr.bf16.mxu0 0
      %1098 = vmatpush1.bf16.xpose.msra.mxu0 0
      %1099 = vmatprep.subr.bf16.mxu0 0
      %1100 = vmatpush1.bf16.xpose.msra.mxu0 0
      %1101 = vmatprep.subr.bf16.mxu0 0
      %1102 = vmatpush1.bf16.xpose.msra.mxu0 0
      %1103 = vmatprep.subr.bf16.mxu0 0
      %1104 = vmatpush1.bf16.xpose.msra.mxu0 0
      %1105 = vmatprep.subr.bf16.mxu0 0
      %1106 = vmatpush1.bf16.xpose.msra.mxu0 0
      %1107 = vmatprep.subr.bf16.mxu0 0
      %1108 = vmatpush1.bf16.xpose.msra.mxu0 0
      %1109 = vmatprep.subr.bf16.mxu0 0
      %1110 = vmatpush1.bf16.xpose.msra.mxu0 0
      %1111 = vmatprep.mubr.bf16.mxu0 0
      %1112 = vmatmul.mubr.bf16.gmra.mrb[0].mxu0 %v1048
      %v1113 = vpop.f32.mrb[0].mxu0
      %v1114 = vadd.f32 0.0, %v1113
      %v1115 = vpop.f32.mrb[0].mxu0
      %v1116 = vpop.f32.mrb[0].mxu0
      %v1117 = vpop.f32.mrb[0].mxu0
      %1118 = vdwg.mxu0
      %vm1119 = vcmask 64512
      %v1120 = vsel %vm1119, %v1114, -inf
      %1121 = vmax.xlane.f32.xlu0 %v1120
      %v1122 = vpop.xlane.xlu0 %1121
      %v1123 = vsub.f32 %v1114, %v1122
      %v1124 = vmul.f32 %v1123, 1.442695
      %v1125 = vpow.pop %v1124
      %v1126 = vsel %vm1119, %v1125, 0.0
      %1127 = vadd.xlane.f32.xlu0 %v1126
      %v1128 = vpop.xlane.xlu0 %1127
      %v1129 = vpack.c.bf16 %v1125, %v1125
      %v1131 = vsel %vm1119, %v1129, 0
      %vm1133 = vcmask 1043456
      %v1135 = vsel %vm1133, %v1052, 0
      %1137 = vmatprep.subr.bf16.mxu0 0
      %1138 = vmatpush1.bf16.msra.mxu0 %v1135
      %1139 = vmatprep.subr.bf16.mxu0 0
      %1140 = vmatpush1.bf16.msra.mxu0 0
      %1141 = vmatprep.subr.bf16.mxu0 0
      %1142 = vmatpush1.bf16.msra.mxu0 0
      %1143 = vmatprep.subr.bf16.mxu0 0
      %1144 = vmatpush1.bf16.msra.mxu0 0
      %1145 = vmatprep.subr.bf16.mxu0 0
      %1146 = vmatpush1.bf16.msra.mxu0 0
      %1147 = vmatprep.subr.bf16.mxu0 0
      %1148 = vmatpush1.bf16.msra.mxu0 0
      %1149 = vmatprep.subr.bf16.mxu0 0
      %1150 = vmatpush1.bf16.msra.mxu0 0
      %1151 = vmatprep.subr.bf16.mxu0 0
      %1152 = vmatpush1.bf16.msra.mxu0 0
      %1153 = vmatprep.subr.bf16.mxu0 0
      %1154 = vmatpush1.bf16.msra.mxu0 0
      %1155 = vmatprep.subr.bf16.mxu0 0
      %1156 = vmatpush1.bf16.msra.mxu0 0
      %1157 = vmatprep.subr.bf16.mxu0 0
      %1158 = vmatpush1.bf16.msra.mxu0 0
      %1159 = vmatprep.subr.bf16.mxu0 0
      %1160 = vmatpush1.bf16.msra.mxu0 0
      %1161 = vmatprep.subr.bf16.mxu0 0
      %1162 = vmatpush1.bf16.msra.mxu0 0
      %1163 = vmatprep.subr.bf16.mxu0 0
      %1164 = vmatpush1.bf16.msra.mxu0 0
      %1165 = vmatprep.subr.bf16.mxu0 0
      %1166 = vmatpush1.bf16.msra.mxu0 0
      %1167 = vmatprep.subr.bf16.mxu0 0
      %1168 = vmatpush1.bf16.msra.mxu0 0
      %1169 = vmatprep.mubr.bf16.mxu0 0
      %1170 = vmatmul.mubr.bf16.gmra.mrb[0].mxu0 %v1131
      %v1171 = vpop.f32.mrb[0].mxu0
      %v1172 = vadd.f32 0.0, %v1171
      %v1173 = vpop.f32.mrb[0].mxu0
      %v1174 = vpop.f32.mrb[0].mxu0
      %v1175 = vpop.f32.mrb[0].mxu0
      %1176 = vdwg.mxu0
      %v1177 = vrcp.pop %v1128
      %v1178 = vmul.f32 %v1172, %v1177
      %v1179 = vpack.c.bf16 %v1178, %v1178
      %v1180 = vld [vmem:[%s3] sm:$0xff]
      %v1181 = vld [vmem:[%s3 + $0x8] sm:$0xff]
      %v1182 = vld [vmem:[%s3 + $0x10] sm:$0xff]
      %v1183 = vld [vmem:[%s3 + $0x18] sm:$0xff]
      %v1184 = vld [vmem:[%s3 + $0x20] sm:$0xff]
      %v1185 = vld [vmem:[%s3 + $0x28] sm:$0xff]
      %v1186 = vld [vmem:[%s3 + $0x30] sm:$0xff]
      %v1187 = vld [vmem:[%s3 + $0x38] sm:$0xff]
      %v1188 = vld [vmem:[%s3 + $0x40] sm:$0xff]
      %v1189 = vld [vmem:[%s3 + $0x48] sm:$0xff]
      %v1190 = vld [vmem:[%s3 + $0x50] sm:$0xff]
      %v1191 = vld [vmem:[%s3 + $0x58] sm:$0xff]
      %v1192 = vld [vmem:[%s3 + $0x60] sm:$0xff]
      %v1193 = vld [vmem:[%s3 + $0x68] sm:$0xff]
      %v1194 = vld [vmem:[%s3 + $0x70] sm:$0xff]
      %v1195 = vld [vmem:[%s3 + $0x78] sm:$0xff]
      %v1212 = vunpack.c.l.b16 %v1180
      %v1213 = vunpack.c.h.b16 %v1180
      %v1214 = vunpack.c.l.b16 %v1181
      %v1215 = vunpack.c.h.b16 %v1181
      %v1216 = vunpack.c.l.b16 %v1182
      %v1217 = vunpack.c.h.b16 %v1182
      %v1218 = vunpack.c.l.b16 %v1183
      %v1219 = vunpack.c.h.b16 %v1183
      %v1220 = vunpack.c.l.b16 %v1184
      %v1221 = vunpack.c.h.b16 %v1184
      %v1222 = vunpack.c.l.b16 %v1185
      %v1223 = vunpack.c.h.b16 %v1185
      %v1224 = vunpack.c.l.b16 %v1186
      %v1225 = vunpack.c.h.b16 %v1186
      %v1226 = vunpack.c.l.b16 %v1187
      %v1227 = vunpack.c.h.b16 %v1187
      %v1228 = vunpack.c.l.b16 %v1188
      %v1229 = vunpack.c.h.b16 %v1188
      %v1230 = vunpack.c.l.b16 %v1189
      %v1231 = vunpack.c.h.b16 %v1189
      %v1232 = vunpack.c.l.b16 %v1190
      %v1233 = vunpack.c.h.b16 %v1190
      %v1234 = vunpack.c.l.b16 %v1191
      %v1235 = vunpack.c.h.b16 %v1191
      %v1236 = vunpack.c.l.b16 %v1192
      %v1237 = vunpack.c.h.b16 %v1192
      %v1238 = vunpack.c.l.b16 %v1193
      %v1239 = vunpack.c.h.b16 %v1193
      %v1240 = vunpack.c.l.b16 %v1194
      %v1241 = vunpack.c.h.b16 %v1194
      %v1242 = vunpack.c.l.b16 %v1195
      %v1243 = vunpack.c.h.b16 %v1195
      %v1244 = vpack.c.b16 %v1214, %v1212
      %v1245 = vpack.c.b16 %v1215, %v1213
      %v1246 = vpack.c.b16 %v1218, %v1216
      %v1247 = vpack.c.b16 %v1219, %v1217
      %v1248 = vpack.c.b16 %v1222, %v1220
      %v1249 = vpack.c.b16 %v1223, %v1221
      %v1250 = vpack.c.b16 %v1226, %v1224
      %v1251 = vpack.c.b16 %v1227, %v1225
      %v1252 = vpack.c.b16 %v1230, %v1228
      %v1253 = vpack.c.b16 %v1231, %v1229
      %v1254 = vpack.c.b16 %v1234, %v1232
      %v1255 = vpack.c.b16 %v1235, %v1233
      %v1256 = vpack.c.b16 %v1238, %v1236
      %v1257 = vpack.c.b16 %v1239, %v1237
      %v1258 = vpack.c.b16 %v1242, %v1240
      %v1259 = vpack.c.b16 %v1243, %v1241
      %1276 = vmatprep.subr.bf16.mxu0 %v1245
      %1277 = vmatpush1.bf16.msra.mxu0 %v1244
      %1278 = vmatprep.subr.bf16.mxu0 %v1247
      %1279 = vmatpush1.bf16.msra.mxu0 %v1246
      %1280 = vmatprep.subr.bf16.mxu0 %v1249
      %1281 = vmatpush1.bf16.msra.mxu0 %v1248
      %1282 = vmatprep.subr.bf16.mxu0 %v1251
      %1283 = vmatpush1.bf16.msra.mxu0 %v1250
      %1284 = vmatprep.subr.bf16.mxu0 %v1253
      %1285 = vmatpush1.bf16.msra.mxu0 %v1252
      %1286 = vmatprep.subr.bf16.mxu0 %v1255
      %1287 = vmatpush1.bf16.msra.mxu0 %v1254
      %1288 = vmatprep.subr.bf16.mxu0 %v1257
      %1289 = vmatpush1.bf16.msra.mxu0 %v1256
      %1290 = vmatprep.subr.bf16.mxu0 %v1259
      %1291 = vmatpush1.bf16.msra.mxu0 %v1258
      %1292 = vmatprep.subr.bf16.mxu0 0
      %1293 = vmatpush1.bf16.msra.mxu0 0
      %1294 = vmatprep.subr.bf16.mxu0 0
      %1295 = vmatpush1.bf16.msra.mxu0 0
      %1296 = vmatprep.subr.bf16.mxu0 0
      %1297 = vmatpush1.bf16.msra.mxu0 0
      %1298 = vmatprep.subr.bf16.mxu0 0
      %1299 = vmatpush1.bf16.msra.mxu0 0
      %1300 = vmatprep.subr.bf16.mxu0 0
      %1301 = vmatpush1.bf16.msra.mxu0 0
      %1302 = vmatprep.subr.bf16.mxu0 0
      %1303 = vmatpush1.bf16.msra.mxu0 0
      %1304 = vmatprep.subr.bf16.mxu0 0
      %1305 = vmatpush1.bf16.msra.mxu0 0
      %1306 = vmatprep.subr.bf16.mxu0 0
      %1307 = vmatpush1.bf16.msra.mxu0 0
      %1308 = vmatprep.mubr.bf16.mxu0 0
      %1309 = vmatmul.mubr.bf16.gmra.mrb[0].mxu0 %v1179
      %v1310 = vpop.f32.mrb[0].mxu0
      %v1311 = vadd.f32 0.0, %v1310
      %v1312 = vpop.f32.mrb[0].mxu0
      %v1313 = vadd.f32 0.0, %v1312
      %v1314 = vpop.f32.mrb[0].mxu0
      %v1315 = vpop.f32.mrb[0].mxu0
      %1316 = vdwg.mxu0
      %v1317 = vadd.f32 %v1077, %v1311
      %v1318 = vadd.f32 %v1078, %v1313
      %1319 = vmatprep.subr.bf16.mxu0 0
      %1320 = vmatpush1.bf16.xpose.msra.mxu0 %v1051
      %1321 = vmatprep.subr.bf16.mxu0 0
      %1322 = vmatpush1.bf16.xpose.msra.mxu0 0
      %1323 = vmatprep.subr.bf16.mxu0 0
      %1324 = vmatpush1.bf16.xpose.msra.mxu0 0
      %1325 = vmatprep.subr.bf16.mxu0 0
      %1326 = vmatpush1.bf16.xpose.msra.mxu0 0
      %1327 = vmatprep.subr.bf16.mxu0 0
      %1328 = vmatpush1.bf16.xpose.msra.mxu0 0
      %1329 = vmatprep.subr.bf16.mxu0 0
      %1330 = vmatpush1.bf16.xpose.msra.mxu0 0
      %1331 = vmatprep.subr.bf16.mxu0 0
      %1332 = vmatpush1.bf16.xpose.msra.mxu0 0
      %1333 = vmatprep.subr.bf16.mxu0 0
      %1334 = vmatpush1.bf16.xpose.msra.mxu0 0
      %1335 = vmatprep.subr.bf16.mxu0 0
      %1336 = vmatpush1.bf16.xpose.msra.mxu0 0
      %1337 = vmatprep.subr.bf16.mxu0 0
      %1338 = vmatpush1.bf16.xpose.msra.mxu0 0
      %1339 = vmatprep.subr.bf16.mxu0 0
      %1340 = vmatpush1.bf16.xpose.msra.mxu0 0
      %1341 = vmatprep.subr.bf16.mxu0 0
      %1342 = vmatpush1.bf16.xpose.msra.mxu0 0
      %1343 = vmatprep.subr.bf16.mxu0 0
      %1344 = vmatpush1.bf16.xpose.msra.mxu0 0
      %1345 = vmatprep.subr.bf16.mxu0 0
      %1346 = vmatpush1.bf16.xpose.msra.mxu0 0
      %1347 = vmatprep.subr.bf16.mxu0 0
      %1348 = vmatpush1.bf16.xpose.msra.mxu0 0
      %1349 = vmatprep.subr.bf16.mxu0 0
      %1350 = vmatpush1.bf16.xpose.msra.mxu0 0
      %1351 = vmatprep.mubr.bf16.mxu0 0
      %1352 = vmatmul.mubr.bf16.gmra.mrb[0].mxu0 %v1049
      %v1353 = vpop.f32.mrb[0].mxu0
      %v1354 = vadd.f32 0.0, %v1353
      %v1355 = vpop.f32.mrb[0].mxu0
      %v1356 = vpop.f32.mrb[0].mxu0
      %v1357 = vpop.f32.mrb[0].mxu0
      %1358 = vdwg.mxu0
      %v1359 = vsel %vm1119, %v1354, -inf
      %1360 = vmax.xlane.f32.xlu0 %v1359
      %v1361 = vpop.xlane.xlu0 %1360
      %v1362 = vsub.f32 %v1354, %v1361
      %v1363 = vmul.f32 %v1362, 1.442695
      %v1364 = vpow.pop %v1363
      %v1365 = vsel %vm1119, %v1364, 0.0
      %1366 = vadd.xlane.f32.xlu0 %v1365
      %v1367 = vpop.xlane.xlu0 %1366
      %v1368 = vpack.c.bf16 %v1364, %v1364
      %v1370 = vsel %vm1119, %v1368, 0
      %v1373 = vsel %vm1133, %v1053, 0
      %1375 = vmatprep.subr.bf16.mxu0 0
      %1376 = vmatpush1.bf16.msra.mxu0 %v1373
      %1377 = vmatprep.subr.bf16.mxu0 0
      %1378 = vmatpush1.bf16.msra.mxu0 0
      %1379 = vmatprep.subr.bf16.mxu0 0
      %1380 = vmatpush1.bf16.msra.mxu0 0
      %1381 = vmatprep.subr.bf16.mxu0 0
      %1382 = vmatpush1.bf16.msra.mxu0 0
      %1383 = vmatprep.subr.bf16.mxu0 0
      %1384 = vmatpush1.bf16.msra.mxu0 0
      %1385 = vmatprep.subr.bf16.mxu0 0
      %1386 = vmatpush1.bf16.msra.mxu0 0
      %1387 = vmatprep.subr.bf16.mxu0 0
      %1388 = vmatpush1.bf16.msra.mxu0 0
      %1389 = vmatprep.subr.bf16.mxu0 0
      %1390 = vmatpush1.bf16.msra.mxu0 0
      %1391 = vmatprep.subr.bf16.mxu0 0
      %1392 = vmatpush1.bf16.msra.mxu0 0
      %1393 = vmatprep.subr.bf16.mxu0 0
      %1394 = vmatpush1.bf16.msra.mxu0 0
      %1395 = vmatprep.subr.bf16.mxu0 0
      %1396 = vmatpush1.bf16.msra.mxu0 0
      %1397 = vmatprep.subr.bf16.mxu0 0
      %1398 = vmatpush1.bf16.msra.mxu0 0
      %1399 = vmatprep.subr.bf16.mxu0 0
      %1400 = vmatpush1.bf16.msra.mxu0 0
      %1401 = vmatprep.subr.bf16.mxu0 0
      %1402 = vmatpush1.bf16.msra.mxu0 0
      %1403 = vmatprep.subr.bf16.mxu0 0
      %1404 = vmatpush1.bf16.msra.mxu0 0
      %1405 = vmatprep.subr.bf16.mxu0 0
      %1406 = vmatpush1.bf16.msra.mxu0 0
      %1407 = vmatprep.mubr.bf16.mxu0 0
      %1408 = vmatmul.mubr.bf16.gmra.mrb[0].mxu0 %v1370
      %v1409 = vpop.f32.mrb[0].mxu0
      %v1410 = vadd.f32 0.0, %v1409
      %v1411 = vpop.f32.mrb[0].mxu0
      %v1412 = vpop.f32.mrb[0].mxu0
      %v1413 = vpop.f32.mrb[0].mxu0
      %1414 = vdwg.mxu0
      %v1415 = vrcp.pop %v1367
      %v1416 = vmul.f32 %v1410, %v1415
      %v1417 = vpack.c.bf16 %v1416, %v1416
      %v1418 = vld [vmem:[%s3 + $0x80] sm:$0xff]
      %v1419 = vld [vmem:[%s3 + $0x88] sm:$0xff]
      %v1420 = vld [vmem:[%s3 + $0x90] sm:$0xff]
      %v1421 = vld [vmem:[%s3 + $0x98] sm:$0xff]
      %v1422 = vld [vmem:[%s3 + $0xa0] sm:$0xff]
      %v1423 = vld [vmem:[%s3 + $0xa8] sm:$0xff]
      %v1424 = vld [vmem:[%s3 + $0xb0] sm:$0xff]
      %v1425 = vld [vmem:[%s3 + $0xb8] sm:$0xff]
      %v1426 = vld [vmem:[%s3 + $0xc0] sm:$0xff]
      %v1427 = vld [vmem:[%s3 + $0xc8] sm:$0xff]
      %v1428 = vld [vmem:[%s3 + $0xd0] sm:$0xff]
      %v1429 = vld [vmem:[%s3 + $0xd8] sm:$0xff]
      %v1430 = vld [vmem:[%s3 + $0xe0] sm:$0xff]
      %v1431 = vld [vmem:[%s3 + $0xe8] sm:$0xff]
      %v1432 = vld [vmem:[%s3 + $0xf0] sm:$0xff]
      %v1433 = vld [vmem:[%s3 + $0xf8] sm:$0xff]
      %v1450 = vunpack.c.l.b16 %v1418
      %v1451 = vunpack.c.h.b16 %v1418
      %v1452 = vunpack.c.l.b16 %v1419
      %v1453 = vunpack.c.h.b16 %v1419
      %v1454 = vunpack.c.l.b16 %v1420
      %v1455 = vunpack.c.h.b16 %v1420
      %v1456 = vunpack.c.l.b16 %v1421
      %v1457 = vunpack.c.h.b16 %v1421
      %v1458 = vunpack.c.l.b16 %v1422
      %v1459 = vunpack.c.h.b16 %v1422
      %v1460 = vunpack.c.l.b16 %v1423
      %v1461 = vunpack.c.h.b16 %v1423
      %v1462 = vunpack.c.l.b16 %v1424
      %v1463 = vunpack.c.h.b16 %v1424
      %v1464 = vunpack.c.l.b16 %v1425
      %v1465 = vunpack.c.h.b16 %v1425
      %v1466 = vunpack.c.l.b16 %v1426
      %v1467 = vunpack.c.h.b16 %v1426
      %v1468 = vunpack.c.l.b16 %v1427
      %v1469 = vunpack.c.h.b16 %v1427
      %v1470 = vunpack.c.l.b16 %v1428
      %v1471 = vunpack.c.h.b16 %v1428
      %v1472 = vunpack.c.l.b16 %v1429
      %v1473 = vunpack.c.h.b16 %v1429
      %v1474 = vunpack.c.l.b16 %v1430
      %v1475 = vunpack.c.h.b16 %v1430
      %v1476 = vunpack.c.l.b16 %v1431
      %v1477 = vunpack.c.h.b16 %v1431
      %v1478 = vunpack.c.l.b16 %v1432
      %v1479 = vunpack.c.h.b16 %v1432
      %v1480 = vunpack.c.l.b16 %v1433
      %v1481 = vunpack.c.h.b16 %v1433
      %v1482 = vpack.c.b16 %v1452, %v1450
      %v1483 = vpack.c.b16 %v1453, %v1451
      %v1484 = vpack.c.b16 %v1456, %v1454
      %v1485 = vpack.c.b16 %v1457, %v1455
      %v1486 = vpack.c.b16 %v1460, %v1458
      %v1487 = vpack.c.b16 %v1461, %v1459
      %v1488 = vpack.c.b16 %v1464, %v1462
      %v1489 = vpack.c.b16 %v1465, %v1463
      %v1490 = vpack.c.b16 %v1468, %v1466
      %v1491 = vpack.c.b16 %v1469, %v1467
      %v1492 = vpack.c.b16 %v1472, %v1470
      %v1493 = vpack.c.b16 %v1473, %v1471
      %v1494 = vpack.c.b16 %v1476, %v1474
      %v1495 = vpack.c.b16 %v1477, %v1475
      %v1496 = vpack.c.b16 %v1480, %v1478
      %v1497 = vpack.c.b16 %v1481, %v1479
      %1514 = vmatprep.subr.bf16.mxu0 %v1483
      %1515 = vmatpush1.bf16.msra.mxu0 %v1482
      %1516 = vmatprep.subr.bf16.mxu0 %v1485
      %1517 = vmatpush1.bf16.msra.mxu0 %v1484
      %1518 = vmatprep.subr.bf16.mxu0 %v1487
      %1519 = vmatpush1.bf16.msra.mxu0 %v1486
      %1520 = vmatprep.subr.bf16.mxu0 %v1489
      %1521 = vmatpush1.bf16.msra.mxu0 %v1488
      %1522 = vmatprep.subr.bf16.mxu0 %v1491
      %1523 = vmatpush1.bf16.msra.mxu0 %v1490
      %1524 = vmatprep.subr.bf16.mxu0 %v1493
      %1525 = vmatpush1.bf16.msra.mxu0 %v1492
      %1526 = vmatprep.subr.bf16.mxu0 %v1495
      %1527 = vmatpush1.bf16.msra.mxu0 %v1494
      %1528 = vmatprep.subr.bf16.mxu0 %v1497
      %1529 = vmatpush1.bf16.msra.mxu0 %v1496
      %1530 = vmatprep.subr.bf16.mxu0 0
      %1531 = vmatpush1.bf16.msra.mxu0 0
      %1532 = vmatprep.subr.bf16.mxu0 0
      %1533 = vmatpush1.bf16.msra.mxu0 0
      %1534 = vmatprep.subr.bf16.mxu0 0
      %1535 = vmatpush1.bf16.msra.mxu0 0
      %1536 = vmatprep.subr.bf16.mxu0 0
      %1537 = vmatpush1.bf16.msra.mxu0 0
      %1538 = vmatprep.subr.bf16.mxu0 0
      %1539 = vmatpush1.bf16.msra.mxu0 0
      %1540 = vmatprep.subr.bf16.mxu0 0
      %1541 = vmatpush1.bf16.msra.mxu0 0
      %1542 = vmatprep.subr.bf16.mxu0 0
      %1543 = vmatpush1.bf16.msra.mxu0 0
      %1544 = vmatprep.subr.bf16.mxu0 0
      %1545 = vmatpush1.bf16.msra.mxu0 0
      %1546 = vmatprep.mubr.bf16.mxu0 0
      %1547 = vmatmul.mubr.bf16.gmra.mrb[0].mxu0 %v1417
      %v1548 = vpop.f32.mrb[0].mxu0
      %v1549 = vadd.f32 0.0, %v1548
      %v1550 = vpop.f32.mrb[0].mxu0
      %v1551 = vadd.f32 0.0, %v1550
      %v1552 = vpop.f32.mrb[0].mxu0
      %v1553 = vpop.f32.mrb[0].mxu0
      %1554 = vdwg.mxu0
      %v1555 = vadd.f32 %v1317, %v1549
      %v1556 = vadd.f32 %v1318, %v1551
      %v1557 = vld [vmem:[%s5] sm:$0x3]
      %v1558 = vunpack.c.l.bf16 %v1557
      %v1559 = vld [vmem:[%s6] sm:$0x3]
      %v1560 = vunpack.c.l.bf16 %v1559
      %v1561 = vadd.f32 %v1555, %v1556
      %1562 = vadd.xlane.f32.xlu0 %v1561
      %v1563 = vpop.xlane.xlu0 %1562
      %v1564 = vrcp.pop 256.0
      %v1565 = vmul.f32 %v1563, %v1564
      %v1566 = vsub.f32 %v1555, %v1565
      %v1567 = vsub.f32 %v1556, %v1565
      %v1568 = vmul.f32 %v1566, %v1566
      %v1569 = vmul.f32 %v1567, %v1567
      %v1570 = vadd.f32 %v1568, %v1569
      %1571 = vadd.xlane.f32.xlu0 %v1570
      %v1572 = vpop.xlane.xlu0 %1571
      %v1573 = vmul.f32 %v1572, %v1564
      %v1574 = vadd.f32 %v1573, 1e-05
      %v1575 = vrsqrt.pop %v1574
      %v1576 = vmul.f32 %v1566, %v1575
      %v1577 = vmul.f32 %v1567, %v1575
      %v1579 = vlaneseq
      %v1580 = vshrl.u32 %v1579, 7
      %v1581 = vsub.s32 0, %v1580
      %v1582 = vrot.slane %v1558, %v1581
      %v1583 = vlaneseq
      %v1584 = vshrl.u32 %v1583, 7
      %v1585 = vsub.s32 2, %v1584
      %v1586 = vrot.slane %v1558, %v1585
      %v1589 = vlaneseq
      %v1590 = vshrl.u32 %v1589, 7
      %v1591 = vsub.s32 0, %v1590
      %v1592 = vrot.slane %v1582, %v1591
      %v1593 = vlaneseq
      %v1594 = vshrl.u32 %v1593, 7
      %v1595 = vsub.s32 0, %v1594
      %v1596 = vrot.slane %v1586, %v1595
      %v1597 = vmul.f32 %v1576, %v1592
      %v1598 = vmul.f32 %v1577, %v1596
      %v1600 = vlaneseq
      %v1601 = vshrl.u32 %v1600, 7
      %v1602 = vsub.s32 0, %v1601
      %v1603 = vrot.slane %v1560, %v1602
      %v1604 = vlaneseq
      %v1605 = vshrl.u32 %v1604, 7
      %v1606 = vsub.s32 2, %v1605
      %v1607 = vrot.slane %v1560, %v1606
      %v1610 = vlaneseq
      %v1611 = vshrl.u32 %v1610, 7
      %v1612 = vsub.s32 0, %v1611
      %v1613 = vrot.slane %v1603, %v1612
      %v1614 = vlaneseq
      %v1615 = vshrl.u32 %v1614, 7
      %v1616 = vsub.s32 0, %v1615
      %v1617 = vrot.slane %v1607, %v1616
      %v1618 = vadd.f32 %v1597, %v1613
      %v1619 = vadd.f32 %v1598, %v1617
      %v1620 = vpack.c.bf16 %v1618, %v1618
      %v1621 = vpack.c.bf16 %v1619, %v1619
      %v1624 = vunpack.c.l.b16 %v1620
      %v1625 = vunpack.c.l.b16 %v1621
      %v1626 = vpack.c.b16 %v1625, %v1624
      %1628 = vst [vmem:[%s278] sm:$0xff] %v1626
      %p1629 = scmp.lt.s32.totalorder %s18, 1
      %s1630 = scalar_select %p1629, %s18, 1
      %s1631 = smul.addr %s1630, 2
      %s1632 = smul.addr %s1631, 4
      %s1633 = scalar_lea.vmem %s7, %s1632
      // Predicated region
      $region49: #{transformer_forward.13} parent=47 // pred_check
        %p1634 = pneg %p188
      $region50: #{transformer_forward.13} parent=47 // pred_check_branch
        %1636 = sbr.rel (%p1634) target = $region52
      $region51: #{transformer_forward.13} parent=47 // pred_region
        _
      $region52: #{transformer_forward.13} parent=47 // pred_fallthru
        _
    $region48: #{transformer_forward.13} parent=5 // pred_fallthru
      _
    %p1637 = scmp.le.s32.totalorder 2, %s13
    // Predicated region
    $region53: #{transformer_forward.13} parent=5 // pred_check
      %p1638 = pneg %p1637
    $region54: #{transformer_forward.13} parent=5 // pred_check_branch
      %1640 = sbr.rel (%p1638) target = $region56
    $region55: #{transformer_forward.13} parent=5 // pred_region
      %s1641 = ssub.s32 %s13, 2
      // Predicated region
      $region57: #{transformer_forward.13} parent=55 // pred_check
        %p1642 = pneg %p194
      $region58: #{transformer_forward.13} parent=55 // pred_check_branch
        %1644 = sbr.rel (%p1642) target = $region60
      $region59: #{transformer_forward.13} parent=55 // pred_region
        %p1645 = scmp.lt.s32.totalorder %s19, 1
        %s1646 = scalar_select %p1645, %s19, 1
        %s1647 = smul.addr %s1646, 2
        %s1648 = smul.addr %s1647, 4
        %s1649 = scalar_lea.vmem %s7, %s1648
      $region60: #{transformer_forward.13} parent=55 // pred_fallthru
        _
    $region56: #{transformer_forward.13} parent=5 // pred_fallthru
      _
  $region6: #{transformer_forward.13} parent=0 // loop_footer
    %s17 = sadd.s32 1, %s13
  $region7: #{transformer_forward.13} parent=0 // loop_footer_branch
    %12 = sbr.rel target = $region3
  $region8: #{transformer_forward.13} parent=0 // loop_exit
    _

// kernel: transformer_forward.11
$region0: #{transformer_forward.11}
  #allocation0 [shape = 'u32[]', space=smem, size = 0x4, offset = 0x4, fixed_abs, tag = 'smem constant byte address 0x4 - core index']
  #allocation1 [shape = 'u32[144,128]{1,0:T(1,128)}', space=vmem, size = 0x12000, scoped, tag = 'internal scratch']
  %s0 = inlined_call_operand.vmem [shape: bf16[2,8,256], index: 0, kind: input, shape index: {}]
  %s1 = inlined_call_operand.hbm [shape: bf16[256,768], index: 1, kind: input, shape index: {}]
  %s2 = inlined_call_operand.vmem [shape: bf16[1,768], index: 2, kind: input, shape index: {}]
  %s3 = inlined_call_operand.vmem [shape: bf16[256,256], index: 3, kind: input, shape index: {}]
  %s4 = inlined_call_operand.vmem [shape: bf16[1,256], index: 4, kind: input, shape index: {}]
  %s5 = inlined_call_operand.vmem [shape: bf16[1,256], index: 5, kind: input, shape index: {}]
  %s6 = inlined_call_operand.vmem [shape: bf16[1,256], index: 6, kind: input, shape index: {}]
  %s7 = inlined_call_operand.vmem [shape: bf16[2,8,256], index: 7, kind: output, shape index: {}]
  %s8 = sld [smem:[#allocation0]]
  $region65: #{transformer_forward.11} parent=0
    _
  %s10 = ssub.s32 1, %s8
  %s11 = scalar_select 0, %s10, %s8
  $region1: #{transformer_forward.11} parent=0
    #allocation2 [shape = 'u8[393216]{0}', space=vmem, size = 0x60000, scoped, tag = 'input window, operand 1, single buffered']
    #allocation3 [shape = 's32[2]{0}', space=sflag, size = 0x8, scoped, tag = 'scoped memory for transformer_forward.11']
    %12 = vsyncpa [#allocation3], 0
    loop: start=0, step=1, limit=4
    $region2: #{transformer_forward.11} parent=1 // loop_pre_header
      _
    $region3: #{transformer_forward.11} parent=1 // loop_header
      %s14 = sphi 0, %s18
      %p15 = scmp.ge.s32.totalorder %s14, 4
      %s24 = sphi 0, %s26
      %s27 = sphi 0, %s24
      %s28 = sphi 0, %s27
      %s44 = sphi 0, %s28
      %s48 = sphi 0, %s48
      %s50 = sphi 0, %s48
      %s51 = sphi 0, %s50
      %s65 = sphi 0, %s51
      %s69 = sphi 0, %s69
      %s71 = sphi 0, %s69
      %s72 = sphi 0, %s71
      %s86 = sphi 0, %s72
      %s90 = sphi 0, %s90
      %s92 = sphi 0, %s90
      %s93 = sphi 0, %s92
      %s107 = sphi 0, %s93
      %s111 = sphi 0, %s111
      %s113 = sphi 0, %s111
      %s114 = sphi 0, %s113
      %s128 = sphi 0, %s114
      %s132 = sphi 0, %s132
      %s134 = sphi 0, %s132
      %s135 = sphi 0, %s134
      %s149 = sphi 0, %s135
      %s153 = sphi 0, %s153
      %s155 = sphi 0, %s153
      %s156 = sphi 0, %s155
      %s170 = sphi 0, %s156
      %s176 = sphi 0, %s178
      %s179 = sphi 0, %s176
      %s180 = sphi 0, %s179
      %s196 = sphi 0, %s180
    $region4: #{transformer_forward.11} parent=1 // loop_header_branch
      %17 = sbr.rel (%p15) target = $region8
    $region5: #{transformer_forward.11} parent=1 // loop_body
      %s19 = ssub.s32 %s14, 1
      %s20 = ssub.s32 %s14, 2
      %s21 = sadd.s32 %s14, 1
      %s22 = ssub.s32 %s14, %s21
      %p23 = scmp.eq.s32.totalorder %s22, 0
      %s25 = sadd.s32 %s24, 1
      %s26 = scalar_select %p23, %s24, %s25
      %p29 = pneg %p23
      %p30 = scmp.eq.s32.totalorder %s14, 1
      %p31 = por %p29, %p30
      %p32 = scmp.ne.s32.totalorder %s24, %s27
      %p33 = scmp.eq.s32.totalorder %s14, 0
      %p34 = por %p32, %p33
      %p35 = scmp.ne.s32.totalorder %s24, %s27
      %p36 = scmp.eq.s32.totalorder %s19, 1
      %p37 = por %p35, %p36
      %p38 = scmp.ne.s32.totalorder %s27, %s28
      %p39 = scmp.eq.s32.totalorder %s19, 0
      %p40 = por %p38, %p39
      %p41 = scmp.ne.s32.totalorder %s27, %s28
      %p42 = scmp.eq.s32.totalorder %s20, 1
      %p43 = por %p41, %p42
      %p45 = scmp.ne.s32.totalorder %s28, %s44
      %p46 = scmp.eq.s32.totalorder %s20, 0
      %p47 = por %p45, %p46
      %s49 = sadd.s32 %s48, 1
      %p52 = scmp.eq.s32.totalorder %s14, 1
      %p53 = scmp.ne.s32.totalorder %s48, %s50
      %p54 = scmp.eq.s32.totalorder %s14, 0
      %p55 = por %p53, %p54
      %p56 = scmp.ne.s32.totalorder %s48, %s50
      %p57 = scmp.eq.s32.totalorder %s19, 1
      %p58 = por %p56, %p57
      %p59 = scmp.ne.s32.totalorder %s50, %s51
      %p60 = scmp.eq.s32.totalorder %s19, 0
      %p61 = por %p59, %p60
      %p62 = scmp.ne.s32.totalorder %s50, %s51
      %p63 = scmp.eq.s32.totalorder %s20, 1
      %p64 = por %p62, %p63
      %p66 = scmp.ne.s32.totalorder %s51, %s65
      %p67 = scmp.eq.s32.totalorder %s20, 0
      %p68 = por %p66, %p67
      %s70 = sadd.s32 %s69, 1
      %p73 = scmp.eq.s32.totalorder %s14, 1
      %p74 = scmp.ne.s32.totalorder %s69, %s71
      %p75 = scmp.eq.s32.totalorder %s14, 0
      %p76 = por %p74, %p75
      %p77 = scmp.ne.s32.totalorder %s69, %s71
      %p78 = scmp.eq.s32.totalorder %s19, 1
      %p79 = por %p77, %p78
      %p80 = scmp.ne.s32.totalorder %s71, %s72
      %p81 = scmp.eq.s32.totalorder %s19, 0
      %p82 = por %p80, %p81
      %p83 = scmp.ne.s32.totalorder %s71, %s72
      %p84 = scmp.eq.s32.totalorder %s20, 1
      %p85 = por %p83, %p84
      %p87 = scmp.ne.s32.totalorder %s72, %s86
      %p88 = scmp.eq.s32.totalorder %s20, 0
      %p89 = por %p87, %p88
      %s91 = sadd.s32 %s90, 1
      %p94 = scmp.eq.s32.totalorder %s14, 1
      %p95 = scmp.ne.s32.totalorder %s90, %s92
      %p96 = scmp.eq.s32.totalorder %s14, 0
      %p97 = por %p95, %p96
      %p98 = scmp.ne.s32.totalorder %s90, %s92
      %p99 = scmp.eq.s32.totalorder %s19, 1
      %p100 = por %p98, %p99
      %p101 = scmp.ne.s32.totalorder %s92, %s93
      %p102 = scmp.eq.s32.totalorder %s19, 0
      %p103 = por %p101, %p102
      %p104 = scmp.ne.s32.totalorder %s92, %s93
      %p105 = scmp.eq.s32.totalorder %s20, 1
      %p106 = por %p104, %p105
      %p108 = scmp.ne.s32.totalorder %s93, %s107
      %p109 = scmp.eq.s32.totalorder %s20, 0
      %p110 = por %p108, %p109
      %s112 = sadd.s32 %s111, 1
      %p115 = scmp.eq.s32.totalorder %s14, 1
      %p116 = scmp.ne.s32.totalorder %s111, %s113
      %p117 = scmp.eq.s32.totalorder %s14, 0
      %p118 = por %p116, %p117
      %p119 = scmp.ne.s32.totalorder %s111, %s113
      %p120 = scmp.eq.s32.totalorder %s19, 1
      %p121 = por %p119, %p120
      %p122 = scmp.ne.s32.totalorder %s113, %s114
      %p123 = scmp.eq.s32.totalorder %s19, 0
      %p124 = por %p122, %p123
      %p125 = scmp.ne.s32.totalorder %s113, %s114
      %p126 = scmp.eq.s32.totalorder %s20, 1
      %p127 = por %p125, %p126
      %p129 = scmp.ne.s32.totalorder %s114, %s128
      %p130 = scmp.eq.s32.totalorder %s20, 0
      %p131 = por %p129, %p130
      %s133 = sadd.s32 %s132, 1
      %p136 = scmp.eq.s32.totalorder %s14, 1
      %p137 = scmp.ne.s32.totalorder %s132, %s134
      %p138 = scmp.eq.s32.totalorder %s14, 0
      %p139 = por %p137, %p138
      %p140 = scmp.ne.s32.totalorder %s132, %s134
      %p141 = scmp.eq.s32.totalorder %s19, 1
      %p142 = por %p140, %p141
      %p143 = scmp.ne.s32.totalorder %s134, %s135
      %p144 = scmp.eq.s32.totalorder %s19, 0
      %p145 = por %p143, %p144
      %p146 = scmp.ne.s32.totalorder %s134, %s135
      %p147 = scmp.eq.s32.totalorder %s20, 1
      %p148 = por %p146, %p147
      %p150 = scmp.ne.s32.totalorder %s135, %s149
      %p151 = scmp.eq.s32.totalorder %s20, 0
      %p152 = por %p150, %p151
      %s154 = sadd.s32 %s153, 1
      %p157 = scmp.eq.s32.totalorder %s14, 1
      %p158 = scmp.ne.s32.totalorder %s153, %s155
      %p159 = scmp.eq.s32.totalorder %s14, 0
      %p160 = por %p158, %p159
      %p161 = scmp.ne.s32.totalorder %s153, %s155
      %p162 = scmp.eq.s32.totalorder %s19, 1
      %p163 = por %p161, %p162
      %p164 = scmp.ne.s32.totalorder %s155, %s156
      %p165 = scmp.eq.s32.totalorder %s19, 0
      %p166 = por %p164, %p165
      %p167 = scmp.ne.s32.totalorder %s155, %s156
      %p168 = scmp.eq.s32.totalorder %s20, 1
      %p169 = por %p167, %p168
      %p171 = scmp.ne.s32.totalorder %s156, %s170
      %p172 = scmp.eq.s32.totalorder %s20, 0
      %p173 = por %p171, %p172
      %s174 = ssub.s32 %s14, %s21
      %p175 = scmp.eq.s32.totalorder %s174, 0
      %s177 = sadd.s32 %s176, 1
      %s178 = scalar_select %p175, %s176, %s177
      %p181 = pneg %p175
      %p182 = scmp.eq.s32.totalorder %s14, 1
      %p183 = por %p181, %p182
      %p184 = scmp.ne.s32.totalorder %s176, %s179
      %p185 = scmp.eq.s32.totalorder %s14, 0
      %p186 = por %p184, %p185
      %p187 = scmp.ne.s32.totalorder %s176, %s179
      %p188 = scmp.eq.s32.totalorder %s19, 1
      %p189 = por %p187, %p188
      %p190 = scmp.ne.s32.totalorder %s179, %s180
      %p191 = scmp.eq.s32.totalorder %s19, 0
      %p192 = por %p190, %p191
      %p193 = scmp.ne.s32.totalorder %s179, %s180
      %p194 = scmp.eq.s32.totalorder %s20, 1
      %p195 = por %p193, %p194
      %p197 = scmp.ne.s32.totalorder %s180, %s196
      %p198 = scmp.eq.s32.totalorder %s20, 0
      %p199 = por %p197, %p198
      %p200 = scmp.le.s32.totalorder 1, %s14
      %p201 = scmp.lt.s32.totalorder %s14, 3
      %p202 = pnand %p200, %p201
      %p203 = pneg %p202
      // Predicated region
      $region9: #{transformer_forward.11} parent=5 // pred_check
        _
      $region10: #{transformer_forward.11} parent=5 // pred_check_branch
        %205 = sbr.rel (%p202) target = $region12
      $region11: #{transformer_forward.11} parent=5 // pred_region
        %s206 = ssub.s32 %s14, 1
        // Predicated region
        $region13: #{transformer_forward.11} parent=11 // pred_check
          %p207 = pneg %p61
        $region14: #{transformer_forward.11} parent=11 // pred_check_branch
          %209 = sbr.rel (%p207) target = $region16
        $region15: #{transformer_forward.11} parent=11 // pred_region
          %s211 = ssub.s32 12288, 12288
          %212 = vsyncadd [#allocation3], %s211
          %s213 = sshll.u32 [#allocation2], 4
          %s214 = int_to_ptr.vmem [resolvable:$true] %s213
          %219 = dma.hbm_to_vmem [thread:$0]  %s1, 12288, %s214, [#allocation3], 384, 384, 24
        $region16: #{transformer_forward.11} parent=11 // pred_fallthru
          _
        // Predicated region
        $region17: #{transformer_forward.11} parent=11 // pred_check
          %p220 = pneg %p82
        $region18: #{transformer_forward.11} parent=11 // pred_check_branch
          %222 = sbr.rel (%p220) target = $region20
        $region19: #{transformer_forward.11} parent=11 // pred_region
          _
        $region20: #{transformer_forward.11} parent=11 // pred_fallthru
          _
        // Predicated region
        $region21: #{transformer_forward.11} parent=11 // pred_check
          %p223 = pneg %p103
        $region22: #{transformer_forward.11} parent=11 // pred_check_branch
          %225 = sbr.rel (%p223) target = $region24
        $region23: #{transformer_forward.11} parent=11 // pred_region
          _
        $region24: #{transformer_forward.11} parent=11 // pred_fallthru
          _
        // Predicated region
        $region25: #{transformer_forward.11} parent=11 // pred_check
          %p226 = pneg %p124
        $region26: #{transformer_forward.11} parent=11 // pred_check_branch
          %228 = sbr.rel (%p226) target = $region28
        $region27: #{transformer_forward.11} parent=11 // pred_region
          _
        $region28: #{transformer_forward.11} parent=11 // pred_fallthru
          _
        // Predicated region
        $region29: #{transformer_forward.11} parent=11 // pred_check
          %p229 = pneg %p145
        $region30: #{transformer_forward.11} parent=11 // pred_check_branch
          %231 = sbr.rel (%p229) target = $region32
        $region31: #{transformer_forward.11} parent=11 // pred_region
          _
        $region32: #{transformer_forward.11} parent=11 // pred_fallthru
          _
        // Predicated region
        $region33: #{transformer_forward.11} parent=11 // pred_check
          %p232 = pneg %p166
        $region34: #{transformer_forward.11} parent=11 // pred_check_branch
          %234 = sbr.rel (%p232) target = $region36
        $region35: #{transformer_forward.11} parent=11 // pred_region
          _
        $region36: #{transformer_forward.11} parent=11 // pred_fallthru
          _
      $region12: #{transformer_forward.11} parent=5 // pred_fallthru
        _
      %p235 = scmp.lt.s32.totalorder %s14, 2
      // Predicated region
      $region37: #{transformer_forward.11} parent=5 // pred_check
        %p236 = pneg %p235
      $region38: #{transformer_forward.11} parent=5 // pred_check_branch
        %238 = sbr.rel (%p236) target = $region40
      $region39: #{transformer_forward.11} parent=5 // pred_region
        // Predicated region
        $region41: #{transformer_forward.11} parent=39 // pred_check
          %p239 = pneg %p34
        $region42: #{transformer_forward.11} parent=39 // pred_check_branch
          %241 = sbr.rel (%p239) target = $region44
        $region43: #{transformer_forward.11} parent=39 // pred_region
          %p242 = scmp.lt.s32.totalorder %s14, 1
          %s243 = scalar_select %p242, %s14, 1
          %s244 = smul.addr %s243, 2
          %s245 = smul.addr %s244, 4
          %s246 = scalar_lea.vmem %s0, %s245
        $region44: #{transformer_forward.11} parent=39 // pred_fallthru
          _
      $region40: #{transformer_forward.11} parent=5 // pred_fallthru
        _
      %p247 = scmp.le.s32.totalorder 1, %s14
      %p248 = scmp.lt.s32.totalorder %s14, 3
      %p249 = pnand %p247, %p248
      %p250 = pneg %p249
      // Predicated region
      $region45: #{transformer_forward.11} parent=5 // pred_check
        _
      $region46: #{transformer_forward.11} parent=5 // pred_check_branch
        %252 = sbr.rel (%p249) target = $region48
      $region47: #{transformer_forward.11} parent=5 // pred_region
        %s253 = ssub.s32 %s14, 1
        // Predicated region
        $region49: #{transformer_forward.11} parent=47 // pred_check
          %p254 = pneg %p61
        $region50: #{transformer_forward.11} parent=47 // pred_check_branch
          %256 = sbr.rel (%p254) target = $region52
        $region51: #{transformer_forward.11} parent=47 // pred_region
          %257 = dma.done [#allocation3], 12288
        $region52: #{transformer_forward.11} parent=47 // pred_fallthru
          _
        %p258 = scmp.lt.s32.totalorder %s19, 1
        %s259 = scalar_select %p258, %s19, 1
        %s260 = smul.addr %s259, 2
        %s261 = smul.addr %s260, 4
        %s262 = scalar_lea.vmem %s0, %s261
        %p263 = pneg %p40
        %p264 = pneg %p37
        %p265 = pneg %p61
        %p266 = pneg %p58
        %p267 = pneg %p82
        %p268 = pneg %p79
        %p269 = pneg %p103
        %p270 = pneg %p100
        %p271 = pneg %p124
        %p272 = pneg %p121
        %p273 = pneg %p145
        %p274 = pneg %p142
        %p275 = pneg %p166
        %p276 = pneg %p163
        %p277 = pneg %p192
        %p278 = pneg %p189
        %p279 = scmp.lt.s32.totalorder %s19, 1
        %s280 = scalar_select %p279, %s19, 1
        %s281 = smul.addr %s280, 2
        %s282 = smul.addr %s281, 4
        %s283 = scalar_lea.vmem %s7, %s282
        %p284 = scmp.lt.s32.totalorder %s19, 1
        %s285 = scalar_select %p284, %s19, 1
        %s286 = smul.addr %s285, 2
        %s287 = smul.addr %s286, 4
        %s288 = scalar_lea.vmem %s0, %s287
        %p289 = scmp.lt.s32.totalorder %s19, 1
        %s290 = scalar_select %p289, %s19, 1
        %s291 = smul.addr %s290, 2
        %s292 = smul.addr %s291, 4
        %s293 = scalar_lea.vmem %s7, %s292
        %v295 = vld [vmem:[%s288] sm:$0xff]
        %v296 = vld [vmem:[#allocation2] sm:$0xff]
        %v297 = vld [vmem:[#allocation2 + $0x8] sm:$0xff]
        %v298 = vld [vmem:[#allocation2 + $0x10] sm:$0xff]
        %v299 = vld [vmem:[#allocation2 + $0x18] sm:$0xff]
        %v300 = vld [vmem:[#allocation2 + $0x20] sm:$0xff]
        %v301 = vld [vmem:[#allocation2 + $0x28] sm:$0xff]
        %v302 = vld [vmem:[#allocation2 + $0x30] sm:$0xff]
        %v303 = vld [vmem:[#allocation2 + $0x38] sm:$0xff]
        %v304 = vld [vmem:[#allocation2 + $0x40] sm:$0xff]
        %v305 = vld [vmem:[#allocation2 + $0x48] sm:$0xff]
        %v306 = vld [vmem:[#allocation2 + $0x50] sm:$0xff]
        %v307 = vld [vmem:[#allocation2 + $0x58] sm:$0xff]
        %v308 = vld [vmem:[#allocation2 + $0x60] sm:$0xff]
        %v309 = vld [vmem:[#allocation2 + $0x68] sm:$0xff]
        %v310 = vld [vmem:[#allocation2 + $0x70] sm:$0xff]
        %v311 = vld [vmem:[#allocation2 + $0x78] sm:$0xff]
        %v312 = vld [vmem:[#allocation2 + $0x80] sm:$0xff]
        %v313 = vld [vmem:[#allocation2 + $0x88] sm:$0xff]
        %v314 = vld [vmem:[#allocation2 + $0x90] sm:$0xff]
        %v315 = vld [vmem:[#allocation2 + $0x98] sm:$0xff]
        %v316 = vld [vmem:[#allocation2 + $0xa0] sm:$0xff]
        %v317 = vld [vmem:[#allocation2 + $0xa8] sm:$0xff]
        %v318 = vld [vmem:[#allocation2 + $0xb0] sm:$0xff]
        %v319 = vld [vmem:[#allocation2 + $0xb8] sm:$0xff]
        %v320 = vld [vmem:[#allocation2 + $0xc0] sm:$0xff]
        %v321 = vld [vmem:[#allocation2 + $0xc8] sm:$0xff]
        %v322 = vld [vmem:[#allocation2 + $0xd0] sm:$0xff]
        %v323 = vld [vmem:[#allocation2 + $0xd8] sm:$0xff]
        %v324 = vld [vmem:[#allocation2 + $0xe0] sm:$0xff]
        %v325 = vld [vmem:[#allocation2 + $0xe8] sm:$0xff]
        %v326 = vld [vmem:[#allocation2 + $0xf0] sm:$0xff]
        %v327 = vld [vmem:[#allocation2 + $0xf8] sm:$0xff]
        %v328 = vld [vmem:[#allocation2 + $0x100] sm:$0xff]
        %v329 = vld [vmem:[#allocation2 + $0x108] sm:$0xff]
        %v330 = vld [vmem:[#allocation2 + $0x110] sm:$0xff]
        %v331 = vld [vmem:[#allocation2 + $0x118] sm:$0xff]
        %v332 = vld [vmem:[#allocation2 + $0x120] sm:$0xff]
        %v333 = vld [vmem:[#allocation2 + $0x128] sm:$0xff]
        %v334 = vld [vmem:[#allocation2 + $0x130] sm:$0xff]
        %v335 = vld [vmem:[#allocation2 + $0x138] sm:$0xff]
        %v336 = vld [vmem:[#allocation2 + $0x140] sm:$0xff]
        %v337 = vld [vmem:[#allocation2 + $0x148] sm:$0xff]
        %v338 = vld [vmem:[#allocation2 + $0x150] sm:$0xff]
        %v339 = vld [vmem:[#allocation2 + $0x158] sm:$0xff]
        %v340 = vld [vmem:[#allocation2 + $0x160] sm:$0xff]
        %v341 = vld [vmem:[#allocation2 + $0x168] sm:$0xff]
        %v342 = vld [vmem:[#allocation2 + $0x170] sm:$0xff]
        %v343 = vld [vmem:[#allocation2 + $0x178] sm:$0xff]
        %v344 = vld [vmem:[#allocation2 + $0x180] sm:$0xff]
        %v345 = vld [vmem:[#allocation2 + $0x188] sm:$0xff]
        %v346 = vld [vmem:[#allocation2 + $0x190] sm:$0xff]
        %v347 = vld [vmem:[#allocation2 + $0x198] sm:$0xff]
        %v348 = vld [vmem:[#allocation2 + $0x1a0] sm:$0xff]
        %v349 = vld [vmem:[#allocation2 + $0x1a8] sm:$0xff]
        %v350 = vld [vmem:[#allocation2 + $0x1b0] sm:$0xff]
        %v351 = vld [vmem:[#allocation2 + $0x1b8] sm:$0xff]
        %v352 = vld [vmem:[#allocation2 + $0x1c0] sm:$0xff]
        %v353 = vld [vmem:[#allocation2 + $0x1c8] sm:$0xff]
        %v354 = vld [vmem:[#allocation2 + $0x1d0] sm:$0xff]
        %v355 = vld [vmem:[#allocation2 + $0x1d8] sm:$0xff]
        %v356 = vld [vmem:[#allocation2 + $0x1e0] sm:$0xff]
        %v357 = vld [vmem:[#allocation2 + $0x1e8] sm:$0xff]
        %v358 = vld [vmem:[#allocation2 + $0x1f0] sm:$0xff]
        %v359 = vld [vmem:[#allocation2 + $0x1f8] sm:$0xff]
        %v360 = vld [vmem:[#allocation2 + $0x200] sm:$0xff]
        %v361 = vld [vmem:[#allocation2 + $0x208] sm:$0xff]
        %v362 = vld [vmem:[#allocation2 + $0x210] sm:$0xff]
        %v363 = vld [vmem:[#allocation2 + $0x218] sm:$0xff]
        %v364 = vld [vmem:[#allocation2 + $0x220] sm:$0xff]
        %v365 = vld [vmem:[#allocation2 + $0x228] sm:$0xff]
        %v366 = vld [vmem:[#allocation2 + $0x230] sm:$0xff]
        %v367 = vld [vmem:[#allocation2 + $0x238] sm:$0xff]
        %v368 = vld [vmem:[#allocation2 + $0x240] sm:$0xff]
        %v369 = vld [vmem:[#allocation2 + $0x248] sm:$0xff]
        %v370 = vld [vmem:[#allocation2 + $0x250] sm:$0xff]
        %v371 = vld [vmem:[#allocation2 + $0x258] sm:$0xff]
        %v372 = vld [vmem:[#allocation2 + $0x260] sm:$0xff]
        %v373 = vld [vmem:[#allocation2 + $0x268] sm:$0xff]
        %v374 = vld [vmem:[#allocation2 + $0x270] sm:$0xff]
        %v375 = vld [vmem:[#allocation2 + $0x278] sm:$0xff]
        %v376 = vld [vmem:[#allocation2 + $0x280] sm:$0xff]
        %v377 = vld [vmem:[#allocation2 + $0x288] sm:$0xff]
        %v378 = vld [vmem:[#allocation2 + $0x290] sm:$0xff]
        %v379 = vld [vmem:[#allocation2 + $0x298] sm:$0xff]
        %v380 = vld [vmem:[#allocation2 + $0x2a0] sm:$0xff]
        %v381 = vld [vmem:[#allocation2 + $0x2a8] sm:$0xff]
        %v382 = vld [vmem:[#allocation2 + $0x2b0] sm:$0xff]
        %v383 = vld [vmem:[#allocation2 + $0x2b8] sm:$0xff]
        %v384 = vld [vmem:[#allocation2 + $0x2c0] sm:$0xff]
        %v385 = vld [vmem:[#allocation2 + $0x2c8] sm:$0xff]
        %v386 = vld [vmem:[#allocation2 + $0x2d0] sm:$0xff]
        %v387 = vld [vmem:[#allocation2 + $0x2d8] sm:$0xff]
        %v388 = vld [vmem:[#allocation2 + $0x2e0] sm:$0xff]
        %v389 = vld [vmem:[#allocation2 + $0x2e8] sm:$0xff]
        %v390 = vld [vmem:[#allocation2 + $0x2f0] sm:$0xff]
        %v391 = vld [vmem:[#allocation2 + $0x2f8] sm:$0xff]
        %v392 = vld [vmem:[%s2] sm:$0x3f]
        %v393 = vunpack.c.l.bf16 %v392
        %v394 = vunpack.c.h.bf16 %v392
        %v397 = vlaneseq
        %v398 = vshrl.u32 %v397, 7
        %v399 = vsub.s32 0, %v398
        %v400 = vrot.slane %v393, %v399
        %v401 = vlaneseq
        %v402 = vshrl.u32 %v401, 7
        %v403 = vsub.s32 2, %v402
        %v404 = vrot.slane %v393, %v403
        %v405 = vlaneseq
        %v406 = vshrl.u32 %v405, 7
        %v407 = vsub.s32 4, %v406
        %v408 = vrot.slane %v393, %v407
        %v409 = vlaneseq
        %v410 = vshrl.u32 %v409, 7
        %v411 = vsub.s32 6, %v410
        %v412 = vrot.slane %v393, %v411
        %v413 = vlaneseq
        %v414 = vshrl.u32 %v413, 7
        %v415 = vsub.s32 0, %v414
        %v416 = vrot.slane %v394, %v415
        %v417 = vlaneseq
        %v418 = vshrl.u32 %v417, 7
        %v419 = vsub.s32 2, %v418
        %v420 = vrot.slane %v394, %v419
        %v427 = vlaneseq
        %v428 = vshrl.u32 %v427, 7
        %v429 = vsub.s32 0, %v428
        %v430 = vrot.slane %v400, %v429
        %v431 = vlaneseq
        %v432 = vshrl.u32 %v431, 7
        %v433 = vsub.s32 0, %v432
        %v434 = vrot.slane %v404, %v433
        %v435 = vlaneseq
        %v436 = vshrl.u32 %v435, 7
        %v437 = vsub.s32 0, %v436
        %v438 = vrot.slane %v408, %v437
        %v439 = vlaneseq
        %v440 = vshrl.u32 %v439, 7
        %v441 = vsub.s32 0, %v440
        %v442 = vrot.slane %v412, %v441
        %v443 = vlaneseq
        %v444 = vshrl.u32 %v443, 7
        %v445 = vsub.s32 0, %v444
        %v446 = vrot.slane %v416, %v445
        %v447 = vlaneseq
        %v448 = vshrl.u32 %v447, 7
        %v449 = vsub.s32 0, %v448
        %v450 = vrot.slane %v420, %v449
        %v452 = vunpack.c.l.b16 %v295
        %v453 = vunpack.c.h.b16 %v295
        %v454 = vpack.c.b16 %v452, %v452
        %v455 = vpack.c.b16 %v453, %v453
        %v554 = vunpack.c.l.b16 %v296
        %v555 = vunpack.c.h.b16 %v296
        %v556 = vunpack.c.l.b16 %v297
        %v557 = vunpack.c.h.b16 %v297
        %v558 = vunpack.c.l.b16 %v298
        %v559 = vunpack.c.h.b16 %v298
        %v560 = vunpack.c.l.b16 %v299
        %v561 = vunpack.c.h.b16 %v299
        %v562 = vunpack.c.l.b16 %v300
        %v563 = vunpack.c.h.b16 %v300
        %v564 = vunpack.c.l.b16 %v301
        %v565 = vunpack.c.h.b16 %v301
        %v566 = vunpack.c.l.b16 %v302
        %v567 = vunpack.c.h.b16 %v302
        %v568 = vunpack.c.l.b16 %v303
        %v569 = vunpack.c.h.b16 %v303
        %v570 = vunpack.c.l.b16 %v304
        %v571 = vunpack.c.h.b16 %v304
        %v572 = vunpack.c.l.b16 %v305
        %v573 = vunpack.c.h.b16 %v305
        %v574 = vunpack.c.l.b16 %v306
        %v575 = vunpack.c.h.b16 %v306
        %v576 = vunpack.c.l.b16 %v307
        %v577 = vunpack.c.h.b16 %v307
        %v578 = vunpack.c.l.b16 %v308
        %v579 = vunpack.c.h.b16 %v308
        %v580 = vunpack.c.l.b16 %v309
        %v581 = vunpack.c.h.b16 %v309
        %v582 = vunpack.c.l.b16 %v310
        %v583 = vunpack.c.h.b16 %v310
        %v584 = vunpack.c.l.b16 %v311
        %v585 = vunpack.c.h.b16 %v311
        %v586 = vunpack.c.l.b16 %v312
        %v587 = vunpack.c.h.b16 %v312
        %v588 = vunpack.c.l.b16 %v313
        %v589 = vunpack.c.h.b16 %v313
        %v590 = vunpack.c.l.b16 %v314
        %v591 = vunpack.c.h.b16 %v314
        %v592 = vunpack.c.l.b16 %v315
        %v593 = vunpack.c.h.b16 %v315
        %v594 = vunpack.c.l.b16 %v316
        %v595 = vunpack.c.h.b16 %v316
        %v596 = vunpack.c.l.b16 %v317
        %v597 = vunpack.c.h.b16 %v317
        %v598 = vunpack.c.l.b16 %v318
        %v599 = vunpack.c.h.b16 %v318
        %v600 = vunpack.c.l.b16 %v319
        %v601 = vunpack.c.h.b16 %v319
        %v602 = vunpack.c.l.b16 %v320
        %v603 = vunpack.c.h.b16 %v320
        %v604 = vunpack.c.l.b16 %v321
        %v605 = vunpack.c.h.b16 %v321
        %v606 = vunpack.c.l.b16 %v322
        %v607 = vunpack.c.h.b16 %v322
        %v608 = vunpack.c.l.b16 %v323
        %v609 = vunpack.c.h.b16 %v323
        %v610 = vunpack.c.l.b16 %v324
        %v611 = vunpack.c.h.b16 %v324
        %v612 = vunpack.c.l.b16 %v325
        %v613 = vunpack.c.h.b16 %v325
        %v614 = vunpack.c.l.b16 %v326
        %v615 = vunpack.c.h.b16 %v326
        %v616 = vunpack.c.l.b16 %v327
        %v617 = vunpack.c.h.b16 %v327
        %v618 = vunpack.c.l.b16 %v328
        %v619 = vunpack.c.h.b16 %v328
        %v620 = vunpack.c.l.b16 %v329
        %v621 = vunpack.c.h.b16 %v329
        %v622 = vunpack.c.l.b16 %v330
        %v623 = vunpack.c.h.b16 %v330
        %v624 = vunpack.c.l.b16 %v331
        %v625 = vunpack.c.h.b16 %v331
        %v626 = vunpack.c.l.b16 %v332
        %v627 = vunpack.c.h.b16 %v332
        %v628 = vunpack.c.l.b16 %v333
        %v629 = vunpack.c.h.b16 %v333
        %v630 = vunpack.c.l.b16 %v334
        %v631 = vunpack.c.h.b16 %v334
        %v632 = vunpack.c.l.b16 %v335
        %v633 = vunpack.c.h.b16 %v335
        %v634 = vunpack.c.l.b16 %v336
        %v635 = vunpack.c.h.b16 %v336
        %v636 = vunpack.c.l.b16 %v337
        %v637 = vunpack.c.h.b16 %v337
        %v638 = vunpack.c.l.b16 %v338
        %v639 = vunpack.c.h.b16 %v338
        %v640 = vunpack.c.l.b16 %v339
        %v641 = vunpack.c.h.b16 %v339
        %v642 = vunpack.c.l.b16 %v340
        %v643 = vunpack.c.h.b16 %v340
        %v644 = vunpack.c.l.b16 %v341
        %v645 = vunpack.c.h.b16 %v341
        %v646 = vunpack.c.l.b16 %v342
        %v647 = vunpack.c.h.b16 %v342
        %v648 = vunpack.c.l.b16 %v343
        %v649 = vunpack.c.h.b16 %v343
        %v650 = vunpack.c.l.b16 %v344
        %v651 = vunpack.c.h.b16 %v344
        %v652 = vunpack.c.l.b16 %v345
        %v653 = vunpack.c.h.b16 %v345
        %v654 = vunpack.c.l.b16 %v346
        %v655 = vunpack.c.h.b16 %v346
        %v656 = vunpack.c.l.b16 %v347
        %v657 = vunpack.c.h.b16 %v347
        %v658 = vunpack.c.l.b16 %v348
        %v659 = vunpack.c.h.b16 %v348
        %v660 = vunpack.c.l.b16 %v349
        %v661 = vunpack.c.h.b16 %v349
        %v662 = vunpack.c.l.b16 %v350
        %v663 = vunpack.c.h.b16 %v350
        %v664 = vunpack.c.l.b16 %v351
        %v665 = vunpack.c.h.b16 %v351
        %v666 = vunpack.c.l.b16 %v352
        %v667 = vunpack.c.h.b16 %v352
        %v668 = vunpack.c.l.b16 %v353
        %v669 = vunpack.c.h.b16 %v353
        %v670 = vunpack.c.l.b16 %v354
        %v671 = vunpack.c.h.b16 %v354
        %v672 = vunpack.c.l.b16 %v355
        %v673 = vunpack.c.h.b16 %v355
        %v674 = vunpack.c.l.b16 %v356
        %v675 = vunpack.c.h.b16 %v356
        %v676 = vunpack.c.l.b16 %v357
        %v677 = vunpack.c.h.b16 %v357
        %v678 = vunpack.c.l.b16 %v358
        %v679 = vunpack.c.h.b16 %v358
        %v680 = vunpack.c.l.b16 %v359
        %v681 = vunpack.c.h.b16 %v359
        %v682 = vunpack.c.l.b16 %v360
        %v683 = vunpack.c.h.b16 %v360
        %v684 = vunpack.c.l.b16 %v361
        %v685 = vunpack.c.h.b16 %v361
        %v686 = vunpack.c.l.b16 %v362
        %v687 = vunpack.c.h.b16 %v362
        %v688 = vunpack.c.l.b16 %v363
        %v689 = vunpack.c.h.b16 %v363
        %v690 = vunpack.c.l.b16 %v364
        %v691 = vunpack.c.h.b16 %v364
        %v692 = vunpack.c.l.b16 %v365
        %v693 = vunpack.c.h.b16 %v365
        %v694 = vunpack.c.l.b16 %v366
        %v695 = vunpack.c.h.b16 %v366
        %v696 = vunpack.c.l.b16 %v367
        %v697 = vunpack.c.h.b16 %v367
        %v698 = vunpack.c.l.b16 %v368
        %v699 = vunpack.c.h.b16 %v368
        %v700 = vunpack.c.l.b16 %v369
        %v701 = vunpack.c.h.b16 %v369
        %v702 = vunpack.c.l.b16 %v370
        %v703 = vunpack.c.h.b16 %v370
        %v704 = vunpack.c.l.b16 %v371
        %v705 = vunpack.c.h.b16 %v371
        %v706 = vunpack.c.l.b16 %v372
        %v707 = vunpack.c.h.b16 %v372
        %v708 = vunpack.c.l.b16 %v373
        %v709 = vunpack.c.h.b16 %v373
        %v710 = vunpack.c.l.b16 %v374
        %v711 = vunpack.c.h.b16 %v374
        %v712 = vunpack.c.l.b16 %v375
        %v713 = vunpack.c.h.b16 %v375
        %v714 = vunpack.c.l.b16 %v376
        %v715 = vunpack.c.h.b16 %v376
        %v716 = vunpack.c.l.b16 %v377
        %v717 = vunpack.c.h.b16 %v377
        %v718 = vunpack.c.l.b16 %v378
        %v719 = vunpack.c.h.b16 %v378
        %v720 = vunpack.c.l.b16 %v379
        %v721 = vunpack.c.h.b16 %v379
        %v722 = vunpack.c.l.b16 %v380
        %v723 = vunpack.c.h.b16 %v380
        %v724 = vunpack.c.l.b16 %v381
        %v725 = vunpack.c.h.b16 %v381
        %v726 = vunpack.c.l.b16 %v382
        %v727 = vunpack.c.h.b16 %v382
        %v728 = vunpack.c.l.b16 %v383
        %v729 = vunpack.c.h.b16 %v383
        %v730 = vunpack.c.l.b16 %v384
        %v731 = vunpack.c.h.b16 %v384
        %v732 = vunpack.c.l.b16 %v385
        %v733 = vunpack.c.h.b16 %v385
        %v734 = vunpack.c.l.b16 %v386
        %v735 = vunpack.c.h.b16 %v386
        %v736 = vunpack.c.l.b16 %v387
        %v737 = vunpack.c.h.b16 %v387
        %v738 = vunpack.c.l.b16 %v388
        %v739 = vunpack.c.h.b16 %v388
        %v740 = vunpack.c.l.b16 %v389
        %v741 = vunpack.c.h.b16 %v389
        %v742 = vunpack.c.l.b16 %v390
        %v743 = vunpack.c.h.b16 %v390
        %v744 = vunpack.c.l.b16 %v391
        %v745 = vunpack.c.h.b16 %v391
        %v746 = vpack.c.b16 %v560, %v554
        %v747 = vpack.c.b16 %v561, %v555
        %v748 = vpack.c.b16 %v562, %v556
        %v749 = vpack.c.b16 %v563, %v557
        %v750 = vpack.c.b16 %v564, %v558
        %v751 = vpack.c.b16 %v565, %v559
        %v752 = vpack.c.b16 %v572, %v566
        %v753 = vpack.c.b16 %v573, %v567
        %v754 = vpack.c.b16 %v574, %v568
        %v755 = vpack.c.b16 %v575, %v569
        %v756 = vpack.c.b16 %v576, %v570
        %v757 = vpack.c.b16 %v577, %v571
        %v758 = vpack.c.b16 %v584, %v578
        %v759 = vpack.c.b16 %v585, %v579
        %v760 = vpack.c.b16 %v586, %v580
        %v761 = vpack.c.b16 %v587, %v581
        %v762 = vpack.c.b16 %v588, %v582
        %v763 = vpack.c.b16 %v589, %v583
        %v764 = vpack.c.b16 %v596, %v590
        %v765 = vpack.c.b16 %v597, %v591
        %v766 = vpack.c.b16 %v598, %v592
        %v767 = vpack.c.b16 %v599, %v593
        %v768 = vpack.c.b16 %v600, %v594
        %v769 = vpack.c.b16 %v601, %v595
        %v770 = vpack.c.b16 %v608, %v602
        %v771 = vpack.c.b16 %v609, %v603
        %v772 = vpack.c.b16 %v610, %v604
        %v773 = vpack.c.b16 %v611, %v605
        %v774 = vpack.c.b16 %v612, %v606
        %v775 = vpack.c.b16 %v613, %v607
        %v776 = vpack.c.b16 %v620, %v614
        %v777 = vpack.c.b16 %v621, %v615
        %v778 = vpack.c.b16 %v622, %v616
        %v779 = vpack.c.b16 %v623, %v617
        %v780 = vpack.c.b16 %v624, %v618
        %v781 = vpack.c.b16 %v625, %v619
        %v782 = vpack.c.b16 %v632, %v626
        %v783 = vpack.c.b16 %v633, %v627
        %v784 = vpack.c.b16 %v634, %v628
        %v785 = vpack.c.b16 %v635, %v629
        %v786 = vpack.c.b16 %v636, %v630
        %v787 = vpack.c.b16 %v637, %v631
        %v788 = vpack.c.b16 %v644, %v638
        %v789 = vpack.c.b16 %v645, %v639
        %v790 = vpack.c.b16 %v646, %v640
        %v791 = vpack.c.b16 %v647, %v641
        %v792 = vpack.c.b16 %v648, %v642
        %v793 = vpack.c.b16 %v649, %v643
        %v794 = vpack.c.b16 %v656, %v650
        %v795 = vpack.c.b16 %v657, %v651
        %v796 = vpack.c.b16 %v658, %v652
        %v797 = vpack.c.b16 %v659, %v653
        %v798 = vpack.c.b16 %v660, %v654
        %v799 = vpack.c.b16 %v661, %v655
        %v800 = vpack.c.b16 %v668, %v662
        %v801 = vpack.c.b16 %v669, %v663
        %v802 = vpack.c.b16 %v670, %v664
        %v803 = vpack.c.b16 %v671, %v665
        %v804 = vpack.c.b16 %v672, %v666
        %v805 = vpack.c.b16 %v673, %v667
        %v806 = vpack.c.b16 %v680, %v674
        %v807 = vpack.c.b16 %v681, %v675
        %v808 = vpack.c.b16 %v682, %v676
        %v809 = vpack.c.b16 %v683, %v677
        %v810 = vpack.c.b16 %v684, %v678
        %v811 = vpack.c.b16 %v685, %v679
        %v812 = vpack.c.b16 %v692, %v686
        %v813 = vpack.c.b16 %v693, %v687
        %v814 = vpack.c.b16 %v694, %v688
        %v815 = vpack.c.b16 %v695, %v689
        %v816 = vpack.c.b16 %v696, %v690
        %v817 = vpack.c.b16 %v697, %v691
        %v818 = vpack.c.b16 %v704, %v698
        %v819 = vpack.c.b16 %v705, %v699
        %v820 = vpack.c.b16 %v706, %v700
        %v821 = vpack.c.b16 %v707, %v701
        %v822 = vpack.c.b16 %v708, %v702
        %v823 = vpack.c.b16 %v709, %v703
        %v824 = vpack.c.b16 %v716, %v710
        %v825 = vpack.c.b16 %v717, %v711
        %v826 = vpack.c.b16 %v718, %v712
        %v827 = vpack.c.b16 %v719, %v713
        %v828 = vpack.c.b16 %v720, %v714
        %v829 = vpack.c.b16 %v721, %v715
        %v830 = vpack.c.b16 %v728, %v722
        %v831 = vpack.c.b16 %v729, %v723
        %v832 = vpack.c.b16 %v730, %v724
        %v833 = vpack.c.b16 %v731, %v725
        %v834 = vpack.c.b16 %v732, %v726
        %v835 = vpack.c.b16 %v733, %v727
        %v836 = vpack.c.b16 %v740, %v734
        %v837 = vpack.c.b16 %v741, %v735
        %v838 = vpack.c.b16 %v742, %v736
        %v839 = vpack.c.b16 %v743, %v737
        %v840 = vpack.c.b16 %v744, %v738
        %v841 = vpack.c.b16 %v745, %v739
        %938 = vmatprep.subr.bf16.mxu0 %v747
        %939 = vmatpush1.bf16.msra.mxu0 %v746
        %940 = vmatprep.subr.bf16.mxu0 %v753
        %941 = vmatpush1.bf16.msra.mxu0 %v752
        %942 = vmatprep.subr.bf16.mxu0 %v759
        %943 = vmatpush1.bf16.msra.mxu0 %v758
        %944 = vmatprep.subr.bf16.mxu0 %v765
        %945 = vmatpush1.bf16.msra.mxu0 %v764
        %946 = vmatprep.subr.bf16.mxu0 %v771
        %947 = vmatpush1.bf16.msra.mxu0 %v770
        %948 = vmatprep.subr.bf16.mxu0 %v777
        %949 = vmatpush1.bf16.msra.mxu0 %v776
        %950 = vmatprep.subr.bf16.mxu0 %v783
        %951 = vmatpush1.bf16.msra.mxu0 %v782
        %952 = vmatprep.subr.bf16.mxu0 %v789
        %953 = vmatpush1.bf16.msra.mxu0 %v788
        %954 = vmatprep.subr.bf16.mxu0 %v795
        %955 = vmatpush1.bf16.msra.mxu0 %v794
        %956 = vmatprep.subr.bf16.mxu0 %v801
        %957 = vmatpush1.bf16.msra.mxu0 %v800
        %958 = vmatprep.subr.bf16.mxu0 %v807
        %959 = vmatpush1.bf16.msra.mxu0 %v806
        %960 = vmatprep.subr.bf16.mxu0 %v813
        %961 = vmatpush1.bf16.msra.mxu0 %v812
        %962 = vmatprep.subr.bf16.mxu0 %v819
        %963 = vmatpush1.bf16.msra.mxu0 %v818
        %964 = vmatprep.subr.bf16.mxu0 %v825
        %965 = vmatpush1.bf16.msra.mxu0 %v824
        %966 = vmatprep.subr.bf16.mxu0 %v831
        %967 = vmatpush1.bf16.msra.mxu0 %v830
        %968 = vmatprep.subr.bf16.mxu0 %v837
        %969 = vmatpush1.bf16.msra.mxu0 %v836
        %970 = vmatprep.mubr.bf16.mxu0 %v455
        %971 = vmatmul.mubr.bf16.gmra.mrb[0].mxu0 %v454
        %v972 = vpop.f32.mrb[0].mxu0
        %v973 = vadd.f32 %v430, %v972
        %v974 = vpop.f32.mrb[0].mxu0
        %v975 = vadd.f32 %v434, %v974
        %v976 = vpop.f32.mrb[0].mxu0
        %v977 = vpop.f32.mrb[0].mxu0
        %978 = vdwg.mxu0
        %979 = vmatprep.subr.bf16.mxu0 %v749
        %980 = vmatpush1.bf16.msra.mxu0 %v748
        %981 = vmatprep.subr.bf16.mxu0 %v755
        %982 = vmatpush1.bf16.msra.mxu0 %v754
        %983 = vmatprep.subr.bf16.mxu0 %v761
        %984 = vmatpush1.bf16.msra.mxu0 %v760
        %985 = vmatprep.subr.bf16.mxu0 %v767
        %986 = vmatpush1.bf16.msra.mxu0 %v766
        %987 = vmatprep.subr.bf16.mxu0 %v773
        %988 = vmatpush1.bf16.msra.mxu0 %v772
        %989 = vmatprep.subr.bf16.mxu0 %v779
        %990 = vmatpush1.bf16.msra.mxu0 %v778
        %991 = vmatprep.subr.bf16.mxu0 %v785
        %992 = vmatpush1.bf16.msra.mxu0 %v784
        %993 = vmatprep.subr.bf16.mxu0 %v791
        %994 = vmatpush1.bf16.msra.mxu0 %v790
        %995 = vmatprep.subr.bf16.mxu0 %v797
        %996 = vmatpush1.bf16.msra.mxu0 %v796
        %997 = vmatprep.subr.bf16.mxu0 %v803
        %998 = vmatpush1.bf16.msra.mxu0 %v802
        %999 = vmatprep.subr.bf16.mxu0 %v809
        %1000 = vmatpush1.bf16.msra.mxu0 %v808
        %1001 = vmatprep.subr.bf16.mxu0 %v815
        %1002 = vmatpush1.bf16.msra.mxu0 %v814
        %1003 = vmatprep.subr.bf16.mxu0 %v821
        %1004 = vmatpush1.bf16.msra.mxu0 %v820
        %1005 = vmatprep.subr.bf16.mxu0 %v827
        %1006 = vmatpush1.bf16.msra.mxu0 %v826
        %1007 = vmatprep.subr.bf16.mxu0 %v833
        %1008 = vmatpush1.bf16.msra.mxu0 %v832
        %1009 = vmatprep.subr.bf16.mxu0 %v839
        %1010 = vmatpush1.bf16.msra.mxu0 %v838
        %1011 = vmatprep.mubr.bf16.mxu0 %v455
        %1012 = vmatmul.mubr.bf16.gmra.mrb[0].mxu0 %v454
        %v1013 = vpop.f32.mrb[0].mxu0
        %v1014 = vadd.f32 %v438, %v1013
        %v1015 = vpop.f32.mrb[0].mxu0
        %v1016 = vadd.f32 %v442, %v1015
        %v1017 = vpop.f32.mrb[0].mxu0
        %v1018 = vpop.f32.mrb[0].mxu0
        %1019 = vdwg.mxu0
        %1020 = vmatprep.subr.bf16.mxu0 %v751
        %1021 = vmatpush1.bf16.msra.mxu0 %v750
        %1022 = vmatprep.subr.bf16.mxu0 %v757
        %1023 = vmatpush1.bf16.msra.mxu0 %v756
        %1024 = vmatprep.subr.bf16.mxu0 %v763
        %1025 = vmatpush1.bf16.msra.mxu0 %v762
        %1026 = vmatprep.subr.bf16.mxu0 %v769
        %1027 = vmatpush1.bf16.msra.mxu0 %v768
        %1028 = vmatprep.subr.bf16.mxu0 %v775
        %1029 = vmatpush1.bf16.msra.mxu0 %v774
        %1030 = vmatprep.subr.bf16.mxu0 %v781
        %1031 = vmatpush1.bf16.msra.mxu0 %v780
        %1032 = vmatprep.subr.bf16.mxu0 %v787
        %1033 = vmatpush1.bf16.msra.mxu0 %v786
        %1034 = vmatprep.subr.bf16.mxu0 %v793
        %1035 = vmatpush1.bf16.msra.mxu0 %v792
        %1036 = vmatprep.subr.bf16.mxu0 %v799
        %1037 = vmatpush1.bf16.msra.mxu0 %v798
        %1038 = vmatprep.subr.bf16.mxu0 %v805
        %1039 = vmatpush1.bf16.msra.mxu0 %v804
        %1040 = vmatprep.subr.bf16.mxu0 %v811
        %1041 = vmatpush1.bf16.msra.mxu0 %v810
        %1042 = vmatprep.subr.bf16.mxu0 %v817
        %1043 = vmatpush1.bf16.msra.mxu0 %v816
        %1044 = vmatprep.subr.bf16.mxu0 %v823
        %1045 = vmatpush1.bf16.msra.mxu0 %v822
        %1046 = vmatprep.subr.bf16.mxu0 %v829
        %1047 = vmatpush1.bf16.msra.mxu0 %v828
        %1048 = vmatprep.subr.bf16.mxu0 %v835
        %1049 = vmatpush1.bf16.msra.mxu0 %v834
        %1050 = vmatprep.subr.bf16.mxu0 %v841
        %1051 = vmatpush1.bf16.msra.mxu0 %v840
        %1052 = vmatprep.mubr.bf16.mxu0 %v455
        %1053 = vmatmul.mubr.bf16.gmra.mrb[0].mxu0 %v454
        %v1054 = vpop.f32.mrb[0].mxu0
        %v1055 = vadd.f32 %v446, %v1054
        %v1056 = vpop.f32.mrb[0].mxu0
        %v1057 = vadd.f32 %v450, %v1056
        %v1058 = vpop.f32.mrb[0].mxu0
        %v1059 = vpop.f32.mrb[0].mxu0
        %1060 = vdwg.mxu0
        %v1061 = vmul.f32 %v973, 0.088388346
        %v1062 = vmul.f32 %v975, 0.088388346
        %v1063 = vpack.c.bf16 %v1061, %v1061
        %v1064 = vpack.c.bf16 %v1062, %v1062
        %v1065 = vpack.c.bf16 %v1014, %v1014
        %v1066 = vpack.c.bf16 %v1016, %v1016
        %v1067 = vpack.c.bf16 %v1055, %v1055
        %v1068 = vpack.c.bf16 %v1057, %v1057
        %v1069 = vunpack.c.l.bf16 %v295
        %v1070 = vunpack.c.h.bf16 %v295
        %v1071 = vld [vmem:[%s4] sm:$0x3]
        %v1072 = vunpack.c.l.bf16 %v1071
        %v1074 = vlaneseq
        %v1075 = vshrl.u32 %v1074, 7
        %v1076 = vsub.s32 0, %v1075
        %v1077 = vrot.slane %v1072, %v1076
        %v1078 = vlaneseq
        %v1079 = vshrl.u32 %v1078, 7
        %v1080 = vsub.s32 2, %v1079
        %v1081 = vrot.slane %v1072, %v1080
        %v1084 = vlaneseq
        %v1085 = vshrl.u32 %v1084, 7
        %v1086 = vsub.s32 0, %v1085
        %v1087 = vrot.slane %v1077, %v1086
        %v1088 = vlaneseq
        %v1089 = vshrl.u32 %v1088, 7
        %v1090 = vsub.s32 0, %v1089
        %v1091 = vrot.slane %v1081, %v1090
        %v1092 = vadd.f32 %v1069, %v1087
        %v1093 = vadd.f32 %v1070, %v1091
        %1094 = vmatprep.subr.bf16.mxu0 0
        %1095 = vmatpush1.bf16.xpose.msra.mxu0 %v1065
        %1096 = vmatprep.subr.bf16.mxu0 0
        %1097 = vmatpush1.bf16.xpose.msra.mxu0 0
        %1098 = vmatprep.subr.bf16.mxu0 0
        %1099 = vmatpush1.bf16.xpose.msra.mxu0 0
        %1100 = vmatprep.subr.bf16.mxu0 0
        %1101 = vmatpush1.bf16.xpose.msra.mxu0 0
        %1102 = vmatprep.subr.bf16.mxu0 0
        %1103 = vmatpush1.bf16.xpose.msra.mxu0 0
        %1104 = vmatprep.subr.bf16.mxu0 0
        %1105 = vmatpush1.bf16.xpose.msra.mxu0 0
        %1106 = vmatprep.subr.bf16.mxu0 0
        %1107 = vmatpush1.bf16.xpose.msra.mxu0 0
        %1108 = vmatprep.subr.bf16.mxu0 0
        %1109 = vmatpush1.bf16.xpose.msra.mxu0 0
        %1110 = vmatprep.subr.bf16.mxu0 0
        %1111 = vmatpush1.bf16.xpose.msra.mxu0 0
        %1112 = vmatprep.subr.bf16.mxu0 0
        %1113 = vmatpush1.bf16.xpose.msra.mxu0 0
        %1114 = vmatprep.subr.bf16.mxu0 0
        %1115 = vmatpush1.bf16.xpose.msra.mxu0 0
        %1116 = vmatprep.subr.bf16.mxu0 0
        %1117 = vmatpush1.bf16.xpose.msra.mxu0 0
        %1118 = vmatprep.subr.bf16.mxu0 0
        %1119 = vmatpush1.bf16.xpose.msra.mxu0 0
        %1120 = vmatprep.subr.bf16.mxu0 0
        %1121 = vmatpush1.bf16.xpose.msra.mxu0 0
        %1122 = vmatprep.subr.bf16.mxu0 0
        %1123 = vmatpush1.bf16.xpose.msra.mxu0 0
        %1124 = vmatprep.subr.bf16.mxu0 0
        %1125 = vmatpush1.bf16.xpose.msra.mxu0 0
        %1126 = vmatprep.mubr.bf16.mxu0 0
        %1127 = vmatmul.mubr.bf16.gmra.mrb[0].mxu0 %v1063
        %v1128 = vpop.f32.mrb[0].mxu0
        %v1129 = vadd.f32 0.0, %v1128
        %v1130 = vpop.f32.mrb[0].mxu0
        %v1131 = vpop.f32.mrb[0].mxu0
        %v1132 = vpop.f32.mrb[0].mxu0
        %1133 = vdwg.mxu0
        %vm1134 = vcmask 64512
        %v1135 = vsel %vm1134, %v1129, -inf
        %1136 = vmax.xlane.f32.xlu0 %v1135
        %v1137 = vpop.xlane.xlu0 %1136
        %v1138 = vsub.f32 %v1129, %v1137
        %v1139 = vmul.f32 %v1138, 1.442695
        %v1140 = vpow.pop %v1139
        %v1141 = vsel %vm1134, %v1140, 0.0
        %1142 = vadd.xlane.f32.xlu0 %v1141
        %v1143 = vpop.xlane.xlu0 %1142
        %v1144 = vpack.c.bf16 %v1140, %v1140
        %v1146 = vsel %vm1134, %v1144, 0
        %vm1148 = vcmask 1043456
        %v1150 = vsel %vm1148, %v1067, 0
        %1152 = vmatprep.subr.bf16.mxu0 0
        %1153 = vmatpush1.bf16.msra.mxu0 %v1150
        %1154 = vmatprep.subr.bf16.mxu0 0
        %1155 = vmatpush1.bf16.msra.mxu0 0
        %1156 = vmatprep.subr.bf16.mxu0 0
        %1157 = vmatpush1.bf16.msra.mxu0 0
        %1158 = vmatprep.subr.bf16.mxu0 0
        %1159 = vmatpush1.bf16.msra.mxu0 0
        %1160 = vmatprep.subr.bf16.mxu0 0
        %1161 = vmatpush1.bf16.msra.mxu0 0
        %1162 = vmatprep.subr.bf16.mxu0 0
        %1163 = vmatpush1.bf16.msra.mxu0 0
        %1164 = vmatprep.subr.bf16.mxu0 0
        %1165 = vmatpush1.bf16.msra.mxu0 0
        %1166 = vmatprep.subr.bf16.mxu0 0
        %1167 = vmatpush1.bf16.msra.mxu0 0
        %1168 = vmatprep.subr.bf16.mxu0 0
        %1169 = vmatpush1.bf16.msra.mxu0 0
        %1170 = vmatprep.subr.bf16.mxu0 0
        %1171 = vmatpush1.bf16.msra.mxu0 0
        %1172 = vmatprep.subr.bf16.mxu0 0
        %1173 = vmatpush1.bf16.msra.mxu0 0
        %1174 = vmatprep.subr.bf16.mxu0 0
        %1175 = vmatpush1.bf16.msra.mxu0 0
        %1176 = vmatprep.subr.bf16.mxu0 0
        %1177 = vmatpush1.bf16.msra.mxu0 0
        %1178 = vmatprep.subr.bf16.mxu0 0
        %1179 = vmatpush1.bf16.msra.mxu0 0
        %1180 = vmatprep.subr.bf16.mxu0 0
        %1181 = vmatpush1.bf16.msra.mxu0 0
        %1182 = vmatprep.subr.bf16.mxu0 0
        %1183 = vmatpush1.bf16.msra.mxu0 0
        %1184 = vmatprep.mubr.bf16.mxu0 0
        %1185 = vmatmul.mubr.bf16.gmra.mrb[0].mxu0 %v1146
        %v1186 = vpop.f32.mrb[0].mxu0
        %v1187 = vadd.f32 0.0, %v1186
        %v1188 = vpop.f32.mrb[0].mxu0
        %v1189 = vpop.f32.mrb[0].mxu0
        %v1190 = vpop.f32.mrb[0].mxu0
        %1191 = vdwg.mxu0
        %v1192 = vrcp.pop %v1143
        %v1193 = vmul.f32 %v1187, %v1192
        %v1194 = vpack.c.bf16 %v1193, %v1193
        %v1195 = vld [vmem:[%s3] sm:$0xff]
        %v1196 = vld [vmem:[%s3 + $0x8] sm:$0xff]
        %v1197 = vld [vmem:[%s3 + $0x10] sm:$0xff]
        %v1198 = vld [vmem:[%s3 + $0x18] sm:$0xff]
        %v1199 = vld [vmem:[%s3 + $0x20] sm:$0xff]
        %v1200 = vld [vmem:[%s3 + $0x28] sm:$0xff]
        %v1201 = vld [vmem:[%s3 + $0x30] sm:$0xff]
        %v1202 = vld [vmem:[%s3 + $0x38] sm:$0xff]
        %v1203 = vld [vmem:[%s3 + $0x40] sm:$0xff]
        %v1204 = vld [vmem:[%s3 + $0x48] sm:$0xff]
        %v1205 = vld [vmem:[%s3 + $0x50] sm:$0xff]
        %v1206 = vld [vmem:[%s3 + $0x58] sm:$0xff]
        %v1207 = vld [vmem:[%s3 + $0x60] sm:$0xff]
        %v1208 = vld [vmem:[%s3 + $0x68] sm:$0xff]
        %v1209 = vld [vmem:[%s3 + $0x70] sm:$0xff]
        %v1210 = vld [vmem:[%s3 + $0x78] sm:$0xff]
        %v1227 = vunpack.c.l.b16 %v1195
        %v1228 = vunpack.c.h.b16 %v1195
        %v1229 = vunpack.c.l.b16 %v1196
        %v1230 = vunpack.c.h.b16 %v1196
        %v1231 = vunpack.c.l.b16 %v1197
        %v1232 = vunpack.c.h.b16 %v1197
        %v1233 = vunpack.c.l.b16 %v1198
        %v1234 = vunpack.c.h.b16 %v1198
        %v1235 = vunpack.c.l.b16 %v1199
        %v1236 = vunpack.c.h.b16 %v1199
        %v1237 = vunpack.c.l.b16 %v1200
        %v1238 = vunpack.c.h.b16 %v1200
        %v1239 = vunpack.c.l.b16 %v1201
        %v1240 = vunpack.c.h.b16 %v1201
        %v1241 = vunpack.c.l.b16 %v1202
        %v1242 = vunpack.c.h.b16 %v1202
        %v1243 = vunpack.c.l.b16 %v1203
        %v1244 = vunpack.c.h.b16 %v1203
        %v1245 = vunpack.c.l.b16 %v1204
        %v1246 = vunpack.c.h.b16 %v1204
        %v1247 = vunpack.c.l.b16 %v1205
        %v1248 = vunpack.c.h.b16 %v1205
        %v1249 = vunpack.c.l.b16 %v1206
        %v1250 = vunpack.c.h.b16 %v1206
        %v1251 = vunpack.c.l.b16 %v1207
        %v1252 = vunpack.c.h.b16 %v1207
        %v1253 = vunpack.c.l.b16 %v1208
        %v1254 = vunpack.c.h.b16 %v1208
        %v1255 = vunpack.c.l.b16 %v1209
        %v1256 = vunpack.c.h.b16 %v1209
        %v1257 = vunpack.c.l.b16 %v1210
        %v1258 = vunpack.c.h.b16 %v1210
        %v1259 = vpack.c.b16 %v1229, %v1227
        %v1260 = vpack.c.b16 %v1230, %v1228
        %v1261 = vpack.c.b16 %v1233, %v1231
        %v1262 = vpack.c.b16 %v1234, %v1232
        %v1263 = vpack.c.b16 %v1237, %v1235
        %v1264 = vpack.c.b16 %v1238, %v1236
        %v1265 = vpack.c.b16 %v1241, %v1239
        %v1266 = vpack.c.b16 %v1242, %v1240
        %v1267 = vpack.c.b16 %v1245, %v1243
        %v1268 = vpack.c.b16 %v1246, %v1244
        %v1269 = vpack.c.b16 %v1249, %v1247
        %v1270 = vpack.c.b16 %v1250, %v1248
        %v1271 = vpack.c.b16 %v1253, %v1251
        %v1272 = vpack.c.b16 %v1254, %v1252
        %v1273 = vpack.c.b16 %v1257, %v1255
        %v1274 = vpack.c.b16 %v1258, %v1256
        %1291 = vmatprep.subr.bf16.mxu0 %v1260
        %1292 = vmatpush1.bf16.msra.mxu0 %v1259
        %1293 = vmatprep.subr.bf16.mxu0 %v1262
        %1294 = vmatpush1.bf16.msra.mxu0 %v1261
        %1295 = vmatprep.subr.bf16.mxu0 %v1264
        %1296 = vmatpush1.bf16.msra.mxu0 %v1263
        %1297 = vmatprep.subr.bf16.mxu0 %v1266
        %1298 = vmatpush1.bf16.msra.mxu0 %v1265
        %1299 = vmatprep.subr.bf16.mxu0 %v1268
        %1300 = vmatpush1.bf16.msra.mxu0 %v1267
        %1301 = vmatprep.subr.bf16.mxu0 %v1270
        %1302 = vmatpush1.bf16.msra.mxu0 %v1269
        %1303 = vmatprep.subr.bf16.mxu0 %v1272
        %1304 = vmatpush1.bf16.msra.mxu0 %v1271
        %1305 = vmatprep.subr.bf16.mxu0 %v1274
        %1306 = vmatpush1.bf16.msra.mxu0 %v1273
        %1307 = vmatprep.subr.bf16.mxu0 0
        %1308 = vmatpush1.bf16.msra.mxu0 0
        %1309 = vmatprep.subr.bf16.mxu0 0
        %1310 = vmatpush1.bf16.msra.mxu0 0
        %1311 = vmatprep.subr.bf16.mxu0 0
        %1312 = vmatpush1.bf16.msra.mxu0 0
        %1313 = vmatprep.subr.bf16.mxu0 0
        %1314 = vmatpush1.bf16.msra.mxu0 0
        %1315 = vmatprep.subr.bf16.mxu0 0
        %1316 = vmatpush1.bf16.msra.mxu0 0
        %1317 = vmatprep.subr.bf16.mxu0 0
        %1318 = vmatpush1.bf16.msra.mxu0 0
        %1319 = vmatprep.subr.bf16.mxu0 0
        %1320 = vmatpush1.bf16.msra.mxu0 0
        %1321 = vmatprep.subr.bf16.mxu0 0
        %1322 = vmatpush1.bf16.msra.mxu0 0
        %1323 = vmatprep.mubr.bf16.mxu0 0
        %1324 = vmatmul.mubr.bf16.gmra.mrb[0].mxu0 %v1194
        %v1325 = vpop.f32.mrb[0].mxu0
        %v1326 = vadd.f32 0.0, %v1325
        %v1327 = vpop.f32.mrb[0].mxu0
        %v1328 = vadd.f32 0.0, %v1327
        %v1329 = vpop.f32.mrb[0].mxu0
        %v1330 = vpop.f32.mrb[0].mxu0
        %1331 = vdwg.mxu0
        %v1332 = vadd.f32 %v1092, %v1326
        %v1333 = vadd.f32 %v1093, %v1328
        %1334 = vmatprep.subr.bf16.mxu0 0
        %1335 = vmatpush1.bf16.xpose.msra.mxu0 %v1066
        %1336 = vmatprep.subr.bf16.mxu0 0
        %1337 = vmatpush1.bf16.xpose.msra.mxu0 0
        %1338 = vmatprep.subr.bf16.mxu0 0
        %1339 = vmatpush1.bf16.xpose.msra.mxu0 0
        %1340 = vmatprep.subr.bf16.mxu0 0
        %1341 = vmatpush1.bf16.xpose.msra.mxu0 0
        %1342 = vmatprep.subr.bf16.mxu0 0
        %1343 = vmatpush1.bf16.xpose.msra.mxu0 0
        %1344 = vmatprep.subr.bf16.mxu0 0
        %1345 = vmatpush1.bf16.xpose.msra.mxu0 0
        %1346 = vmatprep.subr.bf16.mxu0 0
        %1347 = vmatpush1.bf16.xpose.msra.mxu0 0
        %1348 = vmatprep.subr.bf16.mxu0 0
        %1349 = vmatpush1.bf16.xpose.msra.mxu0 0
        %1350 = vmatprep.subr.bf16.mxu0 0
        %1351 = vmatpush1.bf16.xpose.msra.mxu0 0
        %1352 = vmatprep.subr.bf16.mxu0 0
        %1353 = vmatpush1.bf16.xpose.msra.mxu0 0
        %1354 = vmatprep.subr.bf16.mxu0 0
        %1355 = vmatpush1.bf16.xpose.msra.mxu0 0
        %1356 = vmatprep.subr.bf16.mxu0 0
        %1357 = vmatpush1.bf16.xpose.msra.mxu0 0
        %1358 = vmatprep.subr.bf16.mxu0 0
        %1359 = vmatpush1.bf16.xpose.msra.mxu0 0
        %1360 = vmatprep.subr.bf16.mxu0 0
        %1361 = vmatpush1.bf16.xpose.msra.mxu0 0
        %1362 = vmatprep.subr.bf16.mxu0 0
        %1363 = vmatpush1.bf16.xpose.msra.mxu0 0
        %1364 = vmatprep.subr.bf16.mxu0 0
        %1365 = vmatpush1.bf16.xpose.msra.mxu0 0
        %1366 = vmatprep.mubr.bf16.mxu0 0
        %1367 = vmatmul.mubr.bf16.gmra.mrb[0].mxu0 %v1064
        %v1368 = vpop.f32.mrb[0].mxu0
        %v1369 = vadd.f32 0.0, %v1368
        %v1370 = vpop.f32.mrb[0].mxu0
        %v1371 = vpop.f32.mrb[0].mxu0
        %v1372 = vpop.f32.mrb[0].mxu0
        %1373 = vdwg.mxu0
        %v1374 = vsel %vm1134, %v1369, -inf
        %1375 = vmax.xlane.f32.xlu0 %v1374
        %v1376 = vpop.xlane.xlu0 %1375
        %v1377 = vsub.f32 %v1369, %v1376
        %v1378 = vmul.f32 %v1377, 1.442695
        %v1379 = vpow.pop %v1378
        %v1380 = vsel %vm1134, %v1379, 0.0
        %1381 = vadd.xlane.f32.xlu0 %v1380
        %v1382 = vpop.xlane.xlu0 %1381
        %v1383 = vpack.c.bf16 %v1379, %v1379
        %v1385 = vsel %vm1134, %v1383, 0
        %v1388 = vsel %vm1148, %v1068, 0
        %1390 = vmatprep.subr.bf16.mxu0 0
        %1391 = vmatpush1.bf16.msra.mxu0 %v1388
        %1392 = vmatprep.subr.bf16.mxu0 0
        %1393 = vmatpush1.bf16.msra.mxu0 0
        %1394 = vmatprep.subr.bf16.mxu0 0
        %1395 = vmatpush1.bf16.msra.mxu0 0
        %1396 = vmatprep.subr.bf16.mxu0 0
        %1397 = vmatpush1.bf16.msra.mxu0 0
        %1398 = vmatprep.subr.bf16.mxu0 0
        %1399 = vmatpush1.bf16.msra.mxu0 0
        %1400 = vmatprep.subr.bf16.mxu0 0
        %1401 = vmatpush1.bf16.msra.mxu0 0
        %1402 = vmatprep.subr.bf16.mxu0 0
        %1403 = vmatpush1.bf16.msra.mxu0 0
        %1404 = vmatprep.subr.bf16.mxu0 0
        %1405 = vmatpush1.bf16.msra.mxu0 0
        %1406 = vmatprep.subr.bf16.mxu0 0
        %1407 = vmatpush1.bf16.msra.mxu0 0
        %1408 = vmatprep.subr.bf16.mxu0 0
        %1409 = vmatpush1.bf16.msra.mxu0 0
        %1410 = vmatprep.subr.bf16.mxu0 0
        %1411 = vmatpush1.bf16.msra.mxu0 0
        %1412 = vmatprep.subr.bf16.mxu0 0
        %1413 = vmatpush1.bf16.msra.mxu0 0
        %1414 = vmatprep.subr.bf16.mxu0 0
        %1415 = vmatpush1.bf16.msra.mxu0 0
        %1416 = vmatprep.subr.bf16.mxu0 0
        %1417 = vmatpush1.bf16.msra.mxu0 0
        %1418 = vmatprep.subr.bf16.mxu0 0
        %1419 = vmatpush1.bf16.msra.mxu0 0
        %1420 = vmatprep.subr.bf16.mxu0 0
        %1421 = vmatpush1.bf16.msra.mxu0 0
        %1422 = vmatprep.mubr.bf16.mxu0 0
        %1423 = vmatmul.mubr.bf16.gmra.mrb[0].mxu0 %v1385
        %v1424 = vpop.f32.mrb[0].mxu0
        %v1425 = vadd.f32 0.0, %v1424
        %v1426 = vpop.f32.mrb[0].mxu0
        %v1427 = vpop.f32.mrb[0].mxu0
        %v1428 = vpop.f32.mrb[0].mxu0
        %1429 = vdwg.mxu0
        %v1430 = vrcp.pop %v1382
        %v1431 = vmul.f32 %v1425, %v1430
        %v1432 = vpack.c.bf16 %v1431, %v1431
        %v1433 = vld [vmem:[%s3 + $0x80] sm:$0xff]
        %v1434 = vld [vmem:[%s3 + $0x88] sm:$0xff]
        %v1435 = vld [vmem:[%s3 + $0x90] sm:$0xff]
        %v1436 = vld [vmem:[%s3 + $0x98] sm:$0xff]
        %v1437 = vld [vmem:[%s3 + $0xa0] sm:$0xff]
        %v1438 = vld [vmem:[%s3 + $0xa8] sm:$0xff]
        %v1439 = vld [vmem:[%s3 + $0xb0] sm:$0xff]
        %v1440 = vld [vmem:[%s3 + $0xb8] sm:$0xff]
        %v1441 = vld [vmem:[%s3 + $0xc0] sm:$0xff]
        %v1442 = vld [vmem:[%s3 + $0xc8] sm:$0xff]
        %v1443 = vld [vmem:[%s3 + $0xd0] sm:$0xff]
        %v1444 = vld [vmem:[%s3 + $0xd8] sm:$0xff]
        %v1445 = vld [vmem:[%s3 + $0xe0] sm:$0xff]
        %v1446 = vld [vmem:[%s3 + $0xe8] sm:$0xff]
        %v1447 = vld [vmem:[%s3 + $0xf0] sm:$0xff]
        %v1448 = vld [vmem:[%s3 + $0xf8] sm:$0xff]
        %v1465 = vunpack.c.l.b16 %v1433
        %v1466 = vunpack.c.h.b16 %v1433
        %v1467 = vunpack.c.l.b16 %v1434
        %v1468 = vunpack.c.h.b16 %v1434
        %v1469 = vunpack.c.l.b16 %v1435
        %v1470 = vunpack.c.h.b16 %v1435
        %v1471 = vunpack.c.l.b16 %v1436
        %v1472 = vunpack.c.h.b16 %v1436
        %v1473 = vunpack.c.l.b16 %v1437
        %v1474 = vunpack.c.h.b16 %v1437
        %v1475 = vunpack.c.l.b16 %v1438
        %v1476 = vunpack.c.h.b16 %v1438
        %v1477 = vunpack.c.l.b16 %v1439
        %v1478 = vunpack.c.h.b16 %v1439
        %v1479 = vunpack.c.l.b16 %v1440
        %v1480 = vunpack.c.h.b16 %v1440
        %v1481 = vunpack.c.l.b16 %v1441
        %v1482 = vunpack.c.h.b16 %v1441
        %v1483 = vunpack.c.l.b16 %v1442
        %v1484 = vunpack.c.h.b16 %v1442
        %v1485 = vunpack.c.l.b16 %v1443
        %v1486 = vunpack.c.h.b16 %v1443
        %v1487 = vunpack.c.l.b16 %v1444
        %v1488 = vunpack.c.h.b16 %v1444
        %v1489 = vunpack.c.l.b16 %v1445
        %v1490 = vunpack.c.h.b16 %v1445
        %v1491 = vunpack.c.l.b16 %v1446
        %v1492 = vunpack.c.h.b16 %v1446
        %v1493 = vunpack.c.l.b16 %v1447
        %v1494 = vunpack.c.h.b16 %v1447
        %v1495 = vunpack.c.l.b16 %v1448
        %v1496 = vunpack.c.h.b16 %v1448
        %v1497 = vpack.c.b16 %v1467, %v1465
        %v1498 = vpack.c.b16 %v1468, %v1466
        %v1499 = vpack.c.b16 %v1471, %v1469
        %v1500 = vpack.c.b16 %v1472, %v1470
        %v1501 = vpack.c.b16 %v1475, %v1473
        %v1502 = vpack.c.b16 %v1476, %v1474
        %v1503 = vpack.c.b16 %v1479, %v1477
        %v1504 = vpack.c.b16 %v1480, %v1478
        %v1505 = vpack.c.b16 %v1483, %v1481
        %v1506 = vpack.c.b16 %v1484, %v1482
        %v1507 = vpack.c.b16 %v1487, %v1485
        %v1508 = vpack.c.b16 %v1488, %v1486
        %v1509 = vpack.c.b16 %v1491, %v1489
        %v1510 = vpack.c.b16 %v1492, %v1490
        %v1511 = vpack.c.b16 %v1495, %v1493
        %v1512 = vpack.c.b16 %v1496, %v1494
        %1529 = vmatprep.subr.bf16.mxu0 %v1498
        %1530 = vmatpush1.bf16.msra.mxu0 %v1497
        %1531 = vmatprep.subr.bf16.mxu0 %v1500
        %1532 = vmatpush1.bf16.msra.mxu0 %v1499
        %1533 = vmatprep.subr.bf16.mxu0 %v1502
        %1534 = vmatpush1.bf16.msra.mxu0 %v1501
        %1535 = vmatprep.subr.bf16.mxu0 %v1504
        %1536 = vmatpush1.bf16.msra.mxu0 %v1503
        %1537 = vmatprep.subr.bf16.mxu0 %v1506
        %1538 = vmatpush1.bf16.msra.mxu0 %v1505
        %1539 = vmatprep.subr.bf16.mxu0 %v1508
        %1540 = vmatpush1.bf16.msra.mxu0 %v1507
        %1541 = vmatprep.subr.bf16.mxu0 %v1510
        %1542 = vmatpush1.bf16.msra.mxu0 %v1509
        %1543 = vmatprep.subr.bf16.mxu0 %v1512
        %1544 = vmatpush1.bf16.msra.mxu0 %v1511
        %1545 = vmatprep.subr.bf16.mxu0 0
        %1546 = vmatpush1.bf16.msra.mxu0 0
        %1547 = vmatprep.subr.bf16.mxu0 0
        %1548 = vmatpush1.bf16.msra.mxu0 0
        %1549 = vmatprep.subr.bf16.mxu0 0
        %1550 = vmatpush1.bf16.msra.mxu0 0
        %1551 = vmatprep.subr.bf16.mxu0 0
        %1552 = vmatpush1.bf16.msra.mxu0 0
        %1553 = vmatprep.subr.bf16.mxu0 0
        %1554 = vmatpush1.bf16.msra.mxu0 0
        %1555 = vmatprep.subr.bf16.mxu0 0
        %1556 = vmatpush1.bf16.msra.mxu0 0
        %1557 = vmatprep.subr.bf16.mxu0 0
        %1558 = vmatpush1.bf16.msra.mxu0 0
        %1559 = vmatprep.subr.bf16.mxu0 0
        %1560 = vmatpush1.bf16.msra.mxu0 0
        %1561 = vmatprep.mubr.bf16.mxu0 0
        %1562 = vmatmul.mubr.bf16.gmra.mrb[0].mxu0 %v1432
        %v1563 = vpop.f32.mrb[0].mxu0
        %v1564 = vadd.f32 0.0, %v1563
        %v1565 = vpop.f32.mrb[0].mxu0
        %v1566 = vadd.f32 0.0, %v1565
        %v1567 = vpop.f32.mrb[0].mxu0
        %v1568 = vpop.f32.mrb[0].mxu0
        %1569 = vdwg.mxu0
        %v1570 = vadd.f32 %v1332, %v1564
        %v1571 = vadd.f32 %v1333, %v1566
        %v1572 = vld [vmem:[%s5] sm:$0x3]
        %v1573 = vunpack.c.l.bf16 %v1572
        %v1574 = vld [vmem:[%s6] sm:$0x3]
        %v1575 = vunpack.c.l.bf16 %v1574
        %v1576 = vadd.f32 %v1570, %v1571
        %1577 = vadd.xlane.f32.xlu0 %v1576
        %v1578 = vpop.xlane.xlu0 %1577
        %v1579 = vrcp.pop 256.0
        %v1580 = vmul.f32 %v1578, %v1579
        %v1581 = vsub.f32 %v1570, %v1580
        %v1582 = vsub.f32 %v1571, %v1580
        %v1583 = vmul.f32 %v1581, %v1581
        %v1584 = vmul.f32 %v1582, %v1582
        %v1585 = vadd.f32 %v1583, %v1584
        %1586 = vadd.xlane.f32.xlu0 %v1585
        %v1587 = vpop.xlane.xlu0 %1586
        %v1588 = vmul.f32 %v1587, %v1579
        %v1589 = vadd.f32 %v1588, 1e-05
        %v1590 = vrsqrt.pop %v1589
        %v1591 = vmul.f32 %v1581, %v1590
        %v1592 = vmul.f32 %v1582, %v1590
        %v1594 = vlaneseq
        %v1595 = vshrl.u32 %v1594, 7
        %v1596 = vsub.s32 0, %v1595
        %v1597 = vrot.slane %v1573, %v1596
        %v1598 = vlaneseq
        %v1599 = vshrl.u32 %v1598, 7
        %v1600 = vsub.s32 2, %v1599
        %v1601 = vrot.slane %v1573, %v1600
        %v1604 = vlaneseq
        %v1605 = vshrl.u32 %v1604, 7
        %v1606 = vsub.s32 0, %v1605
        %v1607 = vrot.slane %v1597, %v1606
        %v1608 = vlaneseq
        %v1609 = vshrl.u32 %v1608, 7
        %v1610 = vsub.s32 0, %v1609
        %v1611 = vrot.slane %v1601, %v1610
        %v1612 = vmul.f32 %v1591, %v1607
        %v1613 = vmul.f32 %v1592, %v1611
        %v1615 = vlaneseq
        %v1616 = vshrl.u32 %v1615, 7
        %v1617 = vsub.s32 0, %v1616
        %v1618 = vrot.slane %v1575, %v1617
        %v1619 = vlaneseq
        %v1620 = vshrl.u32 %v1619, 7
        %v1621 = vsub.s32 2, %v1620
        %v1622 = vrot.slane %v1575, %v1621
        %v1625 = vlaneseq
        %v1626 = vshrl.u32 %v1625, 7
        %v1627 = vsub.s32 0, %v1626
        %v1628 = vrot.slane %v1618, %v1627
        %v1629 = vlaneseq
        %v1630 = vshrl.u32 %v1629, 7
        %v1631 = vsub.s32 0, %v1630
        %v1632 = vrot.slane %v1622, %v1631
        %v1633 = vadd.f32 %v1612, %v1628
        %v1634 = vadd.f32 %v1613, %v1632
        %v1635 = vpack.c.bf16 %v1633, %v1633
        %v1636 = vpack.c.bf16 %v1634, %v1634
        %v1639 = vunpack.c.l.b16 %v1635
        %v1640 = vunpack.c.l.b16 %v1636
        %v1641 = vpack.c.b16 %v1640, %v1639
        %1643 = vst [vmem:[%s293] sm:$0xff] %v1641
        %p1644 = scmp.lt.s32.totalorder %s19, 1
        %s1645 = scalar_select %p1644, %s19, 1
        %s1646 = smul.addr %s1645, 2
        %s1647 = smul.addr %s1646, 4
        %s1648 = scalar_lea.vmem %s7, %s1647
        // Predicated region
        $region53: #{transformer_forward.11} parent=47 // pred_check
          %p1649 = pneg %p189
        $region54: #{transformer_forward.11} parent=47 // pred_check_branch
          %1651 = sbr.rel (%p1649) target = $region56
        $region55: #{transformer_forward.11} parent=47 // pred_region
          _
        $region56: #{transformer_forward.11} parent=47 // pred_fallthru
          _
      $region48: #{transformer_forward.11} parent=5 // pred_fallthru
        _
      %p1652 = scmp.le.s32.totalorder 2, %s14
      // Predicated region
      $region57: #{transformer_forward.11} parent=5 // pred_check
        %p1653 = pneg %p1652
      $region58: #{transformer_forward.11} parent=5 // pred_check_branch
        %1655 = sbr.rel (%p1653) target = $region60
      $region59: #{transformer_forward.11} parent=5 // pred_region
        %s1656 = ssub.s32 %s14, 2
        // Predicated region
        $region61: #{transformer_forward.11} parent=59 // pred_check
          %p1657 = pneg %p195
        $region62: #{transformer_forward.11} parent=59 // pred_check_branch
          %1659 = sbr.rel (%p1657) target = $region64
        $region63: #{transformer_forward.11} parent=59 // pred_region
          %p1660 = scmp.lt.s32.totalorder %s20, 1
          %s1661 = scalar_select %p1660, %s20, 1
          %s1662 = smul.addr %s1661, 2
          %s1663 = smul.addr %s1662, 4
          %s1664 = scalar_lea.vmem %s7, %s1663
        $region64: #{transformer_forward.11} parent=59 // pred_fallthru
          _
      $region60: #{transformer_forward.11} parent=5 // pred_fallthru
        _
    $region6: #{transformer_forward.11} parent=1 // loop_footer
      %s18 = sadd.s32 1, %s14
    $region7: #{transformer_forward.11} parent=1 // loop_footer_branch
      %13 = sbr.rel target = $region3
    $region8: #{transformer_forward.11} parent=1 // loop_exit
      _
    %1665 = vsyncpa [#allocation3], 1
    %s1666 = scalar_lea.sflag [#allocation3], 1
    %1667 = vsyncpa %s1666, 1

// kernel: transformer_forward.21
$region0: #{transformer_forward.21}
  #allocation0 [shape = 'u32[]', space=smem, size = 0x4, offset = 0x4, fixed_abs, tag = 'smem constant byte address 0x4 - core index']
  #allocation1 [shape = 'u32[144,128]{1,0:T(1,128)}', space=vmem, size = 0x12000, scoped, tag = 'internal scratch']
  #allocation2 [shape = 'f32[16,128]{1,0:T(8,128)}', space=vmem, size = 0x2000, scoped, tag = 'scratch operand']
  %s0 = inlined_call_operand.vmem [shape: bf16[16,256], index: 0, kind: input, shape index: {}]
  %s1 = inlined_call_operand.vmem [shape: bf16[256,128], index: 1, kind: input, shape index: {}]
  %s2 = inlined_call_operand.vmem [shape: bf16[1,128], index: 2, kind: input, shape index: {}]
  %s3 = inlined_call_operand.vmem [shape: f32[16,128], index: 3, kind: output, shape index: {}]
  %s4 = sld [smem:[#allocation0]]
  $region30: #{transformer_forward.21} parent=0
    _
  %s6 = ssub.s32 1, %s4
  %s7 = scalar_select 0, %s6, %s4
  // Predicated region
  $region2: #{transformer_forward.21} parent=0 // pred_check
    _
  $region3: #{transformer_forward.21} parent=0 // pred_check_branch
    %9 = sbr.rel (0) target = $region5
  $region4: #{transformer_forward.21} parent=0 // pred_region
    _
  $region5: #{transformer_forward.21} parent=0 // pred_fallthru
    _
  // Predicated region
  $region6: #{transformer_forward.21} parent=0 // pred_check
    _
  $region7: #{transformer_forward.21} parent=0 // pred_check_branch
    %11 = sbr.rel (0) target = $region9
  $region8: #{transformer_forward.21} parent=0 // pred_region
    _
  $region9: #{transformer_forward.21} parent=0 // pred_fallthru
    _
  // Predicated region
  $region10: #{transformer_forward.21} parent=0 // pred_check
    _
  $region11: #{transformer_forward.21} parent=0 // pred_check_branch
    %13 = sbr.rel (0) target = $region13
  $region12: #{transformer_forward.21} parent=0 // pred_region
    _
  $region13: #{transformer_forward.21} parent=0 // pred_fallthru
    _
  %p15 = scmp.eq.s32.totalorder 0, 0
  // Predicated region
  $region14: #{transformer_forward.21} parent=0 // pred_check
    %p16 = pneg %p15
  $region15: #{transformer_forward.21} parent=0 // pred_check_branch
    %18 = sbr.rel (%p16) target = $region17
  $region16: #{transformer_forward.21} parent=0 // pred_region
    %19 = vst [vmem:[#allocation2] sm:$0xff] 0.0
    %20 = vst [vmem:[#allocation2 + $0x8] sm:$0xff] 0.0
  $region17: #{transformer_forward.21} parent=0 // pred_fallthru
    _
  %v21 = vld [vmem:[#allocation2] sm:$0xff]
  %v22 = vld [vmem:[#allocation2 + $0x8] sm:$0xff]
  %v23 = vld [vmem:[%s0] sm:$0xff]
  %v24 = vld [vmem:[%s0 + $0x8] sm:$0xff]
  %v25 = vld [vmem:[%s1] sm:$0xf]
  %v26 = vld [vmem:[%s1 + $0x4] sm:$0xf]
  %v27 = vld [vmem:[%s1 + $0x8] sm:$0xf]
  %v28 = vld [vmem:[%s1 + $0xc] sm:$0xf]
  %v29 = vld [vmem:[%s1 + $0x10] sm:$0xf]
  %v30 = vld [vmem:[%s1 + $0x14] sm:$0xf]
  %v31 = vld [vmem:[%s1 + $0x18] sm:$0xf]
  %v32 = vld [vmem:[%s1 + $0x1c] sm:$0xf]
  %v33 = vld [vmem:[%s1 + $0x20] sm:$0xf]
  %v34 = vld [vmem:[%s1 + $0x24] sm:$0xf]
  %v35 = vld [vmem:[%s1 + $0x28] sm:$0xf]
  %v36 = vld [vmem:[%s1 + $0x2c] sm:$0xf]
  %v37 = vld [vmem:[%s1 + $0x30] sm:$0xf]
  %v38 = vld [vmem:[%s1 + $0x34] sm:$0xf]
  %v39 = vld [vmem:[%s1 + $0x38] sm:$0xf]
  %v40 = vld [vmem:[%s1 + $0x3c] sm:$0xf]
  %v41 = vld [vmem:[%s1 + $0x40] sm:$0xf]
  %v42 = vld [vmem:[%s1 + $0x44] sm:$0xf]
  %v43 = vld [vmem:[%s1 + $0x48] sm:$0xf]
  %v44 = vld [vmem:[%s1 + $0x4c] sm:$0xf]
  %v45 = vld [vmem:[%s1 + $0x50] sm:$0xf]
  %v46 = vld [vmem:[%s1 + $0x54] sm:$0xf]
  %v47 = vld [vmem:[%s1 + $0x58] sm:$0xf]
  %v48 = vld [vmem:[%s1 + $0x5c] sm:$0xf]
  %v49 = vld [vmem:[%s1 + $0x60] sm:$0xf]
  %v50 = vld [vmem:[%s1 + $0x64] sm:$0xf]
  %v51 = vld [vmem:[%s1 + $0x68] sm:$0xf]
  %v52 = vld [vmem:[%s1 + $0x6c] sm:$0xf]
  %v53 = vld [vmem:[%s1 + $0x70] sm:$0xf]
  %v54 = vld [vmem:[%s1 + $0x74] sm:$0xf]
  %v55 = vld [vmem:[%s1 + $0x78] sm:$0xf]
  %v56 = vld [vmem:[%s1 + $0x7c] sm:$0xf]
  %v59 = vunpack.c.l.b16 %v23
  %v60 = vunpack.c.h.b16 %v23
  %v61 = vunpack.c.l.b16 %v24
  %v62 = vunpack.c.h.b16 %v24
  %v63 = vpack.c.b16 %v61, %v59
  %v64 = vpack.c.b16 %v62, %v60
  %v99 = vunpack.c.l.b16 %v25
  %v100 = vunpack.c.l.b16 %v26
  %v101 = vunpack.c.l.b16 %v27
  %v102 = vunpack.c.l.b16 %v28
  %v103 = vunpack.c.l.b16 %v29
  %v104 = vunpack.c.l.b16 %v30
  %v105 = vunpack.c.l.b16 %v31
  %v106 = vunpack.c.l.b16 %v32
  %v107 = vunpack.c.l.b16 %v33
  %v108 = vunpack.c.l.b16 %v34
  %v109 = vunpack.c.l.b16 %v35
  %v110 = vunpack.c.l.b16 %v36
  %v111 = vunpack.c.l.b16 %v37
  %v112 = vunpack.c.l.b16 %v38
  %v113 = vunpack.c.l.b16 %v39
  %v114 = vunpack.c.l.b16 %v40
  %v115 = vunpack.c.l.b16 %v41
  %v116 = vunpack.c.l.b16 %v42
  %v117 = vunpack.c.l.b16 %v43
  %v118 = vunpack.c.l.b16 %v44
  %v119 = vunpack.c.l.b16 %v45
  %v120 = vunpack.c.l.b16 %v46
  %v121 = vunpack.c.l.b16 %v47
  %v122 = vunpack.c.l.b16 %v48
  %v123 = vunpack.c.l.b16 %v49
  %v124 = vunpack.c.l.b16 %v50
  %v125 = vunpack.c.l.b16 %v51
  %v126 = vunpack.c.l.b16 %v52
  %v127 = vunpack.c.l.b16 %v53
  %v128 = vunpack.c.l.b16 %v54
  %v129 = vunpack.c.l.b16 %v55
  %v130 = vunpack.c.l.b16 %v56
  %v131 = vpack.c.b16 %v100, %v99
  %v132 = vpack.c.b16 %v102, %v101
  %v133 = vpack.c.b16 %v104, %v103
  %v134 = vpack.c.b16 %v106, %v105
  %v135 = vpack.c.b16 %v108, %v107
  %v136 = vpack.c.b16 %v110, %v109
  %v137 = vpack.c.b16 %v112, %v111
  %v138 = vpack.c.b16 %v114, %v113
  %v139 = vpack.c.b16 %v116, %v115
  %v140 = vpack.c.b16 %v118, %v117
  %v141 = vpack.c.b16 %v120, %v119
  %v142 = vpack.c.b16 %v122, %v121
  %v143 = vpack.c.b16 %v124, %v123
  %v144 = vpack.c.b16 %v126, %v125
  %v145 = vpack.c.b16 %v128, %v127
  %v146 = vpack.c.b16 %v130, %v129
  %163 = vmatprep.subr.bf16.mxu0 0
  %164 = vmatpush1.bf16.msra.mxu0 %v131
  %165 = vmatprep.subr.bf16.mxu0 0
  %166 = vmatpush1.bf16.msra.mxu0 %v132
  %167 = vmatprep.subr.bf16.mxu0 0
  %168 = vmatpush1.bf16.msra.mxu0 %v133
  %169 = vmatprep.subr.bf16.mxu0 0
  %170 = vmatpush1.bf16.msra.mxu0 %v134
  %171 = vmatprep.subr.bf16.mxu0 0
  %172 = vmatpush1.bf16.msra.mxu0 %v135
  %173 = vmatprep.subr.bf16.mxu0 0
  %174 = vmatpush1.bf16.msra.mxu0 %v136
  %175 = vmatprep.subr.bf16.mxu0 0
  %176 = vmatpush1.bf16.msra.mxu0 %v137
  %177 = vmatprep.subr.bf16.mxu0 0
  %178 = vmatpush1.bf16.msra.mxu0 %v138
  %179 = vmatprep.subr.bf16.mxu0 0
  %180 = vmatpush1.bf16.msra.mxu0 %v139
  %181 = vmatprep.subr.bf16.mxu0 0
  %182 = vmatpush1.bf16.msra.mxu0 %v140
  %183 = vmatprep.subr.bf16.mxu0 0
  %184 = vmatpush1.bf16.msra.mxu0 %v141
  %185 = vmatprep.subr.bf16.mxu0 0
  %186 = vmatpush1.bf16.msra.mxu0 %v142
  %187 = vmatprep.subr.bf16.mxu0 0
  %188 = vmatpush1.bf16.msra.mxu0 %v143
  %189 = vmatprep.subr.bf16.mxu0 0
  %190 = vmatpush1.bf16.msra.mxu0 %v144
  %191 = vmatprep.subr.bf16.mxu0 0
  %192 = vmatpush1.bf16.msra.mxu0 %v145
  %193 = vmatprep.subr.bf16.mxu0 0
  %194 = vmatpush1.bf16.msra.mxu0 %v146
  %195 = vmatprep.mubr.bf16.mxu0 %v64
  %196 = vmatmul.mubr.bf16.gmra.mrb[0].mxu0 %v63
  %v197 = vpop.f32.mrb[0].mxu0
  %v198 = vadd.f32 0.0, %v197
  %v199 = vpop.f32.mrb[0].mxu0
  %v200 = vpop.f32.mrb[0].mxu0
  %v201 = vadd.f32 0.0, %v200
  %v202 = vpop.f32.mrb[0].mxu0
  %203 = vdwg.mxu0
  %v204 = vadd.f32 %v21, %v198
  %v205 = vadd.f32 %v22, %v201
  %206 = vst [vmem:[#allocation2] sm:$0xff] %v204
  %207 = vst [vmem:[#allocation2 + $0x8] sm:$0xff] %v205
  // Predicated region
  $region18: #{transformer_forward.21} parent=0 // pred_check
    %p208 = pneg %p15
  $region19: #{transformer_forward.21} parent=0 // pred_check_branch
    %210 = sbr.rel (%p208) target = $region21
  $region20: #{transformer_forward.21} parent=0 // pred_region
    %v211 = vld [vmem:[#allocation2] sm:$0xff]
    %v212 = vld [vmem:[#allocation2 + $0x8] sm:$0xff]
    %v213 = vld [vmem:[%s2] sm:$0x1]
    %v214 = vunpack.c.l.bf16 %v213
    %v215 = vlaneseq
    %v216 = vshrl.u32 %v215, 7
    %v217 = vsub.s32 0, %v216
    %v218 = vrot.slane %v214, %v217
    %v219 = vadd.f32 %v211, %v218
    %v220 = vadd.f32 %v212, %v218
    %221 = vst [vmem:[%s3] sm:$0xff] %v219
    %222 = vst [vmem:[%s3 + $0x8] sm:$0xff] %v220
  $region21: #{transformer_forward.21} parent=0 // pred_fallthru
    _
  // Predicated region
  $region22: #{transformer_forward.21} parent=0 // pred_check
    _
  $region23: #{transformer_forward.21} parent=0 // pred_check_branch
    %224 = sbr.rel (0) target = $region25
  $region24: #{transformer_forward.21} parent=0 // pred_region
    _
  $region25: #{transformer_forward.21} parent=0 // pred_fallthru
    _
  // Predicated region
  $region26: #{transformer_forward.21} parent=0 // pred_check
    _
  $region27: #{transformer_forward.21} parent=0 // pred_check_branch
    %226 = sbr.rel (0) target = $region29
  $region28: #{transformer_forward.21} parent=0 // pred_region
    _
  $region29: #{transformer_forward.21} parent=0 // pred_fallthru
    _

</llo_original>
